<compile_context>
chip_gen: v5e
topology: v5e:2x2
jax: 0.10.0
libtpu: 0.0.40
codegen_flags: <defaults>
</compile_context>

<pallas_src>
import math

import jax
import jax.numpy as jnp
from jax.experimental import pallas as pl
from jax.experimental.pallas import tpu as pltpu

NUM_LAYERS = 3
INPUT_DIM = 1
HIDDEN_DIM = 128   # matches the module
OUTPUT_DIM = 1


def lstm_forward_kernel(x_ref,        # (T*B, 1)   time-major, flattened
                        w_ih0_ref,    # (1, 4H)    layer-0 input weight row (g-block x2)
                        b0_ref,       # (1, 4H)    b_ih0 + b_hh0            (g-block x2)
                        w_hh0_ref,    # (H, 4H)    layer-0 recurrent weight (g-block x2)
                        w1_ref,       # (2H, 4H)   layer-1 [W_ih; W_hh] stacked (g x2)
                        b1_ref,       # (1, 4H)
                        w2_ref,       # (2H, 4H)   layer-2 stacked
                        b2_ref,       # (1, 4H)
                        w_lin_ref,    # (1, H)
                        b_lin_ref,    # (1, 1)
                        out_ref):     # (B, 1)
    B = out_ref.shape[0]
    H = w_hh0_ref.shape[0]
    T = x_ref.shape[0] // B
    G = 4 * H

    # Layer-0 input projection: input_dim == 1, so x @ W_ih0^T is a rank-1
    # broadcast multiply (pure VPU).  Computed once, bias folded in, entirely
    # off the recurrence critical path.
    x_proj = x_ref[...] * w_ih0_ref[...] + b0_ref[...]          # (T*B, 4H)

    # Hoist bias broadcasts out of the (unrolled) loop.
    b1 = jnp.broadcast_to(b1_ref[...], (B, G))
    b2 = jnp.broadcast_to(b2_ref[...], (B, G))

    def gates_to_hc(gates, c):
        # One EUP pass over all four gate blocks.  The g-gate columns of the
        # weights/bias were pre-scaled by 2, so tanh(g) == 2*sigmoid(2g) - 1.
        s = jax.nn.sigmoid(gates)
        i = s[:, 0:H]
        f = s[:, H:2 * H]
        g = 2.0 * s[:, 2 * H:3 * H] - 1.0
        o = s[:, 3 * H:4 * H]
        c_new = f * c + i * g
        h_new = o * jnp.tanh(c_new)
        return h_new, c_new

    zeros = jnp.zeros((B, H), jnp.float32)
    h0, c0, h1, c1, h2, c2 = zeros, zeros, zeros, zeros, zeros, zeros

    # T is tiny and static -> full Python unroll so the scheduler sees the
    # whole cross-step dependency DAG.
    for t in range(T):
        g0 = x_proj[t * B:(t + 1) * B, :] + jnp.dot(
            h0, w_hh0_ref[...], preferred_element_type=jnp.float32)
        h0, c0 = gates_to_hc(g0, c0)

        g1 = jnp.dot(jnp.concatenate([h0, h1], axis=-1), w1_ref[...],
                     preferred_element_type=jnp.float32) + b1
        h1, c1 = gates_to_hc(g1, c1)

        g2 = jnp.dot(jnp.concatenate([h1, h2], axis=-1), w2_ref[...],
                     preferred_element_type=jnp.float32) + b2
        h2, c2 = gates_to_hc(g2, c2)

    # Final Linear (output_dim == 1): VPU multiply + lane reduction instead of
    # an N=1 MXU matmul + masked-store-heavy path.
    out = jnp.sum(h2 * w_lin_ref[...], axis=-1, keepdims=True) + b_lin_ref[...]
    out_ref[...] = out.astype(out_ref.dtype)


def init_params(key, input_dim=INPUT_DIM, hidden_dim=HIDDEN_DIM,
                output_dim=OUTPUT_DIM, num_layers=NUM_LAYERS):
    """Deterministic params, PyTorch-style U(-1/sqrt(H), 1/sqrt(H))."""
    params = {}
    k = 1.0 / math.sqrt(hidden_dim)
    for l in range(num_layers):
        in_dim = input_dim if l == 0 else hidden_dim
        key, k1, k2, k3, k4 = jax.random.split(key, 5)
        params[f'w_ih_l{l}'] = jax.random.uniform(k1, (4 * hidden_dim, in_dim),
                                                  jnp.float32, -k, k)
        params[f'w_hh_l{l}'] = jax.random.uniform(k2, (4 * hidden_dim, hidden_dim),
                                                  jnp.float32, -k, k)
        params[f'b_ih_l{l}'] = jax.random.uniform(k3, (4 * hidden_dim,),
                                                  jnp.float32, -k, k)
        params[f'b_hh_l{l}'] = jax.random.uniform(k4, (4 * hidden_dim,),
                                                  jnp.float32, -k, k)
    key, k1, k2 = jax.random.split(key, 3)
    kl = 1.0 / math.sqrt(hidden_dim)
    params['w_lin'] = jax.random.uniform(k1, (output_dim, hidden_dim),
                                         jnp.float32, -kl, kl)
    params['b_lin'] = jax.random.uniform(k2, (output_dim,), jnp.float32, -kl, kl)
    return params


def stock_price_lstm_forward(x, params):
    """x: (B, T, input_dim) float32, batch_first (same as the PyTorch module)."""
    B, T, input_dim = x.shape
    H = params['w_hh_l0'].shape[1]
    out_dim = params['w_lin'].shape[0]
    assert input_dim == 1 and out_dim == 1, "kernel is specialised to the module dims"

    # Pad batch to a full sublane multiple (8) -> no masked sub-tile ops.
    B_pad = max(8, -(-B // 8) * 8)
    xf = x.astype(jnp.float32)
    if B_pad != B:
        xf = jnp.concatenate(
            [xf, jnp.zeros((B_pad - B, T, input_dim), jnp.float32)], axis=0)

    # time-major, flattened to 2D: row t*B_pad + b  ==  x[b, t, :]
    x_flat = jnp.transpose(xf, (1, 0, 2)).reshape(T * B_pad, input_dim)

    def scale_g(a):
        # pre-scale the g-gate block by 2 along the 4H axis so the kernel can
        # use a single sigmoid for all gates (tanh(x) = 2*sigmoid(2x) - 1)
        return jnp.concatenate(
            [a[..., :2 * H], 2.0 * a[..., 2 * H:3 * H], a[..., 3 * H:]], axis=-1)

    # layer 0: input_dim == 1 -> keep W_ih as a single (1, 4H) row
    w_ih0 = scale_g(params['w_ih_l0'].T.reshape(1, 4 * H))
    b0 = scale_g((params['b_ih_l0'] + params['b_hh_l0']).reshape(1, 4 * H))
    w_hh0 = scale_g(params['w_hh_l0'].T)                               # (H, 4H)

    def fused(l):
        w = jnp.concatenate([params[f'w_ih_l{l}'].T,
                             params[f'w_hh_l{l}'].T], axis=0)          # (2H, 4H)
        b = (params[f'b_ih_l{l}'] + params[f'b_hh_l{l}']).reshape(1, 4 * H)
        return scale_g(w), scale_g(b)

    w1, b1 = fused(1)
    w2, b2 = fused(2)

    w_lin_row = params['w_lin'].reshape(1, H)                          # (1, H)
    b_lin = params['b_lin'].reshape(1, 1)

    args = [x_flat, w_ih0, b0, w_hh0, w1, b1, w2, b2, w_lin_row, b_lin]
    vmem = pl.BlockSpec(memory_space=pltpu.MemorySpace.VMEM)
    out = pl.pallas_call(
        lstm_forward_kernel,
        out_shape=jax.ShapeDtypeStruct((B_pad, out_dim), jnp.float32),
        in_specs=[vmem] * len(args),
        out_specs=vmem,
    )(*args)
    return out[:B]


def reference_forward(x, params):
    """Pure-JAX reference mirroring torch.nn.LSTM + Linear semantics."""
    B, T, _ = x.shape
    H = params['w_hh_l0'].shape[1]
    h = [jnp.zeros((B, H), jnp.float32) for _ in range(NUM_LAYERS)]
    c = [jnp.zeros((B, H), jnp.float32) for _ in range(NUM_LAYERS)]
    for t in range(T):
        inp = x[:, t, :]
        for l in range(NUM_LAYERS):
            gates = (inp @ params[f'w_ih_l{l}'].T + params[f'b_ih_l{l}']
                     + h[l] @ params[f'w_hh_l{l}'].T + params[f'b_hh_l{l}'])
            i, f, g, o = jnp.split(gates, 4, axis=1)
            c[l] = jax.nn.sigmoid(f) * c[l] + jax.nn.sigmoid(i) * jnp.tanh(g)
            h[l] = jax.nn.sigmoid(o) * jnp.tanh(c[l])
            inp = h[l]
    return h[-1] @ params['w_lin'].T + params['b_lin']


if __name__ == "__main__":
    key = jax.random.PRNGKey(0)
    kp, kx = jax.random.split(key)

    batch, seq = 4, 8
    params = init_params(kp)
    x = jax.random.normal(kx, (batch, seq, INPUT_DIM), jnp.float32)

    out = stock_price_lstm_forward(x, params)
    out = jax.block_until_ready(out)

    ref = reference_forward(x, params)
    assert out.shape == (batch, OUTPUT_DIM)
    assert jnp.allclose(out, ref, atol=1e-4, rtol=1e-4), (out, ref)
    print("KERNEL_OK")
</pallas_src>

<mosaic_0001>
module attributes {stable_mosaic.version = 11 : i64} {
  func.func @lstm_forward_kernel(%arg0: memref<64x1xf32, #tpu.memory_space<vmem>>, %arg1: memref<1x512xf32, #tpu.memory_space<vmem>>, %arg2: memref<1x512xf32, #tpu.memory_space<vmem>>, %arg3: memref<128x512xf32, #tpu.memory_space<vmem>>, %arg4: memref<256x512xf32, #tpu.memory_space<vmem>>, %arg5: memref<1x512xf32, #tpu.memory_space<vmem>>, %arg6: memref<256x512xf32, #tpu.memory_space<vmem>>, %arg7: memref<1x512xf32, #tpu.memory_space<vmem>>, %arg8: memref<1x128xf32, #tpu.memory_space<vmem>>, %arg9: memref<1x1xf32, #tpu.memory_space<vmem>>, %arg10: memref<8x1xf32, #tpu.memory_space<vmem>>) attributes {dimension_semantics = [], scalar_prefetch = 0 : i64, scratch_operands = 0 : i64, tpu.core_type = #tpu.core_type<tc>} {
    %c0 = arith.constant 0 : index
    %c0_0 = arith.constant 0 : index
    %0 = vector.load %arg0[%c0, %c0_0] : memref<64x1xf32, #tpu.memory_space<vmem>>, vector<64x1xf32>
    %c0_1 = arith.constant 0 : index
    %c0_2 = arith.constant 0 : index
    %1 = vector.load %arg1[%c0_1, %c0_2] : memref<1x512xf32, #tpu.memory_space<vmem>>, vector<1x512xf32>
    %2 = vector.broadcast %0 : vector<64x1xf32> to vector<64x512xf32>
    %3 = vector.broadcast %1 : vector<1x512xf32> to vector<64x512xf32>
    %4 = arith.mulf %2, %3 : vector<64x512xf32>
    %c0_3 = arith.constant 0 : index
    %c0_4 = arith.constant 0 : index
    %5 = vector.load %arg2[%c0_3, %c0_4] : memref<1x512xf32, #tpu.memory_space<vmem>>, vector<1x512xf32>
    %6 = vector.broadcast %5 : vector<1x512xf32> to vector<64x512xf32>
    %7 = arith.addf %4, %6 : vector<64x512xf32>
    %c0_5 = arith.constant 0 : index
    %c0_6 = arith.constant 0 : index
    %8 = vector.load %arg5[%c0_5, %c0_6] : memref<1x512xf32, #tpu.memory_space<vmem>>, vector<1x512xf32>
    %9 = vector.shape_cast %8 : vector<1x512xf32> to vector<1x512xf32>
    %10 = vector.broadcast %9 : vector<1x512xf32> to vector<8x512xf32>
    %c0_7 = arith.constant 0 : index
    %c0_8 = arith.constant 0 : index
    %11 = vector.load %arg7[%c0_7, %c0_8] : memref<1x512xf32, #tpu.memory_space<vmem>>, vector<1x512xf32>
    %12 = vector.shape_cast %11 : vector<1x512xf32> to vector<1x512xf32>
    %13 = vector.broadcast %12 : vector<1x512xf32> to vector<8x512xf32>
    %cst = arith.constant 0.000000e+00 : f32
    %14 = vector.broadcast %cst : f32 to vector<8x128xf32>
    %15 = vector.extract_strided_slice %7 {offsets = [0, 0], sizes = [8, 512], strides = [1, 1]} : vector<64x512xf32> to vector<8x512xf32>
    %c0_9 = arith.constant 0 : index
    %c0_10 = arith.constant 0 : index
    %16 = vector.load %arg3[%c0_9, %c0_10] : memref<128x512xf32, #tpu.memory_space<vmem>>, vector<128x512xf32>
    %cst_11 = arith.constant dense<0.000000e+00> : vector<8x512xf32>
    %17 = tpu.matmul %14, %16, %cst_11 {dimension_numbers = #tpu.dot_dimension_numbers<[1], [0], [0], [1], [0, 0, 1, 1], [], []>} : vector<8x128xf32>, vector<128x512xf32>, vector<8x512xf32> -> vector<8x512xf32>
    %18 = arith.addf %15, %17 : vector<8x512xf32>
    %19 = arith.negf %18 : vector<8x512xf32>
    %20 = math.exp %19 : vector<8x512xf32>
    %cst_12 = arith.constant 1.000000e+00 : f32
    %21 = vector.broadcast %cst_12 : f32 to vector<8x512xf32>
    %22 = arith.addf %21, %20 : vector<8x512xf32>
    %23 = arith.divf %21, %22 : vector<8x512xf32>
    %24 = vector.extract_strided_slice %23 {offsets = [0, 0], sizes = [8, 128], strides = [1, 1]} : vector<8x512xf32> to vector<8x128xf32>
    %25 = vector.extract_strided_slice %23 {offsets = [0, 128], sizes = [8, 128], strides = [1, 1]} : vector<8x512xf32> to vector<8x128xf32>
    %26 = vector.extract_strided_slice %23 {offsets = [0, 256], sizes = [8, 128], strides = [1, 1]} : vector<8x512xf32> to vector<8x128xf32>
    %cst_13 = arith.constant 2.000000e+00 : f32
    %27 = vector.broadcast %cst_13 : f32 to vector<8x128xf32>
    %28 = arith.mulf %27, %26 : vector<8x128xf32>
    %cst_14 = arith.constant 1.000000e+00 : f32
    %29 = vector.broadcast %cst_14 : f32 to vector<8x128xf32>
    %30 = arith.subf %28, %29 : vector<8x128xf32>
    %31 = vector.extract_strided_slice %23 {offsets = [0, 384], sizes = [8, 128], strides = [1, 1]} : vector<8x512xf32> to vector<8x128xf32>
    %32 = arith.mulf %25, %14 : vector<8x128xf32>
    %33 = arith.mulf %24, %30 : vector<8x128xf32>
    %34 = arith.addf %32, %33 : vector<8x128xf32>
    %35 = math.tanh %34 : vector<8x128xf32>
    %36 = arith.mulf %31, %35 : vector<8x128xf32>
    %37 = tpu.concatenate %36, %14 in 1 : vector<8x128xf32>, vector<8x128xf32> -> vector<8x256xf32>
    %c0_15 = arith.constant 0 : index
    %c0_16 = arith.constant 0 : index
    %38 = vector.load %arg4[%c0_15, %c0_16] : memref<256x512xf32, #tpu.memory_space<vmem>>, vector<256x512xf32>
    %cst_17 = arith.constant dense<0.000000e+00> : vector<8x512xf32>
    %39 = tpu.matmul %37, %38, %cst_17 {dimension_numbers = #tpu.dot_dimension_numbers<[1], [0], [0], [1], [0, 0, 1, 1], [], []>} : vector<8x256xf32>, vector<256x512xf32>, vector<8x512xf32> -> vector<8x512xf32>
    %40 = arith.addf %39, %10 : vector<8x512xf32>
    %41 = arith.negf %40 : vector<8x512xf32>
    %42 = math.exp %41 : vector<8x512xf32>
    %cst_18 = arith.constant 1.000000e+00 : f32
    %43 = vector.broadcast %cst_18 : f32 to vector<8x512xf32>
    %44 = arith.addf %43, %42 : vector<8x512xf32>
    %45 = arith.divf %43, %44 : vector<8x512xf32>
    %46 = vector.extract_strided_slice %45 {offsets = [0, 0], sizes = [8, 128], strides = [1, 1]} : vector<8x512xf32> to vector<8x128xf32>
    %47 = vector.extract_strided_slice %45 {offsets = [0, 128], sizes = [8, 128], strides = [1, 1]} : vector<8x512xf32> to vector<8x128xf32>
    %48 = vector.extract_strided_slice %45 {offsets = [0, 256], sizes = [8, 128], strides = [1, 1]} : vector<8x512xf32> to vector<8x128xf32>
    %cst_19 = arith.constant 2.000000e+00 : f32
    %49 = vector.broadcast %cst_19 : f32 to vector<8x128xf32>
    %50 = arith.mulf %49, %48 : vector<8x128xf32>
    %cst_20 = arith.constant 1.000000e+00 : f32
    %51 = vector.broadcast %cst_20 : f32 to vector<8x128xf32>
    %52 = arith.subf %50, %51 : vector<8x128xf32>
    %53 = vector.extract_strided_slice %45 {offsets = [0, 384], sizes = [8, 128], strides = [1, 1]} : vector<8x512xf32> to vector<8x128xf32>
    %54 = arith.mulf %47, %14 : vector<8x128xf32>
    %55 = arith.mulf %46, %52 : vector<8x128xf32>
    %56 = arith.addf %54, %55 : vector<8x128xf32>
    %57 = math.tanh %56 : vector<8x128xf32>
    %58 = arith.mulf %53, %57 : vector<8x128xf32>
    %59 = tpu.concatenate %58, %14 in 1 : vector<8x128xf32>, vector<8x128xf32> -> vector<8x256xf32>
    %c0_21 = arith.constant 0 : index
    %c0_22 = arith.constant 0 : index
    %60 = vector.load %arg6[%c0_21, %c0_22] : memref<256x512xf32, #tpu.memory_space<vmem>>, vector<256x512xf32>
    %cst_23 = arith.constant dense<0.000000e+00> : vector<8x512xf32>
    %61 = tpu.matmul %59, %60, %cst_23 {dimension_numbers = #tpu.dot_dimension_numbers<[1], [0], [0], [1], [0, 0, 1, 1], [], []>} : vector<8x256xf32>, vector<256x512xf32>, vector<8x512xf32> -> vector<8x512xf32>
    %62 = arith.addf %61, %13 : vector<8x512xf32>
    %63 = arith.negf %62 : vector<8x512xf32>
    %64 = math.exp %63 : vector<8x512xf32>
    %cst_24 = arith.constant 1.000000e+00 : f32
    %65 = vector.broadcast %cst_24 : f32 to vector<8x512xf32>
    %66 = arith.addf %65, %64 : vector<8x512xf32>
    %67 = arith.divf %65, %66 : vector<8x512xf32>
    %68 = vector.extract_strided_slice %67 {offsets = [0, 0], sizes = [8, 128], strides = [1, 1]} : vector<8x512xf32> to vector<8x128xf32>
    %69 = vector.extract_strided_slice %67 {offsets = [0, 128], sizes = [8, 128], strides = [1, 1]} : vector<8x512xf32> to vector<8x128xf32>
    %70 = vector.extract_strided_slice %67 {offsets = [0, 256], sizes = [8, 128], strides = [1, 1]} : vector<8x512xf32> to vector<8x128xf32>
    %cst_25 = arith.constant 2.000000e+00 : f32
    %71 = vector.broadcast %cst_25 : f32 to vector<8x128xf32>
    %72 = arith.mulf %71, %70 : vector<8x128xf32>
    %cst_26 = arith.constant 1.000000e+00 : f32
    %73 = vector.broadcast %cst_26 : f32 to vector<8x128xf32>
    %74 = arith.subf %72, %73 : vector<8x128xf32>
    %75 = vector.extract_strided_slice %67 {offsets = [0, 384], sizes = [8, 128], strides = [1, 1]} : vector<8x512xf32> to vector<8x128xf32>
    %76 = arith.mulf %69, %14 : vector<8x128xf32>
    %77 = arith.mulf %68, %74 : vector<8x128xf32>
    %78 = arith.addf %76, %77 : vector<8x128xf32>
    %79 = math.tanh %78 : vector<8x128xf32>
    %80 = arith.mulf %75, %79 : vector<8x128xf32>
    %81 = vector.extract_strided_slice %7 {offsets = [8, 0], sizes = [8, 512], strides = [1, 1]} : vector<64x512xf32> to vector<8x512xf32>
    %c0_27 = arith.constant 0 : index
    %c0_28 = arith.constant 0 : index
    %82 = vector.load %arg3[%c0_27, %c0_28] : memref<128x512xf32, #tpu.memory_space<vmem>>, vector<128x512xf32>
    %cst_29 = arith.constant dense<0.000000e+00> : vector<8x512xf32>
    %83 = tpu.matmul %36, %82, %cst_29 {dimension_numbers = #tpu.dot_dimension_numbers<[1], [0], [0], [1], [0, 0, 1, 1], [], []>} : vector<8x128xf32>, vector<128x512xf32>, vector<8x512xf32> -> vector<8x512xf32>
    %84 = arith.addf %81, %83 : vector<8x512xf32>
    %85 = arith.negf %84 : vector<8x512xf32>
    %86 = math.exp %85 : vector<8x512xf32>
    %cst_30 = arith.constant 1.000000e+00 : f32
    %87 = vector.broadcast %cst_30 : f32 to vector<8x512xf32>
    %88 = arith.addf %87, %86 : vector<8x512xf32>
    %89 = arith.divf %87, %88 : vector<8x512xf32>
    %90 = vector.extract_strided_slice %89 {offsets = [0, 0], sizes = [8, 128], strides = [1, 1]} : vector<8x512xf32> to vector<8x128xf32>
    %91 = vector.extract_strided_slice %89 {offsets = [0, 128], sizes = [8, 128], strides = [1, 1]} : vector<8x512xf32> to vector<8x128xf32>
    %92 = vector.extract_strided_slice %89 {offsets = [0, 256], sizes = [8, 128], strides = [1, 1]} : vector<8x512xf32> to vector<8x128xf32>
    %cst_31 = arith.constant 2.000000e+00 : f32
    %93 = vector.broadcast %cst_31 : f32 to vector<8x128xf32>
    %94 = arith.mulf %93, %92 : vector<8x128xf32>
    %cst_32 = arith.constant 1.000000e+00 : f32
    %95 = vector.broadcast %cst_32 : f32 to vector<8x128xf32>
    %96 = arith.subf %94, %95 : vector<8x128xf32>
    %97 = vector.extract_strided_slice %89 {offsets = [0, 384], sizes = [8, 128], strides = [1, 1]} : vector<8x512xf32> to vector<8x128xf32>
    %98 = arith.mulf %91, %34 : vector<8x128xf32>
    %99 = arith.mulf %90, %96 : vector<8x128xf32>
    %100 = arith.addf %98, %99 : vector<8x128xf32>
    %101 = math.tanh %100 : vector<8x128xf32>
    %102 = arith.mulf %97, %101 : vector<8x128xf32>
    %103 = tpu.concatenate %102, %58 in 1 : vector<8x128xf32>, vector<8x128xf32> -> vector<8x256xf32>
    %c0_33 = arith.constant 0 : index
    %c0_34 = arith.constant 0 : index
    %104 = vector.load %arg4[%c0_33, %c0_34] : memref<256x512xf32, #tpu.memory_space<vmem>>, vector<256x512xf32>
    %cst_35 = arith.constant dense<0.000000e+00> : vector<8x512xf32>
    %105 = tpu.matmul %103, %104, %cst_35 {dimension_numbers = #tpu.dot_dimension_numbers<[1], [0], [0], [1], [0, 0, 1, 1], [], []>} : vector<8x256xf32>, vector<256x512xf32>, vector<8x512xf32> -> vector<8x512xf32>
    %106 = arith.addf %105, %10 : vector<8x512xf32>
    %107 = arith.negf %106 : vector<8x512xf32>
    %108 = math.exp %107 : vector<8x512xf32>
    %cst_36 = arith.constant 1.000000e+00 : f32
    %109 = vector.broadcast %cst_36 : f32 to vector<8x512xf32>
    %110 = arith.addf %109, %108 : vector<8x512xf32>
    %111 = arith.divf %109, %110 : vector<8x512xf32>
    %112 = vector.extract_strided_slice %111 {offsets = [0, 0], sizes = [8, 128], strides = [1, 1]} : vector<8x512xf32> to vector<8x128xf32>
    %113 = vector.extract_strided_slice %111 {offsets = [0, 128], sizes = [8, 128], strides = [1, 1]} : vector<8x512xf32> to vector<8x128xf32>
    %114 = vector.extract_strided_slice %111 {offsets = [0, 256], sizes = [8, 128], strides = [1, 1]} : vector<8x512xf32> to vector<8x128xf32>
    %cst_37 = arith.constant 2.000000e+00 : f32
    %115 = vector.broadcast %cst_37 : f32 to vector<8x128xf32>
    %116 = arith.mulf %115, %114 : vector<8x128xf32>
    %cst_38 = arith.constant 1.000000e+00 : f32
    %117 = vector.broadcast %cst_38 : f32 to vector<8x128xf32>
    %118 = arith.subf %116, %117 : vector<8x128xf32>
    %119 = vector.extract_strided_slice %111 {offsets = [0, 384], sizes = [8, 128], strides = [1, 1]} : vector<8x512xf32> to vector<8x128xf32>
    %120 = arith.mulf %113, %56 : vector<8x128xf32>
    %121 = arith.mulf %112, %118 : vector<8x128xf32>
    %122 = arith.addf %120, %121 : vector<8x128xf32>
    %123 = math.tanh %122 : vector<8x128xf32>
    %124 = arith.mulf %119, %123 : vector<8x128xf32>
    %125 = tpu.concatenate %124, %80 in 1 : vector<8x128xf32>, vector<8x128xf32> -> vector<8x256xf32>
    %c0_39 = arith.constant 0 : index
    %c0_40 = arith.constant 0 : index
    %126 = vector.load %arg6[%c0_39, %c0_40] : memref<256x512xf32, #tpu.memory_space<vmem>>, vector<256x512xf32>
    %cst_41 = arith.constant dense<0.000000e+00> : vector<8x512xf32>
    %127 = tpu.matmul %125, %126, %cst_41 {dimension_numbers = #tpu.dot_dimension_numbers<[1], [0], [0], [1], [0, 0, 1, 1], [], []>} : vector<8x256xf32>, vector<256x512xf32>, vector<8x512xf32> -> vector<8x512xf32>
    %128 = arith.addf %127, %13 : vector<8x512xf32>
    %129 = arith.negf %128 : vector<8x512xf32>
    %130 = math.exp %129 : vector<8x512xf32>
    %cst_42 = arith.constant 1.000000e+00 : f32
    %131 = vector.broadcast %cst_42 : f32 to vector<8x512xf32>
    %132 = arith.addf %131, %130 : vector<8x512xf32>
    %133 = arith.divf %131, %132 : vector<8x512xf32>
    %134 = vector.extract_strided_slice %133 {offsets = [0, 0], sizes = [8, 128], strides = [1, 1]} : vector<8x512xf32> to vector<8x128xf32>
    %135 = vector.extract_strided_slice %133 {offsets = [0, 128], sizes = [8, 128], strides = [1, 1]} : vector<8x512xf32> to vector<8x128xf32>
    %136 = vector.extract_strided_slice %133 {offsets = [0, 256], sizes = [8, 128], strides = [1, 1]} : vector<8x512xf32> to vector<8x128xf32>
    %cst_43 = arith.constant 2.000000e+00 : f32
    %137 = vector.broadcast %cst_43 : f32 to vector<8x128xf32>
    %138 = arith.mulf %137, %136 : vector<8x128xf32>
    %cst_44 = arith.constant 1.000000e+00 : f32
    %139 = vector.broadcast %cst_44 : f32 to vector<8x128xf32>
    %140 = arith.subf %138, %139 : vector<8x128xf32>
    %141 = vector.extract_strided_slice %133 {offsets = [0, 384], sizes = [8, 128], strides = [1, 1]} : vector<8x512xf32> to vector<8x128xf32>
    %142 = arith.mulf %135, %78 : vector<8x128xf32>
    %143 = arith.mulf %134, %140 : vector<8x128xf32>
    %144 = arith.addf %142, %143 : vector<8x128xf32>
    %145 = math.tanh %144 : vector<8x128xf32>
    %146 = arith.mulf %141, %145 : vector<8x128xf32>
    %147 = vector.extract_strided_slice %7 {offsets = [16, 0], sizes = [8, 512], strides = [1, 1]} : vector<64x512xf32> to vector<8x512xf32>
    %c0_45 = arith.constant 0 : index
    %c0_46 = arith.constant 0 : index
    %148 = vector.load %arg3[%c0_45, %c0_46] : memref<128x512xf32, #tpu.memory_space<vmem>>, vector<128x512xf32>
    %cst_47 = arith.constant dense<0.000000e+00> : vector<8x512xf32>
    %149 = tpu.matmul %102, %148, %cst_47 {dimension_numbers = #tpu.dot_dimension_numbers<[1], [0], [0], [1], [0, 0, 1, 1], [], []>} : vector<8x128xf32>, vector<128x512xf32>, vector<8x512xf32> -> vector<8x512xf32>
    %150 = arith.addf %147, %149 : vector<8x512xf32>
    %151 = arith.negf %150 : vector<8x512xf32>
    %152 = math.exp %151 : vector<8x512xf32>
    %cst_48 = arith.constant 1.000000e+00 : f32
    %153 = vector.broadcast %cst_48 : f32 to vector<8x512xf32>
    %154 = arith.addf %153, %152 : vector<8x512xf32>
    %155 = arith.divf %153, %154 : vector<8x512xf32>
    %156 = vector.extract_strided_slice %155 {offsets = [0, 0], sizes = [8, 128], strides = [1, 1]} : vector<8x512xf32> to vector<8x128xf32>
    %157 = vector.extract_strided_slice %155 {offsets = [0, 128], sizes = [8, 128], strides = [1, 1]} : vector<8x512xf32> to vector<8x128xf32>
    %158 = vector.extract_strided_slice %155 {offsets = [0, 256], sizes = [8, 128], strides = [1, 1]} : vector<8x512xf32> to vector<8x128xf32>
    %cst_49 = arith.constant 2.000000e+00 : f32
    %159 = vector.broadcast %cst_49 : f32 to vector<8x128xf32>
    %160 = arith.mulf %159, %158 : vector<8x128xf32>
    %cst_50 = arith.constant 1.000000e+00 : f32
    %161 = vector.broadcast %cst_50 : f32 to vector<8x128xf32>
    %162 = arith.subf %160, %161 : vector<8x128xf32>
    %163 = vector.extract_strided_slice %155 {offsets = [0, 384], sizes = [8, 128], strides = [1, 1]} : vector<8x512xf32> to vector<8x128xf32>
    %164 = arith.mulf %157, %100 : vector<8x128xf32>
    %165 = arith.mulf %156, %162 : vector<8x128xf32>
    %166 = arith.addf %164, %165 : vector<8x128xf32>
    %167 = math.tanh %166 : vector<8x128xf32>
    %168 = arith.mulf %163, %167 : vector<8x128xf32>
    %169 = tpu.concatenate %168, %124 in 1 : vector<8x128xf32>, vector<8x128xf32> -> vector<8x256xf32>
    %c0_51 = arith.constant 0 : index
    %c0_52 = arith.constant 0 : index
    %170 = vector.load %arg4[%c0_51, %c0_52] : memref<256x512xf32, #tpu.memory_space<vmem>>, vector<256x512xf32>
    %cst_53 = arith.constant dense<0.000000e+00> : vector<8x512xf32>
    %171 = tpu.matmul %169, %170, %cst_53 {dimension_numbers = #tpu.dot_dimension_numbers<[1], [0], [0], [1], [0, 0, 1, 1], [], []>} : vector<8x256xf32>, vector<256x512xf32>, vector<8x512xf32> -> vector<8x512xf32>
    %172 = arith.addf %171, %10 : vector<8x512xf32>
    %173 = arith.negf %172 : vector<8x512xf32>
    %174 = math.exp %173 : vector<8x512xf32>
    %cst_54 = arith.constant 1.000000e+00 : f32
    %175 = vector.broadcast %cst_54 : f32 to vector<8x512xf32>
    %176 = arith.addf %175, %174 : vector<8x512xf32>
    %177 = arith.divf %175, %176 : vector<8x512xf32>
    %178 = vector.extract_strided_slice %177 {offsets = [0, 0], sizes = [8, 128], strides = [1, 1]} : vector<8x512xf32> to vector<8x128xf32>
    %179 = vector.extract_strided_slice %177 {offsets = [0, 128], sizes = [8, 128], strides = [1, 1]} : vector<8x512xf32> to vector<8x128xf32>
    %180 = vector.extract_strided_slice %177 {offsets = [0, 256], sizes = [8, 128], strides = [1, 1]} : vector<8x512xf32> to vector<8x128xf32>
    %cst_55 = arith.constant 2.000000e+00 : f32
    %181 = vector.broadcast %cst_55 : f32 to vector<8x128xf32>
    %182 = arith.mulf %181, %180 : vector<8x128xf32>
    %cst_56 = arith.constant 1.000000e+00 : f32
    %183 = vector.broadcast %cst_56 : f32 to vector<8x128xf32>
    %184 = arith.subf %182, %183 : vector<8x128xf32>
    %185 = vector.extract_strided_slice %177 {offsets = [0, 384], sizes = [8, 128], strides = [1, 1]} : vector<8x512xf32> to vector<8x128xf32>
    %186 = arith.mulf %179, %122 : vector<8x128xf32>
    %187 = arith.mulf %178, %184 : vector<8x128xf32>
    %188 = arith.addf %186, %187 : vector<8x128xf32>
    %189 = math.tanh %188 : vector<8x128xf32>
    %190 = arith.mulf %185, %189 : vector<8x128xf32>
    %191 = tpu.concatenate %190, %146 in 1 : vector<8x128xf32>, vector<8x128xf32> -> vector<8x256xf32>
    %c0_57 = arith.constant 0 : index
    %c0_58 = arith.constant 0 : index
    %192 = vector.load %arg6[%c0_57, %c0_58] : memref<256x512xf32, #tpu.memory_space<vmem>>, vector<256x512xf32>
    %cst_59 = arith.constant dense<0.000000e+00> : vector<8x512xf32>
    %193 = tpu.matmul %191, %192, %cst_59 {dimension_numbers = #tpu.dot_dimension_numbers<[1], [0], [0], [1], [0, 0, 1, 1], [], []>} : vector<8x256xf32>, vector<256x512xf32>, vector<8x512xf32> -> vector<8x512xf32>
    %194 = arith.addf %193, %13 : vector<8x512xf32>
    %195 = arith.negf %194 : vector<8x512xf32>
    %196 = math.exp %195 : vector<8x512xf32>
    %cst_60 = arith.constant 1.000000e+00 : f32
    %197 = vector.broadcast %cst_60 : f32 to vector<8x512xf32>
    %198 = arith.addf %197, %196 : vector<8x512xf32>
    %199 = arith.divf %197, %198 : vector<8x512xf32>
    %200 = vector.extract_strided_slice %199 {offsets = [0, 0], sizes = [8, 128], strides = [1, 1]} : vector<8x512xf32> to vector<8x128xf32>
    %201 = vector.extract_strided_slice %199 {offsets = [0, 128], sizes = [8, 128], strides = [1, 1]} : vector<8x512xf32> to vector<8x128xf32>
    %202 = vector.extract_strided_slice %199 {offsets = [0, 256], sizes = [8, 128], strides = [1, 1]} : vector<8x512xf32> to vector<8x128xf32>
    %cst_61 = arith.constant 2.000000e+00 : f32
    %203 = vector.broadcast %cst_61 : f32 to vector<8x128xf32>
    %204 = arith.mulf %203, %202 : vector<8x128xf32>
    %cst_62 = arith.constant 1.000000e+00 : f32
    %205 = vector.broadcast %cst_62 : f32 to vector<8x128xf32>
    %206 = arith.subf %204, %205 : vector<8x128xf32>
    %207 = vector.extract_strided_slice %199 {offsets = [0, 384], sizes = [8, 128], strides = [1, 1]} : vector<8x512xf32> to vector<8x128xf32>
    %208 = arith.mulf %201, %144 : vector<8x128xf32>
    %209 = arith.mulf %200, %206 : vector<8x128xf32>
    %210 = arith.addf %208, %209 : vector<8x128xf32>
    %211 = math.tanh %210 : vector<8x128xf32>
    %212 = arith.mulf %207, %211 : vector<8x128xf32>
    %213 = vector.extract_strided_slice %7 {offsets = [24, 0], sizes = [8, 512], strides = [1, 1]} : vector<64x512xf32> to vector<8x512xf32>
    %c0_63 = arith.constant 0 : index
    %c0_64 = arith.constant 0 : index
    %214 = vector.load %arg3[%c0_63, %c0_64] : memref<128x512xf32, #tpu.memory_space<vmem>>, vector<128x512xf32>
    %cst_65 = arith.constant dense<0.000000e+00> : vector<8x512xf32>
    %215 = tpu.matmul %168, %214, %cst_65 {dimension_numbers = #tpu.dot_dimension_numbers<[1], [0], [0], [1], [0, 0, 1, 1], [], []>} : vector<8x128xf32>, vector<128x512xf32>, vector<8x512xf32> -> vector<8x512xf32>
    %216 = arith.addf %213, %215 : vector<8x512xf32>
    %217 = arith.negf %216 : vector<8x512xf32>
    %218 = math.exp %217 : vector<8x512xf32>
    %cst_66 = arith.constant 1.000000e+00 : f32
    %219 = vector.broadcast %cst_66 : f32 to vector<8x512xf32>
    %220 = arith.addf %219, %218 : vector<8x512xf32>
    %221 = arith.divf %219, %220 : vector<8x512xf32>
    %222 = vector.extract_strided_slice %221 {offsets = [0, 0], sizes = [8, 128], strides = [1, 1]} : vector<8x512xf32> to vector<8x128xf32>
    %223 = vector.extract_strided_slice %221 {offsets = [0, 128], sizes = [8, 128], strides = [1, 1]} : vector<8x512xf32> to vector<8x128xf32>
    %224 = vector.extract_strided_slice %221 {offsets = [0, 256], sizes = [8, 128], strides = [1, 1]} : vector<8x512xf32> to vector<8x128xf32>
    %cst_67 = arith.constant 2.000000e+00 : f32
    %225 = vector.broadcast %cst_67 : f32 to vector<8x128xf32>
    %226 = arith.mulf %225, %224 : vector<8x128xf32>
    %cst_68 = arith.constant 1.000000e+00 : f32
    %227 = vector.broadcast %cst_68 : f32 to vector<8x128xf32>
    %228 = arith.subf %226, %227 : vector<8x128xf32>
    %229 = vector.extract_strided_slice %221 {offsets = [0, 384], sizes = [8, 128], strides = [1, 1]} : vector<8x512xf32> to vector<8x128xf32>
    %230 = arith.mulf %223, %166 : vector<8x128xf32>
    %231 = arith.mulf %222, %228 : vector<8x128xf32>
    %232 = arith.addf %230, %231 : vector<8x128xf32>
    %233 = math.tanh %232 : vector<8x128xf32>
    %234 = arith.mulf %229, %233 : vector<8x128xf32>
    %235 = tpu.concatenate %234, %190 in 1 : vector<8x128xf32>, vector<8x128xf32> -> vector<8x256xf32>
    %c0_69 = arith.constant 0 : index
    %c0_70 = arith.constant 0 : index
    %236 = vector.load %arg4[%c0_69, %c0_70] : memref<256x512xf32, #tpu.memory_space<vmem>>, vector<256x512xf32>
    %cst_71 = arith.constant dense<0.000000e+00> : vector<8x512xf32>
    %237 = tpu.matmul %235, %236, %cst_71 {dimension_numbers = #tpu.dot_dimension_numbers<[1], [0], [0], [1], [0, 0, 1, 1], [], []>} : vector<8x256xf32>, vector<256x512xf32>, vector<8x512xf32> -> vector<8x512xf32>
    %238 = arith.addf %237, %10 : vector<8x512xf32>
    %239 = arith.negf %238 : vector<8x512xf32>
    %240 = math.exp %239 : vector<8x512xf32>
    %cst_72 = arith.constant 1.000000e+00 : f32
    %241 = vector.broadcast %cst_72 : f32 to vector<8x512xf32>
    %242 = arith.addf %241, %240 : vector<8x512xf32>
    %243 = arith.divf %241, %242 : vector<8x512xf32>
    %244 = vector.extract_strided_slice %243 {offsets = [0, 0], sizes = [8, 128], strides = [1, 1]} : vector<8x512xf32> to vector<8x128xf32>
    %245 = vector.extract_strided_slice %243 {offsets = [0, 128], sizes = [8, 128], strides = [1, 1]} : vector<8x512xf32> to vector<8x128xf32>
    %246 = vector.extract_strided_slice %243 {offsets = [0, 256], sizes = [8, 128], strides = [1, 1]} : vector<8x512xf32> to vector<8x128xf32>
    %cst_73 = arith.constant 2.000000e+00 : f32
    %247 = vector.broadcast %cst_73 : f32 to vector<8x128xf32>
    %248 = arith.mulf %247, %246 : vector<8x128xf32>
    %cst_74 = arith.constant 1.000000e+00 : f32
    %249 = vector.broadcast %cst_74 : f32 to vector<8x128xf32>
    %250 = arith.subf %248, %249 : vector<8x128xf32>
    %251 = vector.extract_strided_slice %243 {offsets = [0, 384], sizes = [8, 128], strides = [1, 1]} : vector<8x512xf32> to vector<8x128xf32>
    %252 = arith.mulf %245, %188 : vector<8x128xf32>
    %253 = arith.mulf %244, %250 : vector<8x128xf32>
    %254 = arith.addf %252, %253 : vector<8x128xf32>
    %255 = math.tanh %254 : vector<8x128xf32>
    %256 = arith.mulf %251, %255 : vector<8x128xf32>
    %257 = tpu.concatenate %256, %212 in 1 : vector<8x128xf32>, vector<8x128xf32> -> vector<8x256xf32>
    %c0_75 = arith.constant 0 : index
    %c0_76 = arith.constant 0 : index
    %258 = vector.load %arg6[%c0_75, %c0_76] : memref<256x512xf32, #tpu.memory_space<vmem>>, vector<256x512xf32>
    %cst_77 = arith.constant dense<0.000000e+00> : vector<8x512xf32>
    %259 = tpu.matmul %257, %258, %cst_77 {dimension_numbers = #tpu.dot_dimension_numbers<[1], [0], [0], [1], [0, 0, 1, 1], [], []>} : vector<8x256xf32>, vector<256x512xf32>, vector<8x512xf32> -> vector<8x512xf32>
    %260 = arith.addf %259, %13 : vector<8x512xf32>
    %261 = arith.negf %260 : vector<8x512xf32>
    %262 = math.exp %261 : vector<8x512xf32>
    %cst_78 = arith.constant 1.000000e+00 : f32
    %263 = vector.broadcast %cst_78 : f32 to vector<8x512xf32>
    %264 = arith.addf %263, %262 : vector<8x512xf32>
    %265 = arith.divf %263, %264 : vector<8x512xf32>
    %266 = vector.extract_strided_slice %265 {offsets = [0, 0], sizes = [8, 128], strides = [1, 1]} : vector<8x512xf32> to vector<8x128xf32>
    %267 = vector.extract_strided_slice %265 {offsets = [0, 128], sizes = [8, 128], strides = [1, 1]} : vector<8x512xf32> to vector<8x128xf32>
    %268 = vector.extract_strided_slice %265 {offsets = [0, 256], sizes = [8, 128], strides = [1, 1]} : vector<8x512xf32> to vector<8x128xf32>
    %cst_79 = arith.constant 2.000000e+00 : f32
    %269 = vector.broadcast %cst_79 : f32 to vector<8x128xf32>
    %270 = arith.mulf %269, %268 : vector<8x128xf32>
    %cst_80 = arith.constant 1.000000e+00 : f32
    %271 = vector.broadcast %cst_80 : f32 to vector<8x128xf32>
    %272 = arith.subf %270, %271 : vector<8x128xf32>
    %273 = vector.extract_strided_slice %265 {offsets = [0, 384], sizes = [8, 128], strides = [1, 1]} : vector<8x512xf32> to vector<8x128xf32>
    %274 = arith.mulf %267, %210 : vector<8x128xf32>
    %275 = arith.mulf %266, %272 : vector<8x128xf32>
    %276 = arith.addf %274, %275 : vector<8x128xf32>
    %277 = math.tanh %276 : vector<8x128xf32>
    %278 = arith.mulf %273, %277 : vector<8x128xf32>
    %279 = vector.extract_strided_slice %7 {offsets = [32, 0], sizes = [8, 512], strides = [1, 1]} : vector<64x512xf32> to vector<8x512xf32>
    %c0_81 = arith.constant 0 : index
    %c0_82 = arith.constant 0 : index
    %280 = vector.load %arg3[%c0_81, %c0_82] : memref<128x512xf32, #tpu.memory_space<vmem>>, vector<128x512xf32>
    %cst_83 = arith.constant dense<0.000000e+00> : vector<8x512xf32>
    %281 = tpu.matmul %234, %280, %cst_83 {dimension_numbers = #tpu.dot_dimension_numbers<[1], [0], [0], [1], [0, 0, 1, 1], [], []>} : vector<8x128xf32>, vector<128x512xf32>, vector<8x512xf32> -> vector<8x512xf32>
    %282 = arith.addf %279, %281 : vector<8x512xf32>
    %283 = arith.negf %282 : vector<8x512xf32>
    %284 = math.exp %283 : vector<8x512xf32>
    %cst_84 = arith.constant 1.000000e+00 : f32
    %285 = vector.broadcast %cst_84 : f32 to vector<8x512xf32>
    %286 = arith.addf %285, %284 : vector<8x512xf32>
    %287 = arith.divf %285, %286 : vector<8x512xf32>
    %288 = vector.extract_strided_slice %287 {offsets = [0, 0], sizes = [8, 128], strides = [1, 1]} : vector<8x512xf32> to vector<8x128xf32>
    %289 = vector.extract_strided_slice %287 {offsets = [0, 128], sizes = [8, 128], strides = [1, 1]} : vector<8x512xf32> to vector<8x128xf32>
    %290 = vector.extract_strided_slice %287 {offsets = [0, 256], sizes = [8, 128], strides = [1, 1]} : vector<8x512xf32> to vector<8x128xf32>
    %cst_85 = arith.constant 2.000000e+00 : f32
    %291 = vector.broadcast %cst_85 : f32 to vector<8x128xf32>
    %292 = arith.mulf %291, %290 : vector<8x128xf32>
    %cst_86 = arith.constant 1.000000e+00 : f32
    %293 = vector.broadcast %cst_86 : f32 to vector<8x128xf32>
    %294 = arith.subf %292, %293 : vector<8x128xf32>
    %295 = vector.extract_strided_slice %287 {offsets = [0, 384], sizes = [8, 128], strides = [1, 1]} : vector<8x512xf32> to vector<8x128xf32>
    %296 = arith.mulf %289, %232 : vector<8x128xf32>
    %297 = arith.mulf %288, %294 : vector<8x128xf32>
    %298 = arith.addf %296, %297 : vector<8x128xf32>
    %299 = math.tanh %298 : vector<8x128xf32>
    %300 = arith.mulf %295, %299 : vector<8x128xf32>
    %301 = tpu.concatenate %300, %256 in 1 : vector<8x128xf32>, vector<8x128xf32> -> vector<8x256xf32>
    %c0_87 = arith.constant 0 : index
    %c0_88 = arith.constant 0 : index
    %302 = vector.load %arg4[%c0_87, %c0_88] : memref<256x512xf32, #tpu.memory_space<vmem>>, vector<256x512xf32>
    %cst_89 = arith.constant dense<0.000000e+00> : vector<8x512xf32>
    %303 = tpu.matmul %301, %302, %cst_89 {dimension_numbers = #tpu.dot_dimension_numbers<[1], [0], [0], [1], [0, 0, 1, 1], [], []>} : vector<8x256xf32>, vector<256x512xf32>, vector<8x512xf32> -> vector<8x512xf32>
    %304 = arith.addf %303, %10 : vector<8x512xf32>
    %305 = arith.negf %304 : vector<8x512xf32>
    %306 = math.exp %305 : vector<8x512xf32>
    %cst_90 = arith.constant 1.000000e+00 : f32
    %307 = vector.broadcast %cst_90 : f32 to vector<8x512xf32>
    %308 = arith.addf %307, %306 : vector<8x512xf32>
    %309 = arith.divf %307, %308 : vector<8x512xf32>
    %310 = vector.extract_strided_slice %309 {offsets = [0, 0], sizes = [8, 128], strides = [1, 1]} : vector<8x512xf32> to vector<8x128xf32>
    %311 = vector.extract_strided_slice %309 {offsets = [0, 128], sizes = [8, 128], strides = [1, 1]} : vector<8x512xf32> to vector<8x128xf32>
    %312 = vector.extract_strided_slice %309 {offsets = [0, 256], sizes = [8, 128], strides = [1, 1]} : vector<8x512xf32> to vector<8x128xf32>
    %cst_91 = arith.constant 2.000000e+00 : f32
    %313 = vector.broadcast %cst_91 : f32 to vector<8x128xf32>
    %314 = arith.mulf %313, %312 : vector<8x128xf32>
    %cst_92 = arith.constant 1.000000e+00 : f32
    %315 = vector.broadcast %cst_92 : f32 to vector<8x128xf32>
    %316 = arith.subf %314, %315 : vector<8x128xf32>
    %317 = vector.extract_strided_slice %309 {offsets = [0, 384], sizes = [8, 128], strides = [1, 1]} : vector<8x512xf32> to vector<8x128xf32>
    %318 = arith.mulf %311, %254 : vector<8x128xf32>
    %319 = arith.mulf %310, %316 : vector<8x128xf32>
    %320 = arith.addf %318, %319 : vector<8x128xf32>
    %321 = math.tanh %320 : vector<8x128xf32>
    %322 = arith.mulf %317, %321 : vector<8x128xf32>
    %323 = tpu.concatenate %322, %278 in 1 : vector<8x128xf32>, vector<8x128xf32> -> vector<8x256xf32>
    %c0_93 = arith.constant 0 : index
    %c0_94 = arith.constant 0 : index
    %324 = vector.load %arg6[%c0_93, %c0_94] : memref<256x512xf32, #tpu.memory_space<vmem>>, vector<256x512xf32>
    %cst_95 = arith.constant dense<0.000000e+00> : vector<8x512xf32>
    %325 = tpu.matmul %323, %324, %cst_95 {dimension_numbers = #tpu.dot_dimension_numbers<[1], [0], [0], [1], [0, 0, 1, 1], [], []>} : vector<8x256xf32>, vector<256x512xf32>, vector<8x512xf32> -> vector<8x512xf32>
    %326 = arith.addf %325, %13 : vector<8x512xf32>
    %327 = arith.negf %326 : vector<8x512xf32>
    %328 = math.exp %327 : vector<8x512xf32>
    %cst_96 = arith.constant 1.000000e+00 : f32
    %329 = vector.broadcast %cst_96 : f32 to vector<8x512xf32>
    %330 = arith.addf %329, %328 : vector<8x512xf32>
    %331 = arith.divf %329, %330 : vector<8x512xf32>
    %332 = vector.extract_strided_slice %331 {offsets = [0, 0], sizes = [8, 128], strides = [1, 1]} : vector<8x512xf32> to vector<8x128xf32>
    %333 = vector.extract_strided_slice %331 {offsets = [0, 128], sizes = [8, 128], strides = [1, 1]} : vector<8x512xf32> to vector<8x128xf32>
    %334 = vector.extract_strided_slice %331 {offsets = [0, 256], sizes = [8, 128], strides = [1, 1]} : vector<8x512xf32> to vector<8x128xf32>
    %cst_97 = arith.constant 2.000000e+00 : f32
    %335 = vector.broadcast %cst_97 : f32 to vector<8x128xf32>
    %336 = arith.mulf %335, %334 : vector<8x128xf32>
    %cst_98 = arith.constant 1.000000e+00 : f32
    %337 = vector.broadcast %cst_98 : f32 to vector<8x128xf32>
    %338 = arith.subf %336, %337 : vector<8x128xf32>
    %339 = vector.extract_strided_slice %331 {offsets = [0, 384], sizes = [8, 128], strides = [1, 1]} : vector<8x512xf32> to vector<8x128xf32>
    %340 = arith.mulf %333, %276 : vector<8x128xf32>
    %341 = arith.mulf %332, %338 : vector<8x128xf32>
    %342 = arith.addf %340, %341 : vector<8x128xf32>
    %343 = math.tanh %342 : vector<8x128xf32>
    %344 = arith.mulf %339, %343 : vector<8x128xf32>
    %345 = vector.extract_strided_slice %7 {offsets = [40, 0], sizes = [8, 512], strides = [1, 1]} : vector<64x512xf32> to vector<8x512xf32>
    %c0_99 = arith.constant 0 : index
    %c0_100 = arith.constant 0 : index
    %346 = vector.load %arg3[%c0_99, %c0_100] : memref<128x512xf32, #tpu.memory_space<vmem>>, vector<128x512xf32>
    %cst_101 = arith.constant dense<0.000000e+00> : vector<8x512xf32>
    %347 = tpu.matmul %300, %346, %cst_101 {dimension_numbers = #tpu.dot_dimension_numbers<[1], [0], [0], [1], [0, 0, 1, 1], [], []>} : vector<8x128xf32>, vector<128x512xf32>, vector<8x512xf32> -> vector<8x512xf32>
    %348 = arith.addf %345, %347 : vector<8x512xf32>
    %349 = arith.negf %348 : vector<8x512xf32>
    %350 = math.exp %349 : vector<8x512xf32>
    %cst_102 = arith.constant 1.000000e+00 : f32
    %351 = vector.broadcast %cst_102 : f32 to vector<8x512xf32>
    %352 = arith.addf %351, %350 : vector<8x512xf32>
    %353 = arith.divf %351, %352 : vector<8x512xf32>
    %354 = vector.extract_strided_slice %353 {offsets = [0, 0], sizes = [8, 128], strides = [1, 1]} : vector<8x512xf32> to vector<8x128xf32>
    %355 = vector.extract_strided_slice %353 {offsets = [0, 128], sizes = [8, 128], strides = [1, 1]} : vector<8x512xf32> to vector<8x128xf32>
    %356 = vector.extract_strided_slice %353 {offsets = [0, 256], sizes = [8, 128], strides = [1, 1]} : vector<8x512xf32> to vector<8x128xf32>
    %cst_103 = arith.constant 2.000000e+00 : f32
    %357 = vector.broadcast %cst_103 : f32 to vector<8x128xf32>
    %358 = arith.mulf %357, %356 : vector<8x128xf32>
    %cst_104 = arith.constant 1.000000e+00 : f32
    %359 = vector.broadcast %cst_104 : f32 to vector<8x128xf32>
    %360 = arith.subf %358, %359 : vector<8x128xf32>
    %361 = vector.extract_strided_slice %353 {offsets = [0, 384], sizes = [8, 128], strides = [1, 1]} : vector<8x512xf32> to vector<8x128xf32>
    %362 = arith.mulf %355, %298 : vector<8x128xf32>
    %363 = arith.mulf %354, %360 : vector<8x128xf32>
    %364 = arith.addf %362, %363 : vector<8x128xf32>
    %365 = math.tanh %364 : vector<8x128xf32>
    %366 = arith.mulf %361, %365 : vector<8x128xf32>
    %367 = tpu.concatenate %366, %322 in 1 : vector<8x128xf32>, vector<8x128xf32> -> vector<8x256xf32>
    %c0_105 = arith.constant 0 : index
    %c0_106 = arith.constant 0 : index
    %368 = vector.load %arg4[%c0_105, %c0_106] : memref<256x512xf32, #tpu.memory_space<vmem>>, vector<256x512xf32>
    %cst_107 = arith.constant dense<0.000000e+00> : vector<8x512xf32>
    %369 = tpu.matmul %367, %368, %cst_107 {dimension_numbers = #tpu.dot_dimension_numbers<[1], [0], [0], [1], [0, 0, 1, 1], [], []>} : vector<8x256xf32>, vector<256x512xf32>, vector<8x512xf32> -> vector<8x512xf32>
    %370 = arith.addf %369, %10 : vector<8x512xf32>
    %371 = arith.negf %370 : vector<8x512xf32>
    %372 = math.exp %371 : vector<8x512xf32>
    %cst_108 = arith.constant 1.000000e+00 : f32
    %373 = vector.broadcast %cst_108 : f32 to vector<8x512xf32>
    %374 = arith.addf %373, %372 : vector<8x512xf32>
    %375 = arith.divf %373, %374 : vector<8x512xf32>
    %376 = vector.extract_strided_slice %375 {offsets = [0, 0], sizes = [8, 128], strides = [1, 1]} : vector<8x512xf32> to vector<8x128xf32>
    %377 = vector.extract_strided_slice %375 {offsets = [0, 128], sizes = [8, 128], strides = [1, 1]} : vector<8x512xf32> to vector<8x128xf32>
    %378 = vector.extract_strided_slice %375 {offsets = [0, 256], sizes = [8, 128], strides = [1, 1]} : vector<8x512xf32> to vector<8x128xf32>
    %cst_109 = arith.constant 2.000000e+00 : f32
    %379 = vector.broadcast %cst_109 : f32 to vector<8x128xf32>
    %380 = arith.mulf %379, %378 : vector<8x128xf32>
    %cst_110 = arith.constant 1.000000e+00 : f32
    %381 = vector.broadcast %cst_110 : f32 to vector<8x128xf32>
    %382 = arith.subf %380, %381 : vector<8x128xf32>
    %383 = vector.extract_strided_slice %375 {offsets = [0, 384], sizes = [8, 128], strides = [1, 1]} : vector<8x512xf32> to vector<8x128xf32>
    %384 = arith.mulf %377, %320 : vector<8x128xf32>
    %385 = arith.mulf %376, %382 : vector<8x128xf32>
    %386 = arith.addf %384, %385 : vector<8x128xf32>
    %387 = math.tanh %386 : vector<8x128xf32>
    %388 = arith.mulf %383, %387 : vector<8x128xf32>
    %389 = tpu.concatenate %388, %344 in 1 : vector<8x128xf32>, vector<8x128xf32> -> vector<8x256xf32>
    %c0_111 = arith.constant 0 : index
    %c0_112 = arith.constant 0 : index
    %390 = vector.load %arg6[%c0_111, %c0_112] : memref<256x512xf32, #tpu.memory_space<vmem>>, vector<256x512xf32>
    %cst_113 = arith.constant dense<0.000000e+00> : vector<8x512xf32>
    %391 = tpu.matmul %389, %390, %cst_113 {dimension_numbers = #tpu.dot_dimension_numbers<[1], [0], [0], [1], [0, 0, 1, 1], [], []>} : vector<8x256xf32>, vector<256x512xf32>, vector<8x512xf32> -> vector<8x512xf32>
    %392 = arith.addf %391, %13 : vector<8x512xf32>
    %393 = arith.negf %392 : vector<8x512xf32>
    %394 = math.exp %393 : vector<8x512xf32>
    %cst_114 = arith.constant 1.000000e+00 : f32
    %395 = vector.broadcast %cst_114 : f32 to vector<8x512xf32>
    %396 = arith.addf %395, %394 : vector<8x512xf32>
    %397 = arith.divf %395, %396 : vector<8x512xf32>
    %398 = vector.extract_strided_slice %397 {offsets = [0, 0], sizes = [8, 128], strides = [1, 1]} : vector<8x512xf32> to vector<8x128xf32>
    %399 = vector.extract_strided_slice %397 {offsets = [0, 128], sizes = [8, 128], strides = [1, 1]} : vector<8x512xf32> to vector<8x128xf32>
    %400 = vector.extract_strided_slice %397 {offsets = [0, 256], sizes = [8, 128], strides = [1, 1]} : vector<8x512xf32> to vector<8x128xf32>
    %cst_115 = arith.constant 2.000000e+00 : f32
    %401 = vector.broadcast %cst_115 : f32 to vector<8x128xf32>
    %402 = arith.mulf %401, %400 : vector<8x128xf32>
    %cst_116 = arith.constant 1.000000e+00 : f32
    %403 = vector.broadcast %cst_116 : f32 to vector<8x128xf32>
    %404 = arith.subf %402, %403 : vector<8x128xf32>
    %405 = vector.extract_strided_slice %397 {offsets = [0, 384], sizes = [8, 128], strides = [1, 1]} : vector<8x512xf32> to vector<8x128xf32>
    %406 = arith.mulf %399, %342 : vector<8x128xf32>
    %407 = arith.mulf %398, %404 : vector<8x128xf32>
    %408 = arith.addf %406, %407 : vector<8x128xf32>
    %409 = math.tanh %408 : vector<8x128xf32>
    %410 = arith.mulf %405, %409 : vector<8x128xf32>
    %411 = vector.extract_strided_slice %7 {offsets = [48, 0], sizes = [8, 512], strides = [1, 1]} : vector<64x512xf32> to vector<8x512xf32>
    %c0_117 = arith.constant 0 : index
    %c0_118 = arith.constant 0 : index
    %412 = vector.load %arg3[%c0_117, %c0_118] : memref<128x512xf32, #tpu.memory_space<vmem>>, vector<128x512xf32>
    %cst_119 = arith.constant dense<0.000000e+00> : vector<8x512xf32>
    %413 = tpu.matmul %366, %412, %cst_119 {dimension_numbers = #tpu.dot_dimension_numbers<[1], [0], [0], [1], [0, 0, 1, 1], [], []>} : vector<8x128xf32>, vector<128x512xf32>, vector<8x512xf32> -> vector<8x512xf32>
    %414 = arith.addf %411, %413 : vector<8x512xf32>
    %415 = arith.negf %414 : vector<8x512xf32>
    %416 = math.exp %415 : vector<8x512xf32>
    %cst_120 = arith.constant 1.000000e+00 : f32
    %417 = vector.broadcast %cst_120 : f32 to vector<8x512xf32>
    %418 = arith.addf %417, %416 : vector<8x512xf32>
    %419 = arith.divf %417, %418 : vector<8x512xf32>
    %420 = vector.extract_strided_slice %419 {offsets = [0, 0], sizes = [8, 128], strides = [1, 1]} : vector<8x512xf32> to vector<8x128xf32>
    %421 = vector.extract_strided_slice %419 {offsets = [0, 128], sizes = [8, 128], strides = [1, 1]} : vector<8x512xf32> to vector<8x128xf32>
    %422 = vector.extract_strided_slice %419 {offsets = [0, 256], sizes = [8, 128], strides = [1, 1]} : vector<8x512xf32> to vector<8x128xf32>
    %cst_121 = arith.constant 2.000000e+00 : f32
    %423 = vector.broadcast %cst_121 : f32 to vector<8x128xf32>
    %424 = arith.mulf %423, %422 : vector<8x128xf32>
    %cst_122 = arith.constant 1.000000e+00 : f32
    %425 = vector.broadcast %cst_122 : f32 to vector<8x128xf32>
    %426 = arith.subf %424, %425 : vector<8x128xf32>
    %427 = vector.extract_strided_slice %419 {offsets = [0, 384], sizes = [8, 128], strides = [1, 1]} : vector<8x512xf32> to vector<8x128xf32>
    %428 = arith.mulf %421, %364 : vector<8x128xf32>
    %429 = arith.mulf %420, %426 : vector<8x128xf32>
    %430 = arith.addf %428, %429 : vector<8x128xf32>
    %431 = math.tanh %430 : vector<8x128xf32>
    %432 = arith.mulf %427, %431 : vector<8x128xf32>
    %433 = tpu.concatenate %432, %388 in 1 : vector<8x128xf32>, vector<8x128xf32> -> vector<8x256xf32>
    %c0_123 = arith.constant 0 : index
    %c0_124 = arith.constant 0 : index
    %434 = vector.load %arg4[%c0_123, %c0_124] : memref<256x512xf32, #tpu.memory_space<vmem>>, vector<256x512xf32>
    %cst_125 = arith.constant dense<0.000000e+00> : vector<8x512xf32>
    %435 = tpu.matmul %433, %434, %cst_125 {dimension_numbers = #tpu.dot_dimension_numbers<[1], [0], [0], [1], [0, 0, 1, 1], [], []>} : vector<8x256xf32>, vector<256x512xf32>, vector<8x512xf32> -> vector<8x512xf32>
    %436 = arith.addf %435, %10 : vector<8x512xf32>
    %437 = arith.negf %436 : vector<8x512xf32>
    %438 = math.exp %437 : vector<8x512xf32>
    %cst_126 = arith.constant 1.000000e+00 : f32
    %439 = vector.broadcast %cst_126 : f32 to vector<8x512xf32>
    %440 = arith.addf %439, %438 : vector<8x512xf32>
    %441 = arith.divf %439, %440 : vector<8x512xf32>
    %442 = vector.extract_strided_slice %441 {offsets = [0, 0], sizes = [8, 128], strides = [1, 1]} : vector<8x512xf32> to vector<8x128xf32>
    %443 = vector.extract_strided_slice %441 {offsets = [0, 128], sizes = [8, 128], strides = [1, 1]} : vector<8x512xf32> to vector<8x128xf32>
    %444 = vector.extract_strided_slice %441 {offsets = [0, 256], sizes = [8, 128], strides = [1, 1]} : vector<8x512xf32> to vector<8x128xf32>
    %cst_127 = arith.constant 2.000000e+00 : f32
    %445 = vector.broadcast %cst_127 : f32 to vector<8x128xf32>
    %446 = arith.mulf %445, %444 : vector<8x128xf32>
    %cst_128 = arith.constant 1.000000e+00 : f32
    %447 = vector.broadcast %cst_128 : f32 to vector<8x128xf32>
    %448 = arith.subf %446, %447 : vector<8x128xf32>
    %449 = vector.extract_strided_slice %441 {offsets = [0, 384], sizes = [8, 128], strides = [1, 1]} : vector<8x512xf32> to vector<8x128xf32>
    %450 = arith.mulf %443, %386 : vector<8x128xf32>
    %451 = arith.mulf %442, %448 : vector<8x128xf32>
    %452 = arith.addf %450, %451 : vector<8x128xf32>
    %453 = math.tanh %452 : vector<8x128xf32>
    %454 = arith.mulf %449, %453 : vector<8x128xf32>
    %455 = tpu.concatenate %454, %410 in 1 : vector<8x128xf32>, vector<8x128xf32> -> vector<8x256xf32>
    %c0_129 = arith.constant 0 : index
    %c0_130 = arith.constant 0 : index
    %456 = vector.load %arg6[%c0_129, %c0_130] : memref<256x512xf32, #tpu.memory_space<vmem>>, vector<256x512xf32>
    %cst_131 = arith.constant dense<0.000000e+00> : vector<8x512xf32>
    %457 = tpu.matmul %455, %456, %cst_131 {dimension_numbers = #tpu.dot_dimension_numbers<[1], [0], [0], [1], [0, 0, 1, 1], [], []>} : vector<8x256xf32>, vector<256x512xf32>, vector<8x512xf32> -> vector<8x512xf32>
    %458 = arith.addf %457, %13 : vector<8x512xf32>
    %459 = arith.negf %458 : vector<8x512xf32>
    %460 = math.exp %459 : vector<8x512xf32>
    %cst_132 = arith.constant 1.000000e+00 : f32
    %461 = vector.broadcast %cst_132 : f32 to vector<8x512xf32>
    %462 = arith.addf %461, %460 : vector<8x512xf32>
    %463 = arith.divf %461, %462 : vector<8x512xf32>
    %464 = vector.extract_strided_slice %463 {offsets = [0, 0], sizes = [8, 128], strides = [1, 1]} : vector<8x512xf32> to vector<8x128xf32>
    %465 = vector.extract_strided_slice %463 {offsets = [0, 128], sizes = [8, 128], strides = [1, 1]} : vector<8x512xf32> to vector<8x128xf32>
    %466 = vector.extract_strided_slice %463 {offsets = [0, 256], sizes = [8, 128], strides = [1, 1]} : vector<8x512xf32> to vector<8x128xf32>
    %cst_133 = arith.constant 2.000000e+00 : f32
    %467 = vector.broadcast %cst_133 : f32 to vector<8x128xf32>
    %468 = arith.mulf %467, %466 : vector<8x128xf32>
    %cst_134 = arith.constant 1.000000e+00 : f32
    %469 = vector.broadcast %cst_134 : f32 to vector<8x128xf32>
    %470 = arith.subf %468, %469 : vector<8x128xf32>
    %471 = vector.extract_strided_slice %463 {offsets = [0, 384], sizes = [8, 128], strides = [1, 1]} : vector<8x512xf32> to vector<8x128xf32>
    %472 = arith.mulf %465, %408 : vector<8x128xf32>
    %473 = arith.mulf %464, %470 : vector<8x128xf32>
    %474 = arith.addf %472, %473 : vector<8x128xf32>
    %475 = math.tanh %474 : vector<8x128xf32>
    %476 = arith.mulf %471, %475 : vector<8x128xf32>
    %477 = vector.extract_strided_slice %7 {offsets = [56, 0], sizes = [8, 512], strides = [1, 1]} : vector<64x512xf32> to vector<8x512xf32>
    %c0_135 = arith.constant 0 : index
    %c0_136 = arith.constant 0 : index
    %478 = vector.load %arg3[%c0_135, %c0_136] : memref<128x512xf32, #tpu.memory_space<vmem>>, vector<128x512xf32>
    %cst_137 = arith.constant dense<0.000000e+00> : vector<8x512xf32>
    %479 = tpu.matmul %432, %478, %cst_137 {dimension_numbers = #tpu.dot_dimension_numbers<[1], [0], [0], [1], [0, 0, 1, 1], [], []>} : vector<8x128xf32>, vector<128x512xf32>, vector<8x512xf32> -> vector<8x512xf32>
    %480 = arith.addf %477, %479 : vector<8x512xf32>
    %481 = arith.negf %480 : vector<8x512xf32>
    %482 = math.exp %481 : vector<8x512xf32>
    %cst_138 = arith.constant 1.000000e+00 : f32
    %483 = vector.broadcast %cst_138 : f32 to vector<8x512xf32>
    %484 = arith.addf %483, %482 : vector<8x512xf32>
    %485 = arith.divf %483, %484 : vector<8x512xf32>
    %486 = vector.extract_strided_slice %485 {offsets = [0, 0], sizes = [8, 128], strides = [1, 1]} : vector<8x512xf32> to vector<8x128xf32>
    %487 = vector.extract_strided_slice %485 {offsets = [0, 128], sizes = [8, 128], strides = [1, 1]} : vector<8x512xf32> to vector<8x128xf32>
    %488 = vector.extract_strided_slice %485 {offsets = [0, 256], sizes = [8, 128], strides = [1, 1]} : vector<8x512xf32> to vector<8x128xf32>
    %cst_139 = arith.constant 2.000000e+00 : f32
    %489 = vector.broadcast %cst_139 : f32 to vector<8x128xf32>
    %490 = arith.mulf %489, %488 : vector<8x128xf32>
    %cst_140 = arith.constant 1.000000e+00 : f32
    %491 = vector.broadcast %cst_140 : f32 to vector<8x128xf32>
    %492 = arith.subf %490, %491 : vector<8x128xf32>
    %493 = vector.extract_strided_slice %485 {offsets = [0, 384], sizes = [8, 128], strides = [1, 1]} : vector<8x512xf32> to vector<8x128xf32>
    %494 = arith.mulf %487, %430 : vector<8x128xf32>
    %495 = arith.mulf %486, %492 : vector<8x128xf32>
    %496 = arith.addf %494, %495 : vector<8x128xf32>
    %497 = math.tanh %496 : vector<8x128xf32>
    %498 = arith.mulf %493, %497 : vector<8x128xf32>
    %499 = tpu.concatenate %498, %454 in 1 : vector<8x128xf32>, vector<8x128xf32> -> vector<8x256xf32>
    %c0_141 = arith.constant 0 : index
    %c0_142 = arith.constant 0 : index
    %500 = vector.load %arg4[%c0_141, %c0_142] : memref<256x512xf32, #tpu.memory_space<vmem>>, vector<256x512xf32>
    %cst_143 = arith.constant dense<0.000000e+00> : vector<8x512xf32>
    %501 = tpu.matmul %499, %500, %cst_143 {dimension_numbers = #tpu.dot_dimension_numbers<[1], [0], [0], [1], [0, 0, 1, 1], [], []>} : vector<8x256xf32>, vector<256x512xf32>, vector<8x512xf32> -> vector<8x512xf32>
    %502 = arith.addf %501, %10 : vector<8x512xf32>
    %503 = arith.negf %502 : vector<8x512xf32>
    %504 = math.exp %503 : vector<8x512xf32>
    %cst_144 = arith.constant 1.000000e+00 : f32
    %505 = vector.broadcast %cst_144 : f32 to vector<8x512xf32>
    %506 = arith.addf %505, %504 : vector<8x512xf32>
    %507 = arith.divf %505, %506 : vector<8x512xf32>
    %508 = vector.extract_strided_slice %507 {offsets = [0, 0], sizes = [8, 128], strides = [1, 1]} : vector<8x512xf32> to vector<8x128xf32>
    %509 = vector.extract_strided_slice %507 {offsets = [0, 128], sizes = [8, 128], strides = [1, 1]} : vector<8x512xf32> to vector<8x128xf32>
    %510 = vector.extract_strided_slice %507 {offsets = [0, 256], sizes = [8, 128], strides = [1, 1]} : vector<8x512xf32> to vector<8x128xf32>
    %cst_145 = arith.constant 2.000000e+00 : f32
    %511 = vector.broadcast %cst_145 : f32 to vector<8x128xf32>
    %512 = arith.mulf %511, %510 : vector<8x128xf32>
    %cst_146 = arith.constant 1.000000e+00 : f32
    %513 = vector.broadcast %cst_146 : f32 to vector<8x128xf32>
    %514 = arith.subf %512, %513 : vector<8x128xf32>
    %515 = vector.extract_strided_slice %507 {offsets = [0, 384], sizes = [8, 128], strides = [1, 1]} : vector<8x512xf32> to vector<8x128xf32>
    %516 = arith.mulf %509, %452 : vector<8x128xf32>
    %517 = arith.mulf %508, %514 : vector<8x128xf32>
    %518 = arith.addf %516, %517 : vector<8x128xf32>
    %519 = math.tanh %518 : vector<8x128xf32>
    %520 = arith.mulf %515, %519 : vector<8x128xf32>
    %521 = tpu.concatenate %520, %476 in 1 : vector<8x128xf32>, vector<8x128xf32> -> vector<8x256xf32>
    %c0_147 = arith.constant 0 : index
    %c0_148 = arith.constant 0 : index
    %522 = vector.load %arg6[%c0_147, %c0_148] : memref<256x512xf32, #tpu.memory_space<vmem>>, vector<256x512xf32>
    %cst_149 = arith.constant dense<0.000000e+00> : vector<8x512xf32>
    %523 = tpu.matmul %521, %522, %cst_149 {dimension_numbers = #tpu.dot_dimension_numbers<[1], [0], [0], [1], [0, 0, 1, 1], [], []>} : vector<8x256xf32>, vector<256x512xf32>, vector<8x512xf32> -> vector<8x512xf32>
    %524 = arith.addf %523, %13 : vector<8x512xf32>
    %525 = arith.negf %524 : vector<8x512xf32>
    %526 = math.exp %525 : vector<8x512xf32>
    %cst_150 = arith.constant 1.000000e+00 : f32
    %527 = vector.broadcast %cst_150 : f32 to vector<8x512xf32>
    %528 = arith.addf %527, %526 : vector<8x512xf32>
    %529 = arith.divf %527, %528 : vector<8x512xf32>
    %530 = vector.extract_strided_slice %529 {offsets = [0, 0], sizes = [8, 128], strides = [1, 1]} : vector<8x512xf32> to vector<8x128xf32>
    %531 = vector.extract_strided_slice %529 {offsets = [0, 128], sizes = [8, 128], strides = [1, 1]} : vector<8x512xf32> to vector<8x128xf32>
    %532 = vector.extract_strided_slice %529 {offsets = [0, 256], sizes = [8, 128], strides = [1, 1]} : vector<8x512xf32> to vector<8x128xf32>
    %cst_151 = arith.constant 2.000000e+00 : f32
    %533 = vector.broadcast %cst_151 : f32 to vector<8x128xf32>
    %534 = arith.mulf %533, %532 : vector<8x128xf32>
    %cst_152 = arith.constant 1.000000e+00 : f32
    %535 = vector.broadcast %cst_152 : f32 to vector<8x128xf32>
    %536 = arith.subf %534, %535 : vector<8x128xf32>
    %537 = vector.extract_strided_slice %529 {offsets = [0, 384], sizes = [8, 128], strides = [1, 1]} : vector<8x512xf32> to vector<8x128xf32>
    %538 = arith.mulf %531, %474 : vector<8x128xf32>
    %539 = arith.mulf %530, %536 : vector<8x128xf32>
    %540 = arith.addf %538, %539 : vector<8x128xf32>
    %541 = math.tanh %540 : vector<8x128xf32>
    %542 = arith.mulf %537, %541 : vector<8x128xf32>
    %c0_153 = arith.constant 0 : index
    %c0_154 = arith.constant 0 : index
    %543 = vector.load %arg8[%c0_153, %c0_154] : memref<1x128xf32, #tpu.memory_space<vmem>>, vector<1x128xf32>
    %544 = vector.broadcast %543 : vector<1x128xf32> to vector<8x128xf32>
    %545 = arith.mulf %542, %544 : vector<8x128xf32>
    %cst_155 = arith.constant dense<0.000000e+00> : vector<8xf32>
    %546 = vector.multi_reduction <add>, %545, %cst_155 [1] : vector<8x128xf32> to vector<8xf32>
    %547 = vector.shape_cast %546 : vector<8xf32> to vector<8x1xf32>
    %c0_156 = arith.constant 0 : index
    %c0_157 = arith.constant 0 : index
    %548 = vector.load %arg9[%c0_156, %c0_157] : memref<1x1xf32, #tpu.memory_space<vmem>>, vector<1x1xf32>
    %549 = vector.broadcast %548 : vector<1x1xf32> to vector<8x1xf32>
    %550 = arith.addf %547, %549 : vector<8x1xf32>
    %c0_158 = arith.constant 0 : index
    %c0_159 = arith.constant 0 : index
    %551 = vector.load %arg10[%c0_158, %c0_159] : memref<8x1xf32, #tpu.memory_space<vmem>>, vector<8x1xf32>
    tpu.vector_store %arg10[%c0_158, %c0_159], %550 {strides = array<i32>} : memref<8x1xf32, #tpu.memory_space<vmem>>, vector<8x1xf32>,
    return
  }
}

</mosaic_0001>

<llo_original>
// kernel: tpu_custom_call.1
$region0: #{tpu_custom_call.1}
  #allocation0 [shape = 'u32[]', space=smem, size = 0x4, offset = 0x4, fixed_abs, tag = 'smem constant byte address 0x4 - core index']
  #allocation1 [shape = 'u32[72,128]{1,0:T(1,128)}', space=vmem, size = 0x9000, scoped, tag = 'internal scratch']
  #allocation2 [shape = 'f32[1,1]{1,0:T(1,128)S(1)}', space=vmem, size = 0x200, scoped, tag = 'scoped memory for tpu_custom_call.1']
  %s0 = inlined_call_operand.vmem [shape: f32[64,1], index: 0, kind: input, shape index: {}]
  %s1 = inlined_call_operand.vmem [shape: f32[1,512], index: 1, kind: input, shape index: {}]
  %s2 = inlined_call_operand.vmem [shape: f32[1,512], index: 2, kind: input, shape index: {}]
  %s3 = inlined_call_operand.hbm [shape: f32[128,512], index: 3, kind: input, shape index: {}]
  %s4 = inlined_call_operand.hbm [shape: f32[256,512], index: 4, kind: input, shape index: {}]
  %s5 = inlined_call_operand.vmem [shape: f32[1,512], index: 5, kind: input, shape index: {}]
  %s6 = inlined_call_operand.hbm [shape: f32[256,512], index: 6, kind: input, shape index: {}]
  %s7 = inlined_call_operand.vmem [shape: f32[1,512], index: 7, kind: input, shape index: {}]
  %s8 = inlined_call_operand.vmem [shape: f32[1,128], index: 8, kind: input, shape index: {}]
  %s9 = inlined_call_operand.<no memory space> [shape: f32[1,1], index: 9, kind: input, shape index: {}]
  %s10 = inlined_call_operand.vmem [shape: f32[8,1], index: 10, kind: output, shape index: {}]
  %s11 = sld [smem:[#allocation0]]
  $region62: #{tpu_custom_call.1} parent=0
    _
  %s13 = ssub.s32 1, %s11
  %s14 = scalar_select 0, %s13, %s11
  %v15 = vstv %s9
  %16 = vst [vmem:[#allocation2] sm:$0x1] %v15
  $region1: #{tpu_custom_call.1} parent=0
    #allocation3 [shape = 'u8[262144]{0}', space=vmem, size = 0x40000, scoped, tag = 'input window, operand 3, single buffered']
    #allocation4 [shape = 's32[1]{0}', space=sflag, size = 0x4, scoped, tag = 'scoped memory for tpu_custom_call.1']
    #allocation5 [shape = 'u8[524288]{0}', space=vmem, size = 0x80000, scoped, tag = 'input window, operand 4, single buffered']
    #allocation6 [shape = 's32[1]{0}', space=sflag, size = 0x4, scoped, tag = 'scoped memory for tpu_custom_call.1']
    #allocation7 [shape = 'u8[524288]{0}', space=vmem, size = 0x80000, scoped, tag = 'input window, operand 6, single buffered']
    %17 = vsyncpa [#allocation4], 0
    %18 = vsyncpa [#allocation6], 0
    // Predicated region
    $region2: #{tpu_custom_call.1} parent=1 // pred_check
      _
    $region3: #{tpu_custom_call.1} parent=1 // pred_check_branch
      %20 = sbr.rel (0) target = $region5
    $region4: #{tpu_custom_call.1} parent=1 // pred_region
      _
    $region5: #{tpu_custom_call.1} parent=1 // pred_fallthru
      _
    // Predicated region
    $region6: #{tpu_custom_call.1} parent=1 // pred_check
      _
    $region7: #{tpu_custom_call.1} parent=1 // pred_check_branch
      %22 = sbr.rel (0) target = $region9
    $region8: #{tpu_custom_call.1} parent=1 // pred_region
      _
    $region9: #{tpu_custom_call.1} parent=1 // pred_fallthru
      _
    // Predicated region
    $region10: #{tpu_custom_call.1} parent=1 // pred_check
      _
    $region11: #{tpu_custom_call.1} parent=1 // pred_check_branch
      %24 = sbr.rel (0) target = $region13
    $region12: #{tpu_custom_call.1} parent=1 // pred_region
      _
    $region13: #{tpu_custom_call.1} parent=1 // pred_fallthru
      _
    // Predicated region
    $region14: #{tpu_custom_call.1} parent=1 // pred_check
      _
    $region15: #{tpu_custom_call.1} parent=1 // pred_check_branch
      %26 = sbr.rel (0) target = $region17
    $region16: #{tpu_custom_call.1} parent=1 // pred_region
      %28 = vsyncadd [#allocation4], 0
      %s29 = sshll.u32 %s3, 4
      %s30 = int_to_ptr.hbm [resolvable:$true] %s29
      %s31 = sshll.u32 [#allocation3], 4
      %s32 = int_to_ptr.vmem [resolvable:$true] %s31
      %37 = dma.hbm_to_vmem [thread:$0]  %s30, 8192, %s32, [#allocation4], 512, 512, 32
    $region17: #{tpu_custom_call.1} parent=1 // pred_fallthru
      _
    // Predicated region
    $region18: #{tpu_custom_call.1} parent=1 // pred_check
      _
    $region19: #{tpu_custom_call.1} parent=1 // pred_check_branch
      %39 = sbr.rel (0) target = $region21
    $region20: #{tpu_custom_call.1} parent=1 // pred_region
      %41 = vsyncadd [#allocation6], 0
      %s42 = sshll.u32 %s4, 4
      %s43 = int_to_ptr.hbm [resolvable:$true] %s42
      %s44 = sshll.u32 [#allocation5], 4
      %s45 = int_to_ptr.vmem [resolvable:$true] %s44
      %50 = dma.hbm_to_vmem [thread:$0]  %s43, 16384, %s45, [#allocation6], 512, 512, 32
    $region21: #{tpu_custom_call.1} parent=1 // pred_fallthru
      _
    // Predicated region
    $region22: #{tpu_custom_call.1} parent=1 // pred_check
      _
    $region23: #{tpu_custom_call.1} parent=1 // pred_check_branch
      %52 = sbr.rel (0) target = $region25
    $region24: #{tpu_custom_call.1} parent=1 // pred_region
      _
    $region25: #{tpu_custom_call.1} parent=1 // pred_fallthru
      _
    // Predicated region
    $region26: #{tpu_custom_call.1} parent=1 // pred_check
      _
    $region27: #{tpu_custom_call.1} parent=1 // pred_check_branch
      %54 = sbr.rel (0) target = $region29
    $region28: #{tpu_custom_call.1} parent=1 // pred_region
      %56 = vsyncadd [#allocation6], 0
      %s57 = sshll.u32 %s6, 4
      %s58 = int_to_ptr.hbm [resolvable:$true] %s57
      %s59 = sshll.u32 [#allocation7], 4
      %s60 = int_to_ptr.vmem [resolvable:$true] %s59
      %65 = dma.hbm_to_vmem [thread:$0]  %s58, 16384, %s60, [#allocation6], 512, 512, 32
    $region29: #{tpu_custom_call.1} parent=1 // pred_fallthru
      _
    // Predicated region
    $region30: #{tpu_custom_call.1} parent=1 // pred_check
      _
    $region31: #{tpu_custom_call.1} parent=1 // pred_check_branch
      %67 = sbr.rel (0) target = $region33
    $region32: #{tpu_custom_call.1} parent=1 // pred_region
      _
    $region33: #{tpu_custom_call.1} parent=1 // pred_fallthru
      _
    // Predicated region
    $region34: #{tpu_custom_call.1} parent=1 // pred_check
      _
    $region35: #{tpu_custom_call.1} parent=1 // pred_check_branch
      %69 = sbr.rel (0) target = $region37
    $region36: #{tpu_custom_call.1} parent=1 // pred_region
      _
    $region37: #{tpu_custom_call.1} parent=1 // pred_fallthru
      _
    // Predicated region
    $region38: #{tpu_custom_call.1} parent=1 // pred_check
      _
    $region39: #{tpu_custom_call.1} parent=1 // pred_check_branch
      %71 = sbr.rel (0) target = $region41
    $region40: #{tpu_custom_call.1} parent=1 // pred_region
      _
    $region41: #{tpu_custom_call.1} parent=1 // pred_fallthru
      _
    // Predicated region
    $region42: #{tpu_custom_call.1} parent=1 // pred_check
      _
    $region43: #{tpu_custom_call.1} parent=1 // pred_check_branch
      %73 = sbr.rel (0) target = $region45
    $region44: #{tpu_custom_call.1} parent=1 // pred_region
      %75 = dma.done [#allocation4], 8192
    $region45: #{tpu_custom_call.1} parent=1 // pred_fallthru
      _
    // Predicated region
    $region46: #{tpu_custom_call.1} parent=1 // pred_check
      _
    $region47: #{tpu_custom_call.1} parent=1 // pred_check_branch
      %77 = sbr.rel (0) target = $region49
    $region48: #{tpu_custom_call.1} parent=1 // pred_region
      %79 = dma.done [#allocation6], 16384
    $region49: #{tpu_custom_call.1} parent=1 // pred_fallthru
      _
    // Predicated region
    $region50: #{tpu_custom_call.1} parent=1 // pred_check
      _
    $region51: #{tpu_custom_call.1} parent=1 // pred_check_branch
      %81 = sbr.rel (0) target = $region53
    $region52: #{tpu_custom_call.1} parent=1 // pred_region
      %83 = dma.done [#allocation6], 16384
    $region53: #{tpu_custom_call.1} parent=1 // pred_fallthru
      _
    %v84 = vld [vmem:[%s0] sm:$0xff]
    %v85 = vld [vmem:[%s0 + $0x8] sm:$0xff]
    %v86 = vld [vmem:[%s0 + $0x10] sm:$0xff]
    %v87 = vld [vmem:[%s0 + $0x18] sm:$0xff]
    %v88 = vld [vmem:[%s0 + $0x20] sm:$0xff]
    %v89 = vld [vmem:[%s0 + $0x28] sm:$0xff]
    %v90 = vld [vmem:[%s0 + $0x30] sm:$0xff]
    %v91 = vld [vmem:[%s0 + $0x38] sm:$0xff]
    %v92 = vld [vmem:[%s1] sm:$0xf]
    %94 = vset.pattern.permute.xlu0 0
    %95 = vperm.xlu0 %94, %v84
    %v96 = vpop.permute.xlu0 %95
    %99 = vset.pattern.permute.xlu0 0
    %100 = vperm.xlu0 %99, %v85
    %v101 = vpop.permute.xlu0 %100
    %104 = vset.pattern.permute.xlu0 0
    %105 = vperm.xlu0 %104, %v86
    %v106 = vpop.permute.xlu0 %105
    %109 = vset.pattern.permute.xlu0 0
    %110 = vperm.xlu0 %109, %v87
    %v111 = vpop.permute.xlu0 %110
    %114 = vset.pattern.permute.xlu0 0
    %115 = vperm.xlu0 %114, %v88
    %v116 = vpop.permute.xlu0 %115
    %119 = vset.pattern.permute.xlu0 0
    %120 = vperm.xlu0 %119, %v89
    %v121 = vpop.permute.xlu0 %120
    %124 = vset.pattern.permute.xlu0 0
    %125 = vperm.xlu0 %124, %v90
    %v126 = vpop.permute.xlu0 %125
    %129 = vset.pattern.permute.xlu0 0
    %130 = vperm.xlu0 %129, %v91
    %v131 = vpop.permute.xlu0 %130
    %v134 = vperm.slane %v92, 0
    %v135 = vperm.slane %v92, 1
    %v136 = vperm.slane %v92, 2
    %v137 = vperm.slane %v92, 3
    %v142 = vmul.f32 %v96, %v134
    %v143 = vmul.f32 %v96, %v135
    %v144 = vmul.f32 %v96, %v136
    %v145 = vmul.f32 %v96, %v137
    %v146 = vmul.f32 %v101, %v134
    %v147 = vmul.f32 %v101, %v135
    %v148 = vmul.f32 %v101, %v136
    %v149 = vmul.f32 %v101, %v137
    %v150 = vmul.f32 %v106, %v134
    %v151 = vmul.f32 %v106, %v135
    %v152 = vmul.f32 %v106, %v136
    %v153 = vmul.f32 %v106, %v137
    %v154 = vmul.f32 %v111, %v134
    %v155 = vmul.f32 %v111, %v135
    %v156 = vmul.f32 %v111, %v136
    %v157 = vmul.f32 %v111, %v137
    %v158 = vmul.f32 %v116, %v134
    %v159 = vmul.f32 %v116, %v135
    %v160 = vmul.f32 %v116, %v136
    %v161 = vmul.f32 %v116, %v137
    %v162 = vmul.f32 %v121, %v134
    %v163 = vmul.f32 %v121, %v135
    %v164 = vmul.f32 %v121, %v136
    %v165 = vmul.f32 %v121, %v137
    %v166 = vmul.f32 %v126, %v134
    %v167 = vmul.f32 %v126, %v135
    %v168 = vmul.f32 %v126, %v136
    %v169 = vmul.f32 %v126, %v137
    %v170 = vmul.f32 %v131, %v134
    %v171 = vmul.f32 %v131, %v135
    %v172 = vmul.f32 %v131, %v136
    %v173 = vmul.f32 %v131, %v137
    %v174 = vld [vmem:[%s2] sm:$0xf]
    %v176 = vperm.slane %v174, 0
    %v177 = vperm.slane %v174, 1
    %v178 = vperm.slane %v174, 2
    %v179 = vperm.slane %v174, 3
    %v184 = vadd.f32 %v142, %v176
    %v185 = vadd.f32 %v143, %v177
    %v186 = vadd.f32 %v144, %v178
    %v187 = vadd.f32 %v145, %v179
    %v188 = vadd.f32 %v146, %v176
    %v189 = vadd.f32 %v147, %v177
    %v190 = vadd.f32 %v148, %v178
    %v191 = vadd.f32 %v149, %v179
    %v192 = vadd.f32 %v150, %v176
    %v193 = vadd.f32 %v151, %v177
    %v194 = vadd.f32 %v152, %v178
    %v195 = vadd.f32 %v153, %v179
    %v196 = vadd.f32 %v154, %v176
    %v197 = vadd.f32 %v155, %v177
    %v198 = vadd.f32 %v156, %v178
    %v199 = vadd.f32 %v157, %v179
    %v200 = vadd.f32 %v158, %v176
    %v201 = vadd.f32 %v159, %v177
    %v202 = vadd.f32 %v160, %v178
    %v203 = vadd.f32 %v161, %v179
    %v204 = vadd.f32 %v162, %v176
    %v205 = vadd.f32 %v163, %v177
    %v206 = vadd.f32 %v164, %v178
    %v207 = vadd.f32 %v165, %v179
    %v208 = vadd.f32 %v166, %v176
    %v209 = vadd.f32 %v167, %v177
    %v210 = vadd.f32 %v168, %v178
    %v211 = vadd.f32 %v169, %v179
    %v212 = vadd.f32 %v170, %v176
    %v213 = vadd.f32 %v171, %v177
    %v214 = vadd.f32 %v172, %v178
    %v215 = vadd.f32 %v173, %v179
    %v216 = vld [vmem:[%s5] sm:$0xf]
    %v218 = vperm.slane %v216, 0
    %v219 = vperm.slane %v216, 1
    %v220 = vperm.slane %v216, 2
    %v221 = vperm.slane %v216, 3
    %v226 = vld [vmem:[%s7] sm:$0xf]
    %v228 = vperm.slane %v226, 0
    %v229 = vperm.slane %v226, 1
    %v230 = vperm.slane %v226, 2
    %v231 = vperm.slane %v226, 3
    %v236 = vld [vmem:[#allocation3] sm:$0xff]
    %v237 = vld [vmem:[#allocation3 + $0x8] sm:$0xff]
    %v238 = vld [vmem:[#allocation3 + $0x10] sm:$0xff]
    %v239 = vld [vmem:[#allocation3 + $0x18] sm:$0xff]
    %v240 = vld [vmem:[#allocation3 + $0x20] sm:$0xff]
    %v241 = vld [vmem:[#allocation3 + $0x28] sm:$0xff]
    %v242 = vld [vmem:[#allocation3 + $0x30] sm:$0xff]
    %v243 = vld [vmem:[#allocation3 + $0x38] sm:$0xff]
    %v244 = vld [vmem:[#allocation3 + $0x40] sm:$0xff]
    %v245 = vld [vmem:[#allocation3 + $0x48] sm:$0xff]
    %v246 = vld [vmem:[#allocation3 + $0x50] sm:$0xff]
    %v247 = vld [vmem:[#allocation3 + $0x58] sm:$0xff]
    %v248 = vld [vmem:[#allocation3 + $0x60] sm:$0xff]
    %v249 = vld [vmem:[#allocation3 + $0x68] sm:$0xff]
    %v250 = vld [vmem:[#allocation3 + $0x70] sm:$0xff]
    %v251 = vld [vmem:[#allocation3 + $0x78] sm:$0xff]
    %v252 = vld [vmem:[#allocation3 + $0x80] sm:$0xff]
    %v253 = vld [vmem:[#allocation3 + $0x88] sm:$0xff]
    %v254 = vld [vmem:[#allocation3 + $0x90] sm:$0xff]
    %v255 = vld [vmem:[#allocation3 + $0x98] sm:$0xff]
    %v256 = vld [vmem:[#allocation3 + $0xa0] sm:$0xff]
    %v257 = vld [vmem:[#allocation3 + $0xa8] sm:$0xff]
    %v258 = vld [vmem:[#allocation3 + $0xb0] sm:$0xff]
    %v259 = vld [vmem:[#allocation3 + $0xb8] sm:$0xff]
    %v260 = vld [vmem:[#allocation3 + $0xc0] sm:$0xff]
    %v261 = vld [vmem:[#allocation3 + $0xc8] sm:$0xff]
    %v262 = vld [vmem:[#allocation3 + $0xd0] sm:$0xff]
    %v263 = vld [vmem:[#allocation3 + $0xd8] sm:$0xff]
    %v264 = vld [vmem:[#allocation3 + $0xe0] sm:$0xff]
    %v265 = vld [vmem:[#allocation3 + $0xe8] sm:$0xff]
    %v266 = vld [vmem:[#allocation3 + $0xf0] sm:$0xff]
    %v267 = vld [vmem:[#allocation3 + $0xf8] sm:$0xff]
    %v268 = vld [vmem:[#allocation3 + $0x100] sm:$0xff]
    %v269 = vld [vmem:[#allocation3 + $0x108] sm:$0xff]
    %v270 = vld [vmem:[#allocation3 + $0x110] sm:$0xff]
    %v271 = vld [vmem:[#allocation3 + $0x118] sm:$0xff]
    %v272 = vld [vmem:[#allocation3 + $0x120] sm:$0xff]
    %v273 = vld [vmem:[#allocation3 + $0x128] sm:$0xff]
    %v274 = vld [vmem:[#allocation3 + $0x130] sm:$0xff]
    %v275 = vld [vmem:[#allocation3 + $0x138] sm:$0xff]
    %v276 = vld [vmem:[#allocation3 + $0x140] sm:$0xff]
    %v277 = vld [vmem:[#allocation3 + $0x148] sm:$0xff]
    %v278 = vld [vmem:[#allocation3 + $0x150] sm:$0xff]
    %v279 = vld [vmem:[#allocation3 + $0x158] sm:$0xff]
    %v280 = vld [vmem:[#allocation3 + $0x160] sm:$0xff]
    %v281 = vld [vmem:[#allocation3 + $0x168] sm:$0xff]
    %v282 = vld [vmem:[#allocation3 + $0x170] sm:$0xff]
    %v283 = vld [vmem:[#allocation3 + $0x178] sm:$0xff]
    %v284 = vld [vmem:[#allocation3 + $0x180] sm:$0xff]
    %v285 = vld [vmem:[#allocation3 + $0x188] sm:$0xff]
    %v286 = vld [vmem:[#allocation3 + $0x190] sm:$0xff]
    %v287 = vld [vmem:[#allocation3 + $0x198] sm:$0xff]
    %v288 = vld [vmem:[#allocation3 + $0x1a0] sm:$0xff]
    %v289 = vld [vmem:[#allocation3 + $0x1a8] sm:$0xff]
    %v290 = vld [vmem:[#allocation3 + $0x1b0] sm:$0xff]
    %v291 = vld [vmem:[#allocation3 + $0x1b8] sm:$0xff]
    %v292 = vld [vmem:[#allocation3 + $0x1c0] sm:$0xff]
    %v293 = vld [vmem:[#allocation3 + $0x1c8] sm:$0xff]
    %v294 = vld [vmem:[#allocation3 + $0x1d0] sm:$0xff]
    %v295 = vld [vmem:[#allocation3 + $0x1d8] sm:$0xff]
    %v296 = vld [vmem:[#allocation3 + $0x1e0] sm:$0xff]
    %v297 = vld [vmem:[#allocation3 + $0x1e8] sm:$0xff]
    %v298 = vld [vmem:[#allocation3 + $0x1f0] sm:$0xff]
    %v299 = vld [vmem:[#allocation3 + $0x1f8] sm:$0xff]
    %300 = vmatpush.msra.mxu0 %v296
    %301 = vmatpush.msra.mxu0 %v292
    %302 = vmatpush.msra.mxu0 %v288
    %303 = vmatpush.msra.mxu0 %v284
    %304 = vmatpush.msra.mxu0 %v280
    %305 = vmatpush.msra.mxu0 %v276
    %306 = vmatpush.msra.mxu0 %v272
    %307 = vmatpush.msra.mxu0 %v268
    %308 = vmatpush.msra.mxu0 %v264
    %309 = vmatpush.msra.mxu0 %v260
    %310 = vmatpush.msra.mxu0 %v256
    %311 = vmatpush.msra.mxu0 %v252
    %312 = vmatpush.msra.mxu0 %v248
    %313 = vmatpush.msra.mxu0 %v244
    %314 = vmatpush.msra.mxu0 %v240
    %315 = vmatpush.msra.mxu0 %v236
    %316 = vmatmul.f32.gmra.mxu0 0.0
    %v317 = vpop.f32.mrf.mxu0
    %v318 = vadd.f32 0.0, %v317
    %319 = vdwg.mxu0
    %320 = vmatpush.msra.mxu0 %v297
    %321 = vmatpush.msra.mxu0 %v293
    %322 = vmatpush.msra.mxu0 %v289
    %323 = vmatpush.msra.mxu0 %v285
    %324 = vmatpush.msra.mxu0 %v281
    %325 = vmatpush.msra.mxu0 %v277
    %326 = vmatpush.msra.mxu0 %v273
    %327 = vmatpush.msra.mxu0 %v269
    %328 = vmatpush.msra.mxu0 %v265
    %329 = vmatpush.msra.mxu0 %v261
    %330 = vmatpush.msra.mxu0 %v257
    %331 = vmatpush.msra.mxu0 %v253
    %332 = vmatpush.msra.mxu0 %v249
    %333 = vmatpush.msra.mxu0 %v245
    %334 = vmatpush.msra.mxu0 %v241
    %335 = vmatpush.msra.mxu0 %v237
    %336 = vmatmul.f32.gmra.mxu0 0.0
    %v337 = vpop.f32.mrf.mxu0
    %v338 = vadd.f32 0.0, %v337
    %339 = vdwg.mxu0
    %340 = vmatpush.msra.mxu0 %v298
    %341 = vmatpush.msra.mxu0 %v294
    %342 = vmatpush.msra.mxu0 %v290
    %343 = vmatpush.msra.mxu0 %v286
    %344 = vmatpush.msra.mxu0 %v282
    %345 = vmatpush.msra.mxu0 %v278
    %346 = vmatpush.msra.mxu0 %v274
    %347 = vmatpush.msra.mxu0 %v270
    %348 = vmatpush.msra.mxu0 %v266
    %349 = vmatpush.msra.mxu0 %v262
    %350 = vmatpush.msra.mxu0 %v258
    %351 = vmatpush.msra.mxu0 %v254
    %352 = vmatpush.msra.mxu0 %v250
    %353 = vmatpush.msra.mxu0 %v246
    %354 = vmatpush.msra.mxu0 %v242
    %355 = vmatpush.msra.mxu0 %v238
    %356 = vmatmul.f32.gmra.mxu0 0.0
    %v357 = vpop.f32.mrf.mxu0
    %v358 = vadd.f32 0.0, %v357
    %359 = vdwg.mxu0
    %360 = vmatpush.msra.mxu0 %v299
    %361 = vmatpush.msra.mxu0 %v295
    %362 = vmatpush.msra.mxu0 %v291
    %363 = vmatpush.msra.mxu0 %v287
    %364 = vmatpush.msra.mxu0 %v283
    %365 = vmatpush.msra.mxu0 %v279
    %366 = vmatpush.msra.mxu0 %v275
    %367 = vmatpush.msra.mxu0 %v271
    %368 = vmatpush.msra.mxu0 %v267
    %369 = vmatpush.msra.mxu0 %v263
    %370 = vmatpush.msra.mxu0 %v259
    %371 = vmatpush.msra.mxu0 %v255
    %372 = vmatpush.msra.mxu0 %v251
    %373 = vmatpush.msra.mxu0 %v247
    %374 = vmatpush.msra.mxu0 %v243
    %375 = vmatpush.msra.mxu0 %v239
    %376 = vmatmul.f32.gmra.mxu0 0.0
    %v377 = vpop.f32.mrf.mxu0
    %v378 = vadd.f32 0.0, %v377
    %379 = vdwg.mxu0
    %v380 = vadd.f32 %v184, %v318
    %v381 = vadd.f32 %v185, %v338
    %v382 = vadd.f32 %v186, %v358
    %v383 = vadd.f32 %v187, %v378
    %v384 = vxor.u32 %v380, 2147483648
    %v385 = vxor.u32 %v381, 2147483648
    %v386 = vxor.u32 %v382, 2147483648
    %v387 = vxor.u32 %v383, 2147483648
    %v388 = vmul.f32 %v384, 1.442695
    %v389 = vpow.pop %v388
    %v390 = vmul.f32 %v385, 1.442695
    %v391 = vpow.pop %v390
    %v392 = vmul.f32 %v386, 1.442695
    %v393 = vpow.pop %v392
    %v394 = vmul.f32 %v387, 1.442695
    %v395 = vpow.pop %v394
    %v396 = vadd.f32 %v389, 1.0
    %v397 = vadd.f32 %v391, 1.0
    %v398 = vadd.f32 %v393, 1.0
    %v399 = vadd.f32 %v395, 1.0
    %v400 = vrcp.pop %v396
    %v401 = vmul.f32 %v396, %v400
    %v402 = vsub.f32 1.0, %v401
    %v403 = vmul.f32 %v400, %v402
    %v404 = vadd.f32 %v400, %v403
    %vm405 = vweird.f32 %v396
    %vm406 = vweird.f32 %v400
    %vm407 = vmor %vm405, %vm406
    %v408 = vsel %vm407, %v400, %v404
    %v409 = vand.u32 2147483647, %v396
    %vm410 = vcmp.eq.f32.partialorder %v409, 8.507059e+37
    %v411 = vand.u32 %v396, 2147483648
    %v412 = vor.u32 1.1754944e-38, %v411
    %v413 = vsel %vm410, %v412, %v408
    %v414 = vmul.f32 1.0, %v413
    %v415 = vrcp.pop %v397
    %v416 = vmul.f32 %v397, %v415
    %v417 = vsub.f32 1.0, %v416
    %v418 = vmul.f32 %v415, %v417
    %v419 = vadd.f32 %v415, %v418
    %vm420 = vweird.f32 %v397
    %vm421 = vweird.f32 %v415
    %vm422 = vmor %vm420, %vm421
    %v423 = vsel %vm422, %v415, %v419
    %v424 = vand.u32 2147483647, %v397
    %vm425 = vcmp.eq.f32.partialorder %v424, 8.507059e+37
    %v426 = vand.u32 %v397, 2147483648
    %v427 = vor.u32 1.1754944e-38, %v426
    %v428 = vsel %vm425, %v427, %v423
    %v429 = vmul.f32 1.0, %v428
    %v430 = vrcp.pop %v398
    %v431 = vmul.f32 %v398, %v430
    %v432 = vsub.f32 1.0, %v431
    %v433 = vmul.f32 %v430, %v432
    %v434 = vadd.f32 %v430, %v433
    %vm435 = vweird.f32 %v398
    %vm436 = vweird.f32 %v430
    %vm437 = vmor %vm435, %vm436
    %v438 = vsel %vm437, %v430, %v434
    %v439 = vand.u32 2147483647, %v398
    %vm440 = vcmp.eq.f32.partialorder %v439, 8.507059e+37
    %v441 = vand.u32 %v398, 2147483648
    %v442 = vor.u32 1.1754944e-38, %v441
    %v443 = vsel %vm440, %v442, %v438
    %v444 = vmul.f32 1.0, %v443
    %v445 = vrcp.pop %v399
    %v446 = vmul.f32 %v399, %v445
    %v447 = vsub.f32 1.0, %v446
    %v448 = vmul.f32 %v445, %v447
    %v449 = vadd.f32 %v445, %v448
    %vm450 = vweird.f32 %v399
    %vm451 = vweird.f32 %v445
    %vm452 = vmor %vm450, %vm451
    %v453 = vsel %vm452, %v445, %v449
    %v454 = vand.u32 2147483647, %v399
    %vm455 = vcmp.eq.f32.partialorder %v454, 8.507059e+37
    %v456 = vand.u32 %v399, 2147483648
    %v457 = vor.u32 1.1754944e-38, %v456
    %v458 = vsel %vm455, %v457, %v453
    %v459 = vmul.f32 1.0, %v458
    %v460 = vmul.f32 %v444, 2.0
    %v461 = vsub.f32 %v460, 1.0
    %v462 = vmul.f32 %v429, 0.0
    %v463 = vmul.f32 %v414, %v461
    %v464 = vadd.f32 %v462, %v463
    %v465 = vtanh.pop %v464
    %v466 = vmul.f32 %v459, %v465
    %v467 = vld [vmem:[#allocation5] sm:$0xff]
    %v468 = vld [vmem:[#allocation5 + $0x8] sm:$0xff]
    %v469 = vld [vmem:[#allocation5 + $0x10] sm:$0xff]
    %v470 = vld [vmem:[#allocation5 + $0x18] sm:$0xff]
    %v471 = vld [vmem:[#allocation5 + $0x20] sm:$0xff]
    %v472 = vld [vmem:[#allocation5 + $0x28] sm:$0xff]
    %v473 = vld [vmem:[#allocation5 + $0x30] sm:$0xff]
    %v474 = vld [vmem:[#allocation5 + $0x38] sm:$0xff]
    %v475 = vld [vmem:[#allocation5 + $0x40] sm:$0xff]
    %v476 = vld [vmem:[#allocation5 + $0x48] sm:$0xff]
    %v477 = vld [vmem:[#allocation5 + $0x50] sm:$0xff]
    %v478 = vld [vmem:[#allocation5 + $0x58] sm:$0xff]
    %v479 = vld [vmem:[#allocation5 + $0x60] sm:$0xff]
    %v480 = vld [vmem:[#allocation5 + $0x68] sm:$0xff]
    %v481 = vld [vmem:[#allocation5 + $0x70] sm:$0xff]
    %v482 = vld [vmem:[#allocation5 + $0x78] sm:$0xff]
    %v483 = vld [vmem:[#allocation5 + $0x80] sm:$0xff]
    %v484 = vld [vmem:[#allocation5 + $0x88] sm:$0xff]
    %v485 = vld [vmem:[#allocation5 + $0x90] sm:$0xff]
    %v486 = vld [vmem:[#allocation5 + $0x98] sm:$0xff]
    %v487 = vld [vmem:[#allocation5 + $0xa0] sm:$0xff]
    %v488 = vld [vmem:[#allocation5 + $0xa8] sm:$0xff]
    %v489 = vld [vmem:[#allocation5 + $0xb0] sm:$0xff]
    %v490 = vld [vmem:[#allocation5 + $0xb8] sm:$0xff]
    %v491 = vld [vmem:[#allocation5 + $0xc0] sm:$0xff]
    %v492 = vld [vmem:[#allocation5 + $0xc8] sm:$0xff]
    %v493 = vld [vmem:[#allocation5 + $0xd0] sm:$0xff]
    %v494 = vld [vmem:[#allocation5 + $0xd8] sm:$0xff]
    %v495 = vld [vmem:[#allocation5 + $0xe0] sm:$0xff]
    %v496 = vld [vmem:[#allocation5 + $0xe8] sm:$0xff]
    %v497 = vld [vmem:[#allocation5 + $0xf0] sm:$0xff]
    %v498 = vld [vmem:[#allocation5 + $0xf8] sm:$0xff]
    %v499 = vld [vmem:[#allocation5 + $0x100] sm:$0xff]
    %v500 = vld [vmem:[#allocation5 + $0x108] sm:$0xff]
    %v501 = vld [vmem:[#allocation5 + $0x110] sm:$0xff]
    %v502 = vld [vmem:[#allocation5 + $0x118] sm:$0xff]
    %v503 = vld [vmem:[#allocation5 + $0x120] sm:$0xff]
    %v504 = vld [vmem:[#allocation5 + $0x128] sm:$0xff]
    %v505 = vld [vmem:[#allocation5 + $0x130] sm:$0xff]
    %v506 = vld [vmem:[#allocation5 + $0x138] sm:$0xff]
    %v507 = vld [vmem:[#allocation5 + $0x140] sm:$0xff]
    %v508 = vld [vmem:[#allocation5 + $0x148] sm:$0xff]
    %v509 = vld [vmem:[#allocation5 + $0x150] sm:$0xff]
    %v510 = vld [vmem:[#allocation5 + $0x158] sm:$0xff]
    %v511 = vld [vmem:[#allocation5 + $0x160] sm:$0xff]
    %v512 = vld [vmem:[#allocation5 + $0x168] sm:$0xff]
    %v513 = vld [vmem:[#allocation5 + $0x170] sm:$0xff]
    %v514 = vld [vmem:[#allocation5 + $0x178] sm:$0xff]
    %v515 = vld [vmem:[#allocation5 + $0x180] sm:$0xff]
    %v516 = vld [vmem:[#allocation5 + $0x188] sm:$0xff]
    %v517 = vld [vmem:[#allocation5 + $0x190] sm:$0xff]
    %v518 = vld [vmem:[#allocation5 + $0x198] sm:$0xff]
    %v519 = vld [vmem:[#allocation5 + $0x1a0] sm:$0xff]
    %v520 = vld [vmem:[#allocation5 + $0x1a8] sm:$0xff]
    %v521 = vld [vmem:[#allocation5 + $0x1b0] sm:$0xff]
    %v522 = vld [vmem:[#allocation5 + $0x1b8] sm:$0xff]
    %v523 = vld [vmem:[#allocation5 + $0x1c0] sm:$0xff]
    %v524 = vld [vmem:[#allocation5 + $0x1c8] sm:$0xff]
    %v525 = vld [vmem:[#allocation5 + $0x1d0] sm:$0xff]
    %v526 = vld [vmem:[#allocation5 + $0x1d8] sm:$0xff]
    %v527 = vld [vmem:[#allocation5 + $0x1e0] sm:$0xff]
    %v528 = vld [vmem:[#allocation5 + $0x1e8] sm:$0xff]
    %v529 = vld [vmem:[#allocation5 + $0x1f0] sm:$0xff]
    %v530 = vld [vmem:[#allocation5 + $0x1f8] sm:$0xff]
    %v531 = vld [vmem:[#allocation5 + $0x200] sm:$0xff]
    %v532 = vld [vmem:[#allocation5 + $0x208] sm:$0xff]
    %v533 = vld [vmem:[#allocation5 + $0x210] sm:$0xff]
    %v534 = vld [vmem:[#allocation5 + $0x218] sm:$0xff]
    %v535 = vld [vmem:[#allocation5 + $0x220] sm:$0xff]
    %v536 = vld [vmem:[#allocation5 + $0x228] sm:$0xff]
    %v537 = vld [vmem:[#allocation5 + $0x230] sm:$0xff]
    %v538 = vld [vmem:[#allocation5 + $0x238] sm:$0xff]
    %v539 = vld [vmem:[#allocation5 + $0x240] sm:$0xff]
    %v540 = vld [vmem:[#allocation5 + $0x248] sm:$0xff]
    %v541 = vld [vmem:[#allocation5 + $0x250] sm:$0xff]
    %v542 = vld [vmem:[#allocation5 + $0x258] sm:$0xff]
    %v543 = vld [vmem:[#allocation5 + $0x260] sm:$0xff]
    %v544 = vld [vmem:[#allocation5 + $0x268] sm:$0xff]
    %v545 = vld [vmem:[#allocation5 + $0x270] sm:$0xff]
    %v546 = vld [vmem:[#allocation5 + $0x278] sm:$0xff]
    %v547 = vld [vmem:[#allocation5 + $0x280] sm:$0xff]
    %v548 = vld [vmem:[#allocation5 + $0x288] sm:$0xff]
    %v549 = vld [vmem:[#allocation5 + $0x290] sm:$0xff]
    %v550 = vld [vmem:[#allocation5 + $0x298] sm:$0xff]
    %v551 = vld [vmem:[#allocation5 + $0x2a0] sm:$0xff]
    %v552 = vld [vmem:[#allocation5 + $0x2a8] sm:$0xff]
    %v553 = vld [vmem:[#allocation5 + $0x2b0] sm:$0xff]
    %v554 = vld [vmem:[#allocation5 + $0x2b8] sm:$0xff]
    %v555 = vld [vmem:[#allocation5 + $0x2c0] sm:$0xff]
    %v556 = vld [vmem:[#allocation5 + $0x2c8] sm:$0xff]
    %v557 = vld [vmem:[#allocation5 + $0x2d0] sm:$0xff]
    %v558 = vld [vmem:[#allocation5 + $0x2d8] sm:$0xff]
    %v559 = vld [vmem:[#allocation5 + $0x2e0] sm:$0xff]
    %v560 = vld [vmem:[#allocation5 + $0x2e8] sm:$0xff]
    %v561 = vld [vmem:[#allocation5 + $0x2f0] sm:$0xff]
    %v562 = vld [vmem:[#allocation5 + $0x2f8] sm:$0xff]
    %v563 = vld [vmem:[#allocation5 + $0x300] sm:$0xff]
    %v564 = vld [vmem:[#allocation5 + $0x308] sm:$0xff]
    %v565 = vld [vmem:[#allocation5 + $0x310] sm:$0xff]
    %v566 = vld [vmem:[#allocation5 + $0x318] sm:$0xff]
    %v567 = vld [vmem:[#allocation5 + $0x320] sm:$0xff]
    %v568 = vld [vmem:[#allocation5 + $0x328] sm:$0xff]
    %v569 = vld [vmem:[#allocation5 + $0x330] sm:$0xff]
    %v570 = vld [vmem:[#allocation5 + $0x338] sm:$0xff]
    %v571 = vld [vmem:[#allocation5 + $0x340] sm:$0xff]
    %v572 = vld [vmem:[#allocation5 + $0x348] sm:$0xff]
    %v573 = vld [vmem:[#allocation5 + $0x350] sm:$0xff]
    %v574 = vld [vmem:[#allocation5 + $0x358] sm:$0xff]
    %v575 = vld [vmem:[#allocation5 + $0x360] sm:$0xff]
    %v576 = vld [vmem:[#allocation5 + $0x368] sm:$0xff]
    %v577 = vld [vmem:[#allocation5 + $0x370] sm:$0xff]
    %v578 = vld [vmem:[#allocation5 + $0x378] sm:$0xff]
    %v579 = vld [vmem:[#allocation5 + $0x380] sm:$0xff]
    %v580 = vld [vmem:[#allocation5 + $0x388] sm:$0xff]
    %v581 = vld [vmem:[#allocation5 + $0x390] sm:$0xff]
    %v582 = vld [vmem:[#allocation5 + $0x398] sm:$0xff]
    %v583 = vld [vmem:[#allocation5 + $0x3a0] sm:$0xff]
    %v584 = vld [vmem:[#allocation5 + $0x3a8] sm:$0xff]
    %v585 = vld [vmem:[#allocation5 + $0x3b0] sm:$0xff]
    %v586 = vld [vmem:[#allocation5 + $0x3b8] sm:$0xff]
    %v587 = vld [vmem:[#allocation5 + $0x3c0] sm:$0xff]
    %v588 = vld [vmem:[#allocation5 + $0x3c8] sm:$0xff]
    %v589 = vld [vmem:[#allocation5 + $0x3d0] sm:$0xff]
    %v590 = vld [vmem:[#allocation5 + $0x3d8] sm:$0xff]
    %v591 = vld [vmem:[#allocation5 + $0x3e0] sm:$0xff]
    %v592 = vld [vmem:[#allocation5 + $0x3e8] sm:$0xff]
    %v593 = vld [vmem:[#allocation5 + $0x3f0] sm:$0xff]
    %v594 = vld [vmem:[#allocation5 + $0x3f8] sm:$0xff]
    %595 = vmatpush.msra.mxu0 %v527
    %596 = vmatpush.msra.mxu0 %v523
    %597 = vmatpush.msra.mxu0 %v519
    %598 = vmatpush.msra.mxu0 %v515
    %599 = vmatpush.msra.mxu0 %v511
    %600 = vmatpush.msra.mxu0 %v507
    %601 = vmatpush.msra.mxu0 %v503
    %602 = vmatpush.msra.mxu0 %v499
    %603 = vmatpush.msra.mxu0 %v495
    %604 = vmatpush.msra.mxu0 %v491
    %605 = vmatpush.msra.mxu0 %v487
    %606 = vmatpush.msra.mxu0 %v483
    %607 = vmatpush.msra.mxu0 %v479
    %608 = vmatpush.msra.mxu0 %v475
    %609 = vmatpush.msra.mxu0 %v471
    %610 = vmatpush.msra.mxu0 %v467
    %611 = vmatmul.f32.gmra.mxu0 %v466
    %v612 = vpop.f32.mrf.mxu0
    %v613 = vadd.f32 %v218, %v612
    %614 = vdwg.mxu0
    %615 = vmatpush.msra.mxu0 %v591
    %616 = vmatpush.msra.mxu0 %v587
    %617 = vmatpush.msra.mxu0 %v583
    %618 = vmatpush.msra.mxu0 %v579
    %619 = vmatpush.msra.mxu0 %v575
    %620 = vmatpush.msra.mxu0 %v571
    %621 = vmatpush.msra.mxu0 %v567
    %622 = vmatpush.msra.mxu0 %v563
    %623 = vmatpush.msra.mxu0 %v559
    %624 = vmatpush.msra.mxu0 %v555
    %625 = vmatpush.msra.mxu0 %v551
    %626 = vmatpush.msra.mxu0 %v547
    %627 = vmatpush.msra.mxu0 %v543
    %628 = vmatpush.msra.mxu0 %v539
    %629 = vmatpush.msra.mxu0 %v535
    %630 = vmatpush.msra.mxu0 %v531
    %631 = vmatmul.f32.gmra.mxu0 0.0
    %v632 = vpop.f32.mrf.mxu0
    %v633 = vadd.f32 %v613, %v632
    %634 = vdwg.mxu0
    %635 = vmatpush.msra.mxu0 %v528
    %636 = vmatpush.msra.mxu0 %v524
    %637 = vmatpush.msra.mxu0 %v520
    %638 = vmatpush.msra.mxu0 %v516
    %639 = vmatpush.msra.mxu0 %v512
    %640 = vmatpush.msra.mxu0 %v508
    %641 = vmatpush.msra.mxu0 %v504
    %642 = vmatpush.msra.mxu0 %v500
    %643 = vmatpush.msra.mxu0 %v496
    %644 = vmatpush.msra.mxu0 %v492
    %645 = vmatpush.msra.mxu0 %v488
    %646 = vmatpush.msra.mxu0 %v484
    %647 = vmatpush.msra.mxu0 %v480
    %648 = vmatpush.msra.mxu0 %v476
    %649 = vmatpush.msra.mxu0 %v472
    %650 = vmatpush.msra.mxu0 %v468
    %651 = vmatmul.f32.gmra.mxu0 %v466
    %v652 = vpop.f32.mrf.mxu0
    %v653 = vadd.f32 %v219, %v652
    %654 = vdwg.mxu0
    %655 = vmatpush.msra.mxu0 %v592
    %656 = vmatpush.msra.mxu0 %v588
    %657 = vmatpush.msra.mxu0 %v584
    %658 = vmatpush.msra.mxu0 %v580
    %659 = vmatpush.msra.mxu0 %v576
    %660 = vmatpush.msra.mxu0 %v572
    %661 = vmatpush.msra.mxu0 %v568
    %662 = vmatpush.msra.mxu0 %v564
    %663 = vmatpush.msra.mxu0 %v560
    %664 = vmatpush.msra.mxu0 %v556
    %665 = vmatpush.msra.mxu0 %v552
    %666 = vmatpush.msra.mxu0 %v548
    %667 = vmatpush.msra.mxu0 %v544
    %668 = vmatpush.msra.mxu0 %v540
    %669 = vmatpush.msra.mxu0 %v536
    %670 = vmatpush.msra.mxu0 %v532
    %671 = vmatmul.f32.gmra.mxu0 0.0
    %v672 = vpop.f32.mrf.mxu0
    %v673 = vadd.f32 %v653, %v672
    %674 = vdwg.mxu0
    %675 = vmatpush.msra.mxu0 %v529
    %676 = vmatpush.msra.mxu0 %v525
    %677 = vmatpush.msra.mxu0 %v521
    %678 = vmatpush.msra.mxu0 %v517
    %679 = vmatpush.msra.mxu0 %v513
    %680 = vmatpush.msra.mxu0 %v509
    %681 = vmatpush.msra.mxu0 %v505
    %682 = vmatpush.msra.mxu0 %v501
    %683 = vmatpush.msra.mxu0 %v497
    %684 = vmatpush.msra.mxu0 %v493
    %685 = vmatpush.msra.mxu0 %v489
    %686 = vmatpush.msra.mxu0 %v485
    %687 = vmatpush.msra.mxu0 %v481
    %688 = vmatpush.msra.mxu0 %v477
    %689 = vmatpush.msra.mxu0 %v473
    %690 = vmatpush.msra.mxu0 %v469
    %691 = vmatmul.f32.gmra.mxu0 %v466
    %v692 = vpop.f32.mrf.mxu0
    %v693 = vadd.f32 %v220, %v692
    %694 = vdwg.mxu0
    %695 = vmatpush.msra.mxu0 %v593
    %696 = vmatpush.msra.mxu0 %v589
    %697 = vmatpush.msra.mxu0 %v585
    %698 = vmatpush.msra.mxu0 %v581
    %699 = vmatpush.msra.mxu0 %v577
    %700 = vmatpush.msra.mxu0 %v573
    %701 = vmatpush.msra.mxu0 %v569
    %702 = vmatpush.msra.mxu0 %v565
    %703 = vmatpush.msra.mxu0 %v561
    %704 = vmatpush.msra.mxu0 %v557
    %705 = vmatpush.msra.mxu0 %v553
    %706 = vmatpush.msra.mxu0 %v549
    %707 = vmatpush.msra.mxu0 %v545
    %708 = vmatpush.msra.mxu0 %v541
    %709 = vmatpush.msra.mxu0 %v537
    %710 = vmatpush.msra.mxu0 %v533
    %711 = vmatmul.f32.gmra.mxu0 0.0
    %v712 = vpop.f32.mrf.mxu0
    %v713 = vadd.f32 %v693, %v712
    %714 = vdwg.mxu0
    %715 = vmatpush.msra.mxu0 %v530
    %716 = vmatpush.msra.mxu0 %v526
    %717 = vmatpush.msra.mxu0 %v522
    %718 = vmatpush.msra.mxu0 %v518
    %719 = vmatpush.msra.mxu0 %v514
    %720 = vmatpush.msra.mxu0 %v510
    %721 = vmatpush.msra.mxu0 %v506
    %722 = vmatpush.msra.mxu0 %v502
    %723 = vmatpush.msra.mxu0 %v498
    %724 = vmatpush.msra.mxu0 %v494
    %725 = vmatpush.msra.mxu0 %v490
    %726 = vmatpush.msra.mxu0 %v486
    %727 = vmatpush.msra.mxu0 %v482
    %728 = vmatpush.msra.mxu0 %v478
    %729 = vmatpush.msra.mxu0 %v474
    %730 = vmatpush.msra.mxu0 %v470
    %731 = vmatmul.f32.gmra.mxu0 %v466
    %v732 = vpop.f32.mrf.mxu0
    %v733 = vadd.f32 %v221, %v732
    %734 = vdwg.mxu0
    %735 = vmatpush.msra.mxu0 %v594
    %736 = vmatpush.msra.mxu0 %v590
    %737 = vmatpush.msra.mxu0 %v586
    %738 = vmatpush.msra.mxu0 %v582
    %739 = vmatpush.msra.mxu0 %v578
    %740 = vmatpush.msra.mxu0 %v574
    %741 = vmatpush.msra.mxu0 %v570
    %742 = vmatpush.msra.mxu0 %v566
    %743 = vmatpush.msra.mxu0 %v562
    %744 = vmatpush.msra.mxu0 %v558
    %745 = vmatpush.msra.mxu0 %v554
    %746 = vmatpush.msra.mxu0 %v550
    %747 = vmatpush.msra.mxu0 %v546
    %748 = vmatpush.msra.mxu0 %v542
    %749 = vmatpush.msra.mxu0 %v538
    %750 = vmatpush.msra.mxu0 %v534
    %751 = vmatmul.f32.gmra.mxu0 0.0
    %v752 = vpop.f32.mrf.mxu0
    %v753 = vadd.f32 %v733, %v752
    %754 = vdwg.mxu0
    %v755 = vxor.u32 %v633, 2147483648
    %v756 = vxor.u32 %v673, 2147483648
    %v757 = vxor.u32 %v713, 2147483648
    %v758 = vxor.u32 %v753, 2147483648
    %v759 = vmul.f32 %v755, 1.442695
    %v760 = vpow.pop %v759
    %v761 = vmul.f32 %v756, 1.442695
    %v762 = vpow.pop %v761
    %v763 = vmul.f32 %v757, 1.442695
    %v764 = vpow.pop %v763
    %v765 = vmul.f32 %v758, 1.442695
    %v766 = vpow.pop %v765
    %v767 = vadd.f32 %v760, 1.0
    %v768 = vadd.f32 %v762, 1.0
    %v769 = vadd.f32 %v764, 1.0
    %v770 = vadd.f32 %v766, 1.0
    %v771 = vrcp.pop %v767
    %v772 = vmul.f32 %v767, %v771
    %v773 = vsub.f32 1.0, %v772
    %v774 = vmul.f32 %v771, %v773
    %v775 = vadd.f32 %v771, %v774
    %vm776 = vweird.f32 %v767
    %vm777 = vweird.f32 %v771
    %vm778 = vmor %vm776, %vm777
    %v779 = vsel %vm778, %v771, %v775
    %v780 = vand.u32 2147483647, %v767
    %vm781 = vcmp.eq.f32.partialorder %v780, 8.507059e+37
    %v782 = vand.u32 %v767, 2147483648
    %v783 = vor.u32 1.1754944e-38, %v782
    %v784 = vsel %vm781, %v783, %v779
    %v785 = vmul.f32 1.0, %v784
    %v786 = vrcp.pop %v768
    %v787 = vmul.f32 %v768, %v786
    %v788 = vsub.f32 1.0, %v787
    %v789 = vmul.f32 %v786, %v788
    %v790 = vadd.f32 %v786, %v789
    %vm791 = vweird.f32 %v768
    %vm792 = vweird.f32 %v786
    %vm793 = vmor %vm791, %vm792
    %v794 = vsel %vm793, %v786, %v790
    %v795 = vand.u32 2147483647, %v768
    %vm796 = vcmp.eq.f32.partialorder %v795, 8.507059e+37
    %v797 = vand.u32 %v768, 2147483648
    %v798 = vor.u32 1.1754944e-38, %v797
    %v799 = vsel %vm796, %v798, %v794
    %v800 = vmul.f32 1.0, %v799
    %v801 = vrcp.pop %v769
    %v802 = vmul.f32 %v769, %v801
    %v803 = vsub.f32 1.0, %v802
    %v804 = vmul.f32 %v801, %v803
    %v805 = vadd.f32 %v801, %v804
    %vm806 = vweird.f32 %v769
    %vm807 = vweird.f32 %v801
    %vm808 = vmor %vm806, %vm807
    %v809 = vsel %vm808, %v801, %v805
    %v810 = vand.u32 2147483647, %v769
    %vm811 = vcmp.eq.f32.partialorder %v810, 8.507059e+37
    %v812 = vand.u32 %v769, 2147483648
    %v813 = vor.u32 1.1754944e-38, %v812
    %v814 = vsel %vm811, %v813, %v809
    %v815 = vmul.f32 1.0, %v814
    %v816 = vrcp.pop %v770
    %v817 = vmul.f32 %v770, %v816
    %v818 = vsub.f32 1.0, %v817
    %v819 = vmul.f32 %v816, %v818
    %v820 = vadd.f32 %v816, %v819
    %vm821 = vweird.f32 %v770
    %vm822 = vweird.f32 %v816
    %vm823 = vmor %vm821, %vm822
    %v824 = vsel %vm823, %v816, %v820
    %v825 = vand.u32 2147483647, %v770
    %vm826 = vcmp.eq.f32.partialorder %v825, 8.507059e+37
    %v827 = vand.u32 %v770, 2147483648
    %v828 = vor.u32 1.1754944e-38, %v827
    %v829 = vsel %vm826, %v828, %v824
    %v830 = vmul.f32 1.0, %v829
    %v831 = vmul.f32 %v815, 2.0
    %v832 = vsub.f32 %v831, 1.0
    %v833 = vmul.f32 %v800, 0.0
    %v834 = vmul.f32 %v785, %v832
    %v835 = vadd.f32 %v833, %v834
    %v836 = vtanh.pop %v835
    %v837 = vmul.f32 %v830, %v836
    %v838 = vld [vmem:[#allocation7] sm:$0xff]
    %v839 = vld [vmem:[#allocation7 + $0x8] sm:$0xff]
    %v840 = vld [vmem:[#allocation7 + $0x10] sm:$0xff]
    %v841 = vld [vmem:[#allocation7 + $0x18] sm:$0xff]
    %v842 = vld [vmem:[#allocation7 + $0x20] sm:$0xff]
    %v843 = vld [vmem:[#allocation7 + $0x28] sm:$0xff]
    %v844 = vld [vmem:[#allocation7 + $0x30] sm:$0xff]
    %v845 = vld [vmem:[#allocation7 + $0x38] sm:$0xff]
    %v846 = vld [vmem:[#allocation7 + $0x40] sm:$0xff]
    %v847 = vld [vmem:[#allocation7 + $0x48] sm:$0xff]
    %v848 = vld [vmem:[#allocation7 + $0x50] sm:$0xff]
    %v849 = vld [vmem:[#allocation7 + $0x58] sm:$0xff]
    %v850 = vld [vmem:[#allocation7 + $0x60] sm:$0xff]
    %v851 = vld [vmem:[#allocation7 + $0x68] sm:$0xff]
    %v852 = vld [vmem:[#allocation7 + $0x70] sm:$0xff]
    %v853 = vld [vmem:[#allocation7 + $0x78] sm:$0xff]
    %v854 = vld [vmem:[#allocation7 + $0x80] sm:$0xff]
    %v855 = vld [vmem:[#allocation7 + $0x88] sm:$0xff]
    %v856 = vld [vmem:[#allocation7 + $0x90] sm:$0xff]
    %v857 = vld [vmem:[#allocation7 + $0x98] sm:$0xff]
    %v858 = vld [vmem:[#allocation7 + $0xa0] sm:$0xff]
    %v859 = vld [vmem:[#allocation7 + $0xa8] sm:$0xff]
    %v860 = vld [vmem:[#allocation7 + $0xb0] sm:$0xff]
    %v861 = vld [vmem:[#allocation7 + $0xb8] sm:$0xff]
    %v862 = vld [vmem:[#allocation7 + $0xc0] sm:$0xff]
    %v863 = vld [vmem:[#allocation7 + $0xc8] sm:$0xff]
    %v864 = vld [vmem:[#allocation7 + $0xd0] sm:$0xff]
    %v865 = vld [vmem:[#allocation7 + $0xd8] sm:$0xff]
    %v866 = vld [vmem:[#allocation7 + $0xe0] sm:$0xff]
    %v867 = vld [vmem:[#allocation7 + $0xe8] sm:$0xff]
    %v868 = vld [vmem:[#allocation7 + $0xf0] sm:$0xff]
    %v869 = vld [vmem:[#allocation7 + $0xf8] sm:$0xff]
    %v870 = vld [vmem:[#allocation7 + $0x100] sm:$0xff]
    %v871 = vld [vmem:[#allocation7 + $0x108] sm:$0xff]
    %v872 = vld [vmem:[#allocation7 + $0x110] sm:$0xff]
    %v873 = vld [vmem:[#allocation7 + $0x118] sm:$0xff]
    %v874 = vld [vmem:[#allocation7 + $0x120] sm:$0xff]
    %v875 = vld [vmem:[#allocation7 + $0x128] sm:$0xff]
    %v876 = vld [vmem:[#allocation7 + $0x130] sm:$0xff]
    %v877 = vld [vmem:[#allocation7 + $0x138] sm:$0xff]
    %v878 = vld [vmem:[#allocation7 + $0x140] sm:$0xff]
    %v879 = vld [vmem:[#allocation7 + $0x148] sm:$0xff]
    %v880 = vld [vmem:[#allocation7 + $0x150] sm:$0xff]
    %v881 = vld [vmem:[#allocation7 + $0x158] sm:$0xff]
    %v882 = vld [vmem:[#allocation7 + $0x160] sm:$0xff]
    %v883 = vld [vmem:[#allocation7 + $0x168] sm:$0xff]
    %v884 = vld [vmem:[#allocation7 + $0x170] sm:$0xff]
    %v885 = vld [vmem:[#allocation7 + $0x178] sm:$0xff]
    %v886 = vld [vmem:[#allocation7 + $0x180] sm:$0xff]
    %v887 = vld [vmem:[#allocation7 + $0x188] sm:$0xff]
    %v888 = vld [vmem:[#allocation7 + $0x190] sm:$0xff]
    %v889 = vld [vmem:[#allocation7 + $0x198] sm:$0xff]
    %v890 = vld [vmem:[#allocation7 + $0x1a0] sm:$0xff]
    %v891 = vld [vmem:[#allocation7 + $0x1a8] sm:$0xff]
    %v892 = vld [vmem:[#allocation7 + $0x1b0] sm:$0xff]
    %v893 = vld [vmem:[#allocation7 + $0x1b8] sm:$0xff]
    %v894 = vld [vmem:[#allocation7 + $0x1c0] sm:$0xff]
    %v895 = vld [vmem:[#allocation7 + $0x1c8] sm:$0xff]
    %v896 = vld [vmem:[#allocation7 + $0x1d0] sm:$0xff]
    %v897 = vld [vmem:[#allocation7 + $0x1d8] sm:$0xff]
    %v898 = vld [vmem:[#allocation7 + $0x1e0] sm:$0xff]
    %v899 = vld [vmem:[#allocation7 + $0x1e8] sm:$0xff]
    %v900 = vld [vmem:[#allocation7 + $0x1f0] sm:$0xff]
    %v901 = vld [vmem:[#allocation7 + $0x1f8] sm:$0xff]
    %v902 = vld [vmem:[#allocation7 + $0x200] sm:$0xff]
    %v903 = vld [vmem:[#allocation7 + $0x208] sm:$0xff]
    %v904 = vld [vmem:[#allocation7 + $0x210] sm:$0xff]
    %v905 = vld [vmem:[#allocation7 + $0x218] sm:$0xff]
    %v906 = vld [vmem:[#allocation7 + $0x220] sm:$0xff]
    %v907 = vld [vmem:[#allocation7 + $0x228] sm:$0xff]
    %v908 = vld [vmem:[#allocation7 + $0x230] sm:$0xff]
    %v909 = vld [vmem:[#allocation7 + $0x238] sm:$0xff]
    %v910 = vld [vmem:[#allocation7 + $0x240] sm:$0xff]
    %v911 = vld [vmem:[#allocation7 + $0x248] sm:$0xff]
    %v912 = vld [vmem:[#allocation7 + $0x250] sm:$0xff]
    %v913 = vld [vmem:[#allocation7 + $0x258] sm:$0xff]
    %v914 = vld [vmem:[#allocation7 + $0x260] sm:$0xff]
    %v915 = vld [vmem:[#allocation7 + $0x268] sm:$0xff]
    %v916 = vld [vmem:[#allocation7 + $0x270] sm:$0xff]
    %v917 = vld [vmem:[#allocation7 + $0x278] sm:$0xff]
    %v918 = vld [vmem:[#allocation7 + $0x280] sm:$0xff]
    %v919 = vld [vmem:[#allocation7 + $0x288] sm:$0xff]
    %v920 = vld [vmem:[#allocation7 + $0x290] sm:$0xff]
    %v921 = vld [vmem:[#allocation7 + $0x298] sm:$0xff]
    %v922 = vld [vmem:[#allocation7 + $0x2a0] sm:$0xff]
    %v923 = vld [vmem:[#allocation7 + $0x2a8] sm:$0xff]
    %v924 = vld [vmem:[#allocation7 + $0x2b0] sm:$0xff]
    %v925 = vld [vmem:[#allocation7 + $0x2b8] sm:$0xff]
    %v926 = vld [vmem:[#allocation7 + $0x2c0] sm:$0xff]
    %v927 = vld [vmem:[#allocation7 + $0x2c8] sm:$0xff]
    %v928 = vld [vmem:[#allocation7 + $0x2d0] sm:$0xff]
    %v929 = vld [vmem:[#allocation7 + $0x2d8] sm:$0xff]
    %v930 = vld [vmem:[#allocation7 + $0x2e0] sm:$0xff]
    %v931 = vld [vmem:[#allocation7 + $0x2e8] sm:$0xff]
    %v932 = vld [vmem:[#allocation7 + $0x2f0] sm:$0xff]
    %v933 = vld [vmem:[#allocation7 + $0x2f8] sm:$0xff]
    %v934 = vld [vmem:[#allocation7 + $0x300] sm:$0xff]
    %v935 = vld [vmem:[#allocation7 + $0x308] sm:$0xff]
    %v936 = vld [vmem:[#allocation7 + $0x310] sm:$0xff]
    %v937 = vld [vmem:[#allocation7 + $0x318] sm:$0xff]
    %v938 = vld [vmem:[#allocation7 + $0x320] sm:$0xff]
    %v939 = vld [vmem:[#allocation7 + $0x328] sm:$0xff]
    %v940 = vld [vmem:[#allocation7 + $0x330] sm:$0xff]
    %v941 = vld [vmem:[#allocation7 + $0x338] sm:$0xff]
    %v942 = vld [vmem:[#allocation7 + $0x340] sm:$0xff]
    %v943 = vld [vmem:[#allocation7 + $0x348] sm:$0xff]
    %v944 = vld [vmem:[#allocation7 + $0x350] sm:$0xff]
    %v945 = vld [vmem:[#allocation7 + $0x358] sm:$0xff]
    %v946 = vld [vmem:[#allocation7 + $0x360] sm:$0xff]
    %v947 = vld [vmem:[#allocation7 + $0x368] sm:$0xff]
    %v948 = vld [vmem:[#allocation7 + $0x370] sm:$0xff]
    %v949 = vld [vmem:[#allocation7 + $0x378] sm:$0xff]
    %v950 = vld [vmem:[#allocation7 + $0x380] sm:$0xff]
    %v951 = vld [vmem:[#allocation7 + $0x388] sm:$0xff]
    %v952 = vld [vmem:[#allocation7 + $0x390] sm:$0xff]
    %v953 = vld [vmem:[#allocation7 + $0x398] sm:$0xff]
    %v954 = vld [vmem:[#allocation7 + $0x3a0] sm:$0xff]
    %v955 = vld [vmem:[#allocation7 + $0x3a8] sm:$0xff]
    %v956 = vld [vmem:[#allocation7 + $0x3b0] sm:$0xff]
    %v957 = vld [vmem:[#allocation7 + $0x3b8] sm:$0xff]
    %v958 = vld [vmem:[#allocation7 + $0x3c0] sm:$0xff]
    %v959 = vld [vmem:[#allocation7 + $0x3c8] sm:$0xff]
    %v960 = vld [vmem:[#allocation7 + $0x3d0] sm:$0xff]
    %v961 = vld [vmem:[#allocation7 + $0x3d8] sm:$0xff]
    %v962 = vld [vmem:[#allocation7 + $0x3e0] sm:$0xff]
    %v963 = vld [vmem:[#allocation7 + $0x3e8] sm:$0xff]
    %v964 = vld [vmem:[#allocation7 + $0x3f0] sm:$0xff]
    %v965 = vld [vmem:[#allocation7 + $0x3f8] sm:$0xff]
    %966 = vmatpush.msra.mxu0 %v898
    %967 = vmatpush.msra.mxu0 %v894
    %968 = vmatpush.msra.mxu0 %v890
    %969 = vmatpush.msra.mxu0 %v886
    %970 = vmatpush.msra.mxu0 %v882
    %971 = vmatpush.msra.mxu0 %v878
    %972 = vmatpush.msra.mxu0 %v874
    %973 = vmatpush.msra.mxu0 %v870
    %974 = vmatpush.msra.mxu0 %v866
    %975 = vmatpush.msra.mxu0 %v862
    %976 = vmatpush.msra.mxu0 %v858
    %977 = vmatpush.msra.mxu0 %v854
    %978 = vmatpush.msra.mxu0 %v850
    %979 = vmatpush.msra.mxu0 %v846
    %980 = vmatpush.msra.mxu0 %v842
    %981 = vmatpush.msra.mxu0 %v838
    %982 = vmatmul.f32.gmra.mxu0 %v837
    %v983 = vpop.f32.mrf.mxu0
    %v984 = vadd.f32 %v228, %v983
    %985 = vdwg.mxu0
    %986 = vmatpush.msra.mxu0 %v962
    %987 = vmatpush.msra.mxu0 %v958
    %988 = vmatpush.msra.mxu0 %v954
    %989 = vmatpush.msra.mxu0 %v950
    %990 = vmatpush.msra.mxu0 %v946
    %991 = vmatpush.msra.mxu0 %v942
    %992 = vmatpush.msra.mxu0 %v938
    %993 = vmatpush.msra.mxu0 %v934
    %994 = vmatpush.msra.mxu0 %v930
    %995 = vmatpush.msra.mxu0 %v926
    %996 = vmatpush.msra.mxu0 %v922
    %997 = vmatpush.msra.mxu0 %v918
    %998 = vmatpush.msra.mxu0 %v914
    %999 = vmatpush.msra.mxu0 %v910
    %1000 = vmatpush.msra.mxu0 %v906
    %1001 = vmatpush.msra.mxu0 %v902
    %1002 = vmatmul.f32.gmra.mxu0 0.0
    %v1003 = vpop.f32.mrf.mxu0
    %v1004 = vadd.f32 %v984, %v1003
    %1005 = vdwg.mxu0
    %1006 = vmatpush.msra.mxu0 %v899
    %1007 = vmatpush.msra.mxu0 %v895
    %1008 = vmatpush.msra.mxu0 %v891
    %1009 = vmatpush.msra.mxu0 %v887
    %1010 = vmatpush.msra.mxu0 %v883
    %1011 = vmatpush.msra.mxu0 %v879
    %1012 = vmatpush.msra.mxu0 %v875
    %1013 = vmatpush.msra.mxu0 %v871
    %1014 = vmatpush.msra.mxu0 %v867
    %1015 = vmatpush.msra.mxu0 %v863
    %1016 = vmatpush.msra.mxu0 %v859
    %1017 = vmatpush.msra.mxu0 %v855
    %1018 = vmatpush.msra.mxu0 %v851
    %1019 = vmatpush.msra.mxu0 %v847
    %1020 = vmatpush.msra.mxu0 %v843
    %1021 = vmatpush.msra.mxu0 %v839
    %1022 = vmatmul.f32.gmra.mxu0 %v837
    %v1023 = vpop.f32.mrf.mxu0
    %v1024 = vadd.f32 %v229, %v1023
    %1025 = vdwg.mxu0
    %1026 = vmatpush.msra.mxu0 %v963
    %1027 = vmatpush.msra.mxu0 %v959
    %1028 = vmatpush.msra.mxu0 %v955
    %1029 = vmatpush.msra.mxu0 %v951
    %1030 = vmatpush.msra.mxu0 %v947
    %1031 = vmatpush.msra.mxu0 %v943
    %1032 = vmatpush.msra.mxu0 %v939
    %1033 = vmatpush.msra.mxu0 %v935
    %1034 = vmatpush.msra.mxu0 %v931
    %1035 = vmatpush.msra.mxu0 %v927
    %1036 = vmatpush.msra.mxu0 %v923
    %1037 = vmatpush.msra.mxu0 %v919
    %1038 = vmatpush.msra.mxu0 %v915
    %1039 = vmatpush.msra.mxu0 %v911
    %1040 = vmatpush.msra.mxu0 %v907
    %1041 = vmatpush.msra.mxu0 %v903
    %1042 = vmatmul.f32.gmra.mxu0 0.0
    %v1043 = vpop.f32.mrf.mxu0
    %v1044 = vadd.f32 %v1024, %v1043
    %1045 = vdwg.mxu0
    %1046 = vmatpush.msra.mxu0 %v900
    %1047 = vmatpush.msra.mxu0 %v896
    %1048 = vmatpush.msra.mxu0 %v892
    %1049 = vmatpush.msra.mxu0 %v888
    %1050 = vmatpush.msra.mxu0 %v884
    %1051 = vmatpush.msra.mxu0 %v880
    %1052 = vmatpush.msra.mxu0 %v876
    %1053 = vmatpush.msra.mxu0 %v872
    %1054 = vmatpush.msra.mxu0 %v868
    %1055 = vmatpush.msra.mxu0 %v864
    %1056 = vmatpush.msra.mxu0 %v860
    %1057 = vmatpush.msra.mxu0 %v856
    %1058 = vmatpush.msra.mxu0 %v852
    %1059 = vmatpush.msra.mxu0 %v848
    %1060 = vmatpush.msra.mxu0 %v844
    %1061 = vmatpush.msra.mxu0 %v840
    %1062 = vmatmul.f32.gmra.mxu0 %v837
    %v1063 = vpop.f32.mrf.mxu0
    %v1064 = vadd.f32 %v230, %v1063
    %1065 = vdwg.mxu0
    %1066 = vmatpush.msra.mxu0 %v964
    %1067 = vmatpush.msra.mxu0 %v960
    %1068 = vmatpush.msra.mxu0 %v956
    %1069 = vmatpush.msra.mxu0 %v952
    %1070 = vmatpush.msra.mxu0 %v948
    %1071 = vmatpush.msra.mxu0 %v944
    %1072 = vmatpush.msra.mxu0 %v940
    %1073 = vmatpush.msra.mxu0 %v936
    %1074 = vmatpush.msra.mxu0 %v932
    %1075 = vmatpush.msra.mxu0 %v928
    %1076 = vmatpush.msra.mxu0 %v924
    %1077 = vmatpush.msra.mxu0 %v920
    %1078 = vmatpush.msra.mxu0 %v916
    %1079 = vmatpush.msra.mxu0 %v912
    %1080 = vmatpush.msra.mxu0 %v908
    %1081 = vmatpush.msra.mxu0 %v904
    %1082 = vmatmul.f32.gmra.mxu0 0.0
    %v1083 = vpop.f32.mrf.mxu0
    %v1084 = vadd.f32 %v1064, %v1083
    %1085 = vdwg.mxu0
    %1086 = vmatpush.msra.mxu0 %v901
    %1087 = vmatpush.msra.mxu0 %v897
    %1088 = vmatpush.msra.mxu0 %v893
    %1089 = vmatpush.msra.mxu0 %v889
    %1090 = vmatpush.msra.mxu0 %v885
    %1091 = vmatpush.msra.mxu0 %v881
    %1092 = vmatpush.msra.mxu0 %v877
    %1093 = vmatpush.msra.mxu0 %v873
    %1094 = vmatpush.msra.mxu0 %v869
    %1095 = vmatpush.msra.mxu0 %v865
    %1096 = vmatpush.msra.mxu0 %v861
    %1097 = vmatpush.msra.mxu0 %v857
    %1098 = vmatpush.msra.mxu0 %v853
    %1099 = vmatpush.msra.mxu0 %v849
    %1100 = vmatpush.msra.mxu0 %v845
    %1101 = vmatpush.msra.mxu0 %v841
    %1102 = vmatmul.f32.gmra.mxu0 %v837
    %v1103 = vpop.f32.mrf.mxu0
    %v1104 = vadd.f32 %v231, %v1103
    %1105 = vdwg.mxu0
    %1106 = vmatpush.msra.mxu0 %v965
    %1107 = vmatpush.msra.mxu0 %v961
    %1108 = vmatpush.msra.mxu0 %v957
    %1109 = vmatpush.msra.mxu0 %v953
    %1110 = vmatpush.msra.mxu0 %v949
    %1111 = vmatpush.msra.mxu0 %v945
    %1112 = vmatpush.msra.mxu0 %v941
    %1113 = vmatpush.msra.mxu0 %v937
    %1114 = vmatpush.msra.mxu0 %v933
    %1115 = vmatpush.msra.mxu0 %v929
    %1116 = vmatpush.msra.mxu0 %v925
    %1117 = vmatpush.msra.mxu0 %v921
    %1118 = vmatpush.msra.mxu0 %v917
    %1119 = vmatpush.msra.mxu0 %v913
    %1120 = vmatpush.msra.mxu0 %v909
    %1121 = vmatpush.msra.mxu0 %v905
    %1122 = vmatmul.f32.gmra.mxu0 0.0
    %v1123 = vpop.f32.mrf.mxu0
    %v1124 = vadd.f32 %v1104, %v1123
    %1125 = vdwg.mxu0
    %v1126 = vxor.u32 %v1004, 2147483648
    %v1127 = vxor.u32 %v1044, 2147483648
    %v1128 = vxor.u32 %v1084, 2147483648
    %v1129 = vxor.u32 %v1124, 2147483648
    %v1130 = vmul.f32 %v1126, 1.442695
    %v1131 = vpow.pop %v1130
    %v1132 = vmul.f32 %v1127, 1.442695
    %v1133 = vpow.pop %v1132
    %v1134 = vmul.f32 %v1128, 1.442695
    %v1135 = vpow.pop %v1134
    %v1136 = vmul.f32 %v1129, 1.442695
    %v1137 = vpow.pop %v1136
    %v1138 = vadd.f32 %v1131, 1.0
    %v1139 = vadd.f32 %v1133, 1.0
    %v1140 = vadd.f32 %v1135, 1.0
    %v1141 = vadd.f32 %v1137, 1.0
    %v1142 = vrcp.pop %v1138
    %v1143 = vmul.f32 %v1138, %v1142
    %v1144 = vsub.f32 1.0, %v1143
    %v1145 = vmul.f32 %v1142, %v1144
    %v1146 = vadd.f32 %v1142, %v1145
    %vm1147 = vweird.f32 %v1138
    %vm1148 = vweird.f32 %v1142
    %vm1149 = vmor %vm1147, %vm1148
    %v1150 = vsel %vm1149, %v1142, %v1146
    %v1151 = vand.u32 2147483647, %v1138
    %vm1152 = vcmp.eq.f32.partialorder %v1151, 8.507059e+37
    %v1153 = vand.u32 %v1138, 2147483648
    %v1154 = vor.u32 1.1754944e-38, %v1153
    %v1155 = vsel %vm1152, %v1154, %v1150
    %v1156 = vmul.f32 1.0, %v1155
    %v1157 = vrcp.pop %v1139
    %v1158 = vmul.f32 %v1139, %v1157
    %v1159 = vsub.f32 1.0, %v1158
    %v1160 = vmul.f32 %v1157, %v1159
    %v1161 = vadd.f32 %v1157, %v1160
    %vm1162 = vweird.f32 %v1139
    %vm1163 = vweird.f32 %v1157
    %vm1164 = vmor %vm1162, %vm1163
    %v1165 = vsel %vm1164, %v1157, %v1161
    %v1166 = vand.u32 2147483647, %v1139
    %vm1167 = vcmp.eq.f32.partialorder %v1166, 8.507059e+37
    %v1168 = vand.u32 %v1139, 2147483648
    %v1169 = vor.u32 1.1754944e-38, %v1168
    %v1170 = vsel %vm1167, %v1169, %v1165
    %v1171 = vmul.f32 1.0, %v1170
    %v1172 = vrcp.pop %v1140
    %v1173 = vmul.f32 %v1140, %v1172
    %v1174 = vsub.f32 1.0, %v1173
    %v1175 = vmul.f32 %v1172, %v1174
    %v1176 = vadd.f32 %v1172, %v1175
    %vm1177 = vweird.f32 %v1140
    %vm1178 = vweird.f32 %v1172
    %vm1179 = vmor %vm1177, %vm1178
    %v1180 = vsel %vm1179, %v1172, %v1176
    %v1181 = vand.u32 2147483647, %v1140
    %vm1182 = vcmp.eq.f32.partialorder %v1181, 8.507059e+37
    %v1183 = vand.u32 %v1140, 2147483648
    %v1184 = vor.u32 1.1754944e-38, %v1183
    %v1185 = vsel %vm1182, %v1184, %v1180
    %v1186 = vmul.f32 1.0, %v1185
    %v1187 = vrcp.pop %v1141
    %v1188 = vmul.f32 %v1141, %v1187
    %v1189 = vsub.f32 1.0, %v1188
    %v1190 = vmul.f32 %v1187, %v1189
    %v1191 = vadd.f32 %v1187, %v1190
    %vm1192 = vweird.f32 %v1141
    %vm1193 = vweird.f32 %v1187
    %vm1194 = vmor %vm1192, %vm1193
    %v1195 = vsel %vm1194, %v1187, %v1191
    %v1196 = vand.u32 2147483647, %v1141
    %vm1197 = vcmp.eq.f32.partialorder %v1196, 8.507059e+37
    %v1198 = vand.u32 %v1141, 2147483648
    %v1199 = vor.u32 1.1754944e-38, %v1198
    %v1200 = vsel %vm1197, %v1199, %v1195
    %v1201 = vmul.f32 1.0, %v1200
    %v1202 = vmul.f32 %v1186, 2.0
    %v1203 = vsub.f32 %v1202, 1.0
    %v1204 = vmul.f32 %v1171, 0.0
    %v1205 = vmul.f32 %v1156, %v1203
    %v1206 = vadd.f32 %v1204, %v1205
    %v1207 = vtanh.pop %v1206
    %v1208 = vmul.f32 %v1201, %v1207
    %1209 = vmatpush.msra.mxu0 %v296
    %1210 = vmatpush.msra.mxu0 %v292
    %1211 = vmatpush.msra.mxu0 %v288
    %1212 = vmatpush.msra.mxu0 %v284
    %1213 = vmatpush.msra.mxu0 %v280
    %1214 = vmatpush.msra.mxu0 %v276
    %1215 = vmatpush.msra.mxu0 %v272
    %1216 = vmatpush.msra.mxu0 %v268
    %1217 = vmatpush.msra.mxu0 %v264
    %1218 = vmatpush.msra.mxu0 %v260
    %1219 = vmatpush.msra.mxu0 %v256
    %1220 = vmatpush.msra.mxu0 %v252
    %1221 = vmatpush.msra.mxu0 %v248
    %1222 = vmatpush.msra.mxu0 %v244
    %1223 = vmatpush.msra.mxu0 %v240
    %1224 = vmatpush.msra.mxu0 %v236
    %1225 = vmatmul.f32.gmra.mxu0 %v466
    %v1226 = vpop.f32.mrf.mxu0
    %v1227 = vadd.f32 0.0, %v1226
    %1228 = vdwg.mxu0
    %1229 = vmatpush.msra.mxu0 %v297
    %1230 = vmatpush.msra.mxu0 %v293
    %1231 = vmatpush.msra.mxu0 %v289
    %1232 = vmatpush.msra.mxu0 %v285
    %1233 = vmatpush.msra.mxu0 %v281
    %1234 = vmatpush.msra.mxu0 %v277
    %1235 = vmatpush.msra.mxu0 %v273
    %1236 = vmatpush.msra.mxu0 %v269
    %1237 = vmatpush.msra.mxu0 %v265
    %1238 = vmatpush.msra.mxu0 %v261
    %1239 = vmatpush.msra.mxu0 %v257
    %1240 = vmatpush.msra.mxu0 %v253
    %1241 = vmatpush.msra.mxu0 %v249
    %1242 = vmatpush.msra.mxu0 %v245
    %1243 = vmatpush.msra.mxu0 %v241
    %1244 = vmatpush.msra.mxu0 %v237
    %1245 = vmatmul.f32.gmra.mxu0 %v466
    %v1246 = vpop.f32.mrf.mxu0
    %v1247 = vadd.f32 0.0, %v1246
    %1248 = vdwg.mxu0
    %1249 = vmatpush.msra.mxu0 %v298
    %1250 = vmatpush.msra.mxu0 %v294
    %1251 = vmatpush.msra.mxu0 %v290
    %1252 = vmatpush.msra.mxu0 %v286
    %1253 = vmatpush.msra.mxu0 %v282
    %1254 = vmatpush.msra.mxu0 %v278
    %1255 = vmatpush.msra.mxu0 %v274
    %1256 = vmatpush.msra.mxu0 %v270
    %1257 = vmatpush.msra.mxu0 %v266
    %1258 = vmatpush.msra.mxu0 %v262
    %1259 = vmatpush.msra.mxu0 %v258
    %1260 = vmatpush.msra.mxu0 %v254
    %1261 = vmatpush.msra.mxu0 %v250
    %1262 = vmatpush.msra.mxu0 %v246
    %1263 = vmatpush.msra.mxu0 %v242
    %1264 = vmatpush.msra.mxu0 %v238
    %1265 = vmatmul.f32.gmra.mxu0 %v466
    %v1266 = vpop.f32.mrf.mxu0
    %v1267 = vadd.f32 0.0, %v1266
    %1268 = vdwg.mxu0
    %1269 = vmatpush.msra.mxu0 %v299
    %1270 = vmatpush.msra.mxu0 %v295
    %1271 = vmatpush.msra.mxu0 %v291
    %1272 = vmatpush.msra.mxu0 %v287
    %1273 = vmatpush.msra.mxu0 %v283
    %1274 = vmatpush.msra.mxu0 %v279
    %1275 = vmatpush.msra.mxu0 %v275
    %1276 = vmatpush.msra.mxu0 %v271
    %1277 = vmatpush.msra.mxu0 %v267
    %1278 = vmatpush.msra.mxu0 %v263
    %1279 = vmatpush.msra.mxu0 %v259
    %1280 = vmatpush.msra.mxu0 %v255
    %1281 = vmatpush.msra.mxu0 %v251
    %1282 = vmatpush.msra.mxu0 %v247
    %1283 = vmatpush.msra.mxu0 %v243
    %1284 = vmatpush.msra.mxu0 %v239
    %1285 = vmatmul.f32.gmra.mxu0 %v466
    %v1286 = vpop.f32.mrf.mxu0
    %v1287 = vadd.f32 0.0, %v1286
    %1288 = vdwg.mxu0
    %v1289 = vadd.f32 %v188, %v1227
    %v1290 = vadd.f32 %v189, %v1247
    %v1291 = vadd.f32 %v190, %v1267
    %v1292 = vadd.f32 %v191, %v1287
    %v1293 = vxor.u32 %v1289, 2147483648
    %v1294 = vxor.u32 %v1290, 2147483648
    %v1295 = vxor.u32 %v1291, 2147483648
    %v1296 = vxor.u32 %v1292, 2147483648
    %v1297 = vmul.f32 %v1293, 1.442695
    %v1298 = vpow.pop %v1297
    %v1299 = vmul.f32 %v1294, 1.442695
    %v1300 = vpow.pop %v1299
    %v1301 = vmul.f32 %v1295, 1.442695
    %v1302 = vpow.pop %v1301
    %v1303 = vmul.f32 %v1296, 1.442695
    %v1304 = vpow.pop %v1303
    %v1305 = vadd.f32 %v1298, 1.0
    %v1306 = vadd.f32 %v1300, 1.0
    %v1307 = vadd.f32 %v1302, 1.0
    %v1308 = vadd.f32 %v1304, 1.0
    %v1309 = vrcp.pop %v1305
    %v1310 = vmul.f32 %v1305, %v1309
    %v1311 = vsub.f32 1.0, %v1310
    %v1312 = vmul.f32 %v1309, %v1311
    %v1313 = vadd.f32 %v1309, %v1312
    %vm1314 = vweird.f32 %v1305
    %vm1315 = vweird.f32 %v1309
    %vm1316 = vmor %vm1314, %vm1315
    %v1317 = vsel %vm1316, %v1309, %v1313
    %v1318 = vand.u32 2147483647, %v1305
    %vm1319 = vcmp.eq.f32.partialorder %v1318, 8.507059e+37
    %v1320 = vand.u32 %v1305, 2147483648
    %v1321 = vor.u32 1.1754944e-38, %v1320
    %v1322 = vsel %vm1319, %v1321, %v1317
    %v1323 = vmul.f32 1.0, %v1322
    %v1324 = vrcp.pop %v1306
    %v1325 = vmul.f32 %v1306, %v1324
    %v1326 = vsub.f32 1.0, %v1325
    %v1327 = vmul.f32 %v1324, %v1326
    %v1328 = vadd.f32 %v1324, %v1327
    %vm1329 = vweird.f32 %v1306
    %vm1330 = vweird.f32 %v1324
    %vm1331 = vmor %vm1329, %vm1330
    %v1332 = vsel %vm1331, %v1324, %v1328
    %v1333 = vand.u32 2147483647, %v1306
    %vm1334 = vcmp.eq.f32.partialorder %v1333, 8.507059e+37
    %v1335 = vand.u32 %v1306, 2147483648
    %v1336 = vor.u32 1.1754944e-38, %v1335
    %v1337 = vsel %vm1334, %v1336, %v1332
    %v1338 = vmul.f32 1.0, %v1337
    %v1339 = vrcp.pop %v1307
    %v1340 = vmul.f32 %v1307, %v1339
    %v1341 = vsub.f32 1.0, %v1340
    %v1342 = vmul.f32 %v1339, %v1341
    %v1343 = vadd.f32 %v1339, %v1342
    %vm1344 = vweird.f32 %v1307
    %vm1345 = vweird.f32 %v1339
    %vm1346 = vmor %vm1344, %vm1345
    %v1347 = vsel %vm1346, %v1339, %v1343
    %v1348 = vand.u32 2147483647, %v1307
    %vm1349 = vcmp.eq.f32.partialorder %v1348, 8.507059e+37
    %v1350 = vand.u32 %v1307, 2147483648
    %v1351 = vor.u32 1.1754944e-38, %v1350
    %v1352 = vsel %vm1349, %v1351, %v1347
    %v1353 = vmul.f32 1.0, %v1352
    %v1354 = vrcp.pop %v1308
    %v1355 = vmul.f32 %v1308, %v1354
    %v1356 = vsub.f32 1.0, %v1355
    %v1357 = vmul.f32 %v1354, %v1356
    %v1358 = vadd.f32 %v1354, %v1357
    %vm1359 = vweird.f32 %v1308
    %vm1360 = vweird.f32 %v1354
    %vm1361 = vmor %vm1359, %vm1360
    %v1362 = vsel %vm1361, %v1354, %v1358
    %v1363 = vand.u32 2147483647, %v1308
    %vm1364 = vcmp.eq.f32.partialorder %v1363, 8.507059e+37
    %v1365 = vand.u32 %v1308, 2147483648
    %v1366 = vor.u32 1.1754944e-38, %v1365
    %v1367 = vsel %vm1364, %v1366, %v1362
    %v1368 = vmul.f32 1.0, %v1367
    %v1369 = vmul.f32 %v1353, 2.0
    %v1370 = vsub.f32 %v1369, 1.0
    %v1371 = vmul.f32 %v1338, %v464
    %v1372 = vmul.f32 %v1323, %v1370
    %v1373 = vadd.f32 %v1371, %v1372
    %v1374 = vtanh.pop %v1373
    %v1375 = vmul.f32 %v1368, %v1374
    %1376 = vmatpush.msra.mxu0 %v527
    %1377 = vmatpush.msra.mxu0 %v523
    %1378 = vmatpush.msra.mxu0 %v519
    %1379 = vmatpush.msra.mxu0 %v515
    %1380 = vmatpush.msra.mxu0 %v511
    %1381 = vmatpush.msra.mxu0 %v507
    %1382 = vmatpush.msra.mxu0 %v503
    %1383 = vmatpush.msra.mxu0 %v499
    %1384 = vmatpush.msra.mxu0 %v495
    %1385 = vmatpush.msra.mxu0 %v491
    %1386 = vmatpush.msra.mxu0 %v487
    %1387 = vmatpush.msra.mxu0 %v483
    %1388 = vmatpush.msra.mxu0 %v479
    %1389 = vmatpush.msra.mxu0 %v475
    %1390 = vmatpush.msra.mxu0 %v471
    %1391 = vmatpush.msra.mxu0 %v467
    %1392 = vmatmul.f32.gmra.mxu0 %v1375
    %v1393 = vpop.f32.mrf.mxu0
    %v1394 = vadd.f32 %v218, %v1393
    %1395 = vdwg.mxu0
    %1396 = vmatpush.msra.mxu0 %v591
    %1397 = vmatpush.msra.mxu0 %v587
    %1398 = vmatpush.msra.mxu0 %v583
    %1399 = vmatpush.msra.mxu0 %v579
    %1400 = vmatpush.msra.mxu0 %v575
    %1401 = vmatpush.msra.mxu0 %v571
    %1402 = vmatpush.msra.mxu0 %v567
    %1403 = vmatpush.msra.mxu0 %v563
    %1404 = vmatpush.msra.mxu0 %v559
    %1405 = vmatpush.msra.mxu0 %v555
    %1406 = vmatpush.msra.mxu0 %v551
    %1407 = vmatpush.msra.mxu0 %v547
    %1408 = vmatpush.msra.mxu0 %v543
    %1409 = vmatpush.msra.mxu0 %v539
    %1410 = vmatpush.msra.mxu0 %v535
    %1411 = vmatpush.msra.mxu0 %v531
    %1412 = vmatmul.f32.gmra.mxu0 %v837
    %v1413 = vpop.f32.mrf.mxu0
    %v1414 = vadd.f32 %v1394, %v1413
    %1415 = vdwg.mxu0
    %1416 = vmatpush.msra.mxu0 %v528
    %1417 = vmatpush.msra.mxu0 %v524
    %1418 = vmatpush.msra.mxu0 %v520
    %1419 = vmatpush.msra.mxu0 %v516
    %1420 = vmatpush.msra.mxu0 %v512
    %1421 = vmatpush.msra.mxu0 %v508
    %1422 = vmatpush.msra.mxu0 %v504
    %1423 = vmatpush.msra.mxu0 %v500
    %1424 = vmatpush.msra.mxu0 %v496
    %1425 = vmatpush.msra.mxu0 %v492
    %1426 = vmatpush.msra.mxu0 %v488
    %1427 = vmatpush.msra.mxu0 %v484
    %1428 = vmatpush.msra.mxu0 %v480
    %1429 = vmatpush.msra.mxu0 %v476
    %1430 = vmatpush.msra.mxu0 %v472
    %1431 = vmatpush.msra.mxu0 %v468
    %1432 = vmatmul.f32.gmra.mxu0 %v1375
    %v1433 = vpop.f32.mrf.mxu0
    %v1434 = vadd.f32 %v219, %v1433
    %1435 = vdwg.mxu0
    %1436 = vmatpush.msra.mxu0 %v592
    %1437 = vmatpush.msra.mxu0 %v588
    %1438 = vmatpush.msra.mxu0 %v584
    %1439 = vmatpush.msra.mxu0 %v580
    %1440 = vmatpush.msra.mxu0 %v576
    %1441 = vmatpush.msra.mxu0 %v572
    %1442 = vmatpush.msra.mxu0 %v568
    %1443 = vmatpush.msra.mxu0 %v564
    %1444 = vmatpush.msra.mxu0 %v560
    %1445 = vmatpush.msra.mxu0 %v556
    %1446 = vmatpush.msra.mxu0 %v552
    %1447 = vmatpush.msra.mxu0 %v548
    %1448 = vmatpush.msra.mxu0 %v544
    %1449 = vmatpush.msra.mxu0 %v540
    %1450 = vmatpush.msra.mxu0 %v536
    %1451 = vmatpush.msra.mxu0 %v532
    %1452 = vmatmul.f32.gmra.mxu0 %v837
    %v1453 = vpop.f32.mrf.mxu0
    %v1454 = vadd.f32 %v1434, %v1453
    %1455 = vdwg.mxu0
    %1456 = vmatpush.msra.mxu0 %v529
    %1457 = vmatpush.msra.mxu0 %v525
    %1458 = vmatpush.msra.mxu0 %v521
    %1459 = vmatpush.msra.mxu0 %v517
    %1460 = vmatpush.msra.mxu0 %v513
    %1461 = vmatpush.msra.mxu0 %v509
    %1462 = vmatpush.msra.mxu0 %v505
    %1463 = vmatpush.msra.mxu0 %v501
    %1464 = vmatpush.msra.mxu0 %v497
    %1465 = vmatpush.msra.mxu0 %v493
    %1466 = vmatpush.msra.mxu0 %v489
    %1467 = vmatpush.msra.mxu0 %v485
    %1468 = vmatpush.msra.mxu0 %v481
    %1469 = vmatpush.msra.mxu0 %v477
    %1470 = vmatpush.msra.mxu0 %v473
    %1471 = vmatpush.msra.mxu0 %v469
    %1472 = vmatmul.f32.gmra.mxu0 %v1375
    %v1473 = vpop.f32.mrf.mxu0
    %v1474 = vadd.f32 %v220, %v1473
    %1475 = vdwg.mxu0
    %1476 = vmatpush.msra.mxu0 %v593
    %1477 = vmatpush.msra.mxu0 %v589
    %1478 = vmatpush.msra.mxu0 %v585
    %1479 = vmatpush.msra.mxu0 %v581
    %1480 = vmatpush.msra.mxu0 %v577
    %1481 = vmatpush.msra.mxu0 %v573
    %1482 = vmatpush.msra.mxu0 %v569
    %1483 = vmatpush.msra.mxu0 %v565
    %1484 = vmatpush.msra.mxu0 %v561
    %1485 = vmatpush.msra.mxu0 %v557
    %1486 = vmatpush.msra.mxu0 %v553
    %1487 = vmatpush.msra.mxu0 %v549
    %1488 = vmatpush.msra.mxu0 %v545
    %1489 = vmatpush.msra.mxu0 %v541
    %1490 = vmatpush.msra.mxu0 %v537
    %1491 = vmatpush.msra.mxu0 %v533
    %1492 = vmatmul.f32.gmra.mxu0 %v837
    %v1493 = vpop.f32.mrf.mxu0
    %v1494 = vadd.f32 %v1474, %v1493
    %1495 = vdwg.mxu0
    %1496 = vmatpush.msra.mxu0 %v530
    %1497 = vmatpush.msra.mxu0 %v526
    %1498 = vmatpush.msra.mxu0 %v522
    %1499 = vmatpush.msra.mxu0 %v518
    %1500 = vmatpush.msra.mxu0 %v514
    %1501 = vmatpush.msra.mxu0 %v510
    %1502 = vmatpush.msra.mxu0 %v506
    %1503 = vmatpush.msra.mxu0 %v502
    %1504 = vmatpush.msra.mxu0 %v498
    %1505 = vmatpush.msra.mxu0 %v494
    %1506 = vmatpush.msra.mxu0 %v490
    %1507 = vmatpush.msra.mxu0 %v486
    %1508 = vmatpush.msra.mxu0 %v482
    %1509 = vmatpush.msra.mxu0 %v478
    %1510 = vmatpush.msra.mxu0 %v474
    %1511 = vmatpush.msra.mxu0 %v470
    %1512 = vmatmul.f32.gmra.mxu0 %v1375
    %v1513 = vpop.f32.mrf.mxu0
    %v1514 = vadd.f32 %v221, %v1513
    %1515 = vdwg.mxu0
    %1516 = vmatpush.msra.mxu0 %v594
    %1517 = vmatpush.msra.mxu0 %v590
    %1518 = vmatpush.msra.mxu0 %v586
    %1519 = vmatpush.msra.mxu0 %v582
    %1520 = vmatpush.msra.mxu0 %v578
    %1521 = vmatpush.msra.mxu0 %v574
    %1522 = vmatpush.msra.mxu0 %v570
    %1523 = vmatpush.msra.mxu0 %v566
    %1524 = vmatpush.msra.mxu0 %v562
    %1525 = vmatpush.msra.mxu0 %v558
    %1526 = vmatpush.msra.mxu0 %v554
    %1527 = vmatpush.msra.mxu0 %v550
    %1528 = vmatpush.msra.mxu0 %v546
    %1529 = vmatpush.msra.mxu0 %v542
    %1530 = vmatpush.msra.mxu0 %v538
    %1531 = vmatpush.msra.mxu0 %v534
    %1532 = vmatmul.f32.gmra.mxu0 %v837
    %v1533 = vpop.f32.mrf.mxu0
    %v1534 = vadd.f32 %v1514, %v1533
    %1535 = vdwg.mxu0
    %v1536 = vxor.u32 %v1414, 2147483648
    %v1537 = vxor.u32 %v1454, 2147483648
    %v1538 = vxor.u32 %v1494, 2147483648
    %v1539 = vxor.u32 %v1534, 2147483648
    %v1540 = vmul.f32 %v1536, 1.442695
    %v1541 = vpow.pop %v1540
    %v1542 = vmul.f32 %v1537, 1.442695
    %v1543 = vpow.pop %v1542
    %v1544 = vmul.f32 %v1538, 1.442695
    %v1545 = vpow.pop %v1544
    %v1546 = vmul.f32 %v1539, 1.442695
    %v1547 = vpow.pop %v1546
    %v1548 = vadd.f32 %v1541, 1.0
    %v1549 = vadd.f32 %v1543, 1.0
    %v1550 = vadd.f32 %v1545, 1.0
    %v1551 = vadd.f32 %v1547, 1.0
    %v1552 = vrcp.pop %v1548
    %v1553 = vmul.f32 %v1548, %v1552
    %v1554 = vsub.f32 1.0, %v1553
    %v1555 = vmul.f32 %v1552, %v1554
    %v1556 = vadd.f32 %v1552, %v1555
    %vm1557 = vweird.f32 %v1548
    %vm1558 = vweird.f32 %v1552
    %vm1559 = vmor %vm1557, %vm1558
    %v1560 = vsel %vm1559, %v1552, %v1556
    %v1561 = vand.u32 2147483647, %v1548
    %vm1562 = vcmp.eq.f32.partialorder %v1561, 8.507059e+37
    %v1563 = vand.u32 %v1548, 2147483648
    %v1564 = vor.u32 1.1754944e-38, %v1563
    %v1565 = vsel %vm1562, %v1564, %v1560
    %v1566 = vmul.f32 1.0, %v1565
    %v1567 = vrcp.pop %v1549
    %v1568 = vmul.f32 %v1549, %v1567
    %v1569 = vsub.f32 1.0, %v1568
    %v1570 = vmul.f32 %v1567, %v1569
    %v1571 = vadd.f32 %v1567, %v1570
    %vm1572 = vweird.f32 %v1549
    %vm1573 = vweird.f32 %v1567
    %vm1574 = vmor %vm1572, %vm1573
    %v1575 = vsel %vm1574, %v1567, %v1571
    %v1576 = vand.u32 2147483647, %v1549
    %vm1577 = vcmp.eq.f32.partialorder %v1576, 8.507059e+37
    %v1578 = vand.u32 %v1549, 2147483648
    %v1579 = vor.u32 1.1754944e-38, %v1578
    %v1580 = vsel %vm1577, %v1579, %v1575
    %v1581 = vmul.f32 1.0, %v1580
    %v1582 = vrcp.pop %v1550
    %v1583 = vmul.f32 %v1550, %v1582
    %v1584 = vsub.f32 1.0, %v1583
    %v1585 = vmul.f32 %v1582, %v1584
    %v1586 = vadd.f32 %v1582, %v1585
    %vm1587 = vweird.f32 %v1550
    %vm1588 = vweird.f32 %v1582
    %vm1589 = vmor %vm1587, %vm1588
    %v1590 = vsel %vm1589, %v1582, %v1586
    %v1591 = vand.u32 2147483647, %v1550
    %vm1592 = vcmp.eq.f32.partialorder %v1591, 8.507059e+37
    %v1593 = vand.u32 %v1550, 2147483648
    %v1594 = vor.u32 1.1754944e-38, %v1593
    %v1595 = vsel %vm1592, %v1594, %v1590
    %v1596 = vmul.f32 1.0, %v1595
    %v1597 = vrcp.pop %v1551
    %v1598 = vmul.f32 %v1551, %v1597
    %v1599 = vsub.f32 1.0, %v1598
    %v1600 = vmul.f32 %v1597, %v1599
    %v1601 = vadd.f32 %v1597, %v1600
    %vm1602 = vweird.f32 %v1551
    %vm1603 = vweird.f32 %v1597
    %vm1604 = vmor %vm1602, %vm1603
    %v1605 = vsel %vm1604, %v1597, %v1601
    %v1606 = vand.u32 2147483647, %v1551
    %vm1607 = vcmp.eq.f32.partialorder %v1606, 8.507059e+37
    %v1608 = vand.u32 %v1551, 2147483648
    %v1609 = vor.u32 1.1754944e-38, %v1608
    %v1610 = vsel %vm1607, %v1609, %v1605
    %v1611 = vmul.f32 1.0, %v1610
    %v1612 = vmul.f32 %v1596, 2.0
    %v1613 = vsub.f32 %v1612, 1.0
    %v1614 = vmul.f32 %v1581, %v835
    %v1615 = vmul.f32 %v1566, %v1613
    %v1616 = vadd.f32 %v1614, %v1615
    %v1617 = vtanh.pop %v1616
    %v1618 = vmul.f32 %v1611, %v1617
    %1619 = vmatpush.msra.mxu0 %v898
    %1620 = vmatpush.msra.mxu0 %v894
    %1621 = vmatpush.msra.mxu0 %v890
    %1622 = vmatpush.msra.mxu0 %v886
    %1623 = vmatpush.msra.mxu0 %v882
    %1624 = vmatpush.msra.mxu0 %v878
    %1625 = vmatpush.msra.mxu0 %v874
    %1626 = vmatpush.msra.mxu0 %v870
    %1627 = vmatpush.msra.mxu0 %v866
    %1628 = vmatpush.msra.mxu0 %v862
    %1629 = vmatpush.msra.mxu0 %v858
    %1630 = vmatpush.msra.mxu0 %v854
    %1631 = vmatpush.msra.mxu0 %v850
    %1632 = vmatpush.msra.mxu0 %v846
    %1633 = vmatpush.msra.mxu0 %v842
    %1634 = vmatpush.msra.mxu0 %v838
    %1635 = vmatmul.f32.gmra.mxu0 %v1618
    %v1636 = vpop.f32.mrf.mxu0
    %v1637 = vadd.f32 %v228, %v1636
    %1638 = vdwg.mxu0
    %1639 = vmatpush.msra.mxu0 %v962
    %1640 = vmatpush.msra.mxu0 %v958
    %1641 = vmatpush.msra.mxu0 %v954
    %1642 = vmatpush.msra.mxu0 %v950
    %1643 = vmatpush.msra.mxu0 %v946
    %1644 = vmatpush.msra.mxu0 %v942
    %1645 = vmatpush.msra.mxu0 %v938
    %1646 = vmatpush.msra.mxu0 %v934
    %1647 = vmatpush.msra.mxu0 %v930
    %1648 = vmatpush.msra.mxu0 %v926
    %1649 = vmatpush.msra.mxu0 %v922
    %1650 = vmatpush.msra.mxu0 %v918
    %1651 = vmatpush.msra.mxu0 %v914
    %1652 = vmatpush.msra.mxu0 %v910
    %1653 = vmatpush.msra.mxu0 %v906
    %1654 = vmatpush.msra.mxu0 %v902
    %1655 = vmatmul.f32.gmra.mxu0 %v1208
    %v1656 = vpop.f32.mrf.mxu0
    %v1657 = vadd.f32 %v1637, %v1656
    %1658 = vdwg.mxu0
    %1659 = vmatpush.msra.mxu0 %v899
    %1660 = vmatpush.msra.mxu0 %v895
    %1661 = vmatpush.msra.mxu0 %v891
    %1662 = vmatpush.msra.mxu0 %v887
    %1663 = vmatpush.msra.mxu0 %v883
    %1664 = vmatpush.msra.mxu0 %v879
    %1665 = vmatpush.msra.mxu0 %v875
    %1666 = vmatpush.msra.mxu0 %v871
    %1667 = vmatpush.msra.mxu0 %v867
    %1668 = vmatpush.msra.mxu0 %v863
    %1669 = vmatpush.msra.mxu0 %v859
    %1670 = vmatpush.msra.mxu0 %v855
    %1671 = vmatpush.msra.mxu0 %v851
    %1672 = vmatpush.msra.mxu0 %v847
    %1673 = vmatpush.msra.mxu0 %v843
    %1674 = vmatpush.msra.mxu0 %v839
    %1675 = vmatmul.f32.gmra.mxu0 %v1618
    %v1676 = vpop.f32.mrf.mxu0
    %v1677 = vadd.f32 %v229, %v1676
    %1678 = vdwg.mxu0
    %1679 = vmatpush.msra.mxu0 %v963
    %1680 = vmatpush.msra.mxu0 %v959
    %1681 = vmatpush.msra.mxu0 %v955
    %1682 = vmatpush.msra.mxu0 %v951
    %1683 = vmatpush.msra.mxu0 %v947
    %1684 = vmatpush.msra.mxu0 %v943
    %1685 = vmatpush.msra.mxu0 %v939
    %1686 = vmatpush.msra.mxu0 %v935
    %1687 = vmatpush.msra.mxu0 %v931
    %1688 = vmatpush.msra.mxu0 %v927
    %1689 = vmatpush.msra.mxu0 %v923
    %1690 = vmatpush.msra.mxu0 %v919
    %1691 = vmatpush.msra.mxu0 %v915
    %1692 = vmatpush.msra.mxu0 %v911
    %1693 = vmatpush.msra.mxu0 %v907
    %1694 = vmatpush.msra.mxu0 %v903
    %1695 = vmatmul.f32.gmra.mxu0 %v1208
    %v1696 = vpop.f32.mrf.mxu0
    %v1697 = vadd.f32 %v1677, %v1696
    %1698 = vdwg.mxu0
    %1699 = vmatpush.msra.mxu0 %v900
    %1700 = vmatpush.msra.mxu0 %v896
    %1701 = vmatpush.msra.mxu0 %v892
    %1702 = vmatpush.msra.mxu0 %v888
    %1703 = vmatpush.msra.mxu0 %v884
    %1704 = vmatpush.msra.mxu0 %v880
    %1705 = vmatpush.msra.mxu0 %v876
    %1706 = vmatpush.msra.mxu0 %v872
    %1707 = vmatpush.msra.mxu0 %v868
    %1708 = vmatpush.msra.mxu0 %v864
    %1709 = vmatpush.msra.mxu0 %v860
    %1710 = vmatpush.msra.mxu0 %v856
    %1711 = vmatpush.msra.mxu0 %v852
    %1712 = vmatpush.msra.mxu0 %v848
    %1713 = vmatpush.msra.mxu0 %v844
    %1714 = vmatpush.msra.mxu0 %v840
    %1715 = vmatmul.f32.gmra.mxu0 %v1618
    %v1716 = vpop.f32.mrf.mxu0
    %v1717 = vadd.f32 %v230, %v1716
    %1718 = vdwg.mxu0
    %1719 = vmatpush.msra.mxu0 %v964
    %1720 = vmatpush.msra.mxu0 %v960
    %1721 = vmatpush.msra.mxu0 %v956
    %1722 = vmatpush.msra.mxu0 %v952
    %1723 = vmatpush.msra.mxu0 %v948
    %1724 = vmatpush.msra.mxu0 %v944
    %1725 = vmatpush.msra.mxu0 %v940
    %1726 = vmatpush.msra.mxu0 %v936
    %1727 = vmatpush.msra.mxu0 %v932
    %1728 = vmatpush.msra.mxu0 %v928
    %1729 = vmatpush.msra.mxu0 %v924
    %1730 = vmatpush.msra.mxu0 %v920
    %1731 = vmatpush.msra.mxu0 %v916
    %1732 = vmatpush.msra.mxu0 %v912
    %1733 = vmatpush.msra.mxu0 %v908
    %1734 = vmatpush.msra.mxu0 %v904
    %1735 = vmatmul.f32.gmra.mxu0 %v1208
    %v1736 = vpop.f32.mrf.mxu0
    %v1737 = vadd.f32 %v1717, %v1736
    %1738 = vdwg.mxu0
    %1739 = vmatpush.msra.mxu0 %v901
    %1740 = vmatpush.msra.mxu0 %v897
    %1741 = vmatpush.msra.mxu0 %v893
    %1742 = vmatpush.msra.mxu0 %v889
    %1743 = vmatpush.msra.mxu0 %v885
    %1744 = vmatpush.msra.mxu0 %v881
    %1745 = vmatpush.msra.mxu0 %v877
    %1746 = vmatpush.msra.mxu0 %v873
    %1747 = vmatpush.msra.mxu0 %v869
    %1748 = vmatpush.msra.mxu0 %v865
    %1749 = vmatpush.msra.mxu0 %v861
    %1750 = vmatpush.msra.mxu0 %v857
    %1751 = vmatpush.msra.mxu0 %v853
    %1752 = vmatpush.msra.mxu0 %v849
    %1753 = vmatpush.msra.mxu0 %v845
    %1754 = vmatpush.msra.mxu0 %v841
    %1755 = vmatmul.f32.gmra.mxu0 %v1618
    %v1756 = vpop.f32.mrf.mxu0
    %v1757 = vadd.f32 %v231, %v1756
    %1758 = vdwg.mxu0
    %1759 = vmatpush.msra.mxu0 %v965
    %1760 = vmatpush.msra.mxu0 %v961
    %1761 = vmatpush.msra.mxu0 %v957
    %1762 = vmatpush.msra.mxu0 %v953
    %1763 = vmatpush.msra.mxu0 %v949
    %1764 = vmatpush.msra.mxu0 %v945
    %1765 = vmatpush.msra.mxu0 %v941
    %1766 = vmatpush.msra.mxu0 %v937
    %1767 = vmatpush.msra.mxu0 %v933
    %1768 = vmatpush.msra.mxu0 %v929
    %1769 = vmatpush.msra.mxu0 %v925
    %1770 = vmatpush.msra.mxu0 %v921
    %1771 = vmatpush.msra.mxu0 %v917
    %1772 = vmatpush.msra.mxu0 %v913
    %1773 = vmatpush.msra.mxu0 %v909
    %1774 = vmatpush.msra.mxu0 %v905
    %1775 = vmatmul.f32.gmra.mxu0 %v1208
    %v1776 = vpop.f32.mrf.mxu0
    %v1777 = vadd.f32 %v1757, %v1776
    %1778 = vdwg.mxu0
    %v1779 = vxor.u32 %v1657, 2147483648
    %v1780 = vxor.u32 %v1697, 2147483648
    %v1781 = vxor.u32 %v1737, 2147483648
    %v1782 = vxor.u32 %v1777, 2147483648
    %v1783 = vmul.f32 %v1779, 1.442695
    %v1784 = vpow.pop %v1783
    %v1785 = vmul.f32 %v1780, 1.442695
    %v1786 = vpow.pop %v1785
    %v1787 = vmul.f32 %v1781, 1.442695
    %v1788 = vpow.pop %v1787
    %v1789 = vmul.f32 %v1782, 1.442695
    %v1790 = vpow.pop %v1789
    %v1791 = vadd.f32 %v1784, 1.0
    %v1792 = vadd.f32 %v1786, 1.0
    %v1793 = vadd.f32 %v1788, 1.0
    %v1794 = vadd.f32 %v1790, 1.0
    %v1795 = vrcp.pop %v1791
    %v1796 = vmul.f32 %v1791, %v1795
    %v1797 = vsub.f32 1.0, %v1796
    %v1798 = vmul.f32 %v1795, %v1797
    %v1799 = vadd.f32 %v1795, %v1798
    %vm1800 = vweird.f32 %v1791
    %vm1801 = vweird.f32 %v1795
    %vm1802 = vmor %vm1800, %vm1801
    %v1803 = vsel %vm1802, %v1795, %v1799
    %v1804 = vand.u32 2147483647, %v1791
    %vm1805 = vcmp.eq.f32.partialorder %v1804, 8.507059e+37
    %v1806 = vand.u32 %v1791, 2147483648
    %v1807 = vor.u32 1.1754944e-38, %v1806
    %v1808 = vsel %vm1805, %v1807, %v1803
    %v1809 = vmul.f32 1.0, %v1808
    %v1810 = vrcp.pop %v1792
    %v1811 = vmul.f32 %v1792, %v1810
    %v1812 = vsub.f32 1.0, %v1811
    %v1813 = vmul.f32 %v1810, %v1812
    %v1814 = vadd.f32 %v1810, %v1813
    %vm1815 = vweird.f32 %v1792
    %vm1816 = vweird.f32 %v1810
    %vm1817 = vmor %vm1815, %vm1816
    %v1818 = vsel %vm1817, %v1810, %v1814
    %v1819 = vand.u32 2147483647, %v1792
    %vm1820 = vcmp.eq.f32.partialorder %v1819, 8.507059e+37
    %v1821 = vand.u32 %v1792, 2147483648
    %v1822 = vor.u32 1.1754944e-38, %v1821
    %v1823 = vsel %vm1820, %v1822, %v1818
    %v1824 = vmul.f32 1.0, %v1823
    %v1825 = vrcp.pop %v1793
    %v1826 = vmul.f32 %v1793, %v1825
    %v1827 = vsub.f32 1.0, %v1826
    %v1828 = vmul.f32 %v1825, %v1827
    %v1829 = vadd.f32 %v1825, %v1828
    %vm1830 = vweird.f32 %v1793
    %vm1831 = vweird.f32 %v1825
    %vm1832 = vmor %vm1830, %vm1831
    %v1833 = vsel %vm1832, %v1825, %v1829
    %v1834 = vand.u32 2147483647, %v1793
    %vm1835 = vcmp.eq.f32.partialorder %v1834, 8.507059e+37
    %v1836 = vand.u32 %v1793, 2147483648
    %v1837 = vor.u32 1.1754944e-38, %v1836
    %v1838 = vsel %vm1835, %v1837, %v1833
    %v1839 = vmul.f32 1.0, %v1838
    %v1840 = vrcp.pop %v1794
    %v1841 = vmul.f32 %v1794, %v1840
    %v1842 = vsub.f32 1.0, %v1841
    %v1843 = vmul.f32 %v1840, %v1842
    %v1844 = vadd.f32 %v1840, %v1843
    %vm1845 = vweird.f32 %v1794
    %vm1846 = vweird.f32 %v1840
    %vm1847 = vmor %vm1845, %vm1846
    %v1848 = vsel %vm1847, %v1840, %v1844
    %v1849 = vand.u32 2147483647, %v1794
    %vm1850 = vcmp.eq.f32.partialorder %v1849, 8.507059e+37
    %v1851 = vand.u32 %v1794, 2147483648
    %v1852 = vor.u32 1.1754944e-38, %v1851
    %v1853 = vsel %vm1850, %v1852, %v1848
    %v1854 = vmul.f32 1.0, %v1853
    %v1855 = vmul.f32 %v1839, 2.0
    %v1856 = vsub.f32 %v1855, 1.0
    %v1857 = vmul.f32 %v1824, %v1206
    %v1858 = vmul.f32 %v1809, %v1856
    %v1859 = vadd.f32 %v1857, %v1858
    %v1860 = vtanh.pop %v1859
    %v1861 = vmul.f32 %v1854, %v1860
    %1862 = vmatpush.msra.mxu0 %v296
    %1863 = vmatpush.msra.mxu0 %v292
    %1864 = vmatpush.msra.mxu0 %v288
    %1865 = vmatpush.msra.mxu0 %v284
    %1866 = vmatpush.msra.mxu0 %v280
    %1867 = vmatpush.msra.mxu0 %v276
    %1868 = vmatpush.msra.mxu0 %v272
    %1869 = vmatpush.msra.mxu0 %v268
    %1870 = vmatpush.msra.mxu0 %v264
    %1871 = vmatpush.msra.mxu0 %v260
    %1872 = vmatpush.msra.mxu0 %v256
    %1873 = vmatpush.msra.mxu0 %v252
    %1874 = vmatpush.msra.mxu0 %v248
    %1875 = vmatpush.msra.mxu0 %v244
    %1876 = vmatpush.msra.mxu0 %v240
    %1877 = vmatpush.msra.mxu0 %v236
    %1878 = vmatmul.f32.gmra.mxu0 %v1375
    %v1879 = vpop.f32.mrf.mxu0
    %v1880 = vadd.f32 0.0, %v1879
    %1881 = vdwg.mxu0
    %1882 = vmatpush.msra.mxu0 %v297
    %1883 = vmatpush.msra.mxu0 %v293
    %1884 = vmatpush.msra.mxu0 %v289
    %1885 = vmatpush.msra.mxu0 %v285
    %1886 = vmatpush.msra.mxu0 %v281
    %1887 = vmatpush.msra.mxu0 %v277
    %1888 = vmatpush.msra.mxu0 %v273
    %1889 = vmatpush.msra.mxu0 %v269
    %1890 = vmatpush.msra.mxu0 %v265
    %1891 = vmatpush.msra.mxu0 %v261
    %1892 = vmatpush.msra.mxu0 %v257
    %1893 = vmatpush.msra.mxu0 %v253
    %1894 = vmatpush.msra.mxu0 %v249
    %1895 = vmatpush.msra.mxu0 %v245
    %1896 = vmatpush.msra.mxu0 %v241
    %1897 = vmatpush.msra.mxu0 %v237
    %1898 = vmatmul.f32.gmra.mxu0 %v1375
    %v1899 = vpop.f32.mrf.mxu0
    %v1900 = vadd.f32 0.0, %v1899
    %1901 = vdwg.mxu0
    %1902 = vmatpush.msra.mxu0 %v298
    %1903 = vmatpush.msra.mxu0 %v294
    %1904 = vmatpush.msra.mxu0 %v290
    %1905 = vmatpush.msra.mxu0 %v286
    %1906 = vmatpush.msra.mxu0 %v282
    %1907 = vmatpush.msra.mxu0 %v278
    %1908 = vmatpush.msra.mxu0 %v274
    %1909 = vmatpush.msra.mxu0 %v270
    %1910 = vmatpush.msra.mxu0 %v266
    %1911 = vmatpush.msra.mxu0 %v262
    %1912 = vmatpush.msra.mxu0 %v258
    %1913 = vmatpush.msra.mxu0 %v254
    %1914 = vmatpush.msra.mxu0 %v250
    %1915 = vmatpush.msra.mxu0 %v246
    %1916 = vmatpush.msra.mxu0 %v242
    %1917 = vmatpush.msra.mxu0 %v238
    %1918 = vmatmul.f32.gmra.mxu0 %v1375
    %v1919 = vpop.f32.mrf.mxu0
    %v1920 = vadd.f32 0.0, %v1919
    %1921 = vdwg.mxu0
    %1922 = vmatpush.msra.mxu0 %v299
    %1923 = vmatpush.msra.mxu0 %v295
    %1924 = vmatpush.msra.mxu0 %v291
    %1925 = vmatpush.msra.mxu0 %v287
    %1926 = vmatpush.msra.mxu0 %v283
    %1927 = vmatpush.msra.mxu0 %v279
    %1928 = vmatpush.msra.mxu0 %v275
    %1929 = vmatpush.msra.mxu0 %v271
    %1930 = vmatpush.msra.mxu0 %v267
    %1931 = vmatpush.msra.mxu0 %v263
    %1932 = vmatpush.msra.mxu0 %v259
    %1933 = vmatpush.msra.mxu0 %v255
    %1934 = vmatpush.msra.mxu0 %v251
    %1935 = vmatpush.msra.mxu0 %v247
    %1936 = vmatpush.msra.mxu0 %v243
    %1937 = vmatpush.msra.mxu0 %v239
    %1938 = vmatmul.f32.gmra.mxu0 %v1375
    %v1939 = vpop.f32.mrf.mxu0
    %v1940 = vadd.f32 0.0, %v1939
    %1941 = vdwg.mxu0
    %v1942 = vadd.f32 %v192, %v1880
    %v1943 = vadd.f32 %v193, %v1900
    %v1944 = vadd.f32 %v194, %v1920
    %v1945 = vadd.f32 %v195, %v1940
    %v1946 = vxor.u32 %v1942, 2147483648
    %v1947 = vxor.u32 %v1943, 2147483648
    %v1948 = vxor.u32 %v1944, 2147483648
    %v1949 = vxor.u32 %v1945, 2147483648
    %v1950 = vmul.f32 %v1946, 1.442695
    %v1951 = vpow.pop %v1950
    %v1952 = vmul.f32 %v1947, 1.442695
    %v1953 = vpow.pop %v1952
    %v1954 = vmul.f32 %v1948, 1.442695
    %v1955 = vpow.pop %v1954
    %v1956 = vmul.f32 %v1949, 1.442695
    %v1957 = vpow.pop %v1956
    %v1958 = vadd.f32 %v1951, 1.0
    %v1959 = vadd.f32 %v1953, 1.0
    %v1960 = vadd.f32 %v1955, 1.0
    %v1961 = vadd.f32 %v1957, 1.0
    %v1962 = vrcp.pop %v1958
    %v1963 = vmul.f32 %v1958, %v1962
    %v1964 = vsub.f32 1.0, %v1963
    %v1965 = vmul.f32 %v1962, %v1964
    %v1966 = vadd.f32 %v1962, %v1965
    %vm1967 = vweird.f32 %v1958
    %vm1968 = vweird.f32 %v1962
    %vm1969 = vmor %vm1967, %vm1968
    %v1970 = vsel %vm1969, %v1962, %v1966
    %v1971 = vand.u32 2147483647, %v1958
    %vm1972 = vcmp.eq.f32.partialorder %v1971, 8.507059e+37
    %v1973 = vand.u32 %v1958, 2147483648
    %v1974 = vor.u32 1.1754944e-38, %v1973
    %v1975 = vsel %vm1972, %v1974, %v1970
    %v1976 = vmul.f32 1.0, %v1975
    %v1977 = vrcp.pop %v1959
    %v1978 = vmul.f32 %v1959, %v1977
    %v1979 = vsub.f32 1.0, %v1978
    %v1980 = vmul.f32 %v1977, %v1979
    %v1981 = vadd.f32 %v1977, %v1980
    %vm1982 = vweird.f32 %v1959
    %vm1983 = vweird.f32 %v1977
    %vm1984 = vmor %vm1982, %vm1983
    %v1985 = vsel %vm1984, %v1977, %v1981
    %v1986 = vand.u32 2147483647, %v1959
    %vm1987 = vcmp.eq.f32.partialorder %v1986, 8.507059e+37
    %v1988 = vand.u32 %v1959, 2147483648
    %v1989 = vor.u32 1.1754944e-38, %v1988
    %v1990 = vsel %vm1987, %v1989, %v1985
    %v1991 = vmul.f32 1.0, %v1990
    %v1992 = vrcp.pop %v1960
    %v1993 = vmul.f32 %v1960, %v1992
    %v1994 = vsub.f32 1.0, %v1993
    %v1995 = vmul.f32 %v1992, %v1994
    %v1996 = vadd.f32 %v1992, %v1995
    %vm1997 = vweird.f32 %v1960
    %vm1998 = vweird.f32 %v1992
    %vm1999 = vmor %vm1997, %vm1998
    %v2000 = vsel %vm1999, %v1992, %v1996
    %v2001 = vand.u32 2147483647, %v1960
    %vm2002 = vcmp.eq.f32.partialorder %v2001, 8.507059e+37
    %v2003 = vand.u32 %v1960, 2147483648
    %v2004 = vor.u32 1.1754944e-38, %v2003
    %v2005 = vsel %vm2002, %v2004, %v2000
    %v2006 = vmul.f32 1.0, %v2005
    %v2007 = vrcp.pop %v1961
    %v2008 = vmul.f32 %v1961, %v2007
    %v2009 = vsub.f32 1.0, %v2008
    %v2010 = vmul.f32 %v2007, %v2009
    %v2011 = vadd.f32 %v2007, %v2010
    %vm2012 = vweird.f32 %v1961
    %vm2013 = vweird.f32 %v2007
    %vm2014 = vmor %vm2012, %vm2013
    %v2015 = vsel %vm2014, %v2007, %v2011
    %v2016 = vand.u32 2147483647, %v1961
    %vm2017 = vcmp.eq.f32.partialorder %v2016, 8.507059e+37
    %v2018 = vand.u32 %v1961, 2147483648
    %v2019 = vor.u32 1.1754944e-38, %v2018
    %v2020 = vsel %vm2017, %v2019, %v2015
    %v2021 = vmul.f32 1.0, %v2020
    %v2022 = vmul.f32 %v2006, 2.0
    %v2023 = vsub.f32 %v2022, 1.0
    %v2024 = vmul.f32 %v1991, %v1373
    %v2025 = vmul.f32 %v1976, %v2023
    %v2026 = vadd.f32 %v2024, %v2025
    %v2027 = vtanh.pop %v2026
    %v2028 = vmul.f32 %v2021, %v2027
    %2029 = vmatpush.msra.mxu0 %v527
    %2030 = vmatpush.msra.mxu0 %v523
    %2031 = vmatpush.msra.mxu0 %v519
    %2032 = vmatpush.msra.mxu0 %v515
    %2033 = vmatpush.msra.mxu0 %v511
    %2034 = vmatpush.msra.mxu0 %v507
    %2035 = vmatpush.msra.mxu0 %v503
    %2036 = vmatpush.msra.mxu0 %v499
    %2037 = vmatpush.msra.mxu0 %v495
    %2038 = vmatpush.msra.mxu0 %v491
    %2039 = vmatpush.msra.mxu0 %v487
    %2040 = vmatpush.msra.mxu0 %v483
    %2041 = vmatpush.msra.mxu0 %v479
    %2042 = vmatpush.msra.mxu0 %v475
    %2043 = vmatpush.msra.mxu0 %v471
    %2044 = vmatpush.msra.mxu0 %v467
    %2045 = vmatmul.f32.gmra.mxu0 %v2028
    %v2046 = vpop.f32.mrf.mxu0
    %v2047 = vadd.f32 %v218, %v2046
    %2048 = vdwg.mxu0
    %2049 = vmatpush.msra.mxu0 %v591
    %2050 = vmatpush.msra.mxu0 %v587
    %2051 = vmatpush.msra.mxu0 %v583
    %2052 = vmatpush.msra.mxu0 %v579
    %2053 = vmatpush.msra.mxu0 %v575
    %2054 = vmatpush.msra.mxu0 %v571
    %2055 = vmatpush.msra.mxu0 %v567
    %2056 = vmatpush.msra.mxu0 %v563
    %2057 = vmatpush.msra.mxu0 %v559
    %2058 = vmatpush.msra.mxu0 %v555
    %2059 = vmatpush.msra.mxu0 %v551
    %2060 = vmatpush.msra.mxu0 %v547
    %2061 = vmatpush.msra.mxu0 %v543
    %2062 = vmatpush.msra.mxu0 %v539
    %2063 = vmatpush.msra.mxu0 %v535
    %2064 = vmatpush.msra.mxu0 %v531
    %2065 = vmatmul.f32.gmra.mxu0 %v1618
    %v2066 = vpop.f32.mrf.mxu0
    %v2067 = vadd.f32 %v2047, %v2066
    %2068 = vdwg.mxu0
    %2069 = vmatpush.msra.mxu0 %v528
    %2070 = vmatpush.msra.mxu0 %v524
    %2071 = vmatpush.msra.mxu0 %v520
    %2072 = vmatpush.msra.mxu0 %v516
    %2073 = vmatpush.msra.mxu0 %v512
    %2074 = vmatpush.msra.mxu0 %v508
    %2075 = vmatpush.msra.mxu0 %v504
    %2076 = vmatpush.msra.mxu0 %v500
    %2077 = vmatpush.msra.mxu0 %v496
    %2078 = vmatpush.msra.mxu0 %v492
    %2079 = vmatpush.msra.mxu0 %v488
    %2080 = vmatpush.msra.mxu0 %v484
    %2081 = vmatpush.msra.mxu0 %v480
    %2082 = vmatpush.msra.mxu0 %v476
    %2083 = vmatpush.msra.mxu0 %v472
    %2084 = vmatpush.msra.mxu0 %v468
    %2085 = vmatmul.f32.gmra.mxu0 %v2028
    %v2086 = vpop.f32.mrf.mxu0
    %v2087 = vadd.f32 %v219, %v2086
    %2088 = vdwg.mxu0
    %2089 = vmatpush.msra.mxu0 %v592
    %2090 = vmatpush.msra.mxu0 %v588
    %2091 = vmatpush.msra.mxu0 %v584
    %2092 = vmatpush.msra.mxu0 %v580
    %2093 = vmatpush.msra.mxu0 %v576
    %2094 = vmatpush.msra.mxu0 %v572
    %2095 = vmatpush.msra.mxu0 %v568
    %2096 = vmatpush.msra.mxu0 %v564
    %2097 = vmatpush.msra.mxu0 %v560
    %2098 = vmatpush.msra.mxu0 %v556
    %2099 = vmatpush.msra.mxu0 %v552
    %2100 = vmatpush.msra.mxu0 %v548
    %2101 = vmatpush.msra.mxu0 %v544
    %2102 = vmatpush.msra.mxu0 %v540
    %2103 = vmatpush.msra.mxu0 %v536
    %2104 = vmatpush.msra.mxu0 %v532
    %2105 = vmatmul.f32.gmra.mxu0 %v1618
    %v2106 = vpop.f32.mrf.mxu0
    %v2107 = vadd.f32 %v2087, %v2106
    %2108 = vdwg.mxu0
    %2109 = vmatpush.msra.mxu0 %v529
    %2110 = vmatpush.msra.mxu0 %v525
    %2111 = vmatpush.msra.mxu0 %v521
    %2112 = vmatpush.msra.mxu0 %v517
    %2113 = vmatpush.msra.mxu0 %v513
    %2114 = vmatpush.msra.mxu0 %v509
    %2115 = vmatpush.msra.mxu0 %v505
    %2116 = vmatpush.msra.mxu0 %v501
    %2117 = vmatpush.msra.mxu0 %v497
    %2118 = vmatpush.msra.mxu0 %v493
    %2119 = vmatpush.msra.mxu0 %v489
    %2120 = vmatpush.msra.mxu0 %v485
    %2121 = vmatpush.msra.mxu0 %v481
    %2122 = vmatpush.msra.mxu0 %v477
    %2123 = vmatpush.msra.mxu0 %v473
    %2124 = vmatpush.msra.mxu0 %v469
    %2125 = vmatmul.f32.gmra.mxu0 %v2028
    %v2126 = vpop.f32.mrf.mxu0
    %v2127 = vadd.f32 %v220, %v2126
    %2128 = vdwg.mxu0
    %2129 = vmatpush.msra.mxu0 %v593
    %2130 = vmatpush.msra.mxu0 %v589
    %2131 = vmatpush.msra.mxu0 %v585
    %2132 = vmatpush.msra.mxu0 %v581
    %2133 = vmatpush.msra.mxu0 %v577
    %2134 = vmatpush.msra.mxu0 %v573
    %2135 = vmatpush.msra.mxu0 %v569
    %2136 = vmatpush.msra.mxu0 %v565
    %2137 = vmatpush.msra.mxu0 %v561
    %2138 = vmatpush.msra.mxu0 %v557
    %2139 = vmatpush.msra.mxu0 %v553
    %2140 = vmatpush.msra.mxu0 %v549
    %2141 = vmatpush.msra.mxu0 %v545
    %2142 = vmatpush.msra.mxu0 %v541
    %2143 = vmatpush.msra.mxu0 %v537
    %2144 = vmatpush.msra.mxu0 %v533
    %2145 = vmatmul.f32.gmra.mxu0 %v1618
    %v2146 = vpop.f32.mrf.mxu0
    %v2147 = vadd.f32 %v2127, %v2146
    %2148 = vdwg.mxu0
    %2149 = vmatpush.msra.mxu0 %v530
    %2150 = vmatpush.msra.mxu0 %v526
    %2151 = vmatpush.msra.mxu0 %v522
    %2152 = vmatpush.msra.mxu0 %v518
    %2153 = vmatpush.msra.mxu0 %v514
    %2154 = vmatpush.msra.mxu0 %v510
    %2155 = vmatpush.msra.mxu0 %v506
    %2156 = vmatpush.msra.mxu0 %v502
    %2157 = vmatpush.msra.mxu0 %v498
    %2158 = vmatpush.msra.mxu0 %v494
    %2159 = vmatpush.msra.mxu0 %v490
    %2160 = vmatpush.msra.mxu0 %v486
    %2161 = vmatpush.msra.mxu0 %v482
    %2162 = vmatpush.msra.mxu0 %v478
    %2163 = vmatpush.msra.mxu0 %v474
    %2164 = vmatpush.msra.mxu0 %v470
    %2165 = vmatmul.f32.gmra.mxu0 %v2028
    %v2166 = vpop.f32.mrf.mxu0
    %v2167 = vadd.f32 %v221, %v2166
    %2168 = vdwg.mxu0
    %2169 = vmatpush.msra.mxu0 %v594
    %2170 = vmatpush.msra.mxu0 %v590
    %2171 = vmatpush.msra.mxu0 %v586
    %2172 = vmatpush.msra.mxu0 %v582
    %2173 = vmatpush.msra.mxu0 %v578
    %2174 = vmatpush.msra.mxu0 %v574
    %2175 = vmatpush.msra.mxu0 %v570
    %2176 = vmatpush.msra.mxu0 %v566
    %2177 = vmatpush.msra.mxu0 %v562
    %2178 = vmatpush.msra.mxu0 %v558
    %2179 = vmatpush.msra.mxu0 %v554
    %2180 = vmatpush.msra.mxu0 %v550
    %2181 = vmatpush.msra.mxu0 %v546
    %2182 = vmatpush.msra.mxu0 %v542
    %2183 = vmatpush.msra.mxu0 %v538
    %2184 = vmatpush.msra.mxu0 %v534
    %2185 = vmatmul.f32.gmra.mxu0 %v1618
    %v2186 = vpop.f32.mrf.mxu0
    %v2187 = vadd.f32 %v2167, %v2186
    %2188 = vdwg.mxu0
    %v2189 = vxor.u32 %v2067, 2147483648
    %v2190 = vxor.u32 %v2107, 2147483648
    %v2191 = vxor.u32 %v2147, 2147483648
    %v2192 = vxor.u32 %v2187, 2147483648
    %v2193 = vmul.f32 %v2189, 1.442695
    %v2194 = vpow.pop %v2193
    %v2195 = vmul.f32 %v2190, 1.442695
    %v2196 = vpow.pop %v2195
    %v2197 = vmul.f32 %v2191, 1.442695
    %v2198 = vpow.pop %v2197
    %v2199 = vmul.f32 %v2192, 1.442695
    %v2200 = vpow.pop %v2199
    %v2201 = vadd.f32 %v2194, 1.0
    %v2202 = vadd.f32 %v2196, 1.0
    %v2203 = vadd.f32 %v2198, 1.0
    %v2204 = vadd.f32 %v2200, 1.0
    %v2205 = vrcp.pop %v2201
    %v2206 = vmul.f32 %v2201, %v2205
    %v2207 = vsub.f32 1.0, %v2206
    %v2208 = vmul.f32 %v2205, %v2207
    %v2209 = vadd.f32 %v2205, %v2208
    %vm2210 = vweird.f32 %v2201
    %vm2211 = vweird.f32 %v2205
    %vm2212 = vmor %vm2210, %vm2211
    %v2213 = vsel %vm2212, %v2205, %v2209
    %v2214 = vand.u32 2147483647, %v2201
    %vm2215 = vcmp.eq.f32.partialorder %v2214, 8.507059e+37
    %v2216 = vand.u32 %v2201, 2147483648
    %v2217 = vor.u32 1.1754944e-38, %v2216
    %v2218 = vsel %vm2215, %v2217, %v2213
    %v2219 = vmul.f32 1.0, %v2218
    %v2220 = vrcp.pop %v2202
    %v2221 = vmul.f32 %v2202, %v2220
    %v2222 = vsub.f32 1.0, %v2221
    %v2223 = vmul.f32 %v2220, %v2222
    %v2224 = vadd.f32 %v2220, %v2223
    %vm2225 = vweird.f32 %v2202
    %vm2226 = vweird.f32 %v2220
    %vm2227 = vmor %vm2225, %vm2226
    %v2228 = vsel %vm2227, %v2220, %v2224
    %v2229 = vand.u32 2147483647, %v2202
    %vm2230 = vcmp.eq.f32.partialorder %v2229, 8.507059e+37
    %v2231 = vand.u32 %v2202, 2147483648
    %v2232 = vor.u32 1.1754944e-38, %v2231
    %v2233 = vsel %vm2230, %v2232, %v2228
    %v2234 = vmul.f32 1.0, %v2233
    %v2235 = vrcp.pop %v2203
    %v2236 = vmul.f32 %v2203, %v2235
    %v2237 = vsub.f32 1.0, %v2236
    %v2238 = vmul.f32 %v2235, %v2237
    %v2239 = vadd.f32 %v2235, %v2238
    %vm2240 = vweird.f32 %v2203
    %vm2241 = vweird.f32 %v2235
    %vm2242 = vmor %vm2240, %vm2241
    %v2243 = vsel %vm2242, %v2235, %v2239
    %v2244 = vand.u32 2147483647, %v2203
    %vm2245 = vcmp.eq.f32.partialorder %v2244, 8.507059e+37
    %v2246 = vand.u32 %v2203, 2147483648
    %v2247 = vor.u32 1.1754944e-38, %v2246
    %v2248 = vsel %vm2245, %v2247, %v2243
    %v2249 = vmul.f32 1.0, %v2248
    %v2250 = vrcp.pop %v2204
    %v2251 = vmul.f32 %v2204, %v2250
    %v2252 = vsub.f32 1.0, %v2251
    %v2253 = vmul.f32 %v2250, %v2252
    %v2254 = vadd.f32 %v2250, %v2253
    %vm2255 = vweird.f32 %v2204
    %vm2256 = vweird.f32 %v2250
    %vm2257 = vmor %vm2255, %vm2256
    %v2258 = vsel %vm2257, %v2250, %v2254
    %v2259 = vand.u32 2147483647, %v2204
    %vm2260 = vcmp.eq.f32.partialorder %v2259, 8.507059e+37
    %v2261 = vand.u32 %v2204, 2147483648
    %v2262 = vor.u32 1.1754944e-38, %v2261
    %v2263 = vsel %vm2260, %v2262, %v2258
    %v2264 = vmul.f32 1.0, %v2263
    %v2265 = vmul.f32 %v2249, 2.0
    %v2266 = vsub.f32 %v2265, 1.0
    %v2267 = vmul.f32 %v2234, %v1616
    %v2268 = vmul.f32 %v2219, %v2266
    %v2269 = vadd.f32 %v2267, %v2268
    %v2270 = vtanh.pop %v2269
    %v2271 = vmul.f32 %v2264, %v2270
    %2272 = vmatpush.msra.mxu0 %v898
    %2273 = vmatpush.msra.mxu0 %v894
    %2274 = vmatpush.msra.mxu0 %v890
    %2275 = vmatpush.msra.mxu0 %v886
    %2276 = vmatpush.msra.mxu0 %v882
    %2277 = vmatpush.msra.mxu0 %v878
    %2278 = vmatpush.msra.mxu0 %v874
    %2279 = vmatpush.msra.mxu0 %v870
    %2280 = vmatpush.msra.mxu0 %v866
    %2281 = vmatpush.msra.mxu0 %v862
    %2282 = vmatpush.msra.mxu0 %v858
    %2283 = vmatpush.msra.mxu0 %v854
    %2284 = vmatpush.msra.mxu0 %v850
    %2285 = vmatpush.msra.mxu0 %v846
    %2286 = vmatpush.msra.mxu0 %v842
    %2287 = vmatpush.msra.mxu0 %v838
    %2288 = vmatmul.f32.gmra.mxu0 %v2271
    %v2289 = vpop.f32.mrf.mxu0
    %v2290 = vadd.f32 %v228, %v2289
    %2291 = vdwg.mxu0
    %2292 = vmatpush.msra.mxu0 %v962
    %2293 = vmatpush.msra.mxu0 %v958
    %2294 = vmatpush.msra.mxu0 %v954
    %2295 = vmatpush.msra.mxu0 %v950
    %2296 = vmatpush.msra.mxu0 %v946
    %2297 = vmatpush.msra.mxu0 %v942
    %2298 = vmatpush.msra.mxu0 %v938
    %2299 = vmatpush.msra.mxu0 %v934
    %2300 = vmatpush.msra.mxu0 %v930
    %2301 = vmatpush.msra.mxu0 %v926
    %2302 = vmatpush.msra.mxu0 %v922
    %2303 = vmatpush.msra.mxu0 %v918
    %2304 = vmatpush.msra.mxu0 %v914
    %2305 = vmatpush.msra.mxu0 %v910
    %2306 = vmatpush.msra.mxu0 %v906
    %2307 = vmatpush.msra.mxu0 %v902
    %2308 = vmatmul.f32.gmra.mxu0 %v1861
    %v2309 = vpop.f32.mrf.mxu0
    %v2310 = vadd.f32 %v2290, %v2309
    %2311 = vdwg.mxu0
    %2312 = vmatpush.msra.mxu0 %v899
    %2313 = vmatpush.msra.mxu0 %v895
    %2314 = vmatpush.msra.mxu0 %v891
    %2315 = vmatpush.msra.mxu0 %v887
    %2316 = vmatpush.msra.mxu0 %v883
    %2317 = vmatpush.msra.mxu0 %v879
    %2318 = vmatpush.msra.mxu0 %v875
    %2319 = vmatpush.msra.mxu0 %v871
    %2320 = vmatpush.msra.mxu0 %v867
    %2321 = vmatpush.msra.mxu0 %v863
    %2322 = vmatpush.msra.mxu0 %v859
    %2323 = vmatpush.msra.mxu0 %v855
    %2324 = vmatpush.msra.mxu0 %v851
    %2325 = vmatpush.msra.mxu0 %v847
    %2326 = vmatpush.msra.mxu0 %v843
    %2327 = vmatpush.msra.mxu0 %v839
    %2328 = vmatmul.f32.gmra.mxu0 %v2271
    %v2329 = vpop.f32.mrf.mxu0
    %v2330 = vadd.f32 %v229, %v2329
    %2331 = vdwg.mxu0
    %2332 = vmatpush.msra.mxu0 %v963
    %2333 = vmatpush.msra.mxu0 %v959
    %2334 = vmatpush.msra.mxu0 %v955
    %2335 = vmatpush.msra.mxu0 %v951
    %2336 = vmatpush.msra.mxu0 %v947
    %2337 = vmatpush.msra.mxu0 %v943
    %2338 = vmatpush.msra.mxu0 %v939
    %2339 = vmatpush.msra.mxu0 %v935
    %2340 = vmatpush.msra.mxu0 %v931
    %2341 = vmatpush.msra.mxu0 %v927
    %2342 = vmatpush.msra.mxu0 %v923
    %2343 = vmatpush.msra.mxu0 %v919
    %2344 = vmatpush.msra.mxu0 %v915
    %2345 = vmatpush.msra.mxu0 %v911
    %2346 = vmatpush.msra.mxu0 %v907
    %2347 = vmatpush.msra.mxu0 %v903
    %2348 = vmatmul.f32.gmra.mxu0 %v1861
    %v2349 = vpop.f32.mrf.mxu0
    %v2350 = vadd.f32 %v2330, %v2349
    %2351 = vdwg.mxu0
    %2352 = vmatpush.msra.mxu0 %v900
    %2353 = vmatpush.msra.mxu0 %v896
    %2354 = vmatpush.msra.mxu0 %v892
    %2355 = vmatpush.msra.mxu0 %v888
    %2356 = vmatpush.msra.mxu0 %v884
    %2357 = vmatpush.msra.mxu0 %v880
    %2358 = vmatpush.msra.mxu0 %v876
    %2359 = vmatpush.msra.mxu0 %v872
    %2360 = vmatpush.msra.mxu0 %v868
    %2361 = vmatpush.msra.mxu0 %v864
    %2362 = vmatpush.msra.mxu0 %v860
    %2363 = vmatpush.msra.mxu0 %v856
    %2364 = vmatpush.msra.mxu0 %v852
    %2365 = vmatpush.msra.mxu0 %v848
    %2366 = vmatpush.msra.mxu0 %v844
    %2367 = vmatpush.msra.mxu0 %v840
    %2368 = vmatmul.f32.gmra.mxu0 %v2271
    %v2369 = vpop.f32.mrf.mxu0
    %v2370 = vadd.f32 %v230, %v2369
    %2371 = vdwg.mxu0
    %2372 = vmatpush.msra.mxu0 %v964
    %2373 = vmatpush.msra.mxu0 %v960
    %2374 = vmatpush.msra.mxu0 %v956
    %2375 = vmatpush.msra.mxu0 %v952
    %2376 = vmatpush.msra.mxu0 %v948
    %2377 = vmatpush.msra.mxu0 %v944
    %2378 = vmatpush.msra.mxu0 %v940
    %2379 = vmatpush.msra.mxu0 %v936
    %2380 = vmatpush.msra.mxu0 %v932
    %2381 = vmatpush.msra.mxu0 %v928
    %2382 = vmatpush.msra.mxu0 %v924
    %2383 = vmatpush.msra.mxu0 %v920
    %2384 = vmatpush.msra.mxu0 %v916
    %2385 = vmatpush.msra.mxu0 %v912
    %2386 = vmatpush.msra.mxu0 %v908
    %2387 = vmatpush.msra.mxu0 %v904
    %2388 = vmatmul.f32.gmra.mxu0 %v1861
    %v2389 = vpop.f32.mrf.mxu0
    %v2390 = vadd.f32 %v2370, %v2389
    %2391 = vdwg.mxu0
    %2392 = vmatpush.msra.mxu0 %v901
    %2393 = vmatpush.msra.mxu0 %v897
    %2394 = vmatpush.msra.mxu0 %v893
    %2395 = vmatpush.msra.mxu0 %v889
    %2396 = vmatpush.msra.mxu0 %v885
    %2397 = vmatpush.msra.mxu0 %v881
    %2398 = vmatpush.msra.mxu0 %v877
    %2399 = vmatpush.msra.mxu0 %v873
    %2400 = vmatpush.msra.mxu0 %v869
    %2401 = vmatpush.msra.mxu0 %v865
    %2402 = vmatpush.msra.mxu0 %v861
    %2403 = vmatpush.msra.mxu0 %v857
    %2404 = vmatpush.msra.mxu0 %v853
    %2405 = vmatpush.msra.mxu0 %v849
    %2406 = vmatpush.msra.mxu0 %v845
    %2407 = vmatpush.msra.mxu0 %v841
    %2408 = vmatmul.f32.gmra.mxu0 %v2271
    %v2409 = vpop.f32.mrf.mxu0
    %v2410 = vadd.f32 %v231, %v2409
    %2411 = vdwg.mxu0
    %2412 = vmatpush.msra.mxu0 %v965
    %2413 = vmatpush.msra.mxu0 %v961
    %2414 = vmatpush.msra.mxu0 %v957
    %2415 = vmatpush.msra.mxu0 %v953
    %2416 = vmatpush.msra.mxu0 %v949
    %2417 = vmatpush.msra.mxu0 %v945
    %2418 = vmatpush.msra.mxu0 %v941
    %2419 = vmatpush.msra.mxu0 %v937
    %2420 = vmatpush.msra.mxu0 %v933
    %2421 = vmatpush.msra.mxu0 %v929
    %2422 = vmatpush.msra.mxu0 %v925
    %2423 = vmatpush.msra.mxu0 %v921
    %2424 = vmatpush.msra.mxu0 %v917
    %2425 = vmatpush.msra.mxu0 %v913
    %2426 = vmatpush.msra.mxu0 %v909
    %2427 = vmatpush.msra.mxu0 %v905
    %2428 = vmatmul.f32.gmra.mxu0 %v1861
    %v2429 = vpop.f32.mrf.mxu0
    %v2430 = vadd.f32 %v2410, %v2429
    %2431 = vdwg.mxu0
    %v2432 = vxor.u32 %v2310, 2147483648
    %v2433 = vxor.u32 %v2350, 2147483648
    %v2434 = vxor.u32 %v2390, 2147483648
    %v2435 = vxor.u32 %v2430, 2147483648
    %v2436 = vmul.f32 %v2432, 1.442695
    %v2437 = vpow.pop %v2436
    %v2438 = vmul.f32 %v2433, 1.442695
    %v2439 = vpow.pop %v2438
    %v2440 = vmul.f32 %v2434, 1.442695
    %v2441 = vpow.pop %v2440
    %v2442 = vmul.f32 %v2435, 1.442695
    %v2443 = vpow.pop %v2442
    %v2444 = vadd.f32 %v2437, 1.0
    %v2445 = vadd.f32 %v2439, 1.0
    %v2446 = vadd.f32 %v2441, 1.0
    %v2447 = vadd.f32 %v2443, 1.0
    %v2448 = vrcp.pop %v2444
    %v2449 = vmul.f32 %v2444, %v2448
    %v2450 = vsub.f32 1.0, %v2449
    %v2451 = vmul.f32 %v2448, %v2450
    %v2452 = vadd.f32 %v2448, %v2451
    %vm2453 = vweird.f32 %v2444
    %vm2454 = vweird.f32 %v2448
    %vm2455 = vmor %vm2453, %vm2454
    %v2456 = vsel %vm2455, %v2448, %v2452
    %v2457 = vand.u32 2147483647, %v2444
    %vm2458 = vcmp.eq.f32.partialorder %v2457, 8.507059e+37
    %v2459 = vand.u32 %v2444, 2147483648
    %v2460 = vor.u32 1.1754944e-38, %v2459
    %v2461 = vsel %vm2458, %v2460, %v2456
    %v2462 = vmul.f32 1.0, %v2461
    %v2463 = vrcp.pop %v2445
    %v2464 = vmul.f32 %v2445, %v2463
    %v2465 = vsub.f32 1.0, %v2464
    %v2466 = vmul.f32 %v2463, %v2465
    %v2467 = vadd.f32 %v2463, %v2466
    %vm2468 = vweird.f32 %v2445
    %vm2469 = vweird.f32 %v2463
    %vm2470 = vmor %vm2468, %vm2469
    %v2471 = vsel %vm2470, %v2463, %v2467
    %v2472 = vand.u32 2147483647, %v2445
    %vm2473 = vcmp.eq.f32.partialorder %v2472, 8.507059e+37
    %v2474 = vand.u32 %v2445, 2147483648
    %v2475 = vor.u32 1.1754944e-38, %v2474
    %v2476 = vsel %vm2473, %v2475, %v2471
    %v2477 = vmul.f32 1.0, %v2476
    %v2478 = vrcp.pop %v2446
    %v2479 = vmul.f32 %v2446, %v2478
    %v2480 = vsub.f32 1.0, %v2479
    %v2481 = vmul.f32 %v2478, %v2480
    %v2482 = vadd.f32 %v2478, %v2481
    %vm2483 = vweird.f32 %v2446
    %vm2484 = vweird.f32 %v2478
    %vm2485 = vmor %vm2483, %vm2484
    %v2486 = vsel %vm2485, %v2478, %v2482
    %v2487 = vand.u32 2147483647, %v2446
    %vm2488 = vcmp.eq.f32.partialorder %v2487, 8.507059e+37
    %v2489 = vand.u32 %v2446, 2147483648
    %v2490 = vor.u32 1.1754944e-38, %v2489
    %v2491 = vsel %vm2488, %v2490, %v2486
    %v2492 = vmul.f32 1.0, %v2491
    %v2493 = vrcp.pop %v2447
    %v2494 = vmul.f32 %v2447, %v2493
    %v2495 = vsub.f32 1.0, %v2494
    %v2496 = vmul.f32 %v2493, %v2495
    %v2497 = vadd.f32 %v2493, %v2496
    %vm2498 = vweird.f32 %v2447
    %vm2499 = vweird.f32 %v2493
    %vm2500 = vmor %vm2498, %vm2499
    %v2501 = vsel %vm2500, %v2493, %v2497
    %v2502 = vand.u32 2147483647, %v2447
    %vm2503 = vcmp.eq.f32.partialorder %v2502, 8.507059e+37
    %v2504 = vand.u32 %v2447, 2147483648
    %v2505 = vor.u32 1.1754944e-38, %v2504
    %v2506 = vsel %vm2503, %v2505, %v2501
    %v2507 = vmul.f32 1.0, %v2506
    %v2508 = vmul.f32 %v2492, 2.0
    %v2509 = vsub.f32 %v2508, 1.0
    %v2510 = vmul.f32 %v2477, %v1859
    %v2511 = vmul.f32 %v2462, %v2509
    %v2512 = vadd.f32 %v2510, %v2511
    %v2513 = vtanh.pop %v2512
    %v2514 = vmul.f32 %v2507, %v2513
    %2515 = vmatpush.msra.mxu0 %v296
    %2516 = vmatpush.msra.mxu0 %v292
    %2517 = vmatpush.msra.mxu0 %v288
    %2518 = vmatpush.msra.mxu0 %v284
    %2519 = vmatpush.msra.mxu0 %v280
    %2520 = vmatpush.msra.mxu0 %v276
    %2521 = vmatpush.msra.mxu0 %v272
    %2522 = vmatpush.msra.mxu0 %v268
    %2523 = vmatpush.msra.mxu0 %v264
    %2524 = vmatpush.msra.mxu0 %v260
    %2525 = vmatpush.msra.mxu0 %v256
    %2526 = vmatpush.msra.mxu0 %v252
    %2527 = vmatpush.msra.mxu0 %v248
    %2528 = vmatpush.msra.mxu0 %v244
    %2529 = vmatpush.msra.mxu0 %v240
    %2530 = vmatpush.msra.mxu0 %v236
    %2531 = vmatmul.f32.gmra.mxu0 %v2028
    %v2532 = vpop.f32.mrf.mxu0
    %v2533 = vadd.f32 0.0, %v2532
    %2534 = vdwg.mxu0
    %2535 = vmatpush.msra.mxu0 %v297
    %2536 = vmatpush.msra.mxu0 %v293
    %2537 = vmatpush.msra.mxu0 %v289
    %2538 = vmatpush.msra.mxu0 %v285
    %2539 = vmatpush.msra.mxu0 %v281
    %2540 = vmatpush.msra.mxu0 %v277
    %2541 = vmatpush.msra.mxu0 %v273
    %2542 = vmatpush.msra.mxu0 %v269
    %2543 = vmatpush.msra.mxu0 %v265
    %2544 = vmatpush.msra.mxu0 %v261
    %2545 = vmatpush.msra.mxu0 %v257
    %2546 = vmatpush.msra.mxu0 %v253
    %2547 = vmatpush.msra.mxu0 %v249
    %2548 = vmatpush.msra.mxu0 %v245
    %2549 = vmatpush.msra.mxu0 %v241
    %2550 = vmatpush.msra.mxu0 %v237
    %2551 = vmatmul.f32.gmra.mxu0 %v2028
    %v2552 = vpop.f32.mrf.mxu0
    %v2553 = vadd.f32 0.0, %v2552
    %2554 = vdwg.mxu0
    %2555 = vmatpush.msra.mxu0 %v298
    %2556 = vmatpush.msra.mxu0 %v294
    %2557 = vmatpush.msra.mxu0 %v290
    %2558 = vmatpush.msra.mxu0 %v286
    %2559 = vmatpush.msra.mxu0 %v282
    %2560 = vmatpush.msra.mxu0 %v278
    %2561 = vmatpush.msra.mxu0 %v274
    %2562 = vmatpush.msra.mxu0 %v270
    %2563 = vmatpush.msra.mxu0 %v266
    %2564 = vmatpush.msra.mxu0 %v262
    %2565 = vmatpush.msra.mxu0 %v258
    %2566 = vmatpush.msra.mxu0 %v254
    %2567 = vmatpush.msra.mxu0 %v250
    %2568 = vmatpush.msra.mxu0 %v246
    %2569 = vmatpush.msra.mxu0 %v242
    %2570 = vmatpush.msra.mxu0 %v238
    %2571 = vmatmul.f32.gmra.mxu0 %v2028
    %v2572 = vpop.f32.mrf.mxu0
    %v2573 = vadd.f32 0.0, %v2572
    %2574 = vdwg.mxu0
    %2575 = vmatpush.msra.mxu0 %v299
    %2576 = vmatpush.msra.mxu0 %v295
    %2577 = vmatpush.msra.mxu0 %v291
    %2578 = vmatpush.msra.mxu0 %v287
    %2579 = vmatpush.msra.mxu0 %v283
    %2580 = vmatpush.msra.mxu0 %v279
    %2581 = vmatpush.msra.mxu0 %v275
    %2582 = vmatpush.msra.mxu0 %v271
    %2583 = vmatpush.msra.mxu0 %v267
    %2584 = vmatpush.msra.mxu0 %v263
    %2585 = vmatpush.msra.mxu0 %v259
    %2586 = vmatpush.msra.mxu0 %v255
    %2587 = vmatpush.msra.mxu0 %v251
    %2588 = vmatpush.msra.mxu0 %v247
    %2589 = vmatpush.msra.mxu0 %v243
    %2590 = vmatpush.msra.mxu0 %v239
    %2591 = vmatmul.f32.gmra.mxu0 %v2028
    %v2592 = vpop.f32.mrf.mxu0
    %v2593 = vadd.f32 0.0, %v2592
    %2594 = vdwg.mxu0
    %v2595 = vadd.f32 %v196, %v2533
    %v2596 = vadd.f32 %v197, %v2553
    %v2597 = vadd.f32 %v198, %v2573
    %v2598 = vadd.f32 %v199, %v2593
    %v2599 = vxor.u32 %v2595, 2147483648
    %v2600 = vxor.u32 %v2596, 2147483648
    %v2601 = vxor.u32 %v2597, 2147483648
    %v2602 = vxor.u32 %v2598, 2147483648
    %v2603 = vmul.f32 %v2599, 1.442695
    %v2604 = vpow.pop %v2603
    %v2605 = vmul.f32 %v2600, 1.442695
    %v2606 = vpow.pop %v2605
    %v2607 = vmul.f32 %v2601, 1.442695
    %v2608 = vpow.pop %v2607
    %v2609 = vmul.f32 %v2602, 1.442695
    %v2610 = vpow.pop %v2609
    %v2611 = vadd.f32 %v2604, 1.0
    %v2612 = vadd.f32 %v2606, 1.0
    %v2613 = vadd.f32 %v2608, 1.0
    %v2614 = vadd.f32 %v2610, 1.0
    %v2615 = vrcp.pop %v2611
    %v2616 = vmul.f32 %v2611, %v2615
    %v2617 = vsub.f32 1.0, %v2616
    %v2618 = vmul.f32 %v2615, %v2617
    %v2619 = vadd.f32 %v2615, %v2618
    %vm2620 = vweird.f32 %v2611
    %vm2621 = vweird.f32 %v2615
    %vm2622 = vmor %vm2620, %vm2621
    %v2623 = vsel %vm2622, %v2615, %v2619
    %v2624 = vand.u32 2147483647, %v2611
    %vm2625 = vcmp.eq.f32.partialorder %v2624, 8.507059e+37
    %v2626 = vand.u32 %v2611, 2147483648
    %v2627 = vor.u32 1.1754944e-38, %v2626
    %v2628 = vsel %vm2625, %v2627, %v2623
    %v2629 = vmul.f32 1.0, %v2628
    %v2630 = vrcp.pop %v2612
    %v2631 = vmul.f32 %v2612, %v2630
    %v2632 = vsub.f32 1.0, %v2631
    %v2633 = vmul.f32 %v2630, %v2632
    %v2634 = vadd.f32 %v2630, %v2633
    %vm2635 = vweird.f32 %v2612
    %vm2636 = vweird.f32 %v2630
    %vm2637 = vmor %vm2635, %vm2636
    %v2638 = vsel %vm2637, %v2630, %v2634
    %v2639 = vand.u32 2147483647, %v2612
    %vm2640 = vcmp.eq.f32.partialorder %v2639, 8.507059e+37
    %v2641 = vand.u32 %v2612, 2147483648
    %v2642 = vor.u32 1.1754944e-38, %v2641
    %v2643 = vsel %vm2640, %v2642, %v2638
    %v2644 = vmul.f32 1.0, %v2643
    %v2645 = vrcp.pop %v2613
    %v2646 = vmul.f32 %v2613, %v2645
    %v2647 = vsub.f32 1.0, %v2646
    %v2648 = vmul.f32 %v2645, %v2647
    %v2649 = vadd.f32 %v2645, %v2648
    %vm2650 = vweird.f32 %v2613
    %vm2651 = vweird.f32 %v2645
    %vm2652 = vmor %vm2650, %vm2651
    %v2653 = vsel %vm2652, %v2645, %v2649
    %v2654 = vand.u32 2147483647, %v2613
    %vm2655 = vcmp.eq.f32.partialorder %v2654, 8.507059e+37
    %v2656 = vand.u32 %v2613, 2147483648
    %v2657 = vor.u32 1.1754944e-38, %v2656
    %v2658 = vsel %vm2655, %v2657, %v2653
    %v2659 = vmul.f32 1.0, %v2658
    %v2660 = vrcp.pop %v2614
    %v2661 = vmul.f32 %v2614, %v2660
    %v2662 = vsub.f32 1.0, %v2661
    %v2663 = vmul.f32 %v2660, %v2662
    %v2664 = vadd.f32 %v2660, %v2663
    %vm2665 = vweird.f32 %v2614
    %vm2666 = vweird.f32 %v2660
    %vm2667 = vmor %vm2665, %vm2666
    %v2668 = vsel %vm2667, %v2660, %v2664
    %v2669 = vand.u32 2147483647, %v2614
    %vm2670 = vcmp.eq.f32.partialorder %v2669, 8.507059e+37
    %v2671 = vand.u32 %v2614, 2147483648
    %v2672 = vor.u32 1.1754944e-38, %v2671
    %v2673 = vsel %vm2670, %v2672, %v2668
    %v2674 = vmul.f32 1.0, %v2673
    %v2675 = vmul.f32 %v2659, 2.0
    %v2676 = vsub.f32 %v2675, 1.0
    %v2677 = vmul.f32 %v2644, %v2026
    %v2678 = vmul.f32 %v2629, %v2676
    %v2679 = vadd.f32 %v2677, %v2678
    %v2680 = vtanh.pop %v2679
    %v2681 = vmul.f32 %v2674, %v2680
    %2682 = vmatpush.msra.mxu0 %v527
    %2683 = vmatpush.msra.mxu0 %v523
    %2684 = vmatpush.msra.mxu0 %v519
    %2685 = vmatpush.msra.mxu0 %v515
    %2686 = vmatpush.msra.mxu0 %v511
    %2687 = vmatpush.msra.mxu0 %v507
    %2688 = vmatpush.msra.mxu0 %v503
    %2689 = vmatpush.msra.mxu0 %v499
    %2690 = vmatpush.msra.mxu0 %v495
    %2691 = vmatpush.msra.mxu0 %v491
    %2692 = vmatpush.msra.mxu0 %v487
    %2693 = vmatpush.msra.mxu0 %v483
    %2694 = vmatpush.msra.mxu0 %v479
    %2695 = vmatpush.msra.mxu0 %v475
    %2696 = vmatpush.msra.mxu0 %v471
    %2697 = vmatpush.msra.mxu0 %v467
    %2698 = vmatmul.f32.gmra.mxu0 %v2681
    %v2699 = vpop.f32.mrf.mxu0
    %v2700 = vadd.f32 %v218, %v2699
    %2701 = vdwg.mxu0
    %2702 = vmatpush.msra.mxu0 %v591
    %2703 = vmatpush.msra.mxu0 %v587
    %2704 = vmatpush.msra.mxu0 %v583
    %2705 = vmatpush.msra.mxu0 %v579
    %2706 = vmatpush.msra.mxu0 %v575
    %2707 = vmatpush.msra.mxu0 %v571
    %2708 = vmatpush.msra.mxu0 %v567
    %2709 = vmatpush.msra.mxu0 %v563
    %2710 = vmatpush.msra.mxu0 %v559
    %2711 = vmatpush.msra.mxu0 %v555
    %2712 = vmatpush.msra.mxu0 %v551
    %2713 = vmatpush.msra.mxu0 %v547
    %2714 = vmatpush.msra.mxu0 %v543
    %2715 = vmatpush.msra.mxu0 %v539
    %2716 = vmatpush.msra.mxu0 %v535
    %2717 = vmatpush.msra.mxu0 %v531
    %2718 = vmatmul.f32.gmra.mxu0 %v2271
    %v2719 = vpop.f32.mrf.mxu0
    %v2720 = vadd.f32 %v2700, %v2719
    %2721 = vdwg.mxu0
    %2722 = vmatpush.msra.mxu0 %v528
    %2723 = vmatpush.msra.mxu0 %v524
    %2724 = vmatpush.msra.mxu0 %v520
    %2725 = vmatpush.msra.mxu0 %v516
    %2726 = vmatpush.msra.mxu0 %v512
    %2727 = vmatpush.msra.mxu0 %v508
    %2728 = vmatpush.msra.mxu0 %v504
    %2729 = vmatpush.msra.mxu0 %v500
    %2730 = vmatpush.msra.mxu0 %v496
    %2731 = vmatpush.msra.mxu0 %v492
    %2732 = vmatpush.msra.mxu0 %v488
    %2733 = vmatpush.msra.mxu0 %v484
    %2734 = vmatpush.msra.mxu0 %v480
    %2735 = vmatpush.msra.mxu0 %v476
    %2736 = vmatpush.msra.mxu0 %v472
    %2737 = vmatpush.msra.mxu0 %v468
    %2738 = vmatmul.f32.gmra.mxu0 %v2681
    %v2739 = vpop.f32.mrf.mxu0
    %v2740 = vadd.f32 %v219, %v2739
    %2741 = vdwg.mxu0
    %2742 = vmatpush.msra.mxu0 %v592
    %2743 = vmatpush.msra.mxu0 %v588
    %2744 = vmatpush.msra.mxu0 %v584
    %2745 = vmatpush.msra.mxu0 %v580
    %2746 = vmatpush.msra.mxu0 %v576
    %2747 = vmatpush.msra.mxu0 %v572
    %2748 = vmatpush.msra.mxu0 %v568
    %2749 = vmatpush.msra.mxu0 %v564
    %2750 = vmatpush.msra.mxu0 %v560
    %2751 = vmatpush.msra.mxu0 %v556
    %2752 = vmatpush.msra.mxu0 %v552
    %2753 = vmatpush.msra.mxu0 %v548
    %2754 = vmatpush.msra.mxu0 %v544
    %2755 = vmatpush.msra.mxu0 %v540
    %2756 = vmatpush.msra.mxu0 %v536
    %2757 = vmatpush.msra.mxu0 %v532
    %2758 = vmatmul.f32.gmra.mxu0 %v2271
    %v2759 = vpop.f32.mrf.mxu0
    %v2760 = vadd.f32 %v2740, %v2759
    %2761 = vdwg.mxu0
    %2762 = vmatpush.msra.mxu0 %v529
    %2763 = vmatpush.msra.mxu0 %v525
    %2764 = vmatpush.msra.mxu0 %v521
    %2765 = vmatpush.msra.mxu0 %v517
    %2766 = vmatpush.msra.mxu0 %v513
    %2767 = vmatpush.msra.mxu0 %v509
    %2768 = vmatpush.msra.mxu0 %v505
    %2769 = vmatpush.msra.mxu0 %v501
    %2770 = vmatpush.msra.mxu0 %v497
    %2771 = vmatpush.msra.mxu0 %v493
    %2772 = vmatpush.msra.mxu0 %v489
    %2773 = vmatpush.msra.mxu0 %v485
    %2774 = vmatpush.msra.mxu0 %v481
    %2775 = vmatpush.msra.mxu0 %v477
    %2776 = vmatpush.msra.mxu0 %v473
    %2777 = vmatpush.msra.mxu0 %v469
    %2778 = vmatmul.f32.gmra.mxu0 %v2681
    %v2779 = vpop.f32.mrf.mxu0
    %v2780 = vadd.f32 %v220, %v2779
    %2781 = vdwg.mxu0
    %2782 = vmatpush.msra.mxu0 %v593
    %2783 = vmatpush.msra.mxu0 %v589
    %2784 = vmatpush.msra.mxu0 %v585
    %2785 = vmatpush.msra.mxu0 %v581
    %2786 = vmatpush.msra.mxu0 %v577
    %2787 = vmatpush.msra.mxu0 %v573
    %2788 = vmatpush.msra.mxu0 %v569
    %2789 = vmatpush.msra.mxu0 %v565
    %2790 = vmatpush.msra.mxu0 %v561
    %2791 = vmatpush.msra.mxu0 %v557
    %2792 = vmatpush.msra.mxu0 %v553
    %2793 = vmatpush.msra.mxu0 %v549
    %2794 = vmatpush.msra.mxu0 %v545
    %2795 = vmatpush.msra.mxu0 %v541
    %2796 = vmatpush.msra.mxu0 %v537
    %2797 = vmatpush.msra.mxu0 %v533
    %2798 = vmatmul.f32.gmra.mxu0 %v2271
    %v2799 = vpop.f32.mrf.mxu0
    %v2800 = vadd.f32 %v2780, %v2799
    %2801 = vdwg.mxu0
    %2802 = vmatpush.msra.mxu0 %v530
    %2803 = vmatpush.msra.mxu0 %v526
    %2804 = vmatpush.msra.mxu0 %v522
    %2805 = vmatpush.msra.mxu0 %v518
    %2806 = vmatpush.msra.mxu0 %v514
    %2807 = vmatpush.msra.mxu0 %v510
    %2808 = vmatpush.msra.mxu0 %v506
    %2809 = vmatpush.msra.mxu0 %v502
    %2810 = vmatpush.msra.mxu0 %v498
    %2811 = vmatpush.msra.mxu0 %v494
    %2812 = vmatpush.msra.mxu0 %v490
    %2813 = vmatpush.msra.mxu0 %v486
    %2814 = vmatpush.msra.mxu0 %v482
    %2815 = vmatpush.msra.mxu0 %v478
    %2816 = vmatpush.msra.mxu0 %v474
    %2817 = vmatpush.msra.mxu0 %v470
    %2818 = vmatmul.f32.gmra.mxu0 %v2681
    %v2819 = vpop.f32.mrf.mxu0
    %v2820 = vadd.f32 %v221, %v2819
    %2821 = vdwg.mxu0
    %2822 = vmatpush.msra.mxu0 %v594
    %2823 = vmatpush.msra.mxu0 %v590
    %2824 = vmatpush.msra.mxu0 %v586
    %2825 = vmatpush.msra.mxu0 %v582
    %2826 = vmatpush.msra.mxu0 %v578
    %2827 = vmatpush.msra.mxu0 %v574
    %2828 = vmatpush.msra.mxu0 %v570
    %2829 = vmatpush.msra.mxu0 %v566
    %2830 = vmatpush.msra.mxu0 %v562
    %2831 = vmatpush.msra.mxu0 %v558
    %2832 = vmatpush.msra.mxu0 %v554
    %2833 = vmatpush.msra.mxu0 %v550
    %2834 = vmatpush.msra.mxu0 %v546
    %2835 = vmatpush.msra.mxu0 %v542
    %2836 = vmatpush.msra.mxu0 %v538
    %2837 = vmatpush.msra.mxu0 %v534
    %2838 = vmatmul.f32.gmra.mxu0 %v2271
    %v2839 = vpop.f32.mrf.mxu0
    %v2840 = vadd.f32 %v2820, %v2839
    %2841 = vdwg.mxu0
    %v2842 = vxor.u32 %v2720, 2147483648
    %v2843 = vxor.u32 %v2760, 2147483648
    %v2844 = vxor.u32 %v2800, 2147483648
    %v2845 = vxor.u32 %v2840, 2147483648
    %v2846 = vmul.f32 %v2842, 1.442695
    %v2847 = vpow.pop %v2846
    %v2848 = vmul.f32 %v2843, 1.442695
    %v2849 = vpow.pop %v2848
    %v2850 = vmul.f32 %v2844, 1.442695
    %v2851 = vpow.pop %v2850
    %v2852 = vmul.f32 %v2845, 1.442695
    %v2853 = vpow.pop %v2852
    %v2854 = vadd.f32 %v2847, 1.0
    %v2855 = vadd.f32 %v2849, 1.0
    %v2856 = vadd.f32 %v2851, 1.0
    %v2857 = vadd.f32 %v2853, 1.0
    %v2858 = vrcp.pop %v2854
    %v2859 = vmul.f32 %v2854, %v2858
    %v2860 = vsub.f32 1.0, %v2859
    %v2861 = vmul.f32 %v2858, %v2860
    %v2862 = vadd.f32 %v2858, %v2861
    %vm2863 = vweird.f32 %v2854
    %vm2864 = vweird.f32 %v2858
    %vm2865 = vmor %vm2863, %vm2864
    %v2866 = vsel %vm2865, %v2858, %v2862
    %v2867 = vand.u32 2147483647, %v2854
    %vm2868 = vcmp.eq.f32.partialorder %v2867, 8.507059e+37
    %v2869 = vand.u32 %v2854, 2147483648
    %v2870 = vor.u32 1.1754944e-38, %v2869
    %v2871 = vsel %vm2868, %v2870, %v2866
    %v2872 = vmul.f32 1.0, %v2871
    %v2873 = vrcp.pop %v2855
    %v2874 = vmul.f32 %v2855, %v2873
    %v2875 = vsub.f32 1.0, %v2874
    %v2876 = vmul.f32 %v2873, %v2875
    %v2877 = vadd.f32 %v2873, %v2876
    %vm2878 = vweird.f32 %v2855
    %vm2879 = vweird.f32 %v2873
    %vm2880 = vmor %vm2878, %vm2879
    %v2881 = vsel %vm2880, %v2873, %v2877
    %v2882 = vand.u32 2147483647, %v2855
    %vm2883 = vcmp.eq.f32.partialorder %v2882, 8.507059e+37
    %v2884 = vand.u32 %v2855, 2147483648
    %v2885 = vor.u32 1.1754944e-38, %v2884
    %v2886 = vsel %vm2883, %v2885, %v2881
    %v2887 = vmul.f32 1.0, %v2886
    %v2888 = vrcp.pop %v2856
    %v2889 = vmul.f32 %v2856, %v2888
    %v2890 = vsub.f32 1.0, %v2889
    %v2891 = vmul.f32 %v2888, %v2890
    %v2892 = vadd.f32 %v2888, %v2891
    %vm2893 = vweird.f32 %v2856
    %vm2894 = vweird.f32 %v2888
    %vm2895 = vmor %vm2893, %vm2894
    %v2896 = vsel %vm2895, %v2888, %v2892
    %v2897 = vand.u32 2147483647, %v2856
    %vm2898 = vcmp.eq.f32.partialorder %v2897, 8.507059e+37
    %v2899 = vand.u32 %v2856, 2147483648
    %v2900 = vor.u32 1.1754944e-38, %v2899
    %v2901 = vsel %vm2898, %v2900, %v2896
    %v2902 = vmul.f32 1.0, %v2901
    %v2903 = vrcp.pop %v2857
    %v2904 = vmul.f32 %v2857, %v2903
    %v2905 = vsub.f32 1.0, %v2904
    %v2906 = vmul.f32 %v2903, %v2905
    %v2907 = vadd.f32 %v2903, %v2906
    %vm2908 = vweird.f32 %v2857
    %vm2909 = vweird.f32 %v2903
    %vm2910 = vmor %vm2908, %vm2909
    %v2911 = vsel %vm2910, %v2903, %v2907
    %v2912 = vand.u32 2147483647, %v2857
    %vm2913 = vcmp.eq.f32.partialorder %v2912, 8.507059e+37
    %v2914 = vand.u32 %v2857, 2147483648
    %v2915 = vor.u32 1.1754944e-38, %v2914
    %v2916 = vsel %vm2913, %v2915, %v2911
    %v2917 = vmul.f32 1.0, %v2916
    %v2918 = vmul.f32 %v2902, 2.0
    %v2919 = vsub.f32 %v2918, 1.0
    %v2920 = vmul.f32 %v2887, %v2269
    %v2921 = vmul.f32 %v2872, %v2919
    %v2922 = vadd.f32 %v2920, %v2921
    %v2923 = vtanh.pop %v2922
    %v2924 = vmul.f32 %v2917, %v2923
    %2925 = vmatpush.msra.mxu0 %v898
    %2926 = vmatpush.msra.mxu0 %v894
    %2927 = vmatpush.msra.mxu0 %v890
    %2928 = vmatpush.msra.mxu0 %v886
    %2929 = vmatpush.msra.mxu0 %v882
    %2930 = vmatpush.msra.mxu0 %v878
    %2931 = vmatpush.msra.mxu0 %v874
    %2932 = vmatpush.msra.mxu0 %v870
    %2933 = vmatpush.msra.mxu0 %v866
    %2934 = vmatpush.msra.mxu0 %v862
    %2935 = vmatpush.msra.mxu0 %v858
    %2936 = vmatpush.msra.mxu0 %v854
    %2937 = vmatpush.msra.mxu0 %v850
    %2938 = vmatpush.msra.mxu0 %v846
    %2939 = vmatpush.msra.mxu0 %v842
    %2940 = vmatpush.msra.mxu0 %v838
    %2941 = vmatmul.f32.gmra.mxu0 %v2924
    %v2942 = vpop.f32.mrf.mxu0
    %v2943 = vadd.f32 %v228, %v2942
    %2944 = vdwg.mxu0
    %2945 = vmatpush.msra.mxu0 %v962
    %2946 = vmatpush.msra.mxu0 %v958
    %2947 = vmatpush.msra.mxu0 %v954
    %2948 = vmatpush.msra.mxu0 %v950
    %2949 = vmatpush.msra.mxu0 %v946
    %2950 = vmatpush.msra.mxu0 %v942
    %2951 = vmatpush.msra.mxu0 %v938
    %2952 = vmatpush.msra.mxu0 %v934
    %2953 = vmatpush.msra.mxu0 %v930
    %2954 = vmatpush.msra.mxu0 %v926
    %2955 = vmatpush.msra.mxu0 %v922
    %2956 = vmatpush.msra.mxu0 %v918
    %2957 = vmatpush.msra.mxu0 %v914
    %2958 = vmatpush.msra.mxu0 %v910
    %2959 = vmatpush.msra.mxu0 %v906
    %2960 = vmatpush.msra.mxu0 %v902
    %2961 = vmatmul.f32.gmra.mxu0 %v2514
    %v2962 = vpop.f32.mrf.mxu0
    %v2963 = vadd.f32 %v2943, %v2962
    %2964 = vdwg.mxu0
    %2965 = vmatpush.msra.mxu0 %v899
    %2966 = vmatpush.msra.mxu0 %v895
    %2967 = vmatpush.msra.mxu0 %v891
    %2968 = vmatpush.msra.mxu0 %v887
    %2969 = vmatpush.msra.mxu0 %v883
    %2970 = vmatpush.msra.mxu0 %v879
    %2971 = vmatpush.msra.mxu0 %v875
    %2972 = vmatpush.msra.mxu0 %v871
    %2973 = vmatpush.msra.mxu0 %v867
    %2974 = vmatpush.msra.mxu0 %v863
    %2975 = vmatpush.msra.mxu0 %v859
    %2976 = vmatpush.msra.mxu0 %v855
    %2977 = vmatpush.msra.mxu0 %v851
    %2978 = vmatpush.msra.mxu0 %v847
    %2979 = vmatpush.msra.mxu0 %v843
    %2980 = vmatpush.msra.mxu0 %v839
    %2981 = vmatmul.f32.gmra.mxu0 %v2924
    %v2982 = vpop.f32.mrf.mxu0
    %v2983 = vadd.f32 %v229, %v2982
    %2984 = vdwg.mxu0
    %2985 = vmatpush.msra.mxu0 %v963
    %2986 = vmatpush.msra.mxu0 %v959
    %2987 = vmatpush.msra.mxu0 %v955
    %2988 = vmatpush.msra.mxu0 %v951
    %2989 = vmatpush.msra.mxu0 %v947
    %2990 = vmatpush.msra.mxu0 %v943
    %2991 = vmatpush.msra.mxu0 %v939
    %2992 = vmatpush.msra.mxu0 %v935
    %2993 = vmatpush.msra.mxu0 %v931
    %2994 = vmatpush.msra.mxu0 %v927
    %2995 = vmatpush.msra.mxu0 %v923
    %2996 = vmatpush.msra.mxu0 %v919
    %2997 = vmatpush.msra.mxu0 %v915
    %2998 = vmatpush.msra.mxu0 %v911
    %2999 = vmatpush.msra.mxu0 %v907
    %3000 = vmatpush.msra.mxu0 %v903
    %3001 = vmatmul.f32.gmra.mxu0 %v2514
    %v3002 = vpop.f32.mrf.mxu0
    %v3003 = vadd.f32 %v2983, %v3002
    %3004 = vdwg.mxu0
    %3005 = vmatpush.msra.mxu0 %v900
    %3006 = vmatpush.msra.mxu0 %v896
    %3007 = vmatpush.msra.mxu0 %v892
    %3008 = vmatpush.msra.mxu0 %v888
    %3009 = vmatpush.msra.mxu0 %v884
    %3010 = vmatpush.msra.mxu0 %v880
    %3011 = vmatpush.msra.mxu0 %v876
    %3012 = vmatpush.msra.mxu0 %v872
    %3013 = vmatpush.msra.mxu0 %v868
    %3014 = vmatpush.msra.mxu0 %v864
    %3015 = vmatpush.msra.mxu0 %v860
    %3016 = vmatpush.msra.mxu0 %v856
    %3017 = vmatpush.msra.mxu0 %v852
    %3018 = vmatpush.msra.mxu0 %v848
    %3019 = vmatpush.msra.mxu0 %v844
    %3020 = vmatpush.msra.mxu0 %v840
    %3021 = vmatmul.f32.gmra.mxu0 %v2924
    %v3022 = vpop.f32.mrf.mxu0
    %v3023 = vadd.f32 %v230, %v3022
    %3024 = vdwg.mxu0
    %3025 = vmatpush.msra.mxu0 %v964
    %3026 = vmatpush.msra.mxu0 %v960
    %3027 = vmatpush.msra.mxu0 %v956
    %3028 = vmatpush.msra.mxu0 %v952
    %3029 = vmatpush.msra.mxu0 %v948
    %3030 = vmatpush.msra.mxu0 %v944
    %3031 = vmatpush.msra.mxu0 %v940
    %3032 = vmatpush.msra.mxu0 %v936
    %3033 = vmatpush.msra.mxu0 %v932
    %3034 = vmatpush.msra.mxu0 %v928
    %3035 = vmatpush.msra.mxu0 %v924
    %3036 = vmatpush.msra.mxu0 %v920
    %3037 = vmatpush.msra.mxu0 %v916
    %3038 = vmatpush.msra.mxu0 %v912
    %3039 = vmatpush.msra.mxu0 %v908
    %3040 = vmatpush.msra.mxu0 %v904
    %3041 = vmatmul.f32.gmra.mxu0 %v2514
    %v3042 = vpop.f32.mrf.mxu0
    %v3043 = vadd.f32 %v3023, %v3042
    %3044 = vdwg.mxu0
    %3045 = vmatpush.msra.mxu0 %v901
    %3046 = vmatpush.msra.mxu0 %v897
    %3047 = vmatpush.msra.mxu0 %v893
    %3048 = vmatpush.msra.mxu0 %v889
    %3049 = vmatpush.msra.mxu0 %v885
    %3050 = vmatpush.msra.mxu0 %v881
    %3051 = vmatpush.msra.mxu0 %v877
    %3052 = vmatpush.msra.mxu0 %v873
    %3053 = vmatpush.msra.mxu0 %v869
    %3054 = vmatpush.msra.mxu0 %v865
    %3055 = vmatpush.msra.mxu0 %v861
    %3056 = vmatpush.msra.mxu0 %v857
    %3057 = vmatpush.msra.mxu0 %v853
    %3058 = vmatpush.msra.mxu0 %v849
    %3059 = vmatpush.msra.mxu0 %v845
    %3060 = vmatpush.msra.mxu0 %v841
    %3061 = vmatmul.f32.gmra.mxu0 %v2924
    %v3062 = vpop.f32.mrf.mxu0
    %v3063 = vadd.f32 %v231, %v3062
    %3064 = vdwg.mxu0
    %3065 = vmatpush.msra.mxu0 %v965
    %3066 = vmatpush.msra.mxu0 %v961
    %3067 = vmatpush.msra.mxu0 %v957
    %3068 = vmatpush.msra.mxu0 %v953
    %3069 = vmatpush.msra.mxu0 %v949
    %3070 = vmatpush.msra.mxu0 %v945
    %3071 = vmatpush.msra.mxu0 %v941
    %3072 = vmatpush.msra.mxu0 %v937
    %3073 = vmatpush.msra.mxu0 %v933
    %3074 = vmatpush.msra.mxu0 %v929
    %3075 = vmatpush.msra.mxu0 %v925
    %3076 = vmatpush.msra.mxu0 %v921
    %3077 = vmatpush.msra.mxu0 %v917
    %3078 = vmatpush.msra.mxu0 %v913
    %3079 = vmatpush.msra.mxu0 %v909
    %3080 = vmatpush.msra.mxu0 %v905
    %3081 = vmatmul.f32.gmra.mxu0 %v2514
    %v3082 = vpop.f32.mrf.mxu0
    %v3083 = vadd.f32 %v3063, %v3082
    %3084 = vdwg.mxu0
    %v3085 = vxor.u32 %v2963, 2147483648
    %v3086 = vxor.u32 %v3003, 2147483648
    %v3087 = vxor.u32 %v3043, 2147483648
    %v3088 = vxor.u32 %v3083, 2147483648
    %v3089 = vmul.f32 %v3085, 1.442695
    %v3090 = vpow.pop %v3089
    %v3091 = vmul.f32 %v3086, 1.442695
    %v3092 = vpow.pop %v3091
    %v3093 = vmul.f32 %v3087, 1.442695
    %v3094 = vpow.pop %v3093
    %v3095 = vmul.f32 %v3088, 1.442695
    %v3096 = vpow.pop %v3095
    %v3097 = vadd.f32 %v3090, 1.0
    %v3098 = vadd.f32 %v3092, 1.0
    %v3099 = vadd.f32 %v3094, 1.0
    %v3100 = vadd.f32 %v3096, 1.0
    %v3101 = vrcp.pop %v3097
    %v3102 = vmul.f32 %v3097, %v3101
    %v3103 = vsub.f32 1.0, %v3102
    %v3104 = vmul.f32 %v3101, %v3103
    %v3105 = vadd.f32 %v3101, %v3104
    %vm3106 = vweird.f32 %v3097
    %vm3107 = vweird.f32 %v3101
    %vm3108 = vmor %vm3106, %vm3107
    %v3109 = vsel %vm3108, %v3101, %v3105
    %v3110 = vand.u32 2147483647, %v3097
    %vm3111 = vcmp.eq.f32.partialorder %v3110, 8.507059e+37
    %v3112 = vand.u32 %v3097, 2147483648
    %v3113 = vor.u32 1.1754944e-38, %v3112
    %v3114 = vsel %vm3111, %v3113, %v3109
    %v3115 = vmul.f32 1.0, %v3114
    %v3116 = vrcp.pop %v3098
    %v3117 = vmul.f32 %v3098, %v3116
    %v3118 = vsub.f32 1.0, %v3117
    %v3119 = vmul.f32 %v3116, %v3118
    %v3120 = vadd.f32 %v3116, %v3119
    %vm3121 = vweird.f32 %v3098
    %vm3122 = vweird.f32 %v3116
    %vm3123 = vmor %vm3121, %vm3122
    %v3124 = vsel %vm3123, %v3116, %v3120
    %v3125 = vand.u32 2147483647, %v3098
    %vm3126 = vcmp.eq.f32.partialorder %v3125, 8.507059e+37
    %v3127 = vand.u32 %v3098, 2147483648
    %v3128 = vor.u32 1.1754944e-38, %v3127
    %v3129 = vsel %vm3126, %v3128, %v3124
    %v3130 = vmul.f32 1.0, %v3129
    %v3131 = vrcp.pop %v3099
    %v3132 = vmul.f32 %v3099, %v3131
    %v3133 = vsub.f32 1.0, %v3132
    %v3134 = vmul.f32 %v3131, %v3133
    %v3135 = vadd.f32 %v3131, %v3134
    %vm3136 = vweird.f32 %v3099
    %vm3137 = vweird.f32 %v3131
    %vm3138 = vmor %vm3136, %vm3137
    %v3139 = vsel %vm3138, %v3131, %v3135
    %v3140 = vand.u32 2147483647, %v3099
    %vm3141 = vcmp.eq.f32.partialorder %v3140, 8.507059e+37
    %v3142 = vand.u32 %v3099, 2147483648
    %v3143 = vor.u32 1.1754944e-38, %v3142
    %v3144 = vsel %vm3141, %v3143, %v3139
    %v3145 = vmul.f32 1.0, %v3144
    %v3146 = vrcp.pop %v3100
    %v3147 = vmul.f32 %v3100, %v3146
    %v3148 = vsub.f32 1.0, %v3147
    %v3149 = vmul.f32 %v3146, %v3148
    %v3150 = vadd.f32 %v3146, %v3149
    %vm3151 = vweird.f32 %v3100
    %vm3152 = vweird.f32 %v3146
    %vm3153 = vmor %vm3151, %vm3152
    %v3154 = vsel %vm3153, %v3146, %v3150
    %v3155 = vand.u32 2147483647, %v3100
    %vm3156 = vcmp.eq.f32.partialorder %v3155, 8.507059e+37
    %v3157 = vand.u32 %v3100, 2147483648
    %v3158 = vor.u32 1.1754944e-38, %v3157
    %v3159 = vsel %vm3156, %v3158, %v3154
    %v3160 = vmul.f32 1.0, %v3159
    %v3161 = vmul.f32 %v3145, 2.0
    %v3162 = vsub.f32 %v3161, 1.0
    %v3163 = vmul.f32 %v3130, %v2512
    %v3164 = vmul.f32 %v3115, %v3162
    %v3165 = vadd.f32 %v3163, %v3164
    %v3166 = vtanh.pop %v3165
    %v3167 = vmul.f32 %v3160, %v3166
    %3168 = vmatpush.msra.mxu0 %v296
    %3169 = vmatpush.msra.mxu0 %v292
    %3170 = vmatpush.msra.mxu0 %v288
    %3171 = vmatpush.msra.mxu0 %v284
    %3172 = vmatpush.msra.mxu0 %v280
    %3173 = vmatpush.msra.mxu0 %v276
    %3174 = vmatpush.msra.mxu0 %v272
    %3175 = vmatpush.msra.mxu0 %v268
    %3176 = vmatpush.msra.mxu0 %v264
    %3177 = vmatpush.msra.mxu0 %v260
    %3178 = vmatpush.msra.mxu0 %v256
    %3179 = vmatpush.msra.mxu0 %v252
    %3180 = vmatpush.msra.mxu0 %v248
    %3181 = vmatpush.msra.mxu0 %v244
    %3182 = vmatpush.msra.mxu0 %v240
    %3183 = vmatpush.msra.mxu0 %v236
    %3184 = vmatmul.f32.gmra.mxu0 %v2681
    %v3185 = vpop.f32.mrf.mxu0
    %v3186 = vadd.f32 0.0, %v3185
    %3187 = vdwg.mxu0
    %3188 = vmatpush.msra.mxu0 %v297
    %3189 = vmatpush.msra.mxu0 %v293
    %3190 = vmatpush.msra.mxu0 %v289
    %3191 = vmatpush.msra.mxu0 %v285
    %3192 = vmatpush.msra.mxu0 %v281
    %3193 = vmatpush.msra.mxu0 %v277
    %3194 = vmatpush.msra.mxu0 %v273
    %3195 = vmatpush.msra.mxu0 %v269
    %3196 = vmatpush.msra.mxu0 %v265
    %3197 = vmatpush.msra.mxu0 %v261
    %3198 = vmatpush.msra.mxu0 %v257
    %3199 = vmatpush.msra.mxu0 %v253
    %3200 = vmatpush.msra.mxu0 %v249
    %3201 = vmatpush.msra.mxu0 %v245
    %3202 = vmatpush.msra.mxu0 %v241
    %3203 = vmatpush.msra.mxu0 %v237
    %3204 = vmatmul.f32.gmra.mxu0 %v2681
    %v3205 = vpop.f32.mrf.mxu0
    %v3206 = vadd.f32 0.0, %v3205
    %3207 = vdwg.mxu0
    %3208 = vmatpush.msra.mxu0 %v298
    %3209 = vmatpush.msra.mxu0 %v294
    %3210 = vmatpush.msra.mxu0 %v290
    %3211 = vmatpush.msra.mxu0 %v286
    %3212 = vmatpush.msra.mxu0 %v282
    %3213 = vmatpush.msra.mxu0 %v278
    %3214 = vmatpush.msra.mxu0 %v274
    %3215 = vmatpush.msra.mxu0 %v270
    %3216 = vmatpush.msra.mxu0 %v266
    %3217 = vmatpush.msra.mxu0 %v262
    %3218 = vmatpush.msra.mxu0 %v258
    %3219 = vmatpush.msra.mxu0 %v254
    %3220 = vmatpush.msra.mxu0 %v250
    %3221 = vmatpush.msra.mxu0 %v246
    %3222 = vmatpush.msra.mxu0 %v242
    %3223 = vmatpush.msra.mxu0 %v238
    %3224 = vmatmul.f32.gmra.mxu0 %v2681
    %v3225 = vpop.f32.mrf.mxu0
    %v3226 = vadd.f32 0.0, %v3225
    %3227 = vdwg.mxu0
    %3228 = vmatpush.msra.mxu0 %v299
    %3229 = vmatpush.msra.mxu0 %v295
    %3230 = vmatpush.msra.mxu0 %v291
    %3231 = vmatpush.msra.mxu0 %v287
    %3232 = vmatpush.msra.mxu0 %v283
    %3233 = vmatpush.msra.mxu0 %v279
    %3234 = vmatpush.msra.mxu0 %v275
    %3235 = vmatpush.msra.mxu0 %v271
    %3236 = vmatpush.msra.mxu0 %v267
    %3237 = vmatpush.msra.mxu0 %v263
    %3238 = vmatpush.msra.mxu0 %v259
    %3239 = vmatpush.msra.mxu0 %v255
    %3240 = vmatpush.msra.mxu0 %v251
    %3241 = vmatpush.msra.mxu0 %v247
    %3242 = vmatpush.msra.mxu0 %v243
    %3243 = vmatpush.msra.mxu0 %v239
    %3244 = vmatmul.f32.gmra.mxu0 %v2681
    %v3245 = vpop.f32.mrf.mxu0
    %v3246 = vadd.f32 0.0, %v3245
    %3247 = vdwg.mxu0
    %v3248 = vadd.f32 %v200, %v3186
    %v3249 = vadd.f32 %v201, %v3206
    %v3250 = vadd.f32 %v202, %v3226
    %v3251 = vadd.f32 %v203, %v3246
    %v3252 = vxor.u32 %v3248, 2147483648
    %v3253 = vxor.u32 %v3249, 2147483648
    %v3254 = vxor.u32 %v3250, 2147483648
    %v3255 = vxor.u32 %v3251, 2147483648
    %v3256 = vmul.f32 %v3252, 1.442695
    %v3257 = vpow.pop %v3256
    %v3258 = vmul.f32 %v3253, 1.442695
    %v3259 = vpow.pop %v3258
    %v3260 = vmul.f32 %v3254, 1.442695
    %v3261 = vpow.pop %v3260
    %v3262 = vmul.f32 %v3255, 1.442695
    %v3263 = vpow.pop %v3262
    %v3264 = vadd.f32 %v3257, 1.0
    %v3265 = vadd.f32 %v3259, 1.0
    %v3266 = vadd.f32 %v3261, 1.0
    %v3267 = vadd.f32 %v3263, 1.0
    %v3268 = vrcp.pop %v3264
    %v3269 = vmul.f32 %v3264, %v3268
    %v3270 = vsub.f32 1.0, %v3269
    %v3271 = vmul.f32 %v3268, %v3270
    %v3272 = vadd.f32 %v3268, %v3271
    %vm3273 = vweird.f32 %v3264
    %vm3274 = vweird.f32 %v3268
    %vm3275 = vmor %vm3273, %vm3274
    %v3276 = vsel %vm3275, %v3268, %v3272
    %v3277 = vand.u32 2147483647, %v3264
    %vm3278 = vcmp.eq.f32.partialorder %v3277, 8.507059e+37
    %v3279 = vand.u32 %v3264, 2147483648
    %v3280 = vor.u32 1.1754944e-38, %v3279
    %v3281 = vsel %vm3278, %v3280, %v3276
    %v3282 = vmul.f32 1.0, %v3281
    %v3283 = vrcp.pop %v3265
    %v3284 = vmul.f32 %v3265, %v3283
    %v3285 = vsub.f32 1.0, %v3284
    %v3286 = vmul.f32 %v3283, %v3285
    %v3287 = vadd.f32 %v3283, %v3286
    %vm3288 = vweird.f32 %v3265
    %vm3289 = vweird.f32 %v3283
    %vm3290 = vmor %vm3288, %vm3289
    %v3291 = vsel %vm3290, %v3283, %v3287
    %v3292 = vand.u32 2147483647, %v3265
    %vm3293 = vcmp.eq.f32.partialorder %v3292, 8.507059e+37
    %v3294 = vand.u32 %v3265, 2147483648
    %v3295 = vor.u32 1.1754944e-38, %v3294
    %v3296 = vsel %vm3293, %v3295, %v3291
    %v3297 = vmul.f32 1.0, %v3296
    %v3298 = vrcp.pop %v3266
    %v3299 = vmul.f32 %v3266, %v3298
    %v3300 = vsub.f32 1.0, %v3299
    %v3301 = vmul.f32 %v3298, %v3300
    %v3302 = vadd.f32 %v3298, %v3301
    %vm3303 = vweird.f32 %v3266
    %vm3304 = vweird.f32 %v3298
    %vm3305 = vmor %vm3303, %vm3304
    %v3306 = vsel %vm3305, %v3298, %v3302
    %v3307 = vand.u32 2147483647, %v3266
    %vm3308 = vcmp.eq.f32.partialorder %v3307, 8.507059e+37
    %v3309 = vand.u32 %v3266, 2147483648
    %v3310 = vor.u32 1.1754944e-38, %v3309
    %v3311 = vsel %vm3308, %v3310, %v3306
    %v3312 = vmul.f32 1.0, %v3311
    %v3313 = vrcp.pop %v3267
    %v3314 = vmul.f32 %v3267, %v3313
    %v3315 = vsub.f32 1.0, %v3314
    %v3316 = vmul.f32 %v3313, %v3315
    %v3317 = vadd.f32 %v3313, %v3316
    %vm3318 = vweird.f32 %v3267
    %vm3319 = vweird.f32 %v3313
    %vm3320 = vmor %vm3318, %vm3319
    %v3321 = vsel %vm3320, %v3313, %v3317
    %v3322 = vand.u32 2147483647, %v3267
    %vm3323 = vcmp.eq.f32.partialorder %v3322, 8.507059e+37
    %v3324 = vand.u32 %v3267, 2147483648
    %v3325 = vor.u32 1.1754944e-38, %v3324
    %v3326 = vsel %vm3323, %v3325, %v3321
    %v3327 = vmul.f32 1.0, %v3326
    %v3328 = vmul.f32 %v3312, 2.0
    %v3329 = vsub.f32 %v3328, 1.0
    %v3330 = vmul.f32 %v3297, %v2679
    %v3331 = vmul.f32 %v3282, %v3329
    %v3332 = vadd.f32 %v3330, %v3331
    %v3333 = vtanh.pop %v3332
    %v3334 = vmul.f32 %v3327, %v3333
    %3335 = vmatpush.msra.mxu0 %v527
    %3336 = vmatpush.msra.mxu0 %v523
    %3337 = vmatpush.msra.mxu0 %v519
    %3338 = vmatpush.msra.mxu0 %v515
    %3339 = vmatpush.msra.mxu0 %v511
    %3340 = vmatpush.msra.mxu0 %v507
    %3341 = vmatpush.msra.mxu0 %v503
    %3342 = vmatpush.msra.mxu0 %v499
    %3343 = vmatpush.msra.mxu0 %v495
    %3344 = vmatpush.msra.mxu0 %v491
    %3345 = vmatpush.msra.mxu0 %v487
    %3346 = vmatpush.msra.mxu0 %v483
    %3347 = vmatpush.msra.mxu0 %v479
    %3348 = vmatpush.msra.mxu0 %v475
    %3349 = vmatpush.msra.mxu0 %v471
    %3350 = vmatpush.msra.mxu0 %v467
    %3351 = vmatmul.f32.gmra.mxu0 %v3334
    %v3352 = vpop.f32.mrf.mxu0
    %v3353 = vadd.f32 %v218, %v3352
    %3354 = vdwg.mxu0
    %3355 = vmatpush.msra.mxu0 %v591
    %3356 = vmatpush.msra.mxu0 %v587
    %3357 = vmatpush.msra.mxu0 %v583
    %3358 = vmatpush.msra.mxu0 %v579
    %3359 = vmatpush.msra.mxu0 %v575
    %3360 = vmatpush.msra.mxu0 %v571
    %3361 = vmatpush.msra.mxu0 %v567
    %3362 = vmatpush.msra.mxu0 %v563
    %3363 = vmatpush.msra.mxu0 %v559
    %3364 = vmatpush.msra.mxu0 %v555
    %3365 = vmatpush.msra.mxu0 %v551
    %3366 = vmatpush.msra.mxu0 %v547
    %3367 = vmatpush.msra.mxu0 %v543
    %3368 = vmatpush.msra.mxu0 %v539
    %3369 = vmatpush.msra.mxu0 %v535
    %3370 = vmatpush.msra.mxu0 %v531
    %3371 = vmatmul.f32.gmra.mxu0 %v2924
    %v3372 = vpop.f32.mrf.mxu0
    %v3373 = vadd.f32 %v3353, %v3372
    %3374 = vdwg.mxu0
    %3375 = vmatpush.msra.mxu0 %v528
    %3376 = vmatpush.msra.mxu0 %v524
    %3377 = vmatpush.msra.mxu0 %v520
    %3378 = vmatpush.msra.mxu0 %v516
    %3379 = vmatpush.msra.mxu0 %v512
    %3380 = vmatpush.msra.mxu0 %v508
    %3381 = vmatpush.msra.mxu0 %v504
    %3382 = vmatpush.msra.mxu0 %v500
    %3383 = vmatpush.msra.mxu0 %v496
    %3384 = vmatpush.msra.mxu0 %v492
    %3385 = vmatpush.msra.mxu0 %v488
    %3386 = vmatpush.msra.mxu0 %v484
    %3387 = vmatpush.msra.mxu0 %v480
    %3388 = vmatpush.msra.mxu0 %v476
    %3389 = vmatpush.msra.mxu0 %v472
    %3390 = vmatpush.msra.mxu0 %v468
    %3391 = vmatmul.f32.gmra.mxu0 %v3334
    %v3392 = vpop.f32.mrf.mxu0
    %v3393 = vadd.f32 %v219, %v3392
    %3394 = vdwg.mxu0
    %3395 = vmatpush.msra.mxu0 %v592
    %3396 = vmatpush.msra.mxu0 %v588
    %3397 = vmatpush.msra.mxu0 %v584
    %3398 = vmatpush.msra.mxu0 %v580
    %3399 = vmatpush.msra.mxu0 %v576
    %3400 = vmatpush.msra.mxu0 %v572
    %3401 = vmatpush.msra.mxu0 %v568
    %3402 = vmatpush.msra.mxu0 %v564
    %3403 = vmatpush.msra.mxu0 %v560
    %3404 = vmatpush.msra.mxu0 %v556
    %3405 = vmatpush.msra.mxu0 %v552
    %3406 = vmatpush.msra.mxu0 %v548
    %3407 = vmatpush.msra.mxu0 %v544
    %3408 = vmatpush.msra.mxu0 %v540
    %3409 = vmatpush.msra.mxu0 %v536
    %3410 = vmatpush.msra.mxu0 %v532
    %3411 = vmatmul.f32.gmra.mxu0 %v2924
    %v3412 = vpop.f32.mrf.mxu0
    %v3413 = vadd.f32 %v3393, %v3412
    %3414 = vdwg.mxu0
    %3415 = vmatpush.msra.mxu0 %v529
    %3416 = vmatpush.msra.mxu0 %v525
    %3417 = vmatpush.msra.mxu0 %v521
    %3418 = vmatpush.msra.mxu0 %v517
    %3419 = vmatpush.msra.mxu0 %v513
    %3420 = vmatpush.msra.mxu0 %v509
    %3421 = vmatpush.msra.mxu0 %v505
    %3422 = vmatpush.msra.mxu0 %v501
    %3423 = vmatpush.msra.mxu0 %v497
    %3424 = vmatpush.msra.mxu0 %v493
    %3425 = vmatpush.msra.mxu0 %v489
    %3426 = vmatpush.msra.mxu0 %v485
    %3427 = vmatpush.msra.mxu0 %v481
    %3428 = vmatpush.msra.mxu0 %v477
    %3429 = vmatpush.msra.mxu0 %v473
    %3430 = vmatpush.msra.mxu0 %v469
    %3431 = vmatmul.f32.gmra.mxu0 %v3334
    %v3432 = vpop.f32.mrf.mxu0
    %v3433 = vadd.f32 %v220, %v3432
    %3434 = vdwg.mxu0
    %3435 = vmatpush.msra.mxu0 %v593
    %3436 = vmatpush.msra.mxu0 %v589
    %3437 = vmatpush.msra.mxu0 %v585
    %3438 = vmatpush.msra.mxu0 %v581
    %3439 = vmatpush.msra.mxu0 %v577
    %3440 = vmatpush.msra.mxu0 %v573
    %3441 = vmatpush.msra.mxu0 %v569
    %3442 = vmatpush.msra.mxu0 %v565
    %3443 = vmatpush.msra.mxu0 %v561
    %3444 = vmatpush.msra.mxu0 %v557
    %3445 = vmatpush.msra.mxu0 %v553
    %3446 = vmatpush.msra.mxu0 %v549
    %3447 = vmatpush.msra.mxu0 %v545
    %3448 = vmatpush.msra.mxu0 %v541
    %3449 = vmatpush.msra.mxu0 %v537
    %3450 = vmatpush.msra.mxu0 %v533
    %3451 = vmatmul.f32.gmra.mxu0 %v2924
    %v3452 = vpop.f32.mrf.mxu0
    %v3453 = vadd.f32 %v3433, %v3452
    %3454 = vdwg.mxu0
    %3455 = vmatpush.msra.mxu0 %v530
    %3456 = vmatpush.msra.mxu0 %v526
    %3457 = vmatpush.msra.mxu0 %v522
    %3458 = vmatpush.msra.mxu0 %v518
    %3459 = vmatpush.msra.mxu0 %v514
    %3460 = vmatpush.msra.mxu0 %v510
    %3461 = vmatpush.msra.mxu0 %v506
    %3462 = vmatpush.msra.mxu0 %v502
    %3463 = vmatpush.msra.mxu0 %v498
    %3464 = vmatpush.msra.mxu0 %v494
    %3465 = vmatpush.msra.mxu0 %v490
    %3466 = vmatpush.msra.mxu0 %v486
    %3467 = vmatpush.msra.mxu0 %v482
    %3468 = vmatpush.msra.mxu0 %v478
    %3469 = vmatpush.msra.mxu0 %v474
    %3470 = vmatpush.msra.mxu0 %v470
    %3471 = vmatmul.f32.gmra.mxu0 %v3334
    %v3472 = vpop.f32.mrf.mxu0
    %v3473 = vadd.f32 %v221, %v3472
    %3474 = vdwg.mxu0
    %3475 = vmatpush.msra.mxu0 %v594
    %3476 = vmatpush.msra.mxu0 %v590
    %3477 = vmatpush.msra.mxu0 %v586
    %3478 = vmatpush.msra.mxu0 %v582
    %3479 = vmatpush.msra.mxu0 %v578
    %3480 = vmatpush.msra.mxu0 %v574
    %3481 = vmatpush.msra.mxu0 %v570
    %3482 = vmatpush.msra.mxu0 %v566
    %3483 = vmatpush.msra.mxu0 %v562
    %3484 = vmatpush.msra.mxu0 %v558
    %3485 = vmatpush.msra.mxu0 %v554
    %3486 = vmatpush.msra.mxu0 %v550
    %3487 = vmatpush.msra.mxu0 %v546
    %3488 = vmatpush.msra.mxu0 %v542
    %3489 = vmatpush.msra.mxu0 %v538
    %3490 = vmatpush.msra.mxu0 %v534
    %3491 = vmatmul.f32.gmra.mxu0 %v2924
    %v3492 = vpop.f32.mrf.mxu0
    %v3493 = vadd.f32 %v3473, %v3492
    %3494 = vdwg.mxu0
    %v3495 = vxor.u32 %v3373, 2147483648
    %v3496 = vxor.u32 %v3413, 2147483648
    %v3497 = vxor.u32 %v3453, 2147483648
    %v3498 = vxor.u32 %v3493, 2147483648
    %v3499 = vmul.f32 %v3495, 1.442695
    %v3500 = vpow.pop %v3499
    %v3501 = vmul.f32 %v3496, 1.442695
    %v3502 = vpow.pop %v3501
    %v3503 = vmul.f32 %v3497, 1.442695
    %v3504 = vpow.pop %v3503
    %v3505 = vmul.f32 %v3498, 1.442695
    %v3506 = vpow.pop %v3505
    %v3507 = vadd.f32 %v3500, 1.0
    %v3508 = vadd.f32 %v3502, 1.0
    %v3509 = vadd.f32 %v3504, 1.0
    %v3510 = vadd.f32 %v3506, 1.0
    %v3511 = vrcp.pop %v3507
    %v3512 = vmul.f32 %v3507, %v3511
    %v3513 = vsub.f32 1.0, %v3512
    %v3514 = vmul.f32 %v3511, %v3513
    %v3515 = vadd.f32 %v3511, %v3514
    %vm3516 = vweird.f32 %v3507
    %vm3517 = vweird.f32 %v3511
    %vm3518 = vmor %vm3516, %vm3517
    %v3519 = vsel %vm3518, %v3511, %v3515
    %v3520 = vand.u32 2147483647, %v3507
    %vm3521 = vcmp.eq.f32.partialorder %v3520, 8.507059e+37
    %v3522 = vand.u32 %v3507, 2147483648
    %v3523 = vor.u32 1.1754944e-38, %v3522
    %v3524 = vsel %vm3521, %v3523, %v3519
    %v3525 = vmul.f32 1.0, %v3524
    %v3526 = vrcp.pop %v3508
    %v3527 = vmul.f32 %v3508, %v3526
    %v3528 = vsub.f32 1.0, %v3527
    %v3529 = vmul.f32 %v3526, %v3528
    %v3530 = vadd.f32 %v3526, %v3529
    %vm3531 = vweird.f32 %v3508
    %vm3532 = vweird.f32 %v3526
    %vm3533 = vmor %vm3531, %vm3532
    %v3534 = vsel %vm3533, %v3526, %v3530
    %v3535 = vand.u32 2147483647, %v3508
    %vm3536 = vcmp.eq.f32.partialorder %v3535, 8.507059e+37
    %v3537 = vand.u32 %v3508, 2147483648
    %v3538 = vor.u32 1.1754944e-38, %v3537
    %v3539 = vsel %vm3536, %v3538, %v3534
    %v3540 = vmul.f32 1.0, %v3539
    %v3541 = vrcp.pop %v3509
    %v3542 = vmul.f32 %v3509, %v3541
    %v3543 = vsub.f32 1.0, %v3542
    %v3544 = vmul.f32 %v3541, %v3543
    %v3545 = vadd.f32 %v3541, %v3544
    %vm3546 = vweird.f32 %v3509
    %vm3547 = vweird.f32 %v3541
    %vm3548 = vmor %vm3546, %vm3547
    %v3549 = vsel %vm3548, %v3541, %v3545
    %v3550 = vand.u32 2147483647, %v3509
    %vm3551 = vcmp.eq.f32.partialorder %v3550, 8.507059e+37
    %v3552 = vand.u32 %v3509, 2147483648
    %v3553 = vor.u32 1.1754944e-38, %v3552
    %v3554 = vsel %vm3551, %v3553, %v3549
    %v3555 = vmul.f32 1.0, %v3554
    %v3556 = vrcp.pop %v3510
    %v3557 = vmul.f32 %v3510, %v3556
    %v3558 = vsub.f32 1.0, %v3557
    %v3559 = vmul.f32 %v3556, %v3558
    %v3560 = vadd.f32 %v3556, %v3559
    %vm3561 = vweird.f32 %v3510
    %vm3562 = vweird.f32 %v3556
    %vm3563 = vmor %vm3561, %vm3562
    %v3564 = vsel %vm3563, %v3556, %v3560
    %v3565 = vand.u32 2147483647, %v3510
    %vm3566 = vcmp.eq.f32.partialorder %v3565, 8.507059e+37
    %v3567 = vand.u32 %v3510, 2147483648
    %v3568 = vor.u32 1.1754944e-38, %v3567
    %v3569 = vsel %vm3566, %v3568, %v3564
    %v3570 = vmul.f32 1.0, %v3569
    %v3571 = vmul.f32 %v3555, 2.0
    %v3572 = vsub.f32 %v3571, 1.0
    %v3573 = vmul.f32 %v3540, %v2922
    %v3574 = vmul.f32 %v3525, %v3572
    %v3575 = vadd.f32 %v3573, %v3574
    %v3576 = vtanh.pop %v3575
    %v3577 = vmul.f32 %v3570, %v3576
    %3578 = vmatpush.msra.mxu0 %v898
    %3579 = vmatpush.msra.mxu0 %v894
    %3580 = vmatpush.msra.mxu0 %v890
    %3581 = vmatpush.msra.mxu0 %v886
    %3582 = vmatpush.msra.mxu0 %v882
    %3583 = vmatpush.msra.mxu0 %v878
    %3584 = vmatpush.msra.mxu0 %v874
    %3585 = vmatpush.msra.mxu0 %v870
    %3586 = vmatpush.msra.mxu0 %v866
    %3587 = vmatpush.msra.mxu0 %v862
    %3588 = vmatpush.msra.mxu0 %v858
    %3589 = vmatpush.msra.mxu0 %v854
    %3590 = vmatpush.msra.mxu0 %v850
    %3591 = vmatpush.msra.mxu0 %v846
    %3592 = vmatpush.msra.mxu0 %v842
    %3593 = vmatpush.msra.mxu0 %v838
    %3594 = vmatmul.f32.gmra.mxu0 %v3577
    %v3595 = vpop.f32.mrf.mxu0
    %v3596 = vadd.f32 %v228, %v3595
    %3597 = vdwg.mxu0
    %3598 = vmatpush.msra.mxu0 %v962
    %3599 = vmatpush.msra.mxu0 %v958
    %3600 = vmatpush.msra.mxu0 %v954
    %3601 = vmatpush.msra.mxu0 %v950
    %3602 = vmatpush.msra.mxu0 %v946
    %3603 = vmatpush.msra.mxu0 %v942
    %3604 = vmatpush.msra.mxu0 %v938
    %3605 = vmatpush.msra.mxu0 %v934
    %3606 = vmatpush.msra.mxu0 %v930
    %3607 = vmatpush.msra.mxu0 %v926
    %3608 = vmatpush.msra.mxu0 %v922
    %3609 = vmatpush.msra.mxu0 %v918
    %3610 = vmatpush.msra.mxu0 %v914
    %3611 = vmatpush.msra.mxu0 %v910
    %3612 = vmatpush.msra.mxu0 %v906
    %3613 = vmatpush.msra.mxu0 %v902
    %3614 = vmatmul.f32.gmra.mxu0 %v3167
    %v3615 = vpop.f32.mrf.mxu0
    %v3616 = vadd.f32 %v3596, %v3615
    %3617 = vdwg.mxu0
    %3618 = vmatpush.msra.mxu0 %v899
    %3619 = vmatpush.msra.mxu0 %v895
    %3620 = vmatpush.msra.mxu0 %v891
    %3621 = vmatpush.msra.mxu0 %v887
    %3622 = vmatpush.msra.mxu0 %v883
    %3623 = vmatpush.msra.mxu0 %v879
    %3624 = vmatpush.msra.mxu0 %v875
    %3625 = vmatpush.msra.mxu0 %v871
    %3626 = vmatpush.msra.mxu0 %v867
    %3627 = vmatpush.msra.mxu0 %v863
    %3628 = vmatpush.msra.mxu0 %v859
    %3629 = vmatpush.msra.mxu0 %v855
    %3630 = vmatpush.msra.mxu0 %v851
    %3631 = vmatpush.msra.mxu0 %v847
    %3632 = vmatpush.msra.mxu0 %v843
    %3633 = vmatpush.msra.mxu0 %v839
    %3634 = vmatmul.f32.gmra.mxu0 %v3577
    %v3635 = vpop.f32.mrf.mxu0
    %v3636 = vadd.f32 %v229, %v3635
    %3637 = vdwg.mxu0
    %3638 = vmatpush.msra.mxu0 %v963
    %3639 = vmatpush.msra.mxu0 %v959
    %3640 = vmatpush.msra.mxu0 %v955
    %3641 = vmatpush.msra.mxu0 %v951
    %3642 = vmatpush.msra.mxu0 %v947
    %3643 = vmatpush.msra.mxu0 %v943
    %3644 = vmatpush.msra.mxu0 %v939
    %3645 = vmatpush.msra.mxu0 %v935
    %3646 = vmatpush.msra.mxu0 %v931
    %3647 = vmatpush.msra.mxu0 %v927
    %3648 = vmatpush.msra.mxu0 %v923
    %3649 = vmatpush.msra.mxu0 %v919
    %3650 = vmatpush.msra.mxu0 %v915
    %3651 = vmatpush.msra.mxu0 %v911
    %3652 = vmatpush.msra.mxu0 %v907
    %3653 = vmatpush.msra.mxu0 %v903
    %3654 = vmatmul.f32.gmra.mxu0 %v3167
    %v3655 = vpop.f32.mrf.mxu0
    %v3656 = vadd.f32 %v3636, %v3655
    %3657 = vdwg.mxu0
    %3658 = vmatpush.msra.mxu0 %v900
    %3659 = vmatpush.msra.mxu0 %v896
    %3660 = vmatpush.msra.mxu0 %v892
    %3661 = vmatpush.msra.mxu0 %v888
    %3662 = vmatpush.msra.mxu0 %v884
    %3663 = vmatpush.msra.mxu0 %v880
    %3664 = vmatpush.msra.mxu0 %v876
    %3665 = vmatpush.msra.mxu0 %v872
    %3666 = vmatpush.msra.mxu0 %v868
    %3667 = vmatpush.msra.mxu0 %v864
    %3668 = vmatpush.msra.mxu0 %v860
    %3669 = vmatpush.msra.mxu0 %v856
    %3670 = vmatpush.msra.mxu0 %v852
    %3671 = vmatpush.msra.mxu0 %v848
    %3672 = vmatpush.msra.mxu0 %v844
    %3673 = vmatpush.msra.mxu0 %v840
    %3674 = vmatmul.f32.gmra.mxu0 %v3577
    %v3675 = vpop.f32.mrf.mxu0
    %v3676 = vadd.f32 %v230, %v3675
    %3677 = vdwg.mxu0
    %3678 = vmatpush.msra.mxu0 %v964
    %3679 = vmatpush.msra.mxu0 %v960
    %3680 = vmatpush.msra.mxu0 %v956
    %3681 = vmatpush.msra.mxu0 %v952
    %3682 = vmatpush.msra.mxu0 %v948
    %3683 = vmatpush.msra.mxu0 %v944
    %3684 = vmatpush.msra.mxu0 %v940
    %3685 = vmatpush.msra.mxu0 %v936
    %3686 = vmatpush.msra.mxu0 %v932
    %3687 = vmatpush.msra.mxu0 %v928
    %3688 = vmatpush.msra.mxu0 %v924
    %3689 = vmatpush.msra.mxu0 %v920
    %3690 = vmatpush.msra.mxu0 %v916
    %3691 = vmatpush.msra.mxu0 %v912
    %3692 = vmatpush.msra.mxu0 %v908
    %3693 = vmatpush.msra.mxu0 %v904
    %3694 = vmatmul.f32.gmra.mxu0 %v3167
    %v3695 = vpop.f32.mrf.mxu0
    %v3696 = vadd.f32 %v3676, %v3695
    %3697 = vdwg.mxu0
    %3698 = vmatpush.msra.mxu0 %v901
    %3699 = vmatpush.msra.mxu0 %v897
    %3700 = vmatpush.msra.mxu0 %v893
    %3701 = vmatpush.msra.mxu0 %v889
    %3702 = vmatpush.msra.mxu0 %v885
    %3703 = vmatpush.msra.mxu0 %v881
    %3704 = vmatpush.msra.mxu0 %v877
    %3705 = vmatpush.msra.mxu0 %v873
    %3706 = vmatpush.msra.mxu0 %v869
    %3707 = vmatpush.msra.mxu0 %v865
    %3708 = vmatpush.msra.mxu0 %v861
    %3709 = vmatpush.msra.mxu0 %v857
    %3710 = vmatpush.msra.mxu0 %v853
    %3711 = vmatpush.msra.mxu0 %v849
    %3712 = vmatpush.msra.mxu0 %v845
    %3713 = vmatpush.msra.mxu0 %v841
    %3714 = vmatmul.f32.gmra.mxu0 %v3577
    %v3715 = vpop.f32.mrf.mxu0
    %v3716 = vadd.f32 %v231, %v3715
    %3717 = vdwg.mxu0
    %3718 = vmatpush.msra.mxu0 %v965
    %3719 = vmatpush.msra.mxu0 %v961
    %3720 = vmatpush.msra.mxu0 %v957
    %3721 = vmatpush.msra.mxu0 %v953
    %3722 = vmatpush.msra.mxu0 %v949
    %3723 = vmatpush.msra.mxu0 %v945
    %3724 = vmatpush.msra.mxu0 %v941
    %3725 = vmatpush.msra.mxu0 %v937
    %3726 = vmatpush.msra.mxu0 %v933
    %3727 = vmatpush.msra.mxu0 %v929
    %3728 = vmatpush.msra.mxu0 %v925
    %3729 = vmatpush.msra.mxu0 %v921
    %3730 = vmatpush.msra.mxu0 %v917
    %3731 = vmatpush.msra.mxu0 %v913
    %3732 = vmatpush.msra.mxu0 %v909
    %3733 = vmatpush.msra.mxu0 %v905
    %3734 = vmatmul.f32.gmra.mxu0 %v3167
    %v3735 = vpop.f32.mrf.mxu0
    %v3736 = vadd.f32 %v3716, %v3735
    %3737 = vdwg.mxu0
    %v3738 = vxor.u32 %v3616, 2147483648
    %v3739 = vxor.u32 %v3656, 2147483648
    %v3740 = vxor.u32 %v3696, 2147483648
    %v3741 = vxor.u32 %v3736, 2147483648
    %v3742 = vmul.f32 %v3738, 1.442695
    %v3743 = vpow.pop %v3742
    %v3744 = vmul.f32 %v3739, 1.442695
    %v3745 = vpow.pop %v3744
    %v3746 = vmul.f32 %v3740, 1.442695
    %v3747 = vpow.pop %v3746
    %v3748 = vmul.f32 %v3741, 1.442695
    %v3749 = vpow.pop %v3748
    %v3750 = vadd.f32 %v3743, 1.0
    %v3751 = vadd.f32 %v3745, 1.0
    %v3752 = vadd.f32 %v3747, 1.0
    %v3753 = vadd.f32 %v3749, 1.0
    %v3754 = vrcp.pop %v3750
    %v3755 = vmul.f32 %v3750, %v3754
    %v3756 = vsub.f32 1.0, %v3755
    %v3757 = vmul.f32 %v3754, %v3756
    %v3758 = vadd.f32 %v3754, %v3757
    %vm3759 = vweird.f32 %v3750
    %vm3760 = vweird.f32 %v3754
    %vm3761 = vmor %vm3759, %vm3760
    %v3762 = vsel %vm3761, %v3754, %v3758
    %v3763 = vand.u32 2147483647, %v3750
    %vm3764 = vcmp.eq.f32.partialorder %v3763, 8.507059e+37
    %v3765 = vand.u32 %v3750, 2147483648
    %v3766 = vor.u32 1.1754944e-38, %v3765
    %v3767 = vsel %vm3764, %v3766, %v3762
    %v3768 = vmul.f32 1.0, %v3767
    %v3769 = vrcp.pop %v3751
    %v3770 = vmul.f32 %v3751, %v3769
    %v3771 = vsub.f32 1.0, %v3770
    %v3772 = vmul.f32 %v3769, %v3771
    %v3773 = vadd.f32 %v3769, %v3772
    %vm3774 = vweird.f32 %v3751
    %vm3775 = vweird.f32 %v3769
    %vm3776 = vmor %vm3774, %vm3775
    %v3777 = vsel %vm3776, %v3769, %v3773
    %v3778 = vand.u32 2147483647, %v3751
    %vm3779 = vcmp.eq.f32.partialorder %v3778, 8.507059e+37
    %v3780 = vand.u32 %v3751, 2147483648
    %v3781 = vor.u32 1.1754944e-38, %v3780
    %v3782 = vsel %vm3779, %v3781, %v3777
    %v3783 = vmul.f32 1.0, %v3782
    %v3784 = vrcp.pop %v3752
    %v3785 = vmul.f32 %v3752, %v3784
    %v3786 = vsub.f32 1.0, %v3785
    %v3787 = vmul.f32 %v3784, %v3786
    %v3788 = vadd.f32 %v3784, %v3787
    %vm3789 = vweird.f32 %v3752
    %vm3790 = vweird.f32 %v3784
    %vm3791 = vmor %vm3789, %vm3790
    %v3792 = vsel %vm3791, %v3784, %v3788
    %v3793 = vand.u32 2147483647, %v3752
    %vm3794 = vcmp.eq.f32.partialorder %v3793, 8.507059e+37
    %v3795 = vand.u32 %v3752, 2147483648
    %v3796 = vor.u32 1.1754944e-38, %v3795
    %v3797 = vsel %vm3794, %v3796, %v3792
    %v3798 = vmul.f32 1.0, %v3797
    %v3799 = vrcp.pop %v3753
    %v3800 = vmul.f32 %v3753, %v3799
    %v3801 = vsub.f32 1.0, %v3800
    %v3802 = vmul.f32 %v3799, %v3801
    %v3803 = vadd.f32 %v3799, %v3802
    %vm3804 = vweird.f32 %v3753
    %vm3805 = vweird.f32 %v3799
    %vm3806 = vmor %vm3804, %vm3805
    %v3807 = vsel %vm3806, %v3799, %v3803
    %v3808 = vand.u32 2147483647, %v3753
    %vm3809 = vcmp.eq.f32.partialorder %v3808, 8.507059e+37
    %v3810 = vand.u32 %v3753, 2147483648
    %v3811 = vor.u32 1.1754944e-38, %v3810
    %v3812 = vsel %vm3809, %v3811, %v3807
    %v3813 = vmul.f32 1.0, %v3812
    %v3814 = vmul.f32 %v3798, 2.0
    %v3815 = vsub.f32 %v3814, 1.0
    %v3816 = vmul.f32 %v3783, %v3165
    %v3817 = vmul.f32 %v3768, %v3815
    %v3818 = vadd.f32 %v3816, %v3817
    %v3819 = vtanh.pop %v3818
    %v3820 = vmul.f32 %v3813, %v3819
    %3821 = vmatpush.msra.mxu0 %v296
    %3822 = vmatpush.msra.mxu0 %v292
    %3823 = vmatpush.msra.mxu0 %v288
    %3824 = vmatpush.msra.mxu0 %v284
    %3825 = vmatpush.msra.mxu0 %v280
    %3826 = vmatpush.msra.mxu0 %v276
    %3827 = vmatpush.msra.mxu0 %v272
    %3828 = vmatpush.msra.mxu0 %v268
    %3829 = vmatpush.msra.mxu0 %v264
    %3830 = vmatpush.msra.mxu0 %v260
    %3831 = vmatpush.msra.mxu0 %v256
    %3832 = vmatpush.msra.mxu0 %v252
    %3833 = vmatpush.msra.mxu0 %v248
    %3834 = vmatpush.msra.mxu0 %v244
    %3835 = vmatpush.msra.mxu0 %v240
    %3836 = vmatpush.msra.mxu0 %v236
    %3837 = vmatmul.f32.gmra.mxu0 %v3334
    %v3838 = vpop.f32.mrf.mxu0
    %v3839 = vadd.f32 0.0, %v3838
    %3840 = vdwg.mxu0
    %3841 = vmatpush.msra.mxu0 %v297
    %3842 = vmatpush.msra.mxu0 %v293
    %3843 = vmatpush.msra.mxu0 %v289
    %3844 = vmatpush.msra.mxu0 %v285
    %3845 = vmatpush.msra.mxu0 %v281
    %3846 = vmatpush.msra.mxu0 %v277
    %3847 = vmatpush.msra.mxu0 %v273
    %3848 = vmatpush.msra.mxu0 %v269
    %3849 = vmatpush.msra.mxu0 %v265
    %3850 = vmatpush.msra.mxu0 %v261
    %3851 = vmatpush.msra.mxu0 %v257
    %3852 = vmatpush.msra.mxu0 %v253
    %3853 = vmatpush.msra.mxu0 %v249
    %3854 = vmatpush.msra.mxu0 %v245
    %3855 = vmatpush.msra.mxu0 %v241
    %3856 = vmatpush.msra.mxu0 %v237
    %3857 = vmatmul.f32.gmra.mxu0 %v3334
    %v3858 = vpop.f32.mrf.mxu0
    %v3859 = vadd.f32 0.0, %v3858
    %3860 = vdwg.mxu0
    %3861 = vmatpush.msra.mxu0 %v298
    %3862 = vmatpush.msra.mxu0 %v294
    %3863 = vmatpush.msra.mxu0 %v290
    %3864 = vmatpush.msra.mxu0 %v286
    %3865 = vmatpush.msra.mxu0 %v282
    %3866 = vmatpush.msra.mxu0 %v278
    %3867 = vmatpush.msra.mxu0 %v274
    %3868 = vmatpush.msra.mxu0 %v270
    %3869 = vmatpush.msra.mxu0 %v266
    %3870 = vmatpush.msra.mxu0 %v262
    %3871 = vmatpush.msra.mxu0 %v258
    %3872 = vmatpush.msra.mxu0 %v254
    %3873 = vmatpush.msra.mxu0 %v250
    %3874 = vmatpush.msra.mxu0 %v246
    %3875 = vmatpush.msra.mxu0 %v242
    %3876 = vmatpush.msra.mxu0 %v238
    %3877 = vmatmul.f32.gmra.mxu0 %v3334
    %v3878 = vpop.f32.mrf.mxu0
    %v3879 = vadd.f32 0.0, %v3878
    %3880 = vdwg.mxu0
    %3881 = vmatpush.msra.mxu0 %v299
    %3882 = vmatpush.msra.mxu0 %v295
    %3883 = vmatpush.msra.mxu0 %v291
    %3884 = vmatpush.msra.mxu0 %v287
    %3885 = vmatpush.msra.mxu0 %v283
    %3886 = vmatpush.msra.mxu0 %v279
    %3887 = vmatpush.msra.mxu0 %v275
    %3888 = vmatpush.msra.mxu0 %v271
    %3889 = vmatpush.msra.mxu0 %v267
    %3890 = vmatpush.msra.mxu0 %v263
    %3891 = vmatpush.msra.mxu0 %v259
    %3892 = vmatpush.msra.mxu0 %v255
    %3893 = vmatpush.msra.mxu0 %v251
    %3894 = vmatpush.msra.mxu0 %v247
    %3895 = vmatpush.msra.mxu0 %v243
    %3896 = vmatpush.msra.mxu0 %v239
    %3897 = vmatmul.f32.gmra.mxu0 %v3334
    %v3898 = vpop.f32.mrf.mxu0
    %v3899 = vadd.f32 0.0, %v3898
    %3900 = vdwg.mxu0
    %v3901 = vadd.f32 %v204, %v3839
    %v3902 = vadd.f32 %v205, %v3859
    %v3903 = vadd.f32 %v206, %v3879
    %v3904 = vadd.f32 %v207, %v3899
    %v3905 = vxor.u32 %v3901, 2147483648
    %v3906 = vxor.u32 %v3902, 2147483648
    %v3907 = vxor.u32 %v3903, 2147483648
    %v3908 = vxor.u32 %v3904, 2147483648
    %v3909 = vmul.f32 %v3905, 1.442695
    %v3910 = vpow.pop %v3909
    %v3911 = vmul.f32 %v3906, 1.442695
    %v3912 = vpow.pop %v3911
    %v3913 = vmul.f32 %v3907, 1.442695
    %v3914 = vpow.pop %v3913
    %v3915 = vmul.f32 %v3908, 1.442695
    %v3916 = vpow.pop %v3915
    %v3917 = vadd.f32 %v3910, 1.0
    %v3918 = vadd.f32 %v3912, 1.0
    %v3919 = vadd.f32 %v3914, 1.0
    %v3920 = vadd.f32 %v3916, 1.0
    %v3921 = vrcp.pop %v3917
    %v3922 = vmul.f32 %v3917, %v3921
    %v3923 = vsub.f32 1.0, %v3922
    %v3924 = vmul.f32 %v3921, %v3923
    %v3925 = vadd.f32 %v3921, %v3924
    %vm3926 = vweird.f32 %v3917
    %vm3927 = vweird.f32 %v3921
    %vm3928 = vmor %vm3926, %vm3927
    %v3929 = vsel %vm3928, %v3921, %v3925
    %v3930 = vand.u32 2147483647, %v3917
    %vm3931 = vcmp.eq.f32.partialorder %v3930, 8.507059e+37
    %v3932 = vand.u32 %v3917, 2147483648
    %v3933 = vor.u32 1.1754944e-38, %v3932
    %v3934 = vsel %vm3931, %v3933, %v3929
    %v3935 = vmul.f32 1.0, %v3934
    %v3936 = vrcp.pop %v3918
    %v3937 = vmul.f32 %v3918, %v3936
    %v3938 = vsub.f32 1.0, %v3937
    %v3939 = vmul.f32 %v3936, %v3938
    %v3940 = vadd.f32 %v3936, %v3939
    %vm3941 = vweird.f32 %v3918
    %vm3942 = vweird.f32 %v3936
    %vm3943 = vmor %vm3941, %vm3942
    %v3944 = vsel %vm3943, %v3936, %v3940
    %v3945 = vand.u32 2147483647, %v3918
    %vm3946 = vcmp.eq.f32.partialorder %v3945, 8.507059e+37
    %v3947 = vand.u32 %v3918, 2147483648
    %v3948 = vor.u32 1.1754944e-38, %v3947
    %v3949 = vsel %vm3946, %v3948, %v3944
    %v3950 = vmul.f32 1.0, %v3949
    %v3951 = vrcp.pop %v3919
    %v3952 = vmul.f32 %v3919, %v3951
    %v3953 = vsub.f32 1.0, %v3952
    %v3954 = vmul.f32 %v3951, %v3953
    %v3955 = vadd.f32 %v3951, %v3954
    %vm3956 = vweird.f32 %v3919
    %vm3957 = vweird.f32 %v3951
    %vm3958 = vmor %vm3956, %vm3957
    %v3959 = vsel %vm3958, %v3951, %v3955
    %v3960 = vand.u32 2147483647, %v3919
    %vm3961 = vcmp.eq.f32.partialorder %v3960, 8.507059e+37
    %v3962 = vand.u32 %v3919, 2147483648
    %v3963 = vor.u32 1.1754944e-38, %v3962
    %v3964 = vsel %vm3961, %v3963, %v3959
    %v3965 = vmul.f32 1.0, %v3964
    %v3966 = vrcp.pop %v3920
    %v3967 = vmul.f32 %v3920, %v3966
    %v3968 = vsub.f32 1.0, %v3967
    %v3969 = vmul.f32 %v3966, %v3968
    %v3970 = vadd.f32 %v3966, %v3969
    %vm3971 = vweird.f32 %v3920
    %vm3972 = vweird.f32 %v3966
    %vm3973 = vmor %vm3971, %vm3972
    %v3974 = vsel %vm3973, %v3966, %v3970
    %v3975 = vand.u32 2147483647, %v3920
    %vm3976 = vcmp.eq.f32.partialorder %v3975, 8.507059e+37
    %v3977 = vand.u32 %v3920, 2147483648
    %v3978 = vor.u32 1.1754944e-38, %v3977
    %v3979 = vsel %vm3976, %v3978, %v3974
    %v3980 = vmul.f32 1.0, %v3979
    %v3981 = vmul.f32 %v3965, 2.0
    %v3982 = vsub.f32 %v3981, 1.0
    %v3983 = vmul.f32 %v3950, %v3332
    %v3984 = vmul.f32 %v3935, %v3982
    %v3985 = vadd.f32 %v3983, %v3984
    %v3986 = vtanh.pop %v3985
    %v3987 = vmul.f32 %v3980, %v3986
    %3988 = vmatpush.msra.mxu0 %v527
    %3989 = vmatpush.msra.mxu0 %v523
    %3990 = vmatpush.msra.mxu0 %v519
    %3991 = vmatpush.msra.mxu0 %v515
    %3992 = vmatpush.msra.mxu0 %v511
    %3993 = vmatpush.msra.mxu0 %v507
    %3994 = vmatpush.msra.mxu0 %v503
    %3995 = vmatpush.msra.mxu0 %v499
    %3996 = vmatpush.msra.mxu0 %v495
    %3997 = vmatpush.msra.mxu0 %v491
    %3998 = vmatpush.msra.mxu0 %v487
    %3999 = vmatpush.msra.mxu0 %v483
    %4000 = vmatpush.msra.mxu0 %v479
    %4001 = vmatpush.msra.mxu0 %v475
    %4002 = vmatpush.msra.mxu0 %v471
    %4003 = vmatpush.msra.mxu0 %v467
    %4004 = vmatmul.f32.gmra.mxu0 %v3987
    %v4005 = vpop.f32.mrf.mxu0
    %v4006 = vadd.f32 %v218, %v4005
    %4007 = vdwg.mxu0
    %4008 = vmatpush.msra.mxu0 %v591
    %4009 = vmatpush.msra.mxu0 %v587
    %4010 = vmatpush.msra.mxu0 %v583
    %4011 = vmatpush.msra.mxu0 %v579
    %4012 = vmatpush.msra.mxu0 %v575
    %4013 = vmatpush.msra.mxu0 %v571
    %4014 = vmatpush.msra.mxu0 %v567
    %4015 = vmatpush.msra.mxu0 %v563
    %4016 = vmatpush.msra.mxu0 %v559
    %4017 = vmatpush.msra.mxu0 %v555
    %4018 = vmatpush.msra.mxu0 %v551
    %4019 = vmatpush.msra.mxu0 %v547
    %4020 = vmatpush.msra.mxu0 %v543
    %4021 = vmatpush.msra.mxu0 %v539
    %4022 = vmatpush.msra.mxu0 %v535
    %4023 = vmatpush.msra.mxu0 %v531
    %4024 = vmatmul.f32.gmra.mxu0 %v3577
    %v4025 = vpop.f32.mrf.mxu0
    %v4026 = vadd.f32 %v4006, %v4025
    %4027 = vdwg.mxu0
    %4028 = vmatpush.msra.mxu0 %v528
    %4029 = vmatpush.msra.mxu0 %v524
    %4030 = vmatpush.msra.mxu0 %v520
    %4031 = vmatpush.msra.mxu0 %v516
    %4032 = vmatpush.msra.mxu0 %v512
    %4033 = vmatpush.msra.mxu0 %v508
    %4034 = vmatpush.msra.mxu0 %v504
    %4035 = vmatpush.msra.mxu0 %v500
    %4036 = vmatpush.msra.mxu0 %v496
    %4037 = vmatpush.msra.mxu0 %v492
    %4038 = vmatpush.msra.mxu0 %v488
    %4039 = vmatpush.msra.mxu0 %v484
    %4040 = vmatpush.msra.mxu0 %v480
    %4041 = vmatpush.msra.mxu0 %v476
    %4042 = vmatpush.msra.mxu0 %v472
    %4043 = vmatpush.msra.mxu0 %v468
    %4044 = vmatmul.f32.gmra.mxu0 %v3987
    %v4045 = vpop.f32.mrf.mxu0
    %v4046 = vadd.f32 %v219, %v4045
    %4047 = vdwg.mxu0
    %4048 = vmatpush.msra.mxu0 %v592
    %4049 = vmatpush.msra.mxu0 %v588
    %4050 = vmatpush.msra.mxu0 %v584
    %4051 = vmatpush.msra.mxu0 %v580
    %4052 = vmatpush.msra.mxu0 %v576
    %4053 = vmatpush.msra.mxu0 %v572
    %4054 = vmatpush.msra.mxu0 %v568
    %4055 = vmatpush.msra.mxu0 %v564
    %4056 = vmatpush.msra.mxu0 %v560
    %4057 = vmatpush.msra.mxu0 %v556
    %4058 = vmatpush.msra.mxu0 %v552
    %4059 = vmatpush.msra.mxu0 %v548
    %4060 = vmatpush.msra.mxu0 %v544
    %4061 = vmatpush.msra.mxu0 %v540
    %4062 = vmatpush.msra.mxu0 %v536
    %4063 = vmatpush.msra.mxu0 %v532
    %4064 = vmatmul.f32.gmra.mxu0 %v3577
    %v4065 = vpop.f32.mrf.mxu0
    %v4066 = vadd.f32 %v4046, %v4065
    %4067 = vdwg.mxu0
    %4068 = vmatpush.msra.mxu0 %v529
    %4069 = vmatpush.msra.mxu0 %v525
    %4070 = vmatpush.msra.mxu0 %v521
    %4071 = vmatpush.msra.mxu0 %v517
    %4072 = vmatpush.msra.mxu0 %v513
    %4073 = vmatpush.msra.mxu0 %v509
    %4074 = vmatpush.msra.mxu0 %v505
    %4075 = vmatpush.msra.mxu0 %v501
    %4076 = vmatpush.msra.mxu0 %v497
    %4077 = vmatpush.msra.mxu0 %v493
    %4078 = vmatpush.msra.mxu0 %v489
    %4079 = vmatpush.msra.mxu0 %v485
    %4080 = vmatpush.msra.mxu0 %v481
    %4081 = vmatpush.msra.mxu0 %v477
    %4082 = vmatpush.msra.mxu0 %v473
    %4083 = vmatpush.msra.mxu0 %v469
    %4084 = vmatmul.f32.gmra.mxu0 %v3987
    %v4085 = vpop.f32.mrf.mxu0
    %v4086 = vadd.f32 %v220, %v4085
    %4087 = vdwg.mxu0
    %4088 = vmatpush.msra.mxu0 %v593
    %4089 = vmatpush.msra.mxu0 %v589
    %4090 = vmatpush.msra.mxu0 %v585
    %4091 = vmatpush.msra.mxu0 %v581
    %4092 = vmatpush.msra.mxu0 %v577
    %4093 = vmatpush.msra.mxu0 %v573
    %4094 = vmatpush.msra.mxu0 %v569
    %4095 = vmatpush.msra.mxu0 %v565
    %4096 = vmatpush.msra.mxu0 %v561
    %4097 = vmatpush.msra.mxu0 %v557
    %4098 = vmatpush.msra.mxu0 %v553
    %4099 = vmatpush.msra.mxu0 %v549
    %4100 = vmatpush.msra.mxu0 %v545
    %4101 = vmatpush.msra.mxu0 %v541
    %4102 = vmatpush.msra.mxu0 %v537
    %4103 = vmatpush.msra.mxu0 %v533
    %4104 = vmatmul.f32.gmra.mxu0 %v3577
    %v4105 = vpop.f32.mrf.mxu0
    %v4106 = vadd.f32 %v4086, %v4105
    %4107 = vdwg.mxu0
    %4108 = vmatpush.msra.mxu0 %v530
    %4109 = vmatpush.msra.mxu0 %v526
    %4110 = vmatpush.msra.mxu0 %v522
    %4111 = vmatpush.msra.mxu0 %v518
    %4112 = vmatpush.msra.mxu0 %v514
    %4113 = vmatpush.msra.mxu0 %v510
    %4114 = vmatpush.msra.mxu0 %v506
    %4115 = vmatpush.msra.mxu0 %v502
    %4116 = vmatpush.msra.mxu0 %v498
    %4117 = vmatpush.msra.mxu0 %v494
    %4118 = vmatpush.msra.mxu0 %v490
    %4119 = vmatpush.msra.mxu0 %v486
    %4120 = vmatpush.msra.mxu0 %v482
    %4121 = vmatpush.msra.mxu0 %v478
    %4122 = vmatpush.msra.mxu0 %v474
    %4123 = vmatpush.msra.mxu0 %v470
    %4124 = vmatmul.f32.gmra.mxu0 %v3987
    %v4125 = vpop.f32.mrf.mxu0
    %v4126 = vadd.f32 %v221, %v4125
    %4127 = vdwg.mxu0
    %4128 = vmatpush.msra.mxu0 %v594
    %4129 = vmatpush.msra.mxu0 %v590
    %4130 = vmatpush.msra.mxu0 %v586
    %4131 = vmatpush.msra.mxu0 %v582
    %4132 = vmatpush.msra.mxu0 %v578
    %4133 = vmatpush.msra.mxu0 %v574
    %4134 = vmatpush.msra.mxu0 %v570
    %4135 = vmatpush.msra.mxu0 %v566
    %4136 = vmatpush.msra.mxu0 %v562
    %4137 = vmatpush.msra.mxu0 %v558
    %4138 = vmatpush.msra.mxu0 %v554
    %4139 = vmatpush.msra.mxu0 %v550
    %4140 = vmatpush.msra.mxu0 %v546
    %4141 = vmatpush.msra.mxu0 %v542
    %4142 = vmatpush.msra.mxu0 %v538
    %4143 = vmatpush.msra.mxu0 %v534
    %4144 = vmatmul.f32.gmra.mxu0 %v3577
    %v4145 = vpop.f32.mrf.mxu0
    %v4146 = vadd.f32 %v4126, %v4145
    %4147 = vdwg.mxu0
    %v4148 = vxor.u32 %v4026, 2147483648
    %v4149 = vxor.u32 %v4066, 2147483648
    %v4150 = vxor.u32 %v4106, 2147483648
    %v4151 = vxor.u32 %v4146, 2147483648
    %v4152 = vmul.f32 %v4148, 1.442695
    %v4153 = vpow.pop %v4152
    %v4154 = vmul.f32 %v4149, 1.442695
    %v4155 = vpow.pop %v4154
    %v4156 = vmul.f32 %v4150, 1.442695
    %v4157 = vpow.pop %v4156
    %v4158 = vmul.f32 %v4151, 1.442695
    %v4159 = vpow.pop %v4158
    %v4160 = vadd.f32 %v4153, 1.0
    %v4161 = vadd.f32 %v4155, 1.0
    %v4162 = vadd.f32 %v4157, 1.0
    %v4163 = vadd.f32 %v4159, 1.0
    %v4164 = vrcp.pop %v4160
    %v4165 = vmul.f32 %v4160, %v4164
    %v4166 = vsub.f32 1.0, %v4165
    %v4167 = vmul.f32 %v4164, %v4166
    %v4168 = vadd.f32 %v4164, %v4167
    %vm4169 = vweird.f32 %v4160
    %vm4170 = vweird.f32 %v4164
    %vm4171 = vmor %vm4169, %vm4170
    %v4172 = vsel %vm4171, %v4164, %v4168
    %v4173 = vand.u32 2147483647, %v4160
    %vm4174 = vcmp.eq.f32.partialorder %v4173, 8.507059e+37
    %v4175 = vand.u32 %v4160, 2147483648
    %v4176 = vor.u32 1.1754944e-38, %v4175
    %v4177 = vsel %vm4174, %v4176, %v4172
    %v4178 = vmul.f32 1.0, %v4177
    %v4179 = vrcp.pop %v4161
    %v4180 = vmul.f32 %v4161, %v4179
    %v4181 = vsub.f32 1.0, %v4180
    %v4182 = vmul.f32 %v4179, %v4181
    %v4183 = vadd.f32 %v4179, %v4182
    %vm4184 = vweird.f32 %v4161
    %vm4185 = vweird.f32 %v4179
    %vm4186 = vmor %vm4184, %vm4185
    %v4187 = vsel %vm4186, %v4179, %v4183
    %v4188 = vand.u32 2147483647, %v4161
    %vm4189 = vcmp.eq.f32.partialorder %v4188, 8.507059e+37
    %v4190 = vand.u32 %v4161, 2147483648
    %v4191 = vor.u32 1.1754944e-38, %v4190
    %v4192 = vsel %vm4189, %v4191, %v4187
    %v4193 = vmul.f32 1.0, %v4192
    %v4194 = vrcp.pop %v4162
    %v4195 = vmul.f32 %v4162, %v4194
    %v4196 = vsub.f32 1.0, %v4195
    %v4197 = vmul.f32 %v4194, %v4196
    %v4198 = vadd.f32 %v4194, %v4197
    %vm4199 = vweird.f32 %v4162
    %vm4200 = vweird.f32 %v4194
    %vm4201 = vmor %vm4199, %vm4200
    %v4202 = vsel %vm4201, %v4194, %v4198
    %v4203 = vand.u32 2147483647, %v4162
    %vm4204 = vcmp.eq.f32.partialorder %v4203, 8.507059e+37
    %v4205 = vand.u32 %v4162, 2147483648
    %v4206 = vor.u32 1.1754944e-38, %v4205
    %v4207 = vsel %vm4204, %v4206, %v4202
    %v4208 = vmul.f32 1.0, %v4207
    %v4209 = vrcp.pop %v4163
    %v4210 = vmul.f32 %v4163, %v4209
    %v4211 = vsub.f32 1.0, %v4210
    %v4212 = vmul.f32 %v4209, %v4211
    %v4213 = vadd.f32 %v4209, %v4212
    %vm4214 = vweird.f32 %v4163
    %vm4215 = vweird.f32 %v4209
    %vm4216 = vmor %vm4214, %vm4215
    %v4217 = vsel %vm4216, %v4209, %v4213
    %v4218 = vand.u32 2147483647, %v4163
    %vm4219 = vcmp.eq.f32.partialorder %v4218, 8.507059e+37
    %v4220 = vand.u32 %v4163, 2147483648
    %v4221 = vor.u32 1.1754944e-38, %v4220
    %v4222 = vsel %vm4219, %v4221, %v4217
    %v4223 = vmul.f32 1.0, %v4222
    %v4224 = vmul.f32 %v4208, 2.0
    %v4225 = vsub.f32 %v4224, 1.0
    %v4226 = vmul.f32 %v4193, %v3575
    %v4227 = vmul.f32 %v4178, %v4225
    %v4228 = vadd.f32 %v4226, %v4227
    %v4229 = vtanh.pop %v4228
    %v4230 = vmul.f32 %v4223, %v4229
    %4231 = vmatpush.msra.mxu0 %v898
    %4232 = vmatpush.msra.mxu0 %v894
    %4233 = vmatpush.msra.mxu0 %v890
    %4234 = vmatpush.msra.mxu0 %v886
    %4235 = vmatpush.msra.mxu0 %v882
    %4236 = vmatpush.msra.mxu0 %v878
    %4237 = vmatpush.msra.mxu0 %v874
    %4238 = vmatpush.msra.mxu0 %v870
    %4239 = vmatpush.msra.mxu0 %v866
    %4240 = vmatpush.msra.mxu0 %v862
    %4241 = vmatpush.msra.mxu0 %v858
    %4242 = vmatpush.msra.mxu0 %v854
    %4243 = vmatpush.msra.mxu0 %v850
    %4244 = vmatpush.msra.mxu0 %v846
    %4245 = vmatpush.msra.mxu0 %v842
    %4246 = vmatpush.msra.mxu0 %v838
    %4247 = vmatmul.f32.gmra.mxu0 %v4230
    %v4248 = vpop.f32.mrf.mxu0
    %v4249 = vadd.f32 %v228, %v4248
    %4250 = vdwg.mxu0
    %4251 = vmatpush.msra.mxu0 %v962
    %4252 = vmatpush.msra.mxu0 %v958
    %4253 = vmatpush.msra.mxu0 %v954
    %4254 = vmatpush.msra.mxu0 %v950
    %4255 = vmatpush.msra.mxu0 %v946
    %4256 = vmatpush.msra.mxu0 %v942
    %4257 = vmatpush.msra.mxu0 %v938
    %4258 = vmatpush.msra.mxu0 %v934
    %4259 = vmatpush.msra.mxu0 %v930
    %4260 = vmatpush.msra.mxu0 %v926
    %4261 = vmatpush.msra.mxu0 %v922
    %4262 = vmatpush.msra.mxu0 %v918
    %4263 = vmatpush.msra.mxu0 %v914
    %4264 = vmatpush.msra.mxu0 %v910
    %4265 = vmatpush.msra.mxu0 %v906
    %4266 = vmatpush.msra.mxu0 %v902
    %4267 = vmatmul.f32.gmra.mxu0 %v3820
    %v4268 = vpop.f32.mrf.mxu0
    %v4269 = vadd.f32 %v4249, %v4268
    %4270 = vdwg.mxu0
    %4271 = vmatpush.msra.mxu0 %v899
    %4272 = vmatpush.msra.mxu0 %v895
    %4273 = vmatpush.msra.mxu0 %v891
    %4274 = vmatpush.msra.mxu0 %v887
    %4275 = vmatpush.msra.mxu0 %v883
    %4276 = vmatpush.msra.mxu0 %v879
    %4277 = vmatpush.msra.mxu0 %v875
    %4278 = vmatpush.msra.mxu0 %v871
    %4279 = vmatpush.msra.mxu0 %v867
    %4280 = vmatpush.msra.mxu0 %v863
    %4281 = vmatpush.msra.mxu0 %v859
    %4282 = vmatpush.msra.mxu0 %v855
    %4283 = vmatpush.msra.mxu0 %v851
    %4284 = vmatpush.msra.mxu0 %v847
    %4285 = vmatpush.msra.mxu0 %v843
    %4286 = vmatpush.msra.mxu0 %v839
    %4287 = vmatmul.f32.gmra.mxu0 %v4230
    %v4288 = vpop.f32.mrf.mxu0
    %v4289 = vadd.f32 %v229, %v4288
    %4290 = vdwg.mxu0
    %4291 = vmatpush.msra.mxu0 %v963
    %4292 = vmatpush.msra.mxu0 %v959
    %4293 = vmatpush.msra.mxu0 %v955
    %4294 = vmatpush.msra.mxu0 %v951
    %4295 = vmatpush.msra.mxu0 %v947
    %4296 = vmatpush.msra.mxu0 %v943
    %4297 = vmatpush.msra.mxu0 %v939
    %4298 = vmatpush.msra.mxu0 %v935
    %4299 = vmatpush.msra.mxu0 %v931
    %4300 = vmatpush.msra.mxu0 %v927
    %4301 = vmatpush.msra.mxu0 %v923
    %4302 = vmatpush.msra.mxu0 %v919
    %4303 = vmatpush.msra.mxu0 %v915
    %4304 = vmatpush.msra.mxu0 %v911
    %4305 = vmatpush.msra.mxu0 %v907
    %4306 = vmatpush.msra.mxu0 %v903
    %4307 = vmatmul.f32.gmra.mxu0 %v3820
    %v4308 = vpop.f32.mrf.mxu0
    %v4309 = vadd.f32 %v4289, %v4308
    %4310 = vdwg.mxu0
    %4311 = vmatpush.msra.mxu0 %v900
    %4312 = vmatpush.msra.mxu0 %v896
    %4313 = vmatpush.msra.mxu0 %v892
    %4314 = vmatpush.msra.mxu0 %v888
    %4315 = vmatpush.msra.mxu0 %v884
    %4316 = vmatpush.msra.mxu0 %v880
    %4317 = vmatpush.msra.mxu0 %v876
    %4318 = vmatpush.msra.mxu0 %v872
    %4319 = vmatpush.msra.mxu0 %v868
    %4320 = vmatpush.msra.mxu0 %v864
    %4321 = vmatpush.msra.mxu0 %v860
    %4322 = vmatpush.msra.mxu0 %v856
    %4323 = vmatpush.msra.mxu0 %v852
    %4324 = vmatpush.msra.mxu0 %v848
    %4325 = vmatpush.msra.mxu0 %v844
    %4326 = vmatpush.msra.mxu0 %v840
    %4327 = vmatmul.f32.gmra.mxu0 %v4230
    %v4328 = vpop.f32.mrf.mxu0
    %v4329 = vadd.f32 %v230, %v4328
    %4330 = vdwg.mxu0
    %4331 = vmatpush.msra.mxu0 %v964
    %4332 = vmatpush.msra.mxu0 %v960
    %4333 = vmatpush.msra.mxu0 %v956
    %4334 = vmatpush.msra.mxu0 %v952
    %4335 = vmatpush.msra.mxu0 %v948
    %4336 = vmatpush.msra.mxu0 %v944
    %4337 = vmatpush.msra.mxu0 %v940
    %4338 = vmatpush.msra.mxu0 %v936
    %4339 = vmatpush.msra.mxu0 %v932
    %4340 = vmatpush.msra.mxu0 %v928
    %4341 = vmatpush.msra.mxu0 %v924
    %4342 = vmatpush.msra.mxu0 %v920
    %4343 = vmatpush.msra.mxu0 %v916
    %4344 = vmatpush.msra.mxu0 %v912
    %4345 = vmatpush.msra.mxu0 %v908
    %4346 = vmatpush.msra.mxu0 %v904
    %4347 = vmatmul.f32.gmra.mxu0 %v3820
    %v4348 = vpop.f32.mrf.mxu0
    %v4349 = vadd.f32 %v4329, %v4348
    %4350 = vdwg.mxu0
    %4351 = vmatpush.msra.mxu0 %v901
    %4352 = vmatpush.msra.mxu0 %v897
    %4353 = vmatpush.msra.mxu0 %v893
    %4354 = vmatpush.msra.mxu0 %v889
    %4355 = vmatpush.msra.mxu0 %v885
    %4356 = vmatpush.msra.mxu0 %v881
    %4357 = vmatpush.msra.mxu0 %v877
    %4358 = vmatpush.msra.mxu0 %v873
    %4359 = vmatpush.msra.mxu0 %v869
    %4360 = vmatpush.msra.mxu0 %v865
    %4361 = vmatpush.msra.mxu0 %v861
    %4362 = vmatpush.msra.mxu0 %v857
    %4363 = vmatpush.msra.mxu0 %v853
    %4364 = vmatpush.msra.mxu0 %v849
    %4365 = vmatpush.msra.mxu0 %v845
    %4366 = vmatpush.msra.mxu0 %v841
    %4367 = vmatmul.f32.gmra.mxu0 %v4230
    %v4368 = vpop.f32.mrf.mxu0
    %v4369 = vadd.f32 %v231, %v4368
    %4370 = vdwg.mxu0
    %4371 = vmatpush.msra.mxu0 %v965
    %4372 = vmatpush.msra.mxu0 %v961
    %4373 = vmatpush.msra.mxu0 %v957
    %4374 = vmatpush.msra.mxu0 %v953
    %4375 = vmatpush.msra.mxu0 %v949
    %4376 = vmatpush.msra.mxu0 %v945
    %4377 = vmatpush.msra.mxu0 %v941
    %4378 = vmatpush.msra.mxu0 %v937
    %4379 = vmatpush.msra.mxu0 %v933
    %4380 = vmatpush.msra.mxu0 %v929
    %4381 = vmatpush.msra.mxu0 %v925
    %4382 = vmatpush.msra.mxu0 %v921
    %4383 = vmatpush.msra.mxu0 %v917
    %4384 = vmatpush.msra.mxu0 %v913
    %4385 = vmatpush.msra.mxu0 %v909
    %4386 = vmatpush.msra.mxu0 %v905
    %4387 = vmatmul.f32.gmra.mxu0 %v3820
    %v4388 = vpop.f32.mrf.mxu0
    %v4389 = vadd.f32 %v4369, %v4388
    %4390 = vdwg.mxu0
    %v4391 = vxor.u32 %v4269, 2147483648
    %v4392 = vxor.u32 %v4309, 2147483648
    %v4393 = vxor.u32 %v4349, 2147483648
    %v4394 = vxor.u32 %v4389, 2147483648
    %v4395 = vmul.f32 %v4391, 1.442695
    %v4396 = vpow.pop %v4395
    %v4397 = vmul.f32 %v4392, 1.442695
    %v4398 = vpow.pop %v4397
    %v4399 = vmul.f32 %v4393, 1.442695
    %v4400 = vpow.pop %v4399
    %v4401 = vmul.f32 %v4394, 1.442695
    %v4402 = vpow.pop %v4401
    %v4403 = vadd.f32 %v4396, 1.0
    %v4404 = vadd.f32 %v4398, 1.0
    %v4405 = vadd.f32 %v4400, 1.0
    %v4406 = vadd.f32 %v4402, 1.0
    %v4407 = vrcp.pop %v4403
    %v4408 = vmul.f32 %v4403, %v4407
    %v4409 = vsub.f32 1.0, %v4408
    %v4410 = vmul.f32 %v4407, %v4409
    %v4411 = vadd.f32 %v4407, %v4410
    %vm4412 = vweird.f32 %v4403
    %vm4413 = vweird.f32 %v4407
    %vm4414 = vmor %vm4412, %vm4413
    %v4415 = vsel %vm4414, %v4407, %v4411
    %v4416 = vand.u32 2147483647, %v4403
    %vm4417 = vcmp.eq.f32.partialorder %v4416, 8.507059e+37
    %v4418 = vand.u32 %v4403, 2147483648
    %v4419 = vor.u32 1.1754944e-38, %v4418
    %v4420 = vsel %vm4417, %v4419, %v4415
    %v4421 = vmul.f32 1.0, %v4420
    %v4422 = vrcp.pop %v4404
    %v4423 = vmul.f32 %v4404, %v4422
    %v4424 = vsub.f32 1.0, %v4423
    %v4425 = vmul.f32 %v4422, %v4424
    %v4426 = vadd.f32 %v4422, %v4425
    %vm4427 = vweird.f32 %v4404
    %vm4428 = vweird.f32 %v4422
    %vm4429 = vmor %vm4427, %vm4428
    %v4430 = vsel %vm4429, %v4422, %v4426
    %v4431 = vand.u32 2147483647, %v4404
    %vm4432 = vcmp.eq.f32.partialorder %v4431, 8.507059e+37
    %v4433 = vand.u32 %v4404, 2147483648
    %v4434 = vor.u32 1.1754944e-38, %v4433
    %v4435 = vsel %vm4432, %v4434, %v4430
    %v4436 = vmul.f32 1.0, %v4435
    %v4437 = vrcp.pop %v4405
    %v4438 = vmul.f32 %v4405, %v4437
    %v4439 = vsub.f32 1.0, %v4438
    %v4440 = vmul.f32 %v4437, %v4439
    %v4441 = vadd.f32 %v4437, %v4440
    %vm4442 = vweird.f32 %v4405
    %vm4443 = vweird.f32 %v4437
    %vm4444 = vmor %vm4442, %vm4443
    %v4445 = vsel %vm4444, %v4437, %v4441
    %v4446 = vand.u32 2147483647, %v4405
    %vm4447 = vcmp.eq.f32.partialorder %v4446, 8.507059e+37
    %v4448 = vand.u32 %v4405, 2147483648
    %v4449 = vor.u32 1.1754944e-38, %v4448
    %v4450 = vsel %vm4447, %v4449, %v4445
    %v4451 = vmul.f32 1.0, %v4450
    %v4452 = vrcp.pop %v4406
    %v4453 = vmul.f32 %v4406, %v4452
    %v4454 = vsub.f32 1.0, %v4453
    %v4455 = vmul.f32 %v4452, %v4454
    %v4456 = vadd.f32 %v4452, %v4455
    %vm4457 = vweird.f32 %v4406
    %vm4458 = vweird.f32 %v4452
    %vm4459 = vmor %vm4457, %vm4458
    %v4460 = vsel %vm4459, %v4452, %v4456
    %v4461 = vand.u32 2147483647, %v4406
    %vm4462 = vcmp.eq.f32.partialorder %v4461, 8.507059e+37
    %v4463 = vand.u32 %v4406, 2147483648
    %v4464 = vor.u32 1.1754944e-38, %v4463
    %v4465 = vsel %vm4462, %v4464, %v4460
    %v4466 = vmul.f32 1.0, %v4465
    %v4467 = vmul.f32 %v4451, 2.0
    %v4468 = vsub.f32 %v4467, 1.0
    %v4469 = vmul.f32 %v4436, %v3818
    %v4470 = vmul.f32 %v4421, %v4468
    %v4471 = vadd.f32 %v4469, %v4470
    %v4472 = vtanh.pop %v4471
    %v4473 = vmul.f32 %v4466, %v4472
    %4474 = vmatpush.msra.mxu0 %v296
    %4475 = vmatpush.msra.mxu0 %v292
    %4476 = vmatpush.msra.mxu0 %v288
    %4477 = vmatpush.msra.mxu0 %v284
    %4478 = vmatpush.msra.mxu0 %v280
    %4479 = vmatpush.msra.mxu0 %v276
    %4480 = vmatpush.msra.mxu0 %v272
    %4481 = vmatpush.msra.mxu0 %v268
    %4482 = vmatpush.msra.mxu0 %v264
    %4483 = vmatpush.msra.mxu0 %v260
    %4484 = vmatpush.msra.mxu0 %v256
    %4485 = vmatpush.msra.mxu0 %v252
    %4486 = vmatpush.msra.mxu0 %v248
    %4487 = vmatpush.msra.mxu0 %v244
    %4488 = vmatpush.msra.mxu0 %v240
    %4489 = vmatpush.msra.mxu0 %v236
    %4490 = vmatmul.f32.gmra.mxu0 %v3987
    %v4491 = vpop.f32.mrf.mxu0
    %v4492 = vadd.f32 0.0, %v4491
    %4493 = vdwg.mxu0
    %4494 = vmatpush.msra.mxu0 %v297
    %4495 = vmatpush.msra.mxu0 %v293
    %4496 = vmatpush.msra.mxu0 %v289
    %4497 = vmatpush.msra.mxu0 %v285
    %4498 = vmatpush.msra.mxu0 %v281
    %4499 = vmatpush.msra.mxu0 %v277
    %4500 = vmatpush.msra.mxu0 %v273
    %4501 = vmatpush.msra.mxu0 %v269
    %4502 = vmatpush.msra.mxu0 %v265
    %4503 = vmatpush.msra.mxu0 %v261
    %4504 = vmatpush.msra.mxu0 %v257
    %4505 = vmatpush.msra.mxu0 %v253
    %4506 = vmatpush.msra.mxu0 %v249
    %4507 = vmatpush.msra.mxu0 %v245
    %4508 = vmatpush.msra.mxu0 %v241
    %4509 = vmatpush.msra.mxu0 %v237
    %4510 = vmatmul.f32.gmra.mxu0 %v3987
    %v4511 = vpop.f32.mrf.mxu0
    %v4512 = vadd.f32 0.0, %v4511
    %4513 = vdwg.mxu0
    %4514 = vmatpush.msra.mxu0 %v298
    %4515 = vmatpush.msra.mxu0 %v294
    %4516 = vmatpush.msra.mxu0 %v290
    %4517 = vmatpush.msra.mxu0 %v286
    %4518 = vmatpush.msra.mxu0 %v282
    %4519 = vmatpush.msra.mxu0 %v278
    %4520 = vmatpush.msra.mxu0 %v274
    %4521 = vmatpush.msra.mxu0 %v270
    %4522 = vmatpush.msra.mxu0 %v266
    %4523 = vmatpush.msra.mxu0 %v262
    %4524 = vmatpush.msra.mxu0 %v258
    %4525 = vmatpush.msra.mxu0 %v254
    %4526 = vmatpush.msra.mxu0 %v250
    %4527 = vmatpush.msra.mxu0 %v246
    %4528 = vmatpush.msra.mxu0 %v242
    %4529 = vmatpush.msra.mxu0 %v238
    %4530 = vmatmul.f32.gmra.mxu0 %v3987
    %v4531 = vpop.f32.mrf.mxu0
    %v4532 = vadd.f32 0.0, %v4531
    %4533 = vdwg.mxu0
    %4534 = vmatpush.msra.mxu0 %v299
    %4535 = vmatpush.msra.mxu0 %v295
    %4536 = vmatpush.msra.mxu0 %v291
    %4537 = vmatpush.msra.mxu0 %v287
    %4538 = vmatpush.msra.mxu0 %v283
    %4539 = vmatpush.msra.mxu0 %v279
    %4540 = vmatpush.msra.mxu0 %v275
    %4541 = vmatpush.msra.mxu0 %v271
    %4542 = vmatpush.msra.mxu0 %v267
    %4543 = vmatpush.msra.mxu0 %v263
    %4544 = vmatpush.msra.mxu0 %v259
    %4545 = vmatpush.msra.mxu0 %v255
    %4546 = vmatpush.msra.mxu0 %v251
    %4547 = vmatpush.msra.mxu0 %v247
    %4548 = vmatpush.msra.mxu0 %v243
    %4549 = vmatpush.msra.mxu0 %v239
    %4550 = vmatmul.f32.gmra.mxu0 %v3987
    %v4551 = vpop.f32.mrf.mxu0
    %v4552 = vadd.f32 0.0, %v4551
    %4553 = vdwg.mxu0
    %v4554 = vadd.f32 %v208, %v4492
    %v4555 = vadd.f32 %v209, %v4512
    %v4556 = vadd.f32 %v210, %v4532
    %v4557 = vadd.f32 %v211, %v4552
    %v4558 = vxor.u32 %v4554, 2147483648
    %v4559 = vxor.u32 %v4555, 2147483648
    %v4560 = vxor.u32 %v4556, 2147483648
    %v4561 = vxor.u32 %v4557, 2147483648
    %v4562 = vmul.f32 %v4558, 1.442695
    %v4563 = vpow.pop %v4562
    %v4564 = vmul.f32 %v4559, 1.442695
    %v4565 = vpow.pop %v4564
    %v4566 = vmul.f32 %v4560, 1.442695
    %v4567 = vpow.pop %v4566
    %v4568 = vmul.f32 %v4561, 1.442695
    %v4569 = vpow.pop %v4568
    %v4570 = vadd.f32 %v4563, 1.0
    %v4571 = vadd.f32 %v4565, 1.0
    %v4572 = vadd.f32 %v4567, 1.0
    %v4573 = vadd.f32 %v4569, 1.0
    %v4574 = vrcp.pop %v4570
    %v4575 = vmul.f32 %v4570, %v4574
    %v4576 = vsub.f32 1.0, %v4575
    %v4577 = vmul.f32 %v4574, %v4576
    %v4578 = vadd.f32 %v4574, %v4577
    %vm4579 = vweird.f32 %v4570
    %vm4580 = vweird.f32 %v4574
    %vm4581 = vmor %vm4579, %vm4580
    %v4582 = vsel %vm4581, %v4574, %v4578
    %v4583 = vand.u32 2147483647, %v4570
    %vm4584 = vcmp.eq.f32.partialorder %v4583, 8.507059e+37
    %v4585 = vand.u32 %v4570, 2147483648
    %v4586 = vor.u32 1.1754944e-38, %v4585
    %v4587 = vsel %vm4584, %v4586, %v4582
    %v4588 = vmul.f32 1.0, %v4587
    %v4589 = vrcp.pop %v4571
    %v4590 = vmul.f32 %v4571, %v4589
    %v4591 = vsub.f32 1.0, %v4590
    %v4592 = vmul.f32 %v4589, %v4591
    %v4593 = vadd.f32 %v4589, %v4592
    %vm4594 = vweird.f32 %v4571
    %vm4595 = vweird.f32 %v4589
    %vm4596 = vmor %vm4594, %vm4595
    %v4597 = vsel %vm4596, %v4589, %v4593
    %v4598 = vand.u32 2147483647, %v4571
    %vm4599 = vcmp.eq.f32.partialorder %v4598, 8.507059e+37
    %v4600 = vand.u32 %v4571, 2147483648
    %v4601 = vor.u32 1.1754944e-38, %v4600
    %v4602 = vsel %vm4599, %v4601, %v4597
    %v4603 = vmul.f32 1.0, %v4602
    %v4604 = vrcp.pop %v4572
    %v4605 = vmul.f32 %v4572, %v4604
    %v4606 = vsub.f32 1.0, %v4605
    %v4607 = vmul.f32 %v4604, %v4606
    %v4608 = vadd.f32 %v4604, %v4607
    %vm4609 = vweird.f32 %v4572
    %vm4610 = vweird.f32 %v4604
    %vm4611 = vmor %vm4609, %vm4610
    %v4612 = vsel %vm4611, %v4604, %v4608
    %v4613 = vand.u32 2147483647, %v4572
    %vm4614 = vcmp.eq.f32.partialorder %v4613, 8.507059e+37
    %v4615 = vand.u32 %v4572, 2147483648
    %v4616 = vor.u32 1.1754944e-38, %v4615
    %v4617 = vsel %vm4614, %v4616, %v4612
    %v4618 = vmul.f32 1.0, %v4617
    %v4619 = vrcp.pop %v4573
    %v4620 = vmul.f32 %v4573, %v4619
    %v4621 = vsub.f32 1.0, %v4620
    %v4622 = vmul.f32 %v4619, %v4621
    %v4623 = vadd.f32 %v4619, %v4622
    %vm4624 = vweird.f32 %v4573
    %vm4625 = vweird.f32 %v4619
    %vm4626 = vmor %vm4624, %vm4625
    %v4627 = vsel %vm4626, %v4619, %v4623
    %v4628 = vand.u32 2147483647, %v4573
    %vm4629 = vcmp.eq.f32.partialorder %v4628, 8.507059e+37
    %v4630 = vand.u32 %v4573, 2147483648
    %v4631 = vor.u32 1.1754944e-38, %v4630
    %v4632 = vsel %vm4629, %v4631, %v4627
    %v4633 = vmul.f32 1.0, %v4632
    %v4634 = vmul.f32 %v4618, 2.0
    %v4635 = vsub.f32 %v4634, 1.0
    %v4636 = vmul.f32 %v4603, %v3985
    %v4637 = vmul.f32 %v4588, %v4635
    %v4638 = vadd.f32 %v4636, %v4637
    %v4639 = vtanh.pop %v4638
    %v4640 = vmul.f32 %v4633, %v4639
    %4641 = vmatpush.msra.mxu0 %v527
    %4642 = vmatpush.msra.mxu0 %v523
    %4643 = vmatpush.msra.mxu0 %v519
    %4644 = vmatpush.msra.mxu0 %v515
    %4645 = vmatpush.msra.mxu0 %v511
    %4646 = vmatpush.msra.mxu0 %v507
    %4647 = vmatpush.msra.mxu0 %v503
    %4648 = vmatpush.msra.mxu0 %v499
    %4649 = vmatpush.msra.mxu0 %v495
    %4650 = vmatpush.msra.mxu0 %v491
    %4651 = vmatpush.msra.mxu0 %v487
    %4652 = vmatpush.msra.mxu0 %v483
    %4653 = vmatpush.msra.mxu0 %v479
    %4654 = vmatpush.msra.mxu0 %v475
    %4655 = vmatpush.msra.mxu0 %v471
    %4656 = vmatpush.msra.mxu0 %v467
    %4657 = vmatmul.f32.gmra.mxu0 %v4640
    %v4658 = vpop.f32.mrf.mxu0
    %v4659 = vadd.f32 %v218, %v4658
    %4660 = vdwg.mxu0
    %4661 = vmatpush.msra.mxu0 %v591
    %4662 = vmatpush.msra.mxu0 %v587
    %4663 = vmatpush.msra.mxu0 %v583
    %4664 = vmatpush.msra.mxu0 %v579
    %4665 = vmatpush.msra.mxu0 %v575
    %4666 = vmatpush.msra.mxu0 %v571
    %4667 = vmatpush.msra.mxu0 %v567
    %4668 = vmatpush.msra.mxu0 %v563
    %4669 = vmatpush.msra.mxu0 %v559
    %4670 = vmatpush.msra.mxu0 %v555
    %4671 = vmatpush.msra.mxu0 %v551
    %4672 = vmatpush.msra.mxu0 %v547
    %4673 = vmatpush.msra.mxu0 %v543
    %4674 = vmatpush.msra.mxu0 %v539
    %4675 = vmatpush.msra.mxu0 %v535
    %4676 = vmatpush.msra.mxu0 %v531
    %4677 = vmatmul.f32.gmra.mxu0 %v4230
    %v4678 = vpop.f32.mrf.mxu0
    %v4679 = vadd.f32 %v4659, %v4678
    %4680 = vdwg.mxu0
    %4681 = vmatpush.msra.mxu0 %v528
    %4682 = vmatpush.msra.mxu0 %v524
    %4683 = vmatpush.msra.mxu0 %v520
    %4684 = vmatpush.msra.mxu0 %v516
    %4685 = vmatpush.msra.mxu0 %v512
    %4686 = vmatpush.msra.mxu0 %v508
    %4687 = vmatpush.msra.mxu0 %v504
    %4688 = vmatpush.msra.mxu0 %v500
    %4689 = vmatpush.msra.mxu0 %v496
    %4690 = vmatpush.msra.mxu0 %v492
    %4691 = vmatpush.msra.mxu0 %v488
    %4692 = vmatpush.msra.mxu0 %v484
    %4693 = vmatpush.msra.mxu0 %v480
    %4694 = vmatpush.msra.mxu0 %v476
    %4695 = vmatpush.msra.mxu0 %v472
    %4696 = vmatpush.msra.mxu0 %v468
    %4697 = vmatmul.f32.gmra.mxu0 %v4640
    %v4698 = vpop.f32.mrf.mxu0
    %v4699 = vadd.f32 %v219, %v4698
    %4700 = vdwg.mxu0
    %4701 = vmatpush.msra.mxu0 %v592
    %4702 = vmatpush.msra.mxu0 %v588
    %4703 = vmatpush.msra.mxu0 %v584
    %4704 = vmatpush.msra.mxu0 %v580
    %4705 = vmatpush.msra.mxu0 %v576
    %4706 = vmatpush.msra.mxu0 %v572
    %4707 = vmatpush.msra.mxu0 %v568
    %4708 = vmatpush.msra.mxu0 %v564
    %4709 = vmatpush.msra.mxu0 %v560
    %4710 = vmatpush.msra.mxu0 %v556
    %4711 = vmatpush.msra.mxu0 %v552
    %4712 = vmatpush.msra.mxu0 %v548
    %4713 = vmatpush.msra.mxu0 %v544
    %4714 = vmatpush.msra.mxu0 %v540
    %4715 = vmatpush.msra.mxu0 %v536
    %4716 = vmatpush.msra.mxu0 %v532
    %4717 = vmatmul.f32.gmra.mxu0 %v4230
    %v4718 = vpop.f32.mrf.mxu0
    %v4719 = vadd.f32 %v4699, %v4718
    %4720 = vdwg.mxu0
    %4721 = vmatpush.msra.mxu0 %v529
    %4722 = vmatpush.msra.mxu0 %v525
    %4723 = vmatpush.msra.mxu0 %v521
    %4724 = vmatpush.msra.mxu0 %v517
    %4725 = vmatpush.msra.mxu0 %v513
    %4726 = vmatpush.msra.mxu0 %v509
    %4727 = vmatpush.msra.mxu0 %v505
    %4728 = vmatpush.msra.mxu0 %v501
    %4729 = vmatpush.msra.mxu0 %v497
    %4730 = vmatpush.msra.mxu0 %v493
    %4731 = vmatpush.msra.mxu0 %v489
    %4732 = vmatpush.msra.mxu0 %v485
    %4733 = vmatpush.msra.mxu0 %v481
    %4734 = vmatpush.msra.mxu0 %v477
    %4735 = vmatpush.msra.mxu0 %v473
    %4736 = vmatpush.msra.mxu0 %v469
    %4737 = vmatmul.f32.gmra.mxu0 %v4640
    %v4738 = vpop.f32.mrf.mxu0
    %v4739 = vadd.f32 %v220, %v4738
    %4740 = vdwg.mxu0
    %4741 = vmatpush.msra.mxu0 %v593
    %4742 = vmatpush.msra.mxu0 %v589
    %4743 = vmatpush.msra.mxu0 %v585
    %4744 = vmatpush.msra.mxu0 %v581
    %4745 = vmatpush.msra.mxu0 %v577
    %4746 = vmatpush.msra.mxu0 %v573
    %4747 = vmatpush.msra.mxu0 %v569
    %4748 = vmatpush.msra.mxu0 %v565
    %4749 = vmatpush.msra.mxu0 %v561
    %4750 = vmatpush.msra.mxu0 %v557
    %4751 = vmatpush.msra.mxu0 %v553
    %4752 = vmatpush.msra.mxu0 %v549
    %4753 = vmatpush.msra.mxu0 %v545
    %4754 = vmatpush.msra.mxu0 %v541
    %4755 = vmatpush.msra.mxu0 %v537
    %4756 = vmatpush.msra.mxu0 %v533
    %4757 = vmatmul.f32.gmra.mxu0 %v4230
    %v4758 = vpop.f32.mrf.mxu0
    %v4759 = vadd.f32 %v4739, %v4758
    %4760 = vdwg.mxu0
    %4761 = vmatpush.msra.mxu0 %v530
    %4762 = vmatpush.msra.mxu0 %v526
    %4763 = vmatpush.msra.mxu0 %v522
    %4764 = vmatpush.msra.mxu0 %v518
    %4765 = vmatpush.msra.mxu0 %v514
    %4766 = vmatpush.msra.mxu0 %v510
    %4767 = vmatpush.msra.mxu0 %v506
    %4768 = vmatpush.msra.mxu0 %v502
    %4769 = vmatpush.msra.mxu0 %v498
    %4770 = vmatpush.msra.mxu0 %v494
    %4771 = vmatpush.msra.mxu0 %v490
    %4772 = vmatpush.msra.mxu0 %v486
    %4773 = vmatpush.msra.mxu0 %v482
    %4774 = vmatpush.msra.mxu0 %v478
    %4775 = vmatpush.msra.mxu0 %v474
    %4776 = vmatpush.msra.mxu0 %v470
    %4777 = vmatmul.f32.gmra.mxu0 %v4640
    %v4778 = vpop.f32.mrf.mxu0
    %v4779 = vadd.f32 %v221, %v4778
    %4780 = vdwg.mxu0
    %4781 = vmatpush.msra.mxu0 %v594
    %4782 = vmatpush.msra.mxu0 %v590
    %4783 = vmatpush.msra.mxu0 %v586
    %4784 = vmatpush.msra.mxu0 %v582
    %4785 = vmatpush.msra.mxu0 %v578
    %4786 = vmatpush.msra.mxu0 %v574
    %4787 = vmatpush.msra.mxu0 %v570
    %4788 = vmatpush.msra.mxu0 %v566
    %4789 = vmatpush.msra.mxu0 %v562
    %4790 = vmatpush.msra.mxu0 %v558
    %4791 = vmatpush.msra.mxu0 %v554
    %4792 = vmatpush.msra.mxu0 %v550
    %4793 = vmatpush.msra.mxu0 %v546
    %4794 = vmatpush.msra.mxu0 %v542
    %4795 = vmatpush.msra.mxu0 %v538
    %4796 = vmatpush.msra.mxu0 %v534
    %4797 = vmatmul.f32.gmra.mxu0 %v4230
    %v4798 = vpop.f32.mrf.mxu0
    %v4799 = vadd.f32 %v4779, %v4798
    %4800 = vdwg.mxu0
    %v4801 = vxor.u32 %v4679, 2147483648
    %v4802 = vxor.u32 %v4719, 2147483648
    %v4803 = vxor.u32 %v4759, 2147483648
    %v4804 = vxor.u32 %v4799, 2147483648
    %v4805 = vmul.f32 %v4801, 1.442695
    %v4806 = vpow.pop %v4805
    %v4807 = vmul.f32 %v4802, 1.442695
    %v4808 = vpow.pop %v4807
    %v4809 = vmul.f32 %v4803, 1.442695
    %v4810 = vpow.pop %v4809
    %v4811 = vmul.f32 %v4804, 1.442695
    %v4812 = vpow.pop %v4811
    %v4813 = vadd.f32 %v4806, 1.0
    %v4814 = vadd.f32 %v4808, 1.0
    %v4815 = vadd.f32 %v4810, 1.0
    %v4816 = vadd.f32 %v4812, 1.0
    %v4817 = vrcp.pop %v4813
    %v4818 = vmul.f32 %v4813, %v4817
    %v4819 = vsub.f32 1.0, %v4818
    %v4820 = vmul.f32 %v4817, %v4819
    %v4821 = vadd.f32 %v4817, %v4820
    %vm4822 = vweird.f32 %v4813
    %vm4823 = vweird.f32 %v4817
    %vm4824 = vmor %vm4822, %vm4823
    %v4825 = vsel %vm4824, %v4817, %v4821
    %v4826 = vand.u32 2147483647, %v4813
    %vm4827 = vcmp.eq.f32.partialorder %v4826, 8.507059e+37
    %v4828 = vand.u32 %v4813, 2147483648
    %v4829 = vor.u32 1.1754944e-38, %v4828
    %v4830 = vsel %vm4827, %v4829, %v4825
    %v4831 = vmul.f32 1.0, %v4830
    %v4832 = vrcp.pop %v4814
    %v4833 = vmul.f32 %v4814, %v4832
    %v4834 = vsub.f32 1.0, %v4833
    %v4835 = vmul.f32 %v4832, %v4834
    %v4836 = vadd.f32 %v4832, %v4835
    %vm4837 = vweird.f32 %v4814
    %vm4838 = vweird.f32 %v4832
    %vm4839 = vmor %vm4837, %vm4838
    %v4840 = vsel %vm4839, %v4832, %v4836
    %v4841 = vand.u32 2147483647, %v4814
    %vm4842 = vcmp.eq.f32.partialorder %v4841, 8.507059e+37
    %v4843 = vand.u32 %v4814, 2147483648
    %v4844 = vor.u32 1.1754944e-38, %v4843
    %v4845 = vsel %vm4842, %v4844, %v4840
    %v4846 = vmul.f32 1.0, %v4845
    %v4847 = vrcp.pop %v4815
    %v4848 = vmul.f32 %v4815, %v4847
    %v4849 = vsub.f32 1.0, %v4848
    %v4850 = vmul.f32 %v4847, %v4849
    %v4851 = vadd.f32 %v4847, %v4850
    %vm4852 = vweird.f32 %v4815
    %vm4853 = vweird.f32 %v4847
    %vm4854 = vmor %vm4852, %vm4853
    %v4855 = vsel %vm4854, %v4847, %v4851
    %v4856 = vand.u32 2147483647, %v4815
    %vm4857 = vcmp.eq.f32.partialorder %v4856, 8.507059e+37
    %v4858 = vand.u32 %v4815, 2147483648
    %v4859 = vor.u32 1.1754944e-38, %v4858
    %v4860 = vsel %vm4857, %v4859, %v4855
    %v4861 = vmul.f32 1.0, %v4860
    %v4862 = vrcp.pop %v4816
    %v4863 = vmul.f32 %v4816, %v4862
    %v4864 = vsub.f32 1.0, %v4863
    %v4865 = vmul.f32 %v4862, %v4864
    %v4866 = vadd.f32 %v4862, %v4865
    %vm4867 = vweird.f32 %v4816
    %vm4868 = vweird.f32 %v4862
    %vm4869 = vmor %vm4867, %vm4868
    %v4870 = vsel %vm4869, %v4862, %v4866
    %v4871 = vand.u32 2147483647, %v4816
    %vm4872 = vcmp.eq.f32.partialorder %v4871, 8.507059e+37
    %v4873 = vand.u32 %v4816, 2147483648
    %v4874 = vor.u32 1.1754944e-38, %v4873
    %v4875 = vsel %vm4872, %v4874, %v4870
    %v4876 = vmul.f32 1.0, %v4875
    %v4877 = vmul.f32 %v4861, 2.0
    %v4878 = vsub.f32 %v4877, 1.0
    %v4879 = vmul.f32 %v4846, %v4228
    %v4880 = vmul.f32 %v4831, %v4878
    %v4881 = vadd.f32 %v4879, %v4880
    %v4882 = vtanh.pop %v4881
    %v4883 = vmul.f32 %v4876, %v4882
    %4884 = vmatpush.msra.mxu0 %v898
    %4885 = vmatpush.msra.mxu0 %v894
    %4886 = vmatpush.msra.mxu0 %v890
    %4887 = vmatpush.msra.mxu0 %v886
    %4888 = vmatpush.msra.mxu0 %v882
    %4889 = vmatpush.msra.mxu0 %v878
    %4890 = vmatpush.msra.mxu0 %v874
    %4891 = vmatpush.msra.mxu0 %v870
    %4892 = vmatpush.msra.mxu0 %v866
    %4893 = vmatpush.msra.mxu0 %v862
    %4894 = vmatpush.msra.mxu0 %v858
    %4895 = vmatpush.msra.mxu0 %v854
    %4896 = vmatpush.msra.mxu0 %v850
    %4897 = vmatpush.msra.mxu0 %v846
    %4898 = vmatpush.msra.mxu0 %v842
    %4899 = vmatpush.msra.mxu0 %v838
    %4900 = vmatmul.f32.gmra.mxu0 %v4883
    %v4901 = vpop.f32.mrf.mxu0
    %v4902 = vadd.f32 %v228, %v4901
    %4903 = vdwg.mxu0
    %4904 = vmatpush.msra.mxu0 %v962
    %4905 = vmatpush.msra.mxu0 %v958
    %4906 = vmatpush.msra.mxu0 %v954
    %4907 = vmatpush.msra.mxu0 %v950
    %4908 = vmatpush.msra.mxu0 %v946
    %4909 = vmatpush.msra.mxu0 %v942
    %4910 = vmatpush.msra.mxu0 %v938
    %4911 = vmatpush.msra.mxu0 %v934
    %4912 = vmatpush.msra.mxu0 %v930
    %4913 = vmatpush.msra.mxu0 %v926
    %4914 = vmatpush.msra.mxu0 %v922
    %4915 = vmatpush.msra.mxu0 %v918
    %4916 = vmatpush.msra.mxu0 %v914
    %4917 = vmatpush.msra.mxu0 %v910
    %4918 = vmatpush.msra.mxu0 %v906
    %4919 = vmatpush.msra.mxu0 %v902
    %4920 = vmatmul.f32.gmra.mxu0 %v4473
    %v4921 = vpop.f32.mrf.mxu0
    %v4922 = vadd.f32 %v4902, %v4921
    %4923 = vdwg.mxu0
    %4924 = vmatpush.msra.mxu0 %v899
    %4925 = vmatpush.msra.mxu0 %v895
    %4926 = vmatpush.msra.mxu0 %v891
    %4927 = vmatpush.msra.mxu0 %v887
    %4928 = vmatpush.msra.mxu0 %v883
    %4929 = vmatpush.msra.mxu0 %v879
    %4930 = vmatpush.msra.mxu0 %v875
    %4931 = vmatpush.msra.mxu0 %v871
    %4932 = vmatpush.msra.mxu0 %v867
    %4933 = vmatpush.msra.mxu0 %v863
    %4934 = vmatpush.msra.mxu0 %v859
    %4935 = vmatpush.msra.mxu0 %v855
    %4936 = vmatpush.msra.mxu0 %v851
    %4937 = vmatpush.msra.mxu0 %v847
    %4938 = vmatpush.msra.mxu0 %v843
    %4939 = vmatpush.msra.mxu0 %v839
    %4940 = vmatmul.f32.gmra.mxu0 %v4883
    %v4941 = vpop.f32.mrf.mxu0
    %v4942 = vadd.f32 %v229, %v4941
    %4943 = vdwg.mxu0
    %4944 = vmatpush.msra.mxu0 %v963
    %4945 = vmatpush.msra.mxu0 %v959
    %4946 = vmatpush.msra.mxu0 %v955
    %4947 = vmatpush.msra.mxu0 %v951
    %4948 = vmatpush.msra.mxu0 %v947
    %4949 = vmatpush.msra.mxu0 %v943
    %4950 = vmatpush.msra.mxu0 %v939
    %4951 = vmatpush.msra.mxu0 %v935
    %4952 = vmatpush.msra.mxu0 %v931
    %4953 = vmatpush.msra.mxu0 %v927
    %4954 = vmatpush.msra.mxu0 %v923
    %4955 = vmatpush.msra.mxu0 %v919
    %4956 = vmatpush.msra.mxu0 %v915
    %4957 = vmatpush.msra.mxu0 %v911
    %4958 = vmatpush.msra.mxu0 %v907
    %4959 = vmatpush.msra.mxu0 %v903
    %4960 = vmatmul.f32.gmra.mxu0 %v4473
    %v4961 = vpop.f32.mrf.mxu0
    %v4962 = vadd.f32 %v4942, %v4961
    %4963 = vdwg.mxu0
    %4964 = vmatpush.msra.mxu0 %v900
    %4965 = vmatpush.msra.mxu0 %v896
    %4966 = vmatpush.msra.mxu0 %v892
    %4967 = vmatpush.msra.mxu0 %v888
    %4968 = vmatpush.msra.mxu0 %v884
    %4969 = vmatpush.msra.mxu0 %v880
    %4970 = vmatpush.msra.mxu0 %v876
    %4971 = vmatpush.msra.mxu0 %v872
    %4972 = vmatpush.msra.mxu0 %v868
    %4973 = vmatpush.msra.mxu0 %v864
    %4974 = vmatpush.msra.mxu0 %v860
    %4975 = vmatpush.msra.mxu0 %v856
    %4976 = vmatpush.msra.mxu0 %v852
    %4977 = vmatpush.msra.mxu0 %v848
    %4978 = vmatpush.msra.mxu0 %v844
    %4979 = vmatpush.msra.mxu0 %v840
    %4980 = vmatmul.f32.gmra.mxu0 %v4883
    %v4981 = vpop.f32.mrf.mxu0
    %v4982 = vadd.f32 %v230, %v4981
    %4983 = vdwg.mxu0
    %4984 = vmatpush.msra.mxu0 %v964
    %4985 = vmatpush.msra.mxu0 %v960
    %4986 = vmatpush.msra.mxu0 %v956
    %4987 = vmatpush.msra.mxu0 %v952
    %4988 = vmatpush.msra.mxu0 %v948
    %4989 = vmatpush.msra.mxu0 %v944
    %4990 = vmatpush.msra.mxu0 %v940
    %4991 = vmatpush.msra.mxu0 %v936
    %4992 = vmatpush.msra.mxu0 %v932
    %4993 = vmatpush.msra.mxu0 %v928
    %4994 = vmatpush.msra.mxu0 %v924
    %4995 = vmatpush.msra.mxu0 %v920
    %4996 = vmatpush.msra.mxu0 %v916
    %4997 = vmatpush.msra.mxu0 %v912
    %4998 = vmatpush.msra.mxu0 %v908
    %4999 = vmatpush.msra.mxu0 %v904
    %5000 = vmatmul.f32.gmra.mxu0 %v4473
    %v5001 = vpop.f32.mrf.mxu0
    %v5002 = vadd.f32 %v4982, %v5001
    %5003 = vdwg.mxu0
    %5004 = vmatpush.msra.mxu0 %v901
    %5005 = vmatpush.msra.mxu0 %v897
    %5006 = vmatpush.msra.mxu0 %v893
    %5007 = vmatpush.msra.mxu0 %v889
    %5008 = vmatpush.msra.mxu0 %v885
    %5009 = vmatpush.msra.mxu0 %v881
    %5010 = vmatpush.msra.mxu0 %v877
    %5011 = vmatpush.msra.mxu0 %v873
    %5012 = vmatpush.msra.mxu0 %v869
    %5013 = vmatpush.msra.mxu0 %v865
    %5014 = vmatpush.msra.mxu0 %v861
    %5015 = vmatpush.msra.mxu0 %v857
    %5016 = vmatpush.msra.mxu0 %v853
    %5017 = vmatpush.msra.mxu0 %v849
    %5018 = vmatpush.msra.mxu0 %v845
    %5019 = vmatpush.msra.mxu0 %v841
    %5020 = vmatmul.f32.gmra.mxu0 %v4883
    %v5021 = vpop.f32.mrf.mxu0
    %v5022 = vadd.f32 %v231, %v5021
    %5023 = vdwg.mxu0
    %5024 = vmatpush.msra.mxu0 %v965
    %5025 = vmatpush.msra.mxu0 %v961
    %5026 = vmatpush.msra.mxu0 %v957
    %5027 = vmatpush.msra.mxu0 %v953
    %5028 = vmatpush.msra.mxu0 %v949
    %5029 = vmatpush.msra.mxu0 %v945
    %5030 = vmatpush.msra.mxu0 %v941
    %5031 = vmatpush.msra.mxu0 %v937
    %5032 = vmatpush.msra.mxu0 %v933
    %5033 = vmatpush.msra.mxu0 %v929
    %5034 = vmatpush.msra.mxu0 %v925
    %5035 = vmatpush.msra.mxu0 %v921
    %5036 = vmatpush.msra.mxu0 %v917
    %5037 = vmatpush.msra.mxu0 %v913
    %5038 = vmatpush.msra.mxu0 %v909
    %5039 = vmatpush.msra.mxu0 %v905
    %5040 = vmatmul.f32.gmra.mxu0 %v4473
    %v5041 = vpop.f32.mrf.mxu0
    %v5042 = vadd.f32 %v5022, %v5041
    %5043 = vdwg.mxu0
    %v5044 = vxor.u32 %v4922, 2147483648
    %v5045 = vxor.u32 %v4962, 2147483648
    %v5046 = vxor.u32 %v5002, 2147483648
    %v5047 = vxor.u32 %v5042, 2147483648
    %v5048 = vmul.f32 %v5044, 1.442695
    %v5049 = vpow.pop %v5048
    %v5050 = vmul.f32 %v5045, 1.442695
    %v5051 = vpow.pop %v5050
    %v5052 = vmul.f32 %v5046, 1.442695
    %v5053 = vpow.pop %v5052
    %v5054 = vmul.f32 %v5047, 1.442695
    %v5055 = vpow.pop %v5054
    %v5056 = vadd.f32 %v5049, 1.0
    %v5057 = vadd.f32 %v5051, 1.0
    %v5058 = vadd.f32 %v5053, 1.0
    %v5059 = vadd.f32 %v5055, 1.0
    %v5060 = vrcp.pop %v5056
    %v5061 = vmul.f32 %v5056, %v5060
    %v5062 = vsub.f32 1.0, %v5061
    %v5063 = vmul.f32 %v5060, %v5062
    %v5064 = vadd.f32 %v5060, %v5063
    %vm5065 = vweird.f32 %v5056
    %vm5066 = vweird.f32 %v5060
    %vm5067 = vmor %vm5065, %vm5066
    %v5068 = vsel %vm5067, %v5060, %v5064
    %v5069 = vand.u32 2147483647, %v5056
    %vm5070 = vcmp.eq.f32.partialorder %v5069, 8.507059e+37
    %v5071 = vand.u32 %v5056, 2147483648
    %v5072 = vor.u32 1.1754944e-38, %v5071
    %v5073 = vsel %vm5070, %v5072, %v5068
    %v5074 = vmul.f32 1.0, %v5073
    %v5075 = vrcp.pop %v5057
    %v5076 = vmul.f32 %v5057, %v5075
    %v5077 = vsub.f32 1.0, %v5076
    %v5078 = vmul.f32 %v5075, %v5077
    %v5079 = vadd.f32 %v5075, %v5078
    %vm5080 = vweird.f32 %v5057
    %vm5081 = vweird.f32 %v5075
    %vm5082 = vmor %vm5080, %vm5081
    %v5083 = vsel %vm5082, %v5075, %v5079
    %v5084 = vand.u32 2147483647, %v5057
    %vm5085 = vcmp.eq.f32.partialorder %v5084, 8.507059e+37
    %v5086 = vand.u32 %v5057, 2147483648
    %v5087 = vor.u32 1.1754944e-38, %v5086
    %v5088 = vsel %vm5085, %v5087, %v5083
    %v5089 = vmul.f32 1.0, %v5088
    %v5090 = vrcp.pop %v5058
    %v5091 = vmul.f32 %v5058, %v5090
    %v5092 = vsub.f32 1.0, %v5091
    %v5093 = vmul.f32 %v5090, %v5092
    %v5094 = vadd.f32 %v5090, %v5093
    %vm5095 = vweird.f32 %v5058
    %vm5096 = vweird.f32 %v5090
    %vm5097 = vmor %vm5095, %vm5096
    %v5098 = vsel %vm5097, %v5090, %v5094
    %v5099 = vand.u32 2147483647, %v5058
    %vm5100 = vcmp.eq.f32.partialorder %v5099, 8.507059e+37
    %v5101 = vand.u32 %v5058, 2147483648
    %v5102 = vor.u32 1.1754944e-38, %v5101
    %v5103 = vsel %vm5100, %v5102, %v5098
    %v5104 = vmul.f32 1.0, %v5103
    %v5105 = vrcp.pop %v5059
    %v5106 = vmul.f32 %v5059, %v5105
    %v5107 = vsub.f32 1.0, %v5106
    %v5108 = vmul.f32 %v5105, %v5107
    %v5109 = vadd.f32 %v5105, %v5108
    %vm5110 = vweird.f32 %v5059
    %vm5111 = vweird.f32 %v5105
    %vm5112 = vmor %vm5110, %vm5111
    %v5113 = vsel %vm5112, %v5105, %v5109
    %v5114 = vand.u32 2147483647, %v5059
    %vm5115 = vcmp.eq.f32.partialorder %v5114, 8.507059e+37
    %v5116 = vand.u32 %v5059, 2147483648
    %v5117 = vor.u32 1.1754944e-38, %v5116
    %v5118 = vsel %vm5115, %v5117, %v5113
    %v5119 = vmul.f32 1.0, %v5118
    %v5120 = vmul.f32 %v5104, 2.0
    %v5121 = vsub.f32 %v5120, 1.0
    %v5122 = vmul.f32 %v5089, %v4471
    %v5123 = vmul.f32 %v5074, %v5121
    %v5124 = vadd.f32 %v5122, %v5123
    %v5125 = vtanh.pop %v5124
    %v5126 = vmul.f32 %v5119, %v5125
    %5127 = vmatpush.msra.mxu0 %v296
    %5128 = vmatpush.msra.mxu0 %v292
    %5129 = vmatpush.msra.mxu0 %v288
    %5130 = vmatpush.msra.mxu0 %v284
    %5131 = vmatpush.msra.mxu0 %v280
    %5132 = vmatpush.msra.mxu0 %v276
    %5133 = vmatpush.msra.mxu0 %v272
    %5134 = vmatpush.msra.mxu0 %v268
    %5135 = vmatpush.msra.mxu0 %v264
    %5136 = vmatpush.msra.mxu0 %v260
    %5137 = vmatpush.msra.mxu0 %v256
    %5138 = vmatpush.msra.mxu0 %v252
    %5139 = vmatpush.msra.mxu0 %v248
    %5140 = vmatpush.msra.mxu0 %v244
    %5141 = vmatpush.msra.mxu0 %v240
    %5142 = vmatpush.msra.mxu0 %v236
    %5143 = vmatmul.f32.gmra.mxu0 %v4640
    %v5144 = vpop.f32.mrf.mxu0
    %v5145 = vadd.f32 0.0, %v5144
    %5146 = vdwg.mxu0
    %5147 = vmatpush.msra.mxu0 %v297
    %5148 = vmatpush.msra.mxu0 %v293
    %5149 = vmatpush.msra.mxu0 %v289
    %5150 = vmatpush.msra.mxu0 %v285
    %5151 = vmatpush.msra.mxu0 %v281
    %5152 = vmatpush.msra.mxu0 %v277
    %5153 = vmatpush.msra.mxu0 %v273
    %5154 = vmatpush.msra.mxu0 %v269
    %5155 = vmatpush.msra.mxu0 %v265
    %5156 = vmatpush.msra.mxu0 %v261
    %5157 = vmatpush.msra.mxu0 %v257
    %5158 = vmatpush.msra.mxu0 %v253
    %5159 = vmatpush.msra.mxu0 %v249
    %5160 = vmatpush.msra.mxu0 %v245
    %5161 = vmatpush.msra.mxu0 %v241
    %5162 = vmatpush.msra.mxu0 %v237
    %5163 = vmatmul.f32.gmra.mxu0 %v4640
    %v5164 = vpop.f32.mrf.mxu0
    %v5165 = vadd.f32 0.0, %v5164
    %5166 = vdwg.mxu0
    %5167 = vmatpush.msra.mxu0 %v298
    %5168 = vmatpush.msra.mxu0 %v294
    %5169 = vmatpush.msra.mxu0 %v290
    %5170 = vmatpush.msra.mxu0 %v286
    %5171 = vmatpush.msra.mxu0 %v282
    %5172 = vmatpush.msra.mxu0 %v278
    %5173 = vmatpush.msra.mxu0 %v274
    %5174 = vmatpush.msra.mxu0 %v270
    %5175 = vmatpush.msra.mxu0 %v266
    %5176 = vmatpush.msra.mxu0 %v262
    %5177 = vmatpush.msra.mxu0 %v258
    %5178 = vmatpush.msra.mxu0 %v254
    %5179 = vmatpush.msra.mxu0 %v250
    %5180 = vmatpush.msra.mxu0 %v246
    %5181 = vmatpush.msra.mxu0 %v242
    %5182 = vmatpush.msra.mxu0 %v238
    %5183 = vmatmul.f32.gmra.mxu0 %v4640
    %v5184 = vpop.f32.mrf.mxu0
    %v5185 = vadd.f32 0.0, %v5184
    %5186 = vdwg.mxu0
    %5187 = vmatpush.msra.mxu0 %v299
    %5188 = vmatpush.msra.mxu0 %v295
    %5189 = vmatpush.msra.mxu0 %v291
    %5190 = vmatpush.msra.mxu0 %v287
    %5191 = vmatpush.msra.mxu0 %v283
    %5192 = vmatpush.msra.mxu0 %v279
    %5193 = vmatpush.msra.mxu0 %v275
    %5194 = vmatpush.msra.mxu0 %v271
    %5195 = vmatpush.msra.mxu0 %v267
    %5196 = vmatpush.msra.mxu0 %v263
    %5197 = vmatpush.msra.mxu0 %v259
    %5198 = vmatpush.msra.mxu0 %v255
    %5199 = vmatpush.msra.mxu0 %v251
    %5200 = vmatpush.msra.mxu0 %v247
    %5201 = vmatpush.msra.mxu0 %v243
    %5202 = vmatpush.msra.mxu0 %v239
    %5203 = vmatmul.f32.gmra.mxu0 %v4640
    %v5204 = vpop.f32.mrf.mxu0
    %v5205 = vadd.f32 0.0, %v5204
    %5206 = vdwg.mxu0
    %v5207 = vadd.f32 %v212, %v5145
    %v5208 = vadd.f32 %v213, %v5165
    %v5209 = vadd.f32 %v214, %v5185
    %v5210 = vadd.f32 %v215, %v5205
    %v5211 = vxor.u32 %v5207, 2147483648
    %v5212 = vxor.u32 %v5208, 2147483648
    %v5213 = vxor.u32 %v5209, 2147483648
    %v5214 = vxor.u32 %v5210, 2147483648
    %v5215 = vmul.f32 %v5211, 1.442695
    %v5216 = vpow.pop %v5215
    %v5217 = vmul.f32 %v5212, 1.442695
    %v5218 = vpow.pop %v5217
    %v5219 = vmul.f32 %v5213, 1.442695
    %v5220 = vpow.pop %v5219
    %v5221 = vmul.f32 %v5214, 1.442695
    %v5222 = vpow.pop %v5221
    %v5223 = vadd.f32 %v5216, 1.0
    %v5224 = vadd.f32 %v5218, 1.0
    %v5225 = vadd.f32 %v5220, 1.0
    %v5226 = vadd.f32 %v5222, 1.0
    %v5227 = vrcp.pop %v5223
    %v5228 = vmul.f32 %v5223, %v5227
    %v5229 = vsub.f32 1.0, %v5228
    %v5230 = vmul.f32 %v5227, %v5229
    %v5231 = vadd.f32 %v5227, %v5230
    %vm5232 = vweird.f32 %v5223
    %vm5233 = vweird.f32 %v5227
    %vm5234 = vmor %vm5232, %vm5233
    %v5235 = vsel %vm5234, %v5227, %v5231
    %v5236 = vand.u32 2147483647, %v5223
    %vm5237 = vcmp.eq.f32.partialorder %v5236, 8.507059e+37
    %v5238 = vand.u32 %v5223, 2147483648
    %v5239 = vor.u32 1.1754944e-38, %v5238
    %v5240 = vsel %vm5237, %v5239, %v5235
    %v5241 = vmul.f32 1.0, %v5240
    %v5242 = vrcp.pop %v5224
    %v5243 = vmul.f32 %v5224, %v5242
    %v5244 = vsub.f32 1.0, %v5243
    %v5245 = vmul.f32 %v5242, %v5244
    %v5246 = vadd.f32 %v5242, %v5245
    %vm5247 = vweird.f32 %v5224
    %vm5248 = vweird.f32 %v5242
    %vm5249 = vmor %vm5247, %vm5248
    %v5250 = vsel %vm5249, %v5242, %v5246
    %v5251 = vand.u32 2147483647, %v5224
    %vm5252 = vcmp.eq.f32.partialorder %v5251, 8.507059e+37
    %v5253 = vand.u32 %v5224, 2147483648
    %v5254 = vor.u32 1.1754944e-38, %v5253
    %v5255 = vsel %vm5252, %v5254, %v5250
    %v5256 = vmul.f32 1.0, %v5255
    %v5257 = vrcp.pop %v5225
    %v5258 = vmul.f32 %v5225, %v5257
    %v5259 = vsub.f32 1.0, %v5258
    %v5260 = vmul.f32 %v5257, %v5259
    %v5261 = vadd.f32 %v5257, %v5260
    %vm5262 = vweird.f32 %v5225
    %vm5263 = vweird.f32 %v5257
    %vm5264 = vmor %vm5262, %vm5263
    %v5265 = vsel %vm5264, %v5257, %v5261
    %v5266 = vand.u32 2147483647, %v5225
    %vm5267 = vcmp.eq.f32.partialorder %v5266, 8.507059e+37
    %v5268 = vand.u32 %v5225, 2147483648
    %v5269 = vor.u32 1.1754944e-38, %v5268
    %v5270 = vsel %vm5267, %v5269, %v5265
    %v5271 = vmul.f32 1.0, %v5270
    %v5272 = vrcp.pop %v5226
    %v5273 = vmul.f32 %v5226, %v5272
    %v5274 = vsub.f32 1.0, %v5273
    %v5275 = vmul.f32 %v5272, %v5274
    %v5276 = vadd.f32 %v5272, %v5275
    %vm5277 = vweird.f32 %v5226
    %vm5278 = vweird.f32 %v5272
    %vm5279 = vmor %vm5277, %vm5278
    %v5280 = vsel %vm5279, %v5272, %v5276
    %v5281 = vand.u32 2147483647, %v5226
    %vm5282 = vcmp.eq.f32.partialorder %v5281, 8.507059e+37
    %v5283 = vand.u32 %v5226, 2147483648
    %v5284 = vor.u32 1.1754944e-38, %v5283
    %v5285 = vsel %vm5282, %v5284, %v5280
    %v5286 = vmul.f32 1.0, %v5285
    %v5287 = vmul.f32 %v5271, 2.0
    %v5288 = vsub.f32 %v5287, 1.0
    %v5289 = vmul.f32 %v5256, %v4638
    %v5290 = vmul.f32 %v5241, %v5288
    %v5291 = vadd.f32 %v5289, %v5290
    %v5292 = vtanh.pop %v5291
    %v5293 = vmul.f32 %v5286, %v5292
    %5294 = vmatpush.msra.mxu0 %v527
    %5295 = vmatpush.msra.mxu0 %v523
    %5296 = vmatpush.msra.mxu0 %v519
    %5297 = vmatpush.msra.mxu0 %v515
    %5298 = vmatpush.msra.mxu0 %v511
    %5299 = vmatpush.msra.mxu0 %v507
    %5300 = vmatpush.msra.mxu0 %v503
    %5301 = vmatpush.msra.mxu0 %v499
    %5302 = vmatpush.msra.mxu0 %v495
    %5303 = vmatpush.msra.mxu0 %v491
    %5304 = vmatpush.msra.mxu0 %v487
    %5305 = vmatpush.msra.mxu0 %v483
    %5306 = vmatpush.msra.mxu0 %v479
    %5307 = vmatpush.msra.mxu0 %v475
    %5308 = vmatpush.msra.mxu0 %v471
    %5309 = vmatpush.msra.mxu0 %v467
    %5310 = vmatmul.f32.gmra.mxu0 %v5293
    %v5311 = vpop.f32.mrf.mxu0
    %v5312 = vadd.f32 %v218, %v5311
    %5313 = vdwg.mxu0
    %5314 = vmatpush.msra.mxu0 %v591
    %5315 = vmatpush.msra.mxu0 %v587
    %5316 = vmatpush.msra.mxu0 %v583
    %5317 = vmatpush.msra.mxu0 %v579
    %5318 = vmatpush.msra.mxu0 %v575
    %5319 = vmatpush.msra.mxu0 %v571
    %5320 = vmatpush.msra.mxu0 %v567
    %5321 = vmatpush.msra.mxu0 %v563
    %5322 = vmatpush.msra.mxu0 %v559
    %5323 = vmatpush.msra.mxu0 %v555
    %5324 = vmatpush.msra.mxu0 %v551
    %5325 = vmatpush.msra.mxu0 %v547
    %5326 = vmatpush.msra.mxu0 %v543
    %5327 = vmatpush.msra.mxu0 %v539
    %5328 = vmatpush.msra.mxu0 %v535
    %5329 = vmatpush.msra.mxu0 %v531
    %5330 = vmatmul.f32.gmra.mxu0 %v4883
    %v5331 = vpop.f32.mrf.mxu0
    %v5332 = vadd.f32 %v5312, %v5331
    %5333 = vdwg.mxu0
    %5334 = vmatpush.msra.mxu0 %v528
    %5335 = vmatpush.msra.mxu0 %v524
    %5336 = vmatpush.msra.mxu0 %v520
    %5337 = vmatpush.msra.mxu0 %v516
    %5338 = vmatpush.msra.mxu0 %v512
    %5339 = vmatpush.msra.mxu0 %v508
    %5340 = vmatpush.msra.mxu0 %v504
    %5341 = vmatpush.msra.mxu0 %v500
    %5342 = vmatpush.msra.mxu0 %v496
    %5343 = vmatpush.msra.mxu0 %v492
    %5344 = vmatpush.msra.mxu0 %v488
    %5345 = vmatpush.msra.mxu0 %v484
    %5346 = vmatpush.msra.mxu0 %v480
    %5347 = vmatpush.msra.mxu0 %v476
    %5348 = vmatpush.msra.mxu0 %v472
    %5349 = vmatpush.msra.mxu0 %v468
    %5350 = vmatmul.f32.gmra.mxu0 %v5293
    %v5351 = vpop.f32.mrf.mxu0
    %v5352 = vadd.f32 %v219, %v5351
    %5353 = vdwg.mxu0
    %5354 = vmatpush.msra.mxu0 %v592
    %5355 = vmatpush.msra.mxu0 %v588
    %5356 = vmatpush.msra.mxu0 %v584
    %5357 = vmatpush.msra.mxu0 %v580
    %5358 = vmatpush.msra.mxu0 %v576
    %5359 = vmatpush.msra.mxu0 %v572
    %5360 = vmatpush.msra.mxu0 %v568
    %5361 = vmatpush.msra.mxu0 %v564
    %5362 = vmatpush.msra.mxu0 %v560
    %5363 = vmatpush.msra.mxu0 %v556
    %5364 = vmatpush.msra.mxu0 %v552
    %5365 = vmatpush.msra.mxu0 %v548
    %5366 = vmatpush.msra.mxu0 %v544
    %5367 = vmatpush.msra.mxu0 %v540
    %5368 = vmatpush.msra.mxu0 %v536
    %5369 = vmatpush.msra.mxu0 %v532
    %5370 = vmatmul.f32.gmra.mxu0 %v4883
    %v5371 = vpop.f32.mrf.mxu0
    %v5372 = vadd.f32 %v5352, %v5371
    %5373 = vdwg.mxu0
    %5374 = vmatpush.msra.mxu0 %v529
    %5375 = vmatpush.msra.mxu0 %v525
    %5376 = vmatpush.msra.mxu0 %v521
    %5377 = vmatpush.msra.mxu0 %v517
    %5378 = vmatpush.msra.mxu0 %v513
    %5379 = vmatpush.msra.mxu0 %v509
    %5380 = vmatpush.msra.mxu0 %v505
    %5381 = vmatpush.msra.mxu0 %v501
    %5382 = vmatpush.msra.mxu0 %v497
    %5383 = vmatpush.msra.mxu0 %v493
    %5384 = vmatpush.msra.mxu0 %v489
    %5385 = vmatpush.msra.mxu0 %v485
    %5386 = vmatpush.msra.mxu0 %v481
    %5387 = vmatpush.msra.mxu0 %v477
    %5388 = vmatpush.msra.mxu0 %v473
    %5389 = vmatpush.msra.mxu0 %v469
    %5390 = vmatmul.f32.gmra.mxu0 %v5293
    %v5391 = vpop.f32.mrf.mxu0
    %v5392 = vadd.f32 %v220, %v5391
    %5393 = vdwg.mxu0
    %5394 = vmatpush.msra.mxu0 %v593
    %5395 = vmatpush.msra.mxu0 %v589
    %5396 = vmatpush.msra.mxu0 %v585
    %5397 = vmatpush.msra.mxu0 %v581
    %5398 = vmatpush.msra.mxu0 %v577
    %5399 = vmatpush.msra.mxu0 %v573
    %5400 = vmatpush.msra.mxu0 %v569
    %5401 = vmatpush.msra.mxu0 %v565
    %5402 = vmatpush.msra.mxu0 %v561
    %5403 = vmatpush.msra.mxu0 %v557
    %5404 = vmatpush.msra.mxu0 %v553
    %5405 = vmatpush.msra.mxu0 %v549
    %5406 = vmatpush.msra.mxu0 %v545
    %5407 = vmatpush.msra.mxu0 %v541
    %5408 = vmatpush.msra.mxu0 %v537
    %5409 = vmatpush.msra.mxu0 %v533
    %5410 = vmatmul.f32.gmra.mxu0 %v4883
    %v5411 = vpop.f32.mrf.mxu0
    %v5412 = vadd.f32 %v5392, %v5411
    %5413 = vdwg.mxu0
    %5414 = vmatpush.msra.mxu0 %v530
    %5415 = vmatpush.msra.mxu0 %v526
    %5416 = vmatpush.msra.mxu0 %v522
    %5417 = vmatpush.msra.mxu0 %v518
    %5418 = vmatpush.msra.mxu0 %v514
    %5419 = vmatpush.msra.mxu0 %v510
    %5420 = vmatpush.msra.mxu0 %v506
    %5421 = vmatpush.msra.mxu0 %v502
    %5422 = vmatpush.msra.mxu0 %v498
    %5423 = vmatpush.msra.mxu0 %v494
    %5424 = vmatpush.msra.mxu0 %v490
    %5425 = vmatpush.msra.mxu0 %v486
    %5426 = vmatpush.msra.mxu0 %v482
    %5427 = vmatpush.msra.mxu0 %v478
    %5428 = vmatpush.msra.mxu0 %v474
    %5429 = vmatpush.msra.mxu0 %v470
    %5430 = vmatmul.f32.gmra.mxu0 %v5293
    %v5431 = vpop.f32.mrf.mxu0
    %v5432 = vadd.f32 %v221, %v5431
    %5433 = vdwg.mxu0
    %5434 = vmatpush.msra.mxu0 %v594
    %5435 = vmatpush.msra.mxu0 %v590
    %5436 = vmatpush.msra.mxu0 %v586
    %5437 = vmatpush.msra.mxu0 %v582
    %5438 = vmatpush.msra.mxu0 %v578
    %5439 = vmatpush.msra.mxu0 %v574
    %5440 = vmatpush.msra.mxu0 %v570
    %5441 = vmatpush.msra.mxu0 %v566
    %5442 = vmatpush.msra.mxu0 %v562
    %5443 = vmatpush.msra.mxu0 %v558
    %5444 = vmatpush.msra.mxu0 %v554
    %5445 = vmatpush.msra.mxu0 %v550
    %5446 = vmatpush.msra.mxu0 %v546
    %5447 = vmatpush.msra.mxu0 %v542
    %5448 = vmatpush.msra.mxu0 %v538
    %5449 = vmatpush.msra.mxu0 %v534
    %5450 = vmatmul.f32.gmra.mxu0 %v4883
    %v5451 = vpop.f32.mrf.mxu0
    %v5452 = vadd.f32 %v5432, %v5451
    %5453 = vdwg.mxu0
    %v5454 = vxor.u32 %v5332, 2147483648
    %v5455 = vxor.u32 %v5372, 2147483648
    %v5456 = vxor.u32 %v5412, 2147483648
    %v5457 = vxor.u32 %v5452, 2147483648
    %v5458 = vmul.f32 %v5454, 1.442695
    %v5459 = vpow.pop %v5458
    %v5460 = vmul.f32 %v5455, 1.442695
    %v5461 = vpow.pop %v5460
    %v5462 = vmul.f32 %v5456, 1.442695
    %v5463 = vpow.pop %v5462
    %v5464 = vmul.f32 %v5457, 1.442695
    %v5465 = vpow.pop %v5464
    %v5466 = vadd.f32 %v5459, 1.0
    %v5467 = vadd.f32 %v5461, 1.0
    %v5468 = vadd.f32 %v5463, 1.0
    %v5469 = vadd.f32 %v5465, 1.0
    %v5470 = vrcp.pop %v5466
    %v5471 = vmul.f32 %v5466, %v5470
    %v5472 = vsub.f32 1.0, %v5471
    %v5473 = vmul.f32 %v5470, %v5472
    %v5474 = vadd.f32 %v5470, %v5473
    %vm5475 = vweird.f32 %v5466
    %vm5476 = vweird.f32 %v5470
    %vm5477 = vmor %vm5475, %vm5476
    %v5478 = vsel %vm5477, %v5470, %v5474
    %v5479 = vand.u32 2147483647, %v5466
    %vm5480 = vcmp.eq.f32.partialorder %v5479, 8.507059e+37
    %v5481 = vand.u32 %v5466, 2147483648
    %v5482 = vor.u32 1.1754944e-38, %v5481
    %v5483 = vsel %vm5480, %v5482, %v5478
    %v5484 = vmul.f32 1.0, %v5483
    %v5485 = vrcp.pop %v5467
    %v5486 = vmul.f32 %v5467, %v5485
    %v5487 = vsub.f32 1.0, %v5486
    %v5488 = vmul.f32 %v5485, %v5487
    %v5489 = vadd.f32 %v5485, %v5488
    %vm5490 = vweird.f32 %v5467
    %vm5491 = vweird.f32 %v5485
    %vm5492 = vmor %vm5490, %vm5491
    %v5493 = vsel %vm5492, %v5485, %v5489
    %v5494 = vand.u32 2147483647, %v5467
    %vm5495 = vcmp.eq.f32.partialorder %v5494, 8.507059e+37
    %v5496 = vand.u32 %v5467, 2147483648
    %v5497 = vor.u32 1.1754944e-38, %v5496
    %v5498 = vsel %vm5495, %v5497, %v5493
    %v5499 = vmul.f32 1.0, %v5498
    %v5500 = vrcp.pop %v5468
    %v5501 = vmul.f32 %v5468, %v5500
    %v5502 = vsub.f32 1.0, %v5501
    %v5503 = vmul.f32 %v5500, %v5502
    %v5504 = vadd.f32 %v5500, %v5503
    %vm5505 = vweird.f32 %v5468
    %vm5506 = vweird.f32 %v5500
    %vm5507 = vmor %vm5505, %vm5506
    %v5508 = vsel %vm5507, %v5500, %v5504
    %v5509 = vand.u32 2147483647, %v5468
    %vm5510 = vcmp.eq.f32.partialorder %v5509, 8.507059e+37
    %v5511 = vand.u32 %v5468, 2147483648
    %v5512 = vor.u32 1.1754944e-38, %v5511
    %v5513 = vsel %vm5510, %v5512, %v5508
    %v5514 = vmul.f32 1.0, %v5513
    %v5515 = vrcp.pop %v5469
    %v5516 = vmul.f32 %v5469, %v5515
    %v5517 = vsub.f32 1.0, %v5516
    %v5518 = vmul.f32 %v5515, %v5517
    %v5519 = vadd.f32 %v5515, %v5518
    %vm5520 = vweird.f32 %v5469
    %vm5521 = vweird.f32 %v5515
    %vm5522 = vmor %vm5520, %vm5521
    %v5523 = vsel %vm5522, %v5515, %v5519
    %v5524 = vand.u32 2147483647, %v5469
    %vm5525 = vcmp.eq.f32.partialorder %v5524, 8.507059e+37
    %v5526 = vand.u32 %v5469, 2147483648
    %v5527 = vor.u32 1.1754944e-38, %v5526
    %v5528 = vsel %vm5525, %v5527, %v5523
    %v5529 = vmul.f32 1.0, %v5528
    %v5530 = vmul.f32 %v5514, 2.0
    %v5531 = vsub.f32 %v5530, 1.0
    %v5532 = vmul.f32 %v5499, %v4881
    %v5533 = vmul.f32 %v5484, %v5531
    %v5534 = vadd.f32 %v5532, %v5533
    %v5535 = vtanh.pop %v5534
    %v5536 = vmul.f32 %v5529, %v5535
    %5537 = vmatpush.msra.mxu0 %v898
    %5538 = vmatpush.msra.mxu0 %v894
    %5539 = vmatpush.msra.mxu0 %v890
    %5540 = vmatpush.msra.mxu0 %v886
    %5541 = vmatpush.msra.mxu0 %v882
    %5542 = vmatpush.msra.mxu0 %v878
    %5543 = vmatpush.msra.mxu0 %v874
    %5544 = vmatpush.msra.mxu0 %v870
    %5545 = vmatpush.msra.mxu0 %v866
    %5546 = vmatpush.msra.mxu0 %v862
    %5547 = vmatpush.msra.mxu0 %v858
    %5548 = vmatpush.msra.mxu0 %v854
    %5549 = vmatpush.msra.mxu0 %v850
    %5550 = vmatpush.msra.mxu0 %v846
    %5551 = vmatpush.msra.mxu0 %v842
    %5552 = vmatpush.msra.mxu0 %v838
    %5553 = vmatmul.f32.gmra.mxu0 %v5536
    %v5554 = vpop.f32.mrf.mxu0
    %v5555 = vadd.f32 %v228, %v5554
    %5556 = vdwg.mxu0
    %5557 = vmatpush.msra.mxu0 %v962
    %5558 = vmatpush.msra.mxu0 %v958
    %5559 = vmatpush.msra.mxu0 %v954
    %5560 = vmatpush.msra.mxu0 %v950
    %5561 = vmatpush.msra.mxu0 %v946
    %5562 = vmatpush.msra.mxu0 %v942
    %5563 = vmatpush.msra.mxu0 %v938
    %5564 = vmatpush.msra.mxu0 %v934
    %5565 = vmatpush.msra.mxu0 %v930
    %5566 = vmatpush.msra.mxu0 %v926
    %5567 = vmatpush.msra.mxu0 %v922
    %5568 = vmatpush.msra.mxu0 %v918
    %5569 = vmatpush.msra.mxu0 %v914
    %5570 = vmatpush.msra.mxu0 %v910
    %5571 = vmatpush.msra.mxu0 %v906
    %5572 = vmatpush.msra.mxu0 %v902
    %5573 = vmatmul.f32.gmra.mxu0 %v5126
    %v5574 = vpop.f32.mrf.mxu0
    %v5575 = vadd.f32 %v5555, %v5574
    %5576 = vdwg.mxu0
    %5577 = vmatpush.msra.mxu0 %v899
    %5578 = vmatpush.msra.mxu0 %v895
    %5579 = vmatpush.msra.mxu0 %v891
    %5580 = vmatpush.msra.mxu0 %v887
    %5581 = vmatpush.msra.mxu0 %v883
    %5582 = vmatpush.msra.mxu0 %v879
    %5583 = vmatpush.msra.mxu0 %v875
    %5584 = vmatpush.msra.mxu0 %v871
    %5585 = vmatpush.msra.mxu0 %v867
    %5586 = vmatpush.msra.mxu0 %v863
    %5587 = vmatpush.msra.mxu0 %v859
    %5588 = vmatpush.msra.mxu0 %v855
    %5589 = vmatpush.msra.mxu0 %v851
    %5590 = vmatpush.msra.mxu0 %v847
    %5591 = vmatpush.msra.mxu0 %v843
    %5592 = vmatpush.msra.mxu0 %v839
    %5593 = vmatmul.f32.gmra.mxu0 %v5536
    %v5594 = vpop.f32.mrf.mxu0
    %v5595 = vadd.f32 %v229, %v5594
    %5596 = vdwg.mxu0
    %5597 = vmatpush.msra.mxu0 %v963
    %5598 = vmatpush.msra.mxu0 %v959
    %5599 = vmatpush.msra.mxu0 %v955
    %5600 = vmatpush.msra.mxu0 %v951
    %5601 = vmatpush.msra.mxu0 %v947
    %5602 = vmatpush.msra.mxu0 %v943
    %5603 = vmatpush.msra.mxu0 %v939
    %5604 = vmatpush.msra.mxu0 %v935
    %5605 = vmatpush.msra.mxu0 %v931
    %5606 = vmatpush.msra.mxu0 %v927
    %5607 = vmatpush.msra.mxu0 %v923
    %5608 = vmatpush.msra.mxu0 %v919
    %5609 = vmatpush.msra.mxu0 %v915
    %5610 = vmatpush.msra.mxu0 %v911
    %5611 = vmatpush.msra.mxu0 %v907
    %5612 = vmatpush.msra.mxu0 %v903
    %5613 = vmatmul.f32.gmra.mxu0 %v5126
    %v5614 = vpop.f32.mrf.mxu0
    %v5615 = vadd.f32 %v5595, %v5614
    %5616 = vdwg.mxu0
    %5617 = vmatpush.msra.mxu0 %v900
    %5618 = vmatpush.msra.mxu0 %v896
    %5619 = vmatpush.msra.mxu0 %v892
    %5620 = vmatpush.msra.mxu0 %v888
    %5621 = vmatpush.msra.mxu0 %v884
    %5622 = vmatpush.msra.mxu0 %v880
    %5623 = vmatpush.msra.mxu0 %v876
    %5624 = vmatpush.msra.mxu0 %v872
    %5625 = vmatpush.msra.mxu0 %v868
    %5626 = vmatpush.msra.mxu0 %v864
    %5627 = vmatpush.msra.mxu0 %v860
    %5628 = vmatpush.msra.mxu0 %v856
    %5629 = vmatpush.msra.mxu0 %v852
    %5630 = vmatpush.msra.mxu0 %v848
    %5631 = vmatpush.msra.mxu0 %v844
    %5632 = vmatpush.msra.mxu0 %v840
    %5633 = vmatmul.f32.gmra.mxu0 %v5536
    %v5634 = vpop.f32.mrf.mxu0
    %v5635 = vadd.f32 %v230, %v5634
    %5636 = vdwg.mxu0
    %5637 = vmatpush.msra.mxu0 %v964
    %5638 = vmatpush.msra.mxu0 %v960
    %5639 = vmatpush.msra.mxu0 %v956
    %5640 = vmatpush.msra.mxu0 %v952
    %5641 = vmatpush.msra.mxu0 %v948
    %5642 = vmatpush.msra.mxu0 %v944
    %5643 = vmatpush.msra.mxu0 %v940
    %5644 = vmatpush.msra.mxu0 %v936
    %5645 = vmatpush.msra.mxu0 %v932
    %5646 = vmatpush.msra.mxu0 %v928
    %5647 = vmatpush.msra.mxu0 %v924
    %5648 = vmatpush.msra.mxu0 %v920
    %5649 = vmatpush.msra.mxu0 %v916
    %5650 = vmatpush.msra.mxu0 %v912
    %5651 = vmatpush.msra.mxu0 %v908
    %5652 = vmatpush.msra.mxu0 %v904
    %5653 = vmatmul.f32.gmra.mxu0 %v5126
    %v5654 = vpop.f32.mrf.mxu0
    %v5655 = vadd.f32 %v5635, %v5654
    %5656 = vdwg.mxu0
    %5657 = vmatpush.msra.mxu0 %v901
    %5658 = vmatpush.msra.mxu0 %v897
    %5659 = vmatpush.msra.mxu0 %v893
    %5660 = vmatpush.msra.mxu0 %v889
    %5661 = vmatpush.msra.mxu0 %v885
    %5662 = vmatpush.msra.mxu0 %v881
    %5663 = vmatpush.msra.mxu0 %v877
    %5664 = vmatpush.msra.mxu0 %v873
    %5665 = vmatpush.msra.mxu0 %v869
    %5666 = vmatpush.msra.mxu0 %v865
    %5667 = vmatpush.msra.mxu0 %v861
    %5668 = vmatpush.msra.mxu0 %v857
    %5669 = vmatpush.msra.mxu0 %v853
    %5670 = vmatpush.msra.mxu0 %v849
    %5671 = vmatpush.msra.mxu0 %v845
    %5672 = vmatpush.msra.mxu0 %v841
    %5673 = vmatmul.f32.gmra.mxu0 %v5536
    %v5674 = vpop.f32.mrf.mxu0
    %v5675 = vadd.f32 %v231, %v5674
    %5676 = vdwg.mxu0
    %5677 = vmatpush.msra.mxu0 %v965
    %5678 = vmatpush.msra.mxu0 %v961
    %5679 = vmatpush.msra.mxu0 %v957
    %5680 = vmatpush.msra.mxu0 %v953
    %5681 = vmatpush.msra.mxu0 %v949
    %5682 = vmatpush.msra.mxu0 %v945
    %5683 = vmatpush.msra.mxu0 %v941
    %5684 = vmatpush.msra.mxu0 %v937
    %5685 = vmatpush.msra.mxu0 %v933
    %5686 = vmatpush.msra.mxu0 %v929
    %5687 = vmatpush.msra.mxu0 %v925
    %5688 = vmatpush.msra.mxu0 %v921
    %5689 = vmatpush.msra.mxu0 %v917
    %5690 = vmatpush.msra.mxu0 %v913
    %5691 = vmatpush.msra.mxu0 %v909
    %5692 = vmatpush.msra.mxu0 %v905
    %5693 = vmatmul.f32.gmra.mxu0 %v5126
    %v5694 = vpop.f32.mrf.mxu0
    %v5695 = vadd.f32 %v5675, %v5694
    %5696 = vdwg.mxu0
    %v5697 = vxor.u32 %v5575, 2147483648
    %v5698 = vxor.u32 %v5615, 2147483648
    %v5699 = vxor.u32 %v5655, 2147483648
    %v5700 = vxor.u32 %v5695, 2147483648
    %v5701 = vmul.f32 %v5697, 1.442695
    %v5702 = vpow.pop %v5701
    %v5703 = vmul.f32 %v5698, 1.442695
    %v5704 = vpow.pop %v5703
    %v5705 = vmul.f32 %v5699, 1.442695
    %v5706 = vpow.pop %v5705
    %v5707 = vmul.f32 %v5700, 1.442695
    %v5708 = vpow.pop %v5707
    %v5709 = vadd.f32 %v5702, 1.0
    %v5710 = vadd.f32 %v5704, 1.0
    %v5711 = vadd.f32 %v5706, 1.0
    %v5712 = vadd.f32 %v5708, 1.0
    %v5713 = vrcp.pop %v5709
    %v5714 = vmul.f32 %v5709, %v5713
    %v5715 = vsub.f32 1.0, %v5714
    %v5716 = vmul.f32 %v5713, %v5715
    %v5717 = vadd.f32 %v5713, %v5716
    %vm5718 = vweird.f32 %v5709
    %vm5719 = vweird.f32 %v5713
    %vm5720 = vmor %vm5718, %vm5719
    %v5721 = vsel %vm5720, %v5713, %v5717
    %v5722 = vand.u32 2147483647, %v5709
    %vm5723 = vcmp.eq.f32.partialorder %v5722, 8.507059e+37
    %v5724 = vand.u32 %v5709, 2147483648
    %v5725 = vor.u32 1.1754944e-38, %v5724
    %v5726 = vsel %vm5723, %v5725, %v5721
    %v5727 = vmul.f32 1.0, %v5726
    %v5728 = vrcp.pop %v5710
    %v5729 = vmul.f32 %v5710, %v5728
    %v5730 = vsub.f32 1.0, %v5729
    %v5731 = vmul.f32 %v5728, %v5730
    %v5732 = vadd.f32 %v5728, %v5731
    %vm5733 = vweird.f32 %v5710
    %vm5734 = vweird.f32 %v5728
    %vm5735 = vmor %vm5733, %vm5734
    %v5736 = vsel %vm5735, %v5728, %v5732
    %v5737 = vand.u32 2147483647, %v5710
    %vm5738 = vcmp.eq.f32.partialorder %v5737, 8.507059e+37
    %v5739 = vand.u32 %v5710, 2147483648
    %v5740 = vor.u32 1.1754944e-38, %v5739
    %v5741 = vsel %vm5738, %v5740, %v5736
    %v5742 = vmul.f32 1.0, %v5741
    %v5743 = vrcp.pop %v5711
    %v5744 = vmul.f32 %v5711, %v5743
    %v5745 = vsub.f32 1.0, %v5744
    %v5746 = vmul.f32 %v5743, %v5745
    %v5747 = vadd.f32 %v5743, %v5746
    %vm5748 = vweird.f32 %v5711
    %vm5749 = vweird.f32 %v5743
    %vm5750 = vmor %vm5748, %vm5749
    %v5751 = vsel %vm5750, %v5743, %v5747
    %v5752 = vand.u32 2147483647, %v5711
    %vm5753 = vcmp.eq.f32.partialorder %v5752, 8.507059e+37
    %v5754 = vand.u32 %v5711, 2147483648
    %v5755 = vor.u32 1.1754944e-38, %v5754
    %v5756 = vsel %vm5753, %v5755, %v5751
    %v5757 = vmul.f32 1.0, %v5756
    %v5758 = vrcp.pop %v5712
    %v5759 = vmul.f32 %v5712, %v5758
    %v5760 = vsub.f32 1.0, %v5759
    %v5761 = vmul.f32 %v5758, %v5760
    %v5762 = vadd.f32 %v5758, %v5761
    %vm5763 = vweird.f32 %v5712
    %vm5764 = vweird.f32 %v5758
    %vm5765 = vmor %vm5763, %vm5764
    %v5766 = vsel %vm5765, %v5758, %v5762
    %v5767 = vand.u32 2147483647, %v5712
    %vm5768 = vcmp.eq.f32.partialorder %v5767, 8.507059e+37
    %v5769 = vand.u32 %v5712, 2147483648
    %v5770 = vor.u32 1.1754944e-38, %v5769
    %v5771 = vsel %vm5768, %v5770, %v5766
    %v5772 = vmul.f32 1.0, %v5771
    %v5773 = vmul.f32 %v5757, 2.0
    %v5774 = vsub.f32 %v5773, 1.0
    %v5775 = vmul.f32 %v5742, %v5124
    %v5776 = vmul.f32 %v5727, %v5774
    %v5777 = vadd.f32 %v5775, %v5776
    %v5778 = vtanh.pop %v5777
    %v5779 = vmul.f32 %v5772, %v5778
    %v5780 = vld [vmem:[%s8] sm:$0x1]
    %v5782 = vperm.slane %v5780, 0
    %v5784 = vmul.f32 %v5779, %v5782
    %5785 = vadd.xlane.f32.xlu0 %v5784
    %v5786 = vpop.xlane.xlu0 %5785
    %v5787 = vld [vmem:[#allocation2] sm:$0x1]
    %v5789 = vperm.slane %v5787, 0
    %v5791 = vadd.f32 %v5786, %v5789
    %vm5792 = vcmask 7168
    %5793 = vst.msk [vmem:[%s10] sm:$0xff] %vm5792, %v5791
    // Predicated region
    $region54: #{tpu_custom_call.1} parent=1 // pred_check
      _
    $region55: #{tpu_custom_call.1} parent=1 // pred_check_branch
      %5795 = sbr.rel (0) target = $region57
    $region56: #{tpu_custom_call.1} parent=1 // pred_region
      _
    $region57: #{tpu_custom_call.1} parent=1 // pred_fallthru
      _
    // Predicated region
    $region58: #{tpu_custom_call.1} parent=1 // pred_check
      _
    $region59: #{tpu_custom_call.1} parent=1 // pred_check_branch
      %5797 = sbr.rel (0) target = $region61
    $region60: #{tpu_custom_call.1} parent=1 // pred_region
      _
    $region61: #{tpu_custom_call.1} parent=1 // pred_fallthru
      _
    %5798 = vsyncpa [#allocation4], 1
    %5799 = vsyncpa [#allocation6], 1

</llo_original>
